<compile_context>
chip_gen: v7x
topology: tpu7x:2x2x1
jax: 0.10.0
libtpu: 0.0.40
codegen_flags: <defaults>
</compile_context>

<pallas_src>
import functools

import jax
import jax.numpy as jnp
from jax import lax
from jax.experimental import pallas as pl
from jax.experimental.pallas import tpu as pltpu


# ---------------------------------------------------------------------------
# Fused conv-as-matmul kernel:
#   out = [relu]( (A @ B) * scale + bias [+ residual] )
# A: im2col patches (M, K), B: reshaped conv weights (K, N), scale/bias: BN.
# ---------------------------------------------------------------------------

_TM = 128
_TN = 128
_TK = 128
_BN_EPS = 1e-5


def _epilogue(acc, scale, bias, res, apply_relu, out_dtype):
    out = acc * scale + bias
    if res is not None:
        out = out + res
    if apply_relu:
        out = jnp.maximum(out, 0.0)
    return out.astype(out_dtype)


def _matmul_bn_kernel(a_ref, b_ref, s_ref, bi_ref, o_ref, acc_ref, *, apply_relu):
    k = pl.program_id(2)

    @pl.when(k == 0)
    def _():
        acc_ref[...] = jnp.zeros_like(acc_ref)

    acc_ref[...] += jnp.dot(a_ref[...], b_ref[...],
                            preferred_element_type=jnp.float32)

    @pl.when(k == pl.num_programs(2) - 1)
    def _():
        o_ref[...] = _epilogue(acc_ref[...], s_ref[...], bi_ref[...], None,
                               apply_relu, o_ref.dtype)


def _matmul_bn_res_kernel(a_ref, b_ref, s_ref, bi_ref, r_ref, o_ref, acc_ref,
                          *, apply_relu):
    k = pl.program_id(2)

    @pl.when(k == 0)
    def _():
        acc_ref[...] = jnp.zeros_like(acc_ref)

    acc_ref[...] += jnp.dot(a_ref[...], b_ref[...],
                            preferred_element_type=jnp.float32)

    @pl.when(k == pl.num_programs(2) - 1)
    def _():
        o_ref[...] = _epilogue(acc_ref[...], s_ref[...], bi_ref[...],
                               r_ref[...].astype(jnp.float32),
                               apply_relu, o_ref.dtype)


def _round_up(x, m):
    return (x + m - 1) // m * m


def _fused_matmul_bn(a, b, scale, bias, *, relu, residual=None):
    """Tiled Pallas matmul with fused BN affine / residual add / ReLU."""
    m, kdim = a.shape
    _, ncol = b.shape
    mp, kp, np_ = _round_up(m, _TM), _round_up(kdim, _TK), _round_up(ncol, _TN)

    a_p = jnp.pad(a, ((0, mp - m), (0, kp - kdim)))
    b_p = jnp.pad(b, ((0, kp - kdim), (0, np_ - ncol)))
    s_p = jnp.pad(scale.reshape(1, -1), ((0, 0), (0, np_ - ncol)))
    bi_p = jnp.pad(bias.reshape(1, -1), ((0, 0), (0, np_ - ncol)))

    inputs = [a_p, b_p, s_p, bi_p]
    in_specs = [
        pl.BlockSpec((_TM, _TK), lambda i, j, k: (i, k)),
        pl.BlockSpec((_TK, _TN), lambda i, j, k: (k, j)),
        pl.BlockSpec((1, _TN), lambda i, j, k: (0, j)),
        pl.BlockSpec((1, _TN), lambda i, j, k: (0, j)),
    ]
    if residual is not None:
        r_p = jnp.pad(residual, ((0, mp - m), (0, np_ - ncol)))
        inputs.append(r_p)
        in_specs.append(pl.BlockSpec((_TM, _TN), lambda i, j, k: (i, j)))
        kernel = functools.partial(_matmul_bn_res_kernel, apply_relu=relu)
    else:
        kernel = functools.partial(_matmul_bn_kernel, apply_relu=relu)

    out = pl.pallas_call(
        kernel,
        out_shape=jax.ShapeDtypeStruct((mp, np_), a.dtype),
        grid_spec=pltpu.PrefetchScalarGridSpec(
            num_scalar_prefetch=0,
            grid=(mp // _TM, np_ // _TN, kp // _TK),
            in_specs=in_specs,
            out_specs=pl.BlockSpec((_TM, _TN), lambda i, j, k: (i, j)),
            scratch_shapes=[pltpu.VMEM((_TM, _TN), jnp.float32)],
        ),
        compiler_params=pltpu.CompilerParams(
            dimension_semantics=("parallel", "parallel", "arbitrary"),
            vmem_limit_bytes=32 * 1024 * 1024,
        ),
    )(*inputs)
    return out[:m, :ncol]


# ---------------------------------------------------------------------------
# Conv (NHWC) = im2col + fused Pallas matmul.
# ---------------------------------------------------------------------------

def _im2col(x, ksize, stride, padding):
    """x: (N,H,W,C) -> patches (N*Ho*Wo, ksize*ksize*C), plus (N,Ho,Wo)."""
    n, h, w, c = x.shape
    if padding:
        x = jnp.pad(x, ((0, 0), (padding, padding), (padding, padding), (0, 0)))
    hp, wp = h + 2 * padding, w + 2 * padding
    ho = (hp - ksize) // stride + 1
    wo = (wp - ksize) // stride + 1
    cols = []
    for kh in range(ksize):
        for kw in range(ksize):
            cols.append(
                x[:, kh:kh + (ho - 1) * stride + 1:stride,
                     kw:kw + (wo - 1) * stride + 1:stride, :])
    patches = jnp.concatenate(cols, axis=-1)          # (N, Ho, Wo, k*k*C)
    return patches.reshape(n * ho * wo, ksize * ksize * c), (n, ho, wo)


def _conv_bn_act(x, w, scale, bias, *, stride, padding, relu, residual=None):
    """Conv (NHWC acts, OIHW weights, no bias) + folded BN [+residual] [+ReLU]."""
    cout, cin, ksize, _ = w.shape
    patches, (n, ho, wo) = _im2col(x, ksize, stride, padding)
    # Contraction index order of the patches is (kh, kw, cin).
    w_mat = jnp.transpose(w, (2, 3, 1, 0)).reshape(ksize * ksize * cin, cout)
    res2d = None if residual is None else residual.reshape(n * ho * wo, cout)
    out2d = _fused_matmul_bn(patches, w_mat, scale, bias, relu=relu,
                             residual=res2d)
    return out2d.reshape(n, ho, wo, cout)


# ---------------------------------------------------------------------------
# Decoder head kernel: global avg pool + Linear(9) + ReLU + Linear + softmax.
# ---------------------------------------------------------------------------

def _head_kernel(x_ref, w1_ref, b1_ref, w2_ref, b2_ref, o_ref):
    pooled = jnp.mean(x_ref[...], axis=1)                       # (N, C)
    h = jnp.dot(pooled, w1_ref[...], preferred_element_type=jnp.float32)
    h = jnp.maximum(h + b1_ref[...], 0.0)
    logits = jnp.dot(h, w2_ref[...], preferred_element_type=jnp.float32)
    logits = logits + b2_ref[...]
    logits = logits - jnp.max(logits, axis=-1, keepdims=True)
    e = jnp.exp(logits)
    o_ref[...] = (e / jnp.sum(e, axis=-1, keepdims=True)).astype(o_ref.dtype)


def _decoder_head(x_nhwc, w1, b1, w2, b2):
    n, h, w, c = x_nhwc.shape
    x3 = x_nhwc.reshape(n, h * w, c)
    n_classes = w2.shape[1]
    return pl.pallas_call(
        _head_kernel,
        out_shape=jax.ShapeDtypeStruct((n, n_classes), x_nhwc.dtype),
        in_specs=[
            pl.BlockSpec(x3.shape, lambda: (0, 0, 0)),
            pl.BlockSpec(w1.shape, lambda: (0, 0)),
            pl.BlockSpec((1, w1.shape[1]), lambda: (0, 0)),
            pl.BlockSpec(w2.shape, lambda: (0, 0)),
            pl.BlockSpec((1, n_classes), lambda: (0, 0)),
        ],
        out_specs=pl.BlockSpec((n, n_classes), lambda: (0, 0)),
    )(x3, w1, b1.reshape(1, -1), w2, b2.reshape(1, -1))


# ---------------------------------------------------------------------------
# Parameter construction mirroring the PyTorch module structure.
# ---------------------------------------------------------------------------

def _init_conv(key, cin, cout, ksize):
    fan_in = cin * ksize * ksize
    return (jax.random.normal(key, (cout, cin, ksize, ksize), jnp.float32)
            * (2.0 / fan_in) ** 0.5)


def _init_bn(key, c):
    k1, k2 = jax.random.split(key)
    gamma = 1.0 + 0.1 * jax.random.normal(k1, (c,), jnp.float32)
    beta = 0.1 * jax.random.normal(k2, (c,), jnp.float32)
    running_mean = jnp.zeros((c,), jnp.float32)
    running_var = jnp.ones((c,), jnp.float32)
    scale = gamma / jnp.sqrt(running_var + _BN_EPS)
    bias = beta - running_mean * scale
    return scale, bias


class ResNetPallas:
    """JAX/Pallas forward-pass equivalent of the PyTorch ResNet module."""

    GATE_SIZE = 64
    EXPANSION = 1   # ResNetBasicBlock.expansion

    def __init__(self, in_channels, n_classes, blocks_sizes=(8, 16, 32, 64),
                 deepths=(2, 1, 1, 1), key=None):
        key = jax.random.PRNGKey(0) if key is None else key
        keys = iter(jax.random.split(key, 128))

        params = {
            "gate": {
                "w": _init_conv(next(keys), in_channels, self.GATE_SIZE, 7),
                "bn": _init_bn(next(keys), self.GATE_SIZE),
            }
        }

        def make_block(in_c, out_c, ds):
            expanded = out_c * self.EXPANSION
            blk = {
                "downsampling": ds,
                "conv1_w": _init_conv(next(keys), in_c, out_c, 3),
                "bn1": _init_bn(next(keys), out_c),
                "conv2_w": _init_conv(next(keys), out_c, expanded, 3),
                "bn2": _init_bn(next(keys), expanded),
                "shortcut": None,
            }
            if in_c != expanded:                      # should_apply_shortcut
                blk["shortcut"] = {
                    "w": _init_conv(next(keys), in_c, expanded, 1),
                    "bn": _init_bn(next(keys), expanded),
                }
            return blk

        def make_layer(in_c, out_c, n):
            ds = 2 if in_c != out_c else 1
            blocks = [make_block(in_c, out_c, ds)]
            for _ in range(n - 1):
                blocks.append(make_block(out_c * self.EXPANSION, out_c, 1))
            return blocks

        layers = [make_layer(self.GATE_SIZE, blocks_sizes[0], deepths[0])]
        for (in_c, out_c), n in zip(zip(blocks_sizes, blocks_sizes[1:]),
                                    deepths[1:]):
            layers.append(make_layer(in_c * self.EXPANSION, out_c, n))
        params["layers"] = layers

        pre_decoder_dim = blocks_sizes[-1] * self.EXPANSION
        k1, k2 = next(keys), next(keys)
        params["head"] = {
            "w1": jax.random.normal(k1, (pre_decoder_dim, 9), jnp.float32)
                  * (2.0 / pre_decoder_dim) ** 0.5,
            "b1": jnp.zeros((9,), jnp.float32),
            "w2": jax.random.normal(k2, (9, n_classes), jnp.float32)
                  * (2.0 / 9.0) ** 0.5,
            "b2": jnp.zeros((n_classes,), jnp.float32),
        }
        self.params = params
        self.n_classes = n_classes

    # ----- Pallas forward --------------------------------------------------
    def _block_forward(self, blk, x):
        ds = blk["downsampling"]
        if blk["shortcut"] is not None:
            sc = blk["shortcut"]
            residual = _conv_bn_act(x, sc["w"], *sc["bn"], stride=ds,
                                    padding=0, relu=False)
        else:
            residual = x
        h = _conv_bn_act(x, blk["conv1_w"], *blk["bn1"], stride=ds,
                         padding=1, relu=True)
        # Residual add fused into the producing conv's epilogue.
        return _conv_bn_act(h, blk["conv2_w"], *blk["bn2"], stride=1,
                            padding=1, relu=False, residual=residual)

    def forward(self, x_nchw):
        # PyTorch is NCHW; compute in lane-dense NHWC (channels on lanes).
        x = jnp.transpose(x_nchw, (0, 2, 3, 1))
        g = self.params["gate"]
        x = _conv_bn_act(x, g["w"], *g["bn"], stride=2, padding=3, relu=True)
        for layer in self.params["layers"]:
            for blk in layer:
                x = self._block_forward(blk, x)
        hd = self.params["head"]
        return _decoder_head(x, hd["w1"], hd["b1"], hd["w2"], hd["b2"])

    __call__ = forward

    # ----- Pure-JAX reference (correctness check) ---------------------------
    def reference_forward(self, x_nchw):
        def conv(x, w, stride, padding):
            return lax.conv_general_dilated(
                x, w, window_strides=(stride, stride),
                padding=[(padding, padding), (padding, padding)],
                dimension_numbers=("NHWC", "OIHW", "NHWC"),
                precision=lax.Precision.HIGHEST)

        def cba(x, w, bn, stride, padding, relu):
            y = conv(x, w, stride, padding) * bn[0] + bn[1]
            return jnp.maximum(y, 0.0) if relu else y

        x = jnp.transpose(x_nchw, (0, 2, 3, 1))
        g = self.params["gate"]
        x = cba(x, g["w"], g["bn"], 2, 3, True)
        for layer in self.params["layers"]:
            for blk in layer:
                ds = blk["downsampling"]
                if blk["shortcut"] is not None:
                    sc = blk["shortcut"]
                    res = cba(x, sc["w"], sc["bn"], ds, 0, False)
                else:
                    res = x
                h = cba(x, blk["conv1_w"], blk["bn1"], ds, 1, True)
                x = cba(h, blk["conv2_w"], blk["bn2"], 1, 1, False) + res
        pooled = jnp.mean(x, axis=(1, 2))
        hd = self.params["head"]
        hid = jnp.maximum(
            jnp.dot(pooled, hd["w1"], precision=lax.Precision.HIGHEST) + hd["b1"],
            0.0)
        logits = jnp.dot(hid, hd["w2"], precision=lax.Precision.HIGHEST) + hd["b2"]
        return jax.nn.softmax(logits, axis=-1)


if __name__ == "__main__":
    root = jax.random.PRNGKey(0)
    k_x, k_model = jax.random.split(root)

    N, C, H, W = 2, 4, 16, 16
    n_classes = 5
    x = jax.random.normal(k_x, (N, C, H, W), dtype=jnp.float32)

    model = ResNetPallas(in_channels=C, n_classes=n_classes,
                         blocks_sizes=(8, 16, 32, 64), deepths=(2, 1, 1, 1),
                         key=k_model)

    out = jax.block_until_ready(jax.jit(model.forward)(x))
    ref = jax.block_until_ready(jax.jit(model.reference_forward)(x))

    assert out.shape == (N, n_classes), out.shape
    assert bool(jnp.all(jnp.isfinite(out)))
    assert bool(jnp.allclose(jnp.sum(out, axis=-1), 1.0, atol=1e-3))
    assert bool(jnp.allclose(out, ref, atol=2e-2)), (out, ref)

    print("KERNEL_OK")
</pallas_src>

<mosaic_0001>
module attributes {stable_mosaic.version = 11 : i64} {
  func.func @_matmul_bn_kernel(%arg0: i32, %arg1: i32, %arg2: i32, %arg3: memref<128x128xf32, #tpu.memory_space<vmem>>, %arg4: memref<128x128xf32, #tpu.memory_space<vmem>>, %arg5: memref<1x128xf32, #tpu.memory_space<vmem>>, %arg6: memref<1x128xf32, #tpu.memory_space<vmem>>, %arg7: memref<128x128xf32, #tpu.memory_space<vmem>>, %arg8: memref<128x128xf32, #tpu.memory_space<vmem>>) attributes {dimension_semantics = [#tpu.dimension_semantics<parallel>, #tpu.dimension_semantics<parallel>, #tpu.dimension_semantics<arbitrary>], iteration_bounds = array<i64: 1, 1, 2>, scalar_prefetch = 0 : i64, scratch_operands = 1 : i64, tpu.core_type = #tpu.core_type<tc>, window_params = [{transform_indices = @transform_0, window_bounds = array<i64: 128, 128>}, {transform_indices = @transform_1, window_bounds = array<i64: 128, 128>}, {transform_indices = @transform_2, window_bounds = array<i64: 1, 128>}, {transform_indices = @transform_3, window_bounds = array<i64: 1, 128>}, {transform_indices = @transform_4, window_bounds = array<i64: 128, 128>}]} {
    %c0_i32 = arith.constant 0 : i32
    %0 = arith.cmpi eq, %arg2, %c0_i32 : i32
    %1 = arith.extui %0 : i1 to i32
    %c0_i32_0 = arith.constant 0 : i32
    %2 = arith.cmpi ne, %1, %c0_i32_0 : i32
    scf.if %2 {
      %cst_9 = arith.constant 0.000000e+00 : f32
      %12 = vector.broadcast %cst_9 : f32 to vector<128x128xf32>
      %c0_10 = arith.constant 0 : index
      %c0_11 = arith.constant 0 : index
      %13 = vector.load %arg8[%c0_10, %c0_11] : memref<128x128xf32, #tpu.memory_space<vmem>>, vector<128x128xf32>
      tpu.vector_store %arg8[%c0_10, %c0_11], %12 {strides = array<i32>} : memref<128x128xf32, #tpu.memory_space<vmem>>, vector<128x128xf32>,
    } else {
    }
    %c0 = arith.constant 0 : index
    %c0_1 = arith.constant 0 : index
    %3 = vector.load %arg8[%c0, %c0_1] : memref<128x128xf32, #tpu.memory_space<vmem>>, vector<128x128xf32>
    %c0_2 = arith.constant 0 : index
    %c0_3 = arith.constant 0 : index
    %4 = vector.load %arg3[%c0_2, %c0_3] : memref<128x128xf32, #tpu.memory_space<vmem>>, vector<128x128xf32>
    %c0_4 = arith.constant 0 : index
    %c0_5 = arith.constant 0 : index
    %5 = vector.load %arg4[%c0_4, %c0_5] : memref<128x128xf32, #tpu.memory_space<vmem>>, vector<128x128xf32>
    %cst = arith.constant dense<0.000000e+00> : vector<128x128xf32>
    %6 = tpu.matmul %4, %5, %cst {dimension_numbers = #tpu.dot_dimension_numbers<[1], [0], [0], [1], [0, 0, 1, 1], [], []>} : vector<128x128xf32>, vector<128x128xf32>, vector<128x128xf32> -> vector<128x128xf32>
    %7 = arith.addf %3, %6 : vector<128x128xf32>
    %c0_6 = arith.constant 0 : index
    %c0_7 = arith.constant 0 : index
    %8 = vector.load %arg8[%c0_6, %c0_7] : memref<128x128xf32, #tpu.memory_space<vmem>>, vector<128x128xf32>
    tpu.vector_store %arg8[%c0_6, %c0_7], %7 {strides = array<i32>} : memref<128x128xf32, #tpu.memory_space<vmem>>, vector<128x128xf32>,
    %c1_i32 = arith.constant 1 : i32
    %9 = arith.cmpi eq, %arg2, %c1_i32 : i32
    %10 = arith.extui %9 : i1 to i32
    %c0_i32_8 = arith.constant 0 : i32
    %11 = arith.cmpi ne, %10, %c0_i32_8 : i32
    scf.if %11 {
      %c0_9 = arith.constant 0 : index
      %c0_10 = arith.constant 0 : index
      %12 = vector.load %arg8[%c0_9, %c0_10] : memref<128x128xf32, #tpu.memory_space<vmem>>, vector<128x128xf32>
      %c0_11 = arith.constant 0 : index
      %c0_12 = arith.constant 0 : index
      %13 = vector.load %arg5[%c0_11, %c0_12] : memref<1x128xf32, #tpu.memory_space<vmem>>, vector<1x128xf32>
      %c0_13 = arith.constant 0 : index
      %c0_14 = arith.constant 0 : index
      %14 = vector.load %arg6[%c0_13, %c0_14] : memref<1x128xf32, #tpu.memory_space<vmem>>, vector<1x128xf32>
      %15 = vector.broadcast %13 : vector<1x128xf32> to vector<128x128xf32>
      %16 = arith.mulf %12, %15 : vector<128x128xf32>
      %17 = vector.broadcast %14 : vector<1x128xf32> to vector<128x128xf32>
      %18 = arith.addf %16, %17 : vector<128x128xf32>
      %cst_15 = arith.constant 0.000000e+00 : f32
      %19 = vector.broadcast %cst_15 : f32 to vector<128x128xf32>
      %20 = arith.maximumf %18, %19 : vector<128x128xf32>
      %c0_16 = arith.constant 0 : index
      %c0_17 = arith.constant 0 : index
      %21 = vector.load %arg7[%c0_16, %c0_17] : memref<128x128xf32, #tpu.memory_space<vmem>>, vector<128x128xf32>
      tpu.vector_store %arg7[%c0_16, %c0_17], %20 {strides = array<i32>} : memref<128x128xf32, #tpu.memory_space<vmem>>, vector<128x128xf32>,
    } else {
    }
    return
  }
  func.func @transform_0(%arg0: i32, %arg1: i32, %arg2: i32) -> (i32, i32) {
    %c0_i32 = arith.constant 0 : i32
    return %arg0, %arg2 : i32, i32
  }
  func.func @transform_1(%arg0: i32, %arg1: i32, %arg2: i32) -> (i32, i32) {
    %c0_i32 = arith.constant 0 : i32
    return %arg2, %arg1 : i32, i32
  }
  func.func @transform_2(%arg0: i32, %arg1: i32, %arg2: i32) -> (i32, i32) {
    %c0_i32 = arith.constant 0 : i32
    %c0_i32_0 = arith.constant 0 : i32
    return %c0_i32, %arg1 : i32, i32
  }
  func.func @transform_3(%arg0: i32, %arg1: i32, %arg2: i32) -> (i32, i32) {
    %c0_i32 = arith.constant 0 : i32
    %c0_i32_0 = arith.constant 0 : i32
    return %c0_i32, %arg1 : i32, i32
  }
  func.func @transform_4(%arg0: i32, %arg1: i32, %arg2: i32) -> (i32, i32) {
    %c0_i32 = arith.constant 0 : i32
    return %arg0, %arg1 : i32, i32
  }
}

module attributes {stable_mosaic.version = 11 : i64} {
  func.func @_matmul_bn_kernel(%arg0: i32, %arg1: i32, %arg2: i32, %arg3: memref<128x128xf32, #tpu.memory_space<vmem>>, %arg4: memref<128x128xf32, #tpu.memory_space<vmem>>, %arg5: memref<1x128xf32, #tpu.memory_space<vmem>>, %arg6: memref<1x128xf32, #tpu.memory_space<vmem>>, %arg7: memref<128x128xf32, #tpu.memory_space<vmem>>, %arg8: memref<128x128xf32, #tpu.memory_space<vmem>>) attributes {dimension_semantics = [#tpu.dimension_semantics<parallel>, #tpu.dimension_semantics<parallel>, #tpu.dimension_semantics<arbitrary>], iteration_bounds = array<i64: 1, 1, 5>, scalar_prefetch = 0 : i64, scratch_operands = 1 : i64, tpu.core_type = #tpu.core_type<tc>, window_params = [{transform_indices = @transform_0, window_bounds = array<i64: 128, 128>}, {transform_indices = @transform_1, window_bounds = array<i64: 128, 128>}, {transform_indices = @transform_2, window_bounds = array<i64: 1, 128>}, {transform_indices = @transform_3, window_bounds = array<i64: 1, 128>}, {transform_indices = @transform_4, window_bounds = array<i64: 128, 128>}]} {
    %c0_i32 = arith.constant 0 : i32
    %0 = arith.cmpi eq, %arg2, %c0_i32 : i32
    %1 = arith.extui %0 : i1 to i32
    %c0_i32_0 = arith.constant 0 : i32
    %2 = arith.cmpi ne, %1, %c0_i32_0 : i32
    scf.if %2 {
      %cst_9 = arith.constant 0.000000e+00 : f32
      %12 = vector.broadcast %cst_9 : f32 to vector<128x128xf32>
      %c0_10 = arith.constant 0 : index
      %c0_11 = arith.constant 0 : index
      %13 = vector.load %arg8[%c0_10, %c0_11] : memref<128x128xf32, #tpu.memory_space<vmem>>, vector<128x128xf32>
      tpu.vector_store %arg8[%c0_10, %c0_11], %12 {strides = array<i32>} : memref<128x128xf32, #tpu.memory_space<vmem>>, vector<128x128xf32>,
    } else {
    }
    %c0 = arith.constant 0 : index
    %c0_1 = arith.constant 0 : index
    %3 = vector.load %arg8[%c0, %c0_1] : memref<128x128xf32, #tpu.memory_space<vmem>>, vector<128x128xf32>
    %c0_2 = arith.constant 0 : index
    %c0_3 = arith.constant 0 : index
    %4 = vector.load %arg3[%c0_2, %c0_3] : memref<128x128xf32, #tpu.memory_space<vmem>>, vector<128x128xf32>
    %c0_4 = arith.constant 0 : index
    %c0_5 = arith.constant 0 : index
    %5 = vector.load %arg4[%c0_4, %c0_5] : memref<128x128xf32, #tpu.memory_space<vmem>>, vector<128x128xf32>
    %cst = arith.constant dense<0.000000e+00> : vector<128x128xf32>
    %6 = tpu.matmul %4, %5, %cst {dimension_numbers = #tpu.dot_dimension_numbers<[1], [0], [0], [1], [0, 0, 1, 1], [], []>} : vector<128x128xf32>, vector<128x128xf32>, vector<128x128xf32> -> vector<128x128xf32>
    %7 = arith.addf %3, %6 : vector<128x128xf32>
    %c0_6 = arith.constant 0 : index
    %c0_7 = arith.constant 0 : index
    %8 = vector.load %arg8[%c0_6, %c0_7] : memref<128x128xf32, #tpu.memory_space<vmem>>, vector<128x128xf32>
    tpu.vector_store %arg8[%c0_6, %c0_7], %7 {strides = array<i32>} : memref<128x128xf32, #tpu.memory_space<vmem>>, vector<128x128xf32>,
    %c4_i32 = arith.constant 4 : i32
    %9 = arith.cmpi eq, %arg2, %c4_i32 : i32
    %10 = arith.extui %9 : i1 to i32
    %c0_i32_8 = arith.constant 0 : i32
    %11 = arith.cmpi ne, %10, %c0_i32_8 : i32
    scf.if %11 {
      %c0_9 = arith.constant 0 : index
      %c0_10 = arith.constant 0 : index
      %12 = vector.load %arg8[%c0_9, %c0_10] : memref<128x128xf32, #tpu.memory_space<vmem>>, vector<128x128xf32>
      %c0_11 = arith.constant 0 : index
      %c0_12 = arith.constant 0 : index
      %13 = vector.load %arg5[%c0_11, %c0_12] : memref<1x128xf32, #tpu.memory_space<vmem>>, vector<1x128xf32>
      %c0_13 = arith.constant 0 : index
      %c0_14 = arith.constant 0 : index
      %14 = vector.load %arg6[%c0_13, %c0_14] : memref<1x128xf32, #tpu.memory_space<vmem>>, vector<1x128xf32>
      %15 = vector.broadcast %13 : vector<1x128xf32> to vector<128x128xf32>
      %16 = arith.mulf %12, %15 : vector<128x128xf32>
      %17 = vector.broadcast %14 : vector<1x128xf32> to vector<128x128xf32>
      %18 = arith.addf %16, %17 : vector<128x128xf32>
      %cst_15 = arith.constant 0.000000e+00 : f32
      %19 = vector.broadcast %cst_15 : f32 to vector<128x128xf32>
      %20 = arith.maximumf %18, %19 : vector<128x128xf32>
      %c0_16 = arith.constant 0 : index
      %c0_17 = arith.constant 0 : index
      %21 = vector.load %arg7[%c0_16, %c0_17] : memref<128x128xf32, #tpu.memory_space<vmem>>, vector<128x128xf32>
      tpu.vector_store %arg7[%c0_16, %c0_17], %20 {strides = array<i32>} : memref<128x128xf32, #tpu.memory_space<vmem>>, vector<128x128xf32>,
    } else {
    }
    return
  }
  func.func @transform_0(%arg0: i32, %arg1: i32, %arg2: i32) -> (i32, i32) {
    %c0_i32 = arith.constant 0 : i32
    return %arg0, %arg2 : i32, i32
  }
  func.func @transform_1(%arg0: i32, %arg1: i32, %arg2: i32) -> (i32, i32) {
    %c0_i32 = arith.constant 0 : i32
    return %arg2, %arg1 : i32, i32
  }
  func.func @transform_2(%arg0: i32, %arg1: i32, %arg2: i32) -> (i32, i32) {
    %c0_i32 = arith.constant 0 : i32
    %c0_i32_0 = arith.constant 0 : i32
    return %c0_i32, %arg1 : i32, i32
  }
  func.func @transform_3(%arg0: i32, %arg1: i32, %arg2: i32) -> (i32, i32) {
    %c0_i32 = arith.constant 0 : i32
    %c0_i32_0 = arith.constant 0 : i32
    return %c0_i32, %arg1 : i32, i32
  }
  func.func @transform_4(%arg0: i32, %arg1: i32, %arg2: i32) -> (i32, i32) {
    %c0_i32 = arith.constant 0 : i32
    return %arg0, %arg1 : i32, i32
  }
}

module attributes {stable_mosaic.version = 11 : i64} {
  func.func @_matmul_bn_kernel(%arg0: i32, %arg1: i32, %arg2: i32, %arg3: memref<128x128xf32, #tpu.memory_space<vmem>>, %arg4: memref<128x128xf32, #tpu.memory_space<vmem>>, %arg5: memref<1x128xf32, #tpu.memory_space<vmem>>, %arg6: memref<1x128xf32, #tpu.memory_space<vmem>>, %arg7: memref<128x128xf32, #tpu.memory_space<vmem>>, %arg8: memref<128x128xf32, #tpu.memory_space<vmem>>) attributes {dimension_semantics = [#tpu.dimension_semantics<parallel>, #tpu.dimension_semantics<parallel>, #tpu.dimension_semantics<arbitrary>], iteration_bounds = array<i64: 1, 1, 1>, scalar_prefetch = 0 : i64, scratch_operands = 1 : i64, tpu.core_type = #tpu.core_type<tc>, window_params = [{transform_indices = @transform_0, window_bounds = array<i64: 128, 128>}, {transform_indices = @transform_1, window_bounds = array<i64: 128, 128>}, {transform_indices = @transform_2, window_bounds = array<i64: 1, 128>}, {transform_indices = @transform_3, window_bounds = array<i64: 1, 128>}, {transform_indices = @transform_4, window_bounds = array<i64: 128, 128>}]} {
    %c0_i32 = arith.constant 0 : i32
    %0 = arith.cmpi eq, %arg2, %c0_i32 : i32
    %1 = arith.extui %0 : i1 to i32
    %c0_i32_0 = arith.constant 0 : i32
    %2 = arith.cmpi ne, %1, %c0_i32_0 : i32
    scf.if %2 {
      %cst_10 = arith.constant 0.000000e+00 : f32
      %12 = vector.broadcast %cst_10 : f32 to vector<128x128xf32>
      %c0_11 = arith.constant 0 : index
      %c0_12 = arith.constant 0 : index
      %13 = vector.load %arg8[%c0_11, %c0_12] : memref<128x128xf32, #tpu.memory_space<vmem>>, vector<128x128xf32>
      tpu.vector_store %arg8[%c0_11, %c0_12], %12 {strides = array<i32>} : memref<128x128xf32, #tpu.memory_space<vmem>>, vector<128x128xf32>,
    } else {
    }
    %c0 = arith.constant 0 : index
    %c0_1 = arith.constant 0 : index
    %3 = vector.load %arg8[%c0, %c0_1] : memref<128x128xf32, #tpu.memory_space<vmem>>, vector<128x128xf32>
    %c0_2 = arith.constant 0 : index
    %c0_3 = arith.constant 0 : index
    %4 = vector.load %arg3[%c0_2, %c0_3] : memref<128x128xf32, #tpu.memory_space<vmem>>, vector<128x128xf32>
    %c0_4 = arith.constant 0 : index
    %c0_5 = arith.constant 0 : index
    %5 = vector.load %arg4[%c0_4, %c0_5] : memref<128x128xf32, #tpu.memory_space<vmem>>, vector<128x128xf32>
    %cst = arith.constant dense<0.000000e+00> : vector<128x128xf32>
    %6 = tpu.matmul %4, %5, %cst {dimension_numbers = #tpu.dot_dimension_numbers<[1], [0], [0], [1], [0, 0, 1, 1], [], []>} : vector<128x128xf32>, vector<128x128xf32>, vector<128x128xf32> -> vector<128x128xf32>
    %7 = arith.addf %3, %6 : vector<128x128xf32>
    %c0_6 = arith.constant 0 : index
    %c0_7 = arith.constant 0 : index
    %8 = vector.load %arg8[%c0_6, %c0_7] : memref<128x128xf32, #tpu.memory_space<vmem>>, vector<128x128xf32>
    tpu.vector_store %arg8[%c0_6, %c0_7], %7 {strides = array<i32>} : memref<128x128xf32, #tpu.memory_space<vmem>>, vector<128x128xf32>,
    %c0_i32_8 = arith.constant 0 : i32
    %9 = arith.cmpi eq, %arg2, %c0_i32_8 : i32
    %10 = arith.extui %9 : i1 to i32
    %c0_i32_9 = arith.constant 0 : i32
    %11 = arith.cmpi ne, %10, %c0_i32_9 : i32
    scf.if %11 {
      %c0_10 = arith.constant 0 : index
      %c0_11 = arith.constant 0 : index
      %12 = vector.load %arg8[%c0_10, %c0_11] : memref<128x128xf32, #tpu.memory_space<vmem>>, vector<128x128xf32>
      %c0_12 = arith.constant 0 : index
      %c0_13 = arith.constant 0 : index
      %13 = vector.load %arg5[%c0_12, %c0_13] : memref<1x128xf32, #tpu.memory_space<vmem>>, vector<1x128xf32>
      %c0_14 = arith.constant 0 : index
      %c0_15 = arith.constant 0 : index
      %14 = vector.load %arg6[%c0_14, %c0_15] : memref<1x128xf32, #tpu.memory_space<vmem>>, vector<1x128xf32>
      %15 = vector.broadcast %13 : vector<1x128xf32> to vector<128x128xf32>
      %16 = arith.mulf %12, %15 : vector<128x128xf32>
      %17 = vector.broadcast %14 : vector<1x128xf32> to vector<128x128xf32>
      %18 = arith.addf %16, %17 : vector<128x128xf32>
      %c0_16 = arith.constant 0 : index
      %c0_17 = arith.constant 0 : index
      %19 = vector.load %arg7[%c0_16, %c0_17] : memref<128x128xf32, #tpu.memory_space<vmem>>, vector<128x128xf32>
      tpu.vector_store %arg7[%c0_16, %c0_17], %18 {strides = array<i32>} : memref<128x128xf32, #tpu.memory_space<vmem>>, vector<128x128xf32>,
    } else {
    }
    return
  }
  func.func @transform_0(%arg0: i32, %arg1: i32, %arg2: i32) -> (i32, i32) {
    %c0_i32 = arith.constant 0 : i32
    return %arg0, %arg2 : i32, i32
  }
  func.func @transform_1(%arg0: i32, %arg1: i32, %arg2: i32) -> (i32, i32) {
    %c0_i32 = arith.constant 0 : i32
    return %arg2, %arg1 : i32, i32
  }
  func.func @transform_2(%arg0: i32, %arg1: i32, %arg2: i32) -> (i32, i32) {
    %c0_i32 = arith.constant 0 : i32
    %c0_i32_0 = arith.constant 0 : i32
    return %c0_i32, %arg1 : i32, i32
  }
  func.func @transform_3(%arg0: i32, %arg1: i32, %arg2: i32) -> (i32, i32) {
    %c0_i32 = arith.constant 0 : i32
    %c0_i32_0 = arith.constant 0 : i32
    return %c0_i32, %arg1 : i32, i32
  }
  func.func @transform_4(%arg0: i32, %arg1: i32, %arg2: i32) -> (i32, i32) {
    %c0_i32 = arith.constant 0 : i32
    return %arg0, %arg1 : i32, i32
  }
}

module attributes {stable_mosaic.version = 11 : i64} {
  func.func @_matmul_bn_res_kernel(%arg0: i32, %arg1: i32, %arg2: i32, %arg3: memref<128x128xf32, #tpu.memory_space<vmem>>, %arg4: memref<128x128xf32, #tpu.memory_space<vmem>>, %arg5: memref<1x128xf32, #tpu.memory_space<vmem>>, %arg6: memref<1x128xf32, #tpu.memory_space<vmem>>, %arg7: memref<128x128xf32, #tpu.memory_space<vmem>>, %arg8: memref<128x128xf32, #tpu.memory_space<vmem>>, %arg9: memref<128x128xf32, #tpu.memory_space<vmem>>) attributes {dimension_semantics = [#tpu.dimension_semantics<parallel>, #tpu.dimension_semantics<parallel>, #tpu.dimension_semantics<arbitrary>], iteration_bounds = array<i64: 1, 1, 1>, scalar_prefetch = 0 : i64, scratch_operands = 1 : i64, tpu.core_type = #tpu.core_type<tc>, window_params = [{transform_indices = @transform_0, window_bounds = array<i64: 128, 128>}, {transform_indices = @transform_1, window_bounds = array<i64: 128, 128>}, {transform_indices = @transform_2, window_bounds = array<i64: 1, 128>}, {transform_indices = @transform_3, window_bounds = array<i64: 1, 128>}, {transform_indices = @transform_4, window_bounds = array<i64: 128, 128>}, {transform_indices = @transform_5, window_bounds = array<i64: 128, 128>}]} {
    %c0_i32 = arith.constant 0 : i32
    %0 = arith.cmpi eq, %arg2, %c0_i32 : i32
    %1 = arith.extui %0 : i1 to i32
    %c0_i32_0 = arith.constant 0 : i32
    %2 = arith.cmpi ne, %1, %c0_i32_0 : i32
    scf.if %2 {
      %cst_10 = arith.constant 0.000000e+00 : f32
      %12 = vector.broadcast %cst_10 : f32 to vector<128x128xf32>
      %c0_11 = arith.constant 0 : index
      %c0_12 = arith.constant 0 : index
      %13 = vector.load %arg9[%c0_11, %c0_12] : memref<128x128xf32, #tpu.memory_space<vmem>>, vector<128x128xf32>
      tpu.vector_store %arg9[%c0_11, %c0_12], %12 {strides = array<i32>} : memref<128x128xf32, #tpu.memory_space<vmem>>, vector<128x128xf32>,
    } else {
    }
    %c0 = arith.constant 0 : index
    %c0_1 = arith.constant 0 : index
    %3 = vector.load %arg9[%c0, %c0_1] : memref<128x128xf32, #tpu.memory_space<vmem>>, vector<128x128xf32>
    %c0_2 = arith.constant 0 : index
    %c0_3 = arith.constant 0 : index
    %4 = vector.load %arg3[%c0_2, %c0_3] : memref<128x128xf32, #tpu.memory_space<vmem>>, vector<128x128xf32>
    %c0_4 = arith.constant 0 : index
    %c0_5 = arith.constant 0 : index
    %5 = vector.load %arg4[%c0_4, %c0_5] : memref<128x128xf32, #tpu.memory_space<vmem>>, vector<128x128xf32>
    %cst = arith.constant dense<0.000000e+00> : vector<128x128xf32>
    %6 = tpu.matmul %4, %5, %cst {dimension_numbers = #tpu.dot_dimension_numbers<[1], [0], [0], [1], [0, 0, 1, 1], [], []>} : vector<128x128xf32>, vector<128x128xf32>, vector<128x128xf32> -> vector<128x128xf32>
    %7 = arith.addf %3, %6 : vector<128x128xf32>
    %c0_6 = arith.constant 0 : index
    %c0_7 = arith.constant 0 : index
    %8 = vector.load %arg9[%c0_6, %c0_7] : memref<128x128xf32, #tpu.memory_space<vmem>>, vector<128x128xf32>
    tpu.vector_store %arg9[%c0_6, %c0_7], %7 {strides = array<i32>} : memref<128x128xf32, #tpu.memory_space<vmem>>, vector<128x128xf32>,
    %c0_i32_8 = arith.constant 0 : i32
    %9 = arith.cmpi eq, %arg2, %c0_i32_8 : i32
    %10 = arith.extui %9 : i1 to i32
    %c0_i32_9 = arith.constant 0 : i32
    %11 = arith.cmpi ne, %10, %c0_i32_9 : i32
    scf.if %11 {
      %c0_10 = arith.constant 0 : index
      %c0_11 = arith.constant 0 : index
      %12 = vector.load %arg9[%c0_10, %c0_11] : memref<128x128xf32, #tpu.memory_space<vmem>>, vector<128x128xf32>
      %c0_12 = arith.constant 0 : index
      %c0_13 = arith.constant 0 : index
      %13 = vector.load %arg5[%c0_12, %c0_13] : memref<1x128xf32, #tpu.memory_space<vmem>>, vector<1x128xf32>
      %c0_14 = arith.constant 0 : index
      %c0_15 = arith.constant 0 : index
      %14 = vector.load %arg6[%c0_14, %c0_15] : memref<1x128xf32, #tpu.memory_space<vmem>>, vector<1x128xf32>
      %c0_16 = arith.constant 0 : index
      %c0_17 = arith.constant 0 : index
      %15 = vector.load %arg7[%c0_16, %c0_17] : memref<128x128xf32, #tpu.memory_space<vmem>>, vector<128x128xf32>
      %16 = vector.broadcast %13 : vector<1x128xf32> to vector<128x128xf32>
      %17 = arith.mulf %12, %16 : vector<128x128xf32>
      %18 = vector.broadcast %14 : vector<1x128xf32> to vector<128x128xf32>
      %19 = arith.addf %17, %18 : vector<128x128xf32>
      %20 = arith.addf %19, %15 : vector<128x128xf32>
      %c0_18 = arith.constant 0 : index
      %c0_19 = arith.constant 0 : index
      %21 = vector.load %arg8[%c0_18, %c0_19] : memref<128x128xf32, #tpu.memory_space<vmem>>, vector<128x128xf32>
      tpu.vector_store %arg8[%c0_18, %c0_19], %20 {strides = array<i32>} : memref<128x128xf32, #tpu.memory_space<vmem>>, vector<128x128xf32>,
    } else {
    }
    return
  }
  func.func @transform_0(%arg0: i32, %arg1: i32, %arg2: i32) -> (i32, i32) {
    %c0_i32 = arith.constant 0 : i32
    return %arg0, %arg2 : i32, i32
  }
  func.func @transform_1(%arg0: i32, %arg1: i32, %arg2: i32) -> (i32, i32) {
    %c0_i32 = arith.constant 0 : i32
    return %arg2, %arg1 : i32, i32
  }
  func.func @transform_2(%arg0: i32, %arg1: i32, %arg2: i32) -> (i32, i32) {
    %c0_i32 = arith.constant 0 : i32
    %c0_i32_0 = arith.constant 0 : i32
    return %c0_i32, %arg1 : i32, i32
  }
  func.func @transform_3(%arg0: i32, %arg1: i32, %arg2: i32) -> (i32, i32) {
    %c0_i32 = arith.constant 0 : i32
    %c0_i32_0 = arith.constant 0 : i32
    return %c0_i32, %arg1 : i32, i32
  }
  func.func @transform_4(%arg0: i32, %arg1: i32, %arg2: i32) -> (i32, i32) {
    %c0_i32 = arith.constant 0 : i32
    return %arg0, %arg1 : i32, i32
  }
  func.func @transform_5(%arg0: i32, %arg1: i32, %arg2: i32) -> (i32, i32) {
    %c0_i32 = arith.constant 0 : i32
    return %arg0, %arg1 : i32, i32
  }
}

module attributes {stable_mosaic.version = 11 : i64} {
  func.func @_matmul_bn_kernel(%arg0: i32, %arg1: i32, %arg2: i32, %arg3: memref<128x128xf32, #tpu.memory_space<vmem>>, %arg4: memref<128x128xf32, #tpu.memory_space<vmem>>, %arg5: memref<1x128xf32, #tpu.memory_space<vmem>>, %arg6: memref<1x128xf32, #tpu.memory_space<vmem>>, %arg7: memref<128x128xf32, #tpu.memory_space<vmem>>, %arg8: memref<128x128xf32, #tpu.memory_space<vmem>>) attributes {dimension_semantics = [#tpu.dimension_semantics<parallel>, #tpu.dimension_semantics<parallel>, #tpu.dimension_semantics<arbitrary>], iteration_bounds = array<i64: 1, 1, 1>, scalar_prefetch = 0 : i64, scratch_operands = 1 : i64, tpu.core_type = #tpu.core_type<tc>, window_params = [{transform_indices = @transform_0, window_bounds = array<i64: 128, 128>}, {transform_indices = @transform_1, window_bounds = array<i64: 128, 128>}, {transform_indices = @transform_2, window_bounds = array<i64: 1, 128>}, {transform_indices = @transform_3, window_bounds = array<i64: 1, 128>}, {transform_indices = @transform_4, window_bounds = array<i64: 128, 128>}]} {
    %c0_i32 = arith.constant 0 : i32
    %0 = arith.cmpi eq, %arg2, %c0_i32 : i32
    %1 = arith.extui %0 : i1 to i32
    %c0_i32_0 = arith.constant 0 : i32
    %2 = arith.cmpi ne, %1, %c0_i32_0 : i32
    scf.if %2 {
      %cst_10 = arith.constant 0.000000e+00 : f32
      %12 = vector.broadcast %cst_10 : f32 to vector<128x128xf32>
      %c0_11 = arith.constant 0 : index
      %c0_12 = arith.constant 0 : index
      %13 = vector.load %arg8[%c0_11, %c0_12] : memref<128x128xf32, #tpu.memory_space<vmem>>, vector<128x128xf32>
      tpu.vector_store %arg8[%c0_11, %c0_12], %12 {strides = array<i32>} : memref<128x128xf32, #tpu.memory_space<vmem>>, vector<128x128xf32>,
    } else {
    }
    %c0 = arith.constant 0 : index
    %c0_1 = arith.constant 0 : index
    %3 = vector.load %arg8[%c0, %c0_1] : memref<128x128xf32, #tpu.memory_space<vmem>>, vector<128x128xf32>
    %c0_2 = arith.constant 0 : index
    %c0_3 = arith.constant 0 : index
    %4 = vector.load %arg3[%c0_2, %c0_3] : memref<128x128xf32, #tpu.memory_space<vmem>>, vector<128x128xf32>
    %c0_4 = arith.constant 0 : index
    %c0_5 = arith.constant 0 : index
    %5 = vector.load %arg4[%c0_4, %c0_5] : memref<128x128xf32, #tpu.memory_space<vmem>>, vector<128x128xf32>
    %cst = arith.constant dense<0.000000e+00> : vector<128x128xf32>
    %6 = tpu.matmul %4, %5, %cst {dimension_numbers = #tpu.dot_dimension_numbers<[1], [0], [0], [1], [0, 0, 1, 1], [], []>} : vector<128x128xf32>, vector<128x128xf32>, vector<128x128xf32> -> vector<128x128xf32>
    %7 = arith.addf %3, %6 : vector<128x128xf32>
    %c0_6 = arith.constant 0 : index
    %c0_7 = arith.constant 0 : index
    %8 = vector.load %arg8[%c0_6, %c0_7] : memref<128x128xf32, #tpu.memory_space<vmem>>, vector<128x128xf32>
    tpu.vector_store %arg8[%c0_6, %c0_7], %7 {strides = array<i32>} : memref<128x128xf32, #tpu.memory_space<vmem>>, vector<128x128xf32>,
    %c0_i32_8 = arith.constant 0 : i32
    %9 = arith.cmpi eq, %arg2, %c0_i32_8 : i32
    %10 = arith.extui %9 : i1 to i32
    %c0_i32_9 = arith.constant 0 : i32
    %11 = arith.cmpi ne, %10, %c0_i32_9 : i32
    scf.if %11 {
      %c0_10 = arith.constant 0 : index
      %c0_11 = arith.constant 0 : index
      %12 = vector.load %arg8[%c0_10, %c0_11] : memref<128x128xf32, #tpu.memory_space<vmem>>, vector<128x128xf32>
      %c0_12 = arith.constant 0 : index
      %c0_13 = arith.constant 0 : index
      %13 = vector.load %arg5[%c0_12, %c0_13] : memref<1x128xf32, #tpu.memory_space<vmem>>, vector<1x128xf32>
      %c0_14 = arith.constant 0 : index
      %c0_15 = arith.constant 0 : index
      %14 = vector.load %arg6[%c0_14, %c0_15] : memref<1x128xf32, #tpu.memory_space<vmem>>, vector<1x128xf32>
      %15 = vector.broadcast %13 : vector<1x128xf32> to vector<128x128xf32>
      %16 = arith.mulf %12, %15 : vector<128x128xf32>
      %17 = vector.broadcast %14 : vector<1x128xf32> to vector<128x128xf32>
      %18 = arith.addf %16, %17 : vector<128x128xf32>
      %cst_16 = arith.constant 0.000000e+00 : f32
      %19 = vector.broadcast %cst_16 : f32 to vector<128x128xf32>
      %20 = arith.maximumf %18, %19 : vector<128x128xf32>
      %c0_17 = arith.constant 0 : index
      %c0_18 = arith.constant 0 : index
      %21 = vector.load %arg7[%c0_17, %c0_18] : memref<128x128xf32, #tpu.memory_space<vmem>>, vector<128x128xf32>
      tpu.vector_store %arg7[%c0_17, %c0_18], %20 {strides = array<i32>} : memref<128x128xf32, #tpu.memory_space<vmem>>, vector<128x128xf32>,
    } else {
    }
    return
  }
  func.func @transform_0(%arg0: i32, %arg1: i32, %arg2: i32) -> (i32, i32) {
    %c0_i32 = arith.constant 0 : i32
    return %arg0, %arg2 : i32, i32
  }
  func.func @transform_1(%arg0: i32, %arg1: i32, %arg2: i32) -> (i32, i32) {
    %c0_i32 = arith.constant 0 : i32
    return %arg2, %arg1 : i32, i32
  }
  func.func @transform_2(%arg0: i32, %arg1: i32, %arg2: i32) -> (i32, i32) {
    %c0_i32 = arith.constant 0 : i32
    %c0_i32_0 = arith.constant 0 : i32
    return %c0_i32, %arg1 : i32, i32
  }
  func.func @transform_3(%arg0: i32, %arg1: i32, %arg2: i32) -> (i32, i32) {
    %c0_i32 = arith.constant 0 : i32
    %c0_i32_0 = arith.constant 0 : i32
    return %c0_i32, %arg1 : i32, i32
  }
  func.func @transform_4(%arg0: i32, %arg1: i32, %arg2: i32) -> (i32, i32) {
    %c0_i32 = arith.constant 0 : i32
    return %arg0, %arg1 : i32, i32
  }
}

module attributes {stable_mosaic.version = 11 : i64} {
  func.func @_matmul_bn_res_kernel(%arg0: i32, %arg1: i32, %arg2: i32, %arg3: memref<128x128xf32, #tpu.memory_space<vmem>>, %arg4: memref<128x128xf32, #tpu.memory_space<vmem>>, %arg5: memref<1x128xf32, #tpu.memory_space<vmem>>, %arg6: memref<1x128xf32, #tpu.memory_space<vmem>>, %arg7: memref<128x128xf32, #tpu.memory_space<vmem>>, %arg8: memref<128x128xf32, #tpu.memory_space<vmem>>, %arg9: memref<128x128xf32, #tpu.memory_space<vmem>>) attributes {dimension_semantics = [#tpu.dimension_semantics<parallel>, #tpu.dimension_semantics<parallel>, #tpu.dimension_semantics<arbitrary>], iteration_bounds = array<i64: 1, 1, 2>, scalar_prefetch = 0 : i64, scratch_operands = 1 : i64, tpu.core_type = #tpu.core_type<tc>, window_params = [{transform_indices = @transform_0, window_bounds = array<i64: 128, 128>}, {transform_indices = @transform_1, window_bounds = array<i64: 128, 128>}, {transform_indices = @transform_2, window_bounds = array<i64: 1, 128>}, {transform_indices = @transform_3, window_bounds = array<i64: 1, 128>}, {transform_indices = @transform_4, window_bounds = array<i64: 128, 128>}, {transform_indices = @transform_5, window_bounds = array<i64: 128, 128>}]} {
    %c0_i32 = arith.constant 0 : i32
    %0 = arith.cmpi eq, %arg2, %c0_i32 : i32
    %1 = arith.extui %0 : i1 to i32
    %c0_i32_0 = arith.constant 0 : i32
    %2 = arith.cmpi ne, %1, %c0_i32_0 : i32
    scf.if %2 {
      %cst_9 = arith.constant 0.000000e+00 : f32
      %12 = vector.broadcast %cst_9 : f32 to vector<128x128xf32>
      %c0_10 = arith.constant 0 : index
      %c0_11 = arith.constant 0 : index
      %13 = vector.load %arg9[%c0_10, %c0_11] : memref<128x128xf32, #tpu.memory_space<vmem>>, vector<128x128xf32>
      tpu.vector_store %arg9[%c0_10, %c0_11], %12 {strides = array<i32>} : memref<128x128xf32, #tpu.memory_space<vmem>>, vector<128x128xf32>,
    } else {
    }
    %c0 = arith.constant 0 : index
    %c0_1 = arith.constant 0 : index
    %3 = vector.load %arg9[%c0, %c0_1] : memref<128x128xf32, #tpu.memory_space<vmem>>, vector<128x128xf32>
    %c0_2 = arith.constant 0 : index
    %c0_3 = arith.constant 0 : index
    %4 = vector.load %arg3[%c0_2, %c0_3] : memref<128x128xf32, #tpu.memory_space<vmem>>, vector<128x128xf32>
    %c0_4 = arith.constant 0 : index
    %c0_5 = arith.constant 0 : index
    %5 = vector.load %arg4[%c0_4, %c0_5] : memref<128x128xf32, #tpu.memory_space<vmem>>, vector<128x128xf32>
    %cst = arith.constant dense<0.000000e+00> : vector<128x128xf32>
    %6 = tpu.matmul %4, %5, %cst {dimension_numbers = #tpu.dot_dimension_numbers<[1], [0], [0], [1], [0, 0, 1, 1], [], []>} : vector<128x128xf32>, vector<128x128xf32>, vector<128x128xf32> -> vector<128x128xf32>
    %7 = arith.addf %3, %6 : vector<128x128xf32>
    %c0_6 = arith.constant 0 : index
    %c0_7 = arith.constant 0 : index
    %8 = vector.load %arg9[%c0_6, %c0_7] : memref<128x128xf32, #tpu.memory_space<vmem>>, vector<128x128xf32>
    tpu.vector_store %arg9[%c0_6, %c0_7], %7 {strides = array<i32>} : memref<128x128xf32, #tpu.memory_space<vmem>>, vector<128x128xf32>,
    %c1_i32 = arith.constant 1 : i32
    %9 = arith.cmpi eq, %arg2, %c1_i32 : i32
    %10 = arith.extui %9 : i1 to i32
    %c0_i32_8 = arith.constant 0 : i32
    %11 = arith.cmpi ne, %10, %c0_i32_8 : i32
    scf.if %11 {
      %c0_9 = arith.constant 0 : index
      %c0_10 = arith.constant 0 : index
      %12 = vector.load %arg9[%c0_9, %c0_10] : memref<128x128xf32, #tpu.memory_space<vmem>>, vector<128x128xf32>
      %c0_11 = arith.constant 0 : index
      %c0_12 = arith.constant 0 : index
      %13 = vector.load %arg5[%c0_11, %c0_12] : memref<1x128xf32, #tpu.memory_space<vmem>>, vector<1x128xf32>
      %c0_13 = arith.constant 0 : index
      %c0_14 = arith.constant 0 : index
      %14 = vector.load %arg6[%c0_13, %c0_14] : memref<1x128xf32, #tpu.memory_space<vmem>>, vector<1x128xf32>
      %c0_15 = arith.constant 0 : index
      %c0_16 = arith.constant 0 : index
      %15 = vector.load %arg7[%c0_15, %c0_16] : memref<128x128xf32, #tpu.memory_space<vmem>>, vector<128x128xf32>
      %16 = vector.broadcast %13 : vector<1x128xf32> to vector<128x128xf32>
      %17 = arith.mulf %12, %16 : vector<128x128xf32>
      %18 = vector.broadcast %14 : vector<1x128xf32> to vector<128x128xf32>
      %19 = arith.addf %17, %18 : vector<128x128xf32>
      %20 = arith.addf %19, %15 : vector<128x128xf32>
      %c0_17 = arith.constant 0 : index
      %c0_18 = arith.constant 0 : index
      %21 = vector.load %arg8[%c0_17, %c0_18] : memref<128x128xf32, #tpu.memory_space<vmem>>, vector<128x128xf32>
      tpu.vector_store %arg8[%c0_17, %c0_18], %20 {strides = array<i32>} : memref<128x128xf32, #tpu.memory_space<vmem>>, vector<128x128xf32>,
    } else {
    }
    return
  }
  func.func @transform_0(%arg0: i32, %arg1: i32, %arg2: i32) -> (i32, i32) {
    %c0_i32 = arith.constant 0 : i32
    return %arg0, %arg2 : i32, i32
  }
  func.func @transform_1(%arg0: i32, %arg1: i32, %arg2: i32) -> (i32, i32) {
    %c0_i32 = arith.constant 0 : i32
    return %arg2, %arg1 : i32, i32
  }
  func.func @transform_2(%arg0: i32, %arg1: i32, %arg2: i32) -> (i32, i32) {
    %c0_i32 = arith.constant 0 : i32
    %c0_i32_0 = arith.constant 0 : i32
    return %c0_i32, %arg1 : i32, i32
  }
  func.func @transform_3(%arg0: i32, %arg1: i32, %arg2: i32) -> (i32, i32) {
    %c0_i32 = arith.constant 0 : i32
    %c0_i32_0 = arith.constant 0 : i32
    return %c0_i32, %arg1 : i32, i32
  }
  func.func @transform_4(%arg0: i32, %arg1: i32, %arg2: i32) -> (i32, i32) {
    %c0_i32 = arith.constant 0 : i32
    return %arg0, %arg1 : i32, i32
  }
  func.func @transform_5(%arg0: i32, %arg1: i32, %arg2: i32) -> (i32, i32) {
    %c0_i32 = arith.constant 0 : i32
    return %arg0, %arg1 : i32, i32
  }
}

module attributes {stable_mosaic.version = 11 : i64} {
  func.func @_matmul_bn_kernel(%arg0: i32, %arg1: i32, %arg2: i32, %arg3: memref<128x128xf32, #tpu.memory_space<vmem>>, %arg4: memref<128x128xf32, #tpu.memory_space<vmem>>, %arg5: memref<1x128xf32, #tpu.memory_space<vmem>>, %arg6: memref<1x128xf32, #tpu.memory_space<vmem>>, %arg7: memref<128x128xf32, #tpu.memory_space<vmem>>, %arg8: memref<128x128xf32, #tpu.memory_space<vmem>>) attributes {dimension_semantics = [#tpu.dimension_semantics<parallel>, #tpu.dimension_semantics<parallel>, #tpu.dimension_semantics<arbitrary>], iteration_bounds = array<i64: 1, 1, 3>, scalar_prefetch = 0 : i64, scratch_operands = 1 : i64, tpu.core_type = #tpu.core_type<tc>, window_params = [{transform_indices = @transform_0, window_bounds = array<i64: 128, 128>}, {transform_indices = @transform_1, window_bounds = array<i64: 128, 128>}, {transform_indices = @transform_2, window_bounds = array<i64: 1, 128>}, {transform_indices = @transform_3, window_bounds = array<i64: 1, 128>}, {transform_indices = @transform_4, window_bounds = array<i64: 128, 128>}]} {
    %c0_i32 = arith.constant 0 : i32
    %0 = arith.cmpi eq, %arg2, %c0_i32 : i32
    %1 = arith.extui %0 : i1 to i32
    %c0_i32_0 = arith.constant 0 : i32
    %2 = arith.cmpi ne, %1, %c0_i32_0 : i32
    scf.if %2 {
      %cst_9 = arith.constant 0.000000e+00 : f32
      %12 = vector.broadcast %cst_9 : f32 to vector<128x128xf32>
      %c0_10 = arith.constant 0 : index
      %c0_11 = arith.constant 0 : index
      %13 = vector.load %arg8[%c0_10, %c0_11] : memref<128x128xf32, #tpu.memory_space<vmem>>, vector<128x128xf32>
      tpu.vector_store %arg8[%c0_10, %c0_11], %12 {strides = array<i32>} : memref<128x128xf32, #tpu.memory_space<vmem>>, vector<128x128xf32>,
    } else {
    }
    %c0 = arith.constant 0 : index
    %c0_1 = arith.constant 0 : index
    %3 = vector.load %arg8[%c0, %c0_1] : memref<128x128xf32, #tpu.memory_space<vmem>>, vector<128x128xf32>
    %c0_2 = arith.constant 0 : index
    %c0_3 = arith.constant 0 : index
    %4 = vector.load %arg3[%c0_2, %c0_3] : memref<128x128xf32, #tpu.memory_space<vmem>>, vector<128x128xf32>
    %c0_4 = arith.constant 0 : index
    %c0_5 = arith.constant 0 : index
    %5 = vector.load %arg4[%c0_4, %c0_5] : memref<128x128xf32, #tpu.memory_space<vmem>>, vector<128x128xf32>
    %cst = arith.constant dense<0.000000e+00> : vector<128x128xf32>
    %6 = tpu.matmul %4, %5, %cst {dimension_numbers = #tpu.dot_dimension_numbers<[1], [0], [0], [1], [0, 0, 1, 1], [], []>} : vector<128x128xf32>, vector<128x128xf32>, vector<128x128xf32> -> vector<128x128xf32>
    %7 = arith.addf %3, %6 : vector<128x128xf32>
    %c0_6 = arith.constant 0 : index
    %c0_7 = arith.constant 0 : index
    %8 = vector.load %arg8[%c0_6, %c0_7] : memref<128x128xf32, #tpu.memory_space<vmem>>, vector<128x128xf32>
    tpu.vector_store %arg8[%c0_6, %c0_7], %7 {strides = array<i32>} : memref<128x128xf32, #tpu.memory_space<vmem>>, vector<128x128xf32>,
    %c2_i32 = arith.constant 2 : i32
    %9 = arith.cmpi eq, %arg2, %c2_i32 : i32
    %10 = arith.extui %9 : i1 to i32
    %c0_i32_8 = arith.constant 0 : i32
    %11 = arith.cmpi ne, %10, %c0_i32_8 : i32
    scf.if %11 {
      %c0_9 = arith.constant 0 : index
      %c0_10 = arith.constant 0 : index
      %12 = vector.load %arg8[%c0_9, %c0_10] : memref<128x128xf32, #tpu.memory_space<vmem>>, vector<128x128xf32>
      %c0_11 = arith.constant 0 : index
      %c0_12 = arith.constant 0 : index
      %13 = vector.load %arg5[%c0_11, %c0_12] : memref<1x128xf32, #tpu.memory_space<vmem>>, vector<1x128xf32>
      %c0_13 = arith.constant 0 : index
      %c0_14 = arith.constant 0 : index
      %14 = vector.load %arg6[%c0_13, %c0_14] : memref<1x128xf32, #tpu.memory_space<vmem>>, vector<1x128xf32>
      %15 = vector.broadcast %13 : vector<1x128xf32> to vector<128x128xf32>
      %16 = arith.mulf %12, %15 : vector<128x128xf32>
      %17 = vector.broadcast %14 : vector<1x128xf32> to vector<128x128xf32>
      %18 = arith.addf %16, %17 : vector<128x128xf32>
      %cst_15 = arith.constant 0.000000e+00 : f32
      %19 = vector.broadcast %cst_15 : f32 to vector<128x128xf32>
      %20 = arith.maximumf %18, %19 : vector<128x128xf32>
      %c0_16 = arith.constant 0 : index
      %c0_17 = arith.constant 0 : index
      %21 = vector.load %arg7[%c0_16, %c0_17] : memref<128x128xf32, #tpu.memory_space<vmem>>, vector<128x128xf32>
      tpu.vector_store %arg7[%c0_16, %c0_17], %20 {strides = array<i32>} : memref<128x128xf32, #tpu.memory_space<vmem>>, vector<128x128xf32>,
    } else {
    }
    return
  }
  func.func @transform_0(%arg0: i32, %arg1: i32, %arg2: i32) -> (i32, i32) {
    %c0_i32 = arith.constant 0 : i32
    return %arg0, %arg2 : i32, i32
  }
  func.func @transform_1(%arg0: i32, %arg1: i32, %arg2: i32) -> (i32, i32) {
    %c0_i32 = arith.constant 0 : i32
    return %arg2, %arg1 : i32, i32
  }
  func.func @transform_2(%arg0: i32, %arg1: i32, %arg2: i32) -> (i32, i32) {
    %c0_i32 = arith.constant 0 : i32
    %c0_i32_0 = arith.constant 0 : i32
    return %c0_i32, %arg1 : i32, i32
  }
  func.func @transform_3(%arg0: i32, %arg1: i32, %arg2: i32) -> (i32, i32) {
    %c0_i32 = arith.constant 0 : i32
    %c0_i32_0 = arith.constant 0 : i32
    return %c0_i32, %arg1 : i32, i32
  }
  func.func @transform_4(%arg0: i32, %arg1: i32, %arg2: i32) -> (i32, i32) {
    %c0_i32 = arith.constant 0 : i32
    return %arg0, %arg1 : i32, i32
  }
}

module attributes {stable_mosaic.version = 11 : i64} {
  func.func @_matmul_bn_res_kernel(%arg0: i32, %arg1: i32, %arg2: i32, %arg3: memref<128x128xf32, #tpu.memory_space<vmem>>, %arg4: memref<128x128xf32, #tpu.memory_space<vmem>>, %arg5: memref<1x128xf32, #tpu.memory_space<vmem>>, %arg6: memref<1x128xf32, #tpu.memory_space<vmem>>, %arg7: memref<128x128xf32, #tpu.memory_space<vmem>>, %arg8: memref<128x128xf32, #tpu.memory_space<vmem>>, %arg9: memref<128x128xf32, #tpu.memory_space<vmem>>) attributes {dimension_semantics = [#tpu.dimension_semantics<parallel>, #tpu.dimension_semantics<parallel>, #tpu.dimension_semantics<arbitrary>], iteration_bounds = array<i64: 1, 1, 3>, scalar_prefetch = 0 : i64, scratch_operands = 1 : i64, tpu.core_type = #tpu.core_type<tc>, window_params = [{transform_indices = @transform_0, window_bounds = array<i64: 128, 128>}, {transform_indices = @transform_1, window_bounds = array<i64: 128, 128>}, {transform_indices = @transform_2, window_bounds = array<i64: 1, 128>}, {transform_indices = @transform_3, window_bounds = array<i64: 1, 128>}, {transform_indices = @transform_4, window_bounds = array<i64: 128, 128>}, {transform_indices = @transform_5, window_bounds = array<i64: 128, 128>}]} {
    %c0_i32 = arith.constant 0 : i32
    %0 = arith.cmpi eq, %arg2, %c0_i32 : i32
    %1 = arith.extui %0 : i1 to i32
    %c0_i32_0 = arith.constant 0 : i32
    %2 = arith.cmpi ne, %1, %c0_i32_0 : i32
    scf.if %2 {
      %cst_9 = arith.constant 0.000000e+00 : f32
      %12 = vector.broadcast %cst_9 : f32 to vector<128x128xf32>
      %c0_10 = arith.constant 0 : index
      %c0_11 = arith.constant 0 : index
      %13 = vector.load %arg9[%c0_10, %c0_11] : memref<128x128xf32, #tpu.memory_space<vmem>>, vector<128x128xf32>
      tpu.vector_store %arg9[%c0_10, %c0_11], %12 {strides = array<i32>} : memref<128x128xf32, #tpu.memory_space<vmem>>, vector<128x128xf32>,
    } else {
    }
    %c0 = arith.constant 0 : index
    %c0_1 = arith.constant 0 : index
    %3 = vector.load %arg9[%c0, %c0_1] : memref<128x128xf32, #tpu.memory_space<vmem>>, vector<128x128xf32>
    %c0_2 = arith.constant 0 : index
    %c0_3 = arith.constant 0 : index
    %4 = vector.load %arg3[%c0_2, %c0_3] : memref<128x128xf32, #tpu.memory_space<vmem>>, vector<128x128xf32>
    %c0_4 = arith.constant 0 : index
    %c0_5 = arith.constant 0 : index
    %5 = vector.load %arg4[%c0_4, %c0_5] : memref<128x128xf32, #tpu.memory_space<vmem>>, vector<128x128xf32>
    %cst = arith.constant dense<0.000000e+00> : vector<128x128xf32>
    %6 = tpu.matmul %4, %5, %cst {dimension_numbers = #tpu.dot_dimension_numbers<[1], [0], [0], [1], [0, 0, 1, 1], [], []>} : vector<128x128xf32>, vector<128x128xf32>, vector<128x128xf32> -> vector<128x128xf32>
    %7 = arith.addf %3, %6 : vector<128x128xf32>
    %c0_6 = arith.constant 0 : index
    %c0_7 = arith.constant 0 : index
    %8 = vector.load %arg9[%c0_6, %c0_7] : memref<128x128xf32, #tpu.memory_space<vmem>>, vector<128x128xf32>
    tpu.vector_store %arg9[%c0_6, %c0_7], %7 {strides = array<i32>} : memref<128x128xf32, #tpu.memory_space<vmem>>, vector<128x128xf32>,
    %c2_i32 = arith.constant 2 : i32
    %9 = arith.cmpi eq, %arg2, %c2_i32 : i32
    %10 = arith.extui %9 : i1 to i32
    %c0_i32_8 = arith.constant 0 : i32
    %11 = arith.cmpi ne, %10, %c0_i32_8 : i32
    scf.if %11 {
      %c0_9 = arith.constant 0 : index
      %c0_10 = arith.constant 0 : index
      %12 = vector.load %arg9[%c0_9, %c0_10] : memref<128x128xf32, #tpu.memory_space<vmem>>, vector<128x128xf32>
      %c0_11 = arith.constant 0 : index
      %c0_12 = arith.constant 0 : index
      %13 = vector.load %arg5[%c0_11, %c0_12] : memref<1x128xf32, #tpu.memory_space<vmem>>, vector<1x128xf32>
      %c0_13 = arith.constant 0 : index
      %c0_14 = arith.constant 0 : index
      %14 = vector.load %arg6[%c0_13, %c0_14] : memref<1x128xf32, #tpu.memory_space<vmem>>, vector<1x128xf32>
      %c0_15 = arith.constant 0 : index
      %c0_16 = arith.constant 0 : index
      %15 = vector.load %arg7[%c0_15, %c0_16] : memref<128x128xf32, #tpu.memory_space<vmem>>, vector<128x128xf32>
      %16 = vector.broadcast %13 : vector<1x128xf32> to vector<128x128xf32>
      %17 = arith.mulf %12, %16 : vector<128x128xf32>
      %18 = vector.broadcast %14 : vector<1x128xf32> to vector<128x128xf32>
      %19 = arith.addf %17, %18 : vector<128x128xf32>
      %20 = arith.addf %19, %15 : vector<128x128xf32>
      %c0_17 = arith.constant 0 : index
      %c0_18 = arith.constant 0 : index
      %21 = vector.load %arg8[%c0_17, %c0_18] : memref<128x128xf32, #tpu.memory_space<vmem>>, vector<128x128xf32>
      tpu.vector_store %arg8[%c0_17, %c0_18], %20 {strides = array<i32>} : memref<128x128xf32, #tpu.memory_space<vmem>>, vector<128x128xf32>,
    } else {
    }
    return
  }
  func.func @transform_0(%arg0: i32, %arg1: i32, %arg2: i32) -> (i32, i32) {
    %c0_i32 = arith.constant 0 : i32
    return %arg0, %arg2 : i32, i32
  }
  func.func @transform_1(%arg0: i32, %arg1: i32, %arg2: i32) -> (i32, i32) {
    %c0_i32 = arith.constant 0 : i32
    return %arg2, %arg1 : i32, i32
  }
  func.func @transform_2(%arg0: i32, %arg1: i32, %arg2: i32) -> (i32, i32) {
    %c0_i32 = arith.constant 0 : i32
    %c0_i32_0 = arith.constant 0 : i32
    return %c0_i32, %arg1 : i32, i32
  }
  func.func @transform_3(%arg0: i32, %arg1: i32, %arg2: i32) -> (i32, i32) {
    %c0_i32 = arith.constant 0 : i32
    %c0_i32_0 = arith.constant 0 : i32
    return %c0_i32, %arg1 : i32, i32
  }
  func.func @transform_4(%arg0: i32, %arg1: i32, %arg2: i32) -> (i32, i32) {
    %c0_i32 = arith.constant 0 : i32
    return %arg0, %arg1 : i32, i32
  }
  func.func @transform_5(%arg0: i32, %arg1: i32, %arg2: i32) -> (i32, i32) {
    %c0_i32 = arith.constant 0 : i32
    return %arg0, %arg1 : i32, i32
  }
}

module attributes {stable_mosaic.version = 11 : i64} {
  func.func @_head_kernel(%arg0: memref<2x1x64xf32, #tpu.memory_space<vmem>>, %arg1: memref<64x9xf32, #tpu.memory_space<vmem>>, %arg2: memref<1x9xf32, #tpu.memory_space<vmem>>, %arg3: memref<9x5xf32, #tpu.memory_space<vmem>>, %arg4: memref<1x5xf32, #tpu.memory_space<vmem>>, %arg5: memref<2x5xf32, #tpu.memory_space<vmem>>) attributes {dimension_semantics = [], scalar_prefetch = 0 : i64, scratch_operands = 0 : i64, tpu.core_type = #tpu.core_type<tc>} {
    %c0 = arith.constant 0 : index
    %c0_0 = arith.constant 0 : index
    %c0_1 = arith.constant 0 : index
    %0 = vector.load %arg0[%c0, %c0_0, %c0_1] : memref<2x1x64xf32, #tpu.memory_space<vmem>>, vector<2x1x64xf32>
    %cst = arith.constant dense<0.000000e+00> : vector<2x64xf32>
    %1 = vector.multi_reduction <add>, %0, %cst [1] : vector<2x1x64xf32> to vector<2x64xf32>
    %cst_2 = arith.constant 1.000000e+00 : f32
    %2 = vector.broadcast %cst_2 : f32 to vector<2x64xf32>
    %3 = arith.divf %1, %2 : vector<2x64xf32>
    %c0_3 = arith.constant 0 : index
    %c0_4 = arith.constant 0 : index
    %4 = vector.load %arg1[%c0_3, %c0_4] : memref<64x9xf32, #tpu.memory_space<vmem>>, vector<64x9xf32>
    %cst_5 = arith.constant dense<0.000000e+00> : vector<2x9xf32>
    %5 = tpu.matmul %3, %4, %cst_5 {dimension_numbers = #tpu.dot_dimension_numbers<[1], [0], [0], [1], [0, 0, 1, 1], [], []>} : vector<2x64xf32>, vector<64x9xf32>, vector<2x9xf32> -> vector<2x9xf32>
    %c0_6 = arith.constant 0 : index
    %c0_7 = arith.constant 0 : index
    %6 = vector.load %arg2[%c0_6, %c0_7] : memref<1x9xf32, #tpu.memory_space<vmem>>, vector<1x9xf32>
    %7 = vector.broadcast %6 : vector<1x9xf32> to vector<2x9xf32>
    %8 = arith.addf %5, %7 : vector<2x9xf32>
    %cst_8 = arith.constant 0.000000e+00 : f32
    %9 = vector.broadcast %cst_8 : f32 to vector<2x9xf32>
    %10 = arith.maximumf %8, %9 : vector<2x9xf32>
    %c0_9 = arith.constant 0 : index
    %c0_10 = arith.constant 0 : index
    %11 = vector.load %arg3[%c0_9, %c0_10] : memref<9x5xf32, #tpu.memory_space<vmem>>, vector<9x5xf32>
    %cst_11 = arith.constant dense<0.000000e+00> : vector<2x5xf32>
    %12 = tpu.matmul %10, %11, %cst_11 {dimension_numbers = #tpu.dot_dimension_numbers<[1], [0], [0], [1], [0, 0, 1, 1], [], []>} : vector<2x9xf32>, vector<9x5xf32>, vector<2x5xf32> -> vector<2x5xf32>
    %c0_12 = arith.constant 0 : index
    %c0_13 = arith.constant 0 : index
    %13 = vector.load %arg4[%c0_12, %c0_13] : memref<1x5xf32, #tpu.memory_space<vmem>>, vector<1x5xf32>
    %14 = vector.broadcast %13 : vector<1x5xf32> to vector<2x5xf32>
    %15 = arith.addf %12, %14 : vector<2x5xf32>
    %cst_14 = arith.constant dense<0xFF800000> : vector<2xf32>
    %16 = vector.multi_reduction <maximumf>, %15, %cst_14 [1] : vector<2x5xf32> to vector<2xf32>
    %17 = vector.shape_cast %16 : vector<2xf32> to vector<2x1xf32>
    %18 = vector.broadcast %17 : vector<2x1xf32> to vector<2x5xf32>
    %19 = arith.subf %15, %18 : vector<2x5xf32>
    %20 = math.exp %19 : vector<2x5xf32>
    %cst_15 = arith.constant dense<0.000000e+00> : vector<2xf32>
    %21 = vector.multi_reduction <add>, %20, %cst_15 [1] : vector<2x5xf32> to vector<2xf32>
    %22 = vector.shape_cast %21 : vector<2xf32> to vector<2x1xf32>
    %23 = vector.broadcast %22 : vector<2x1xf32> to vector<2x5xf32>
    %24 = arith.divf %20, %23 : vector<2x5xf32>
    %c0_16 = arith.constant 0 : index
    %c0_17 = arith.constant 0 : index
    %25 = vector.load %arg5[%c0_16, %c0_17] : memref<2x5xf32, #tpu.memory_space<vmem>>, vector<2x5xf32>
    tpu.vector_store %arg5[%c0_16, %c0_17], %24 {strides = array<i32>} : memref<2x5xf32, #tpu.memory_space<vmem>>, vector<2x5xf32>,
    return
  }
}

module attributes {stable_mosaic.version = 11 : i64} {
  func.func @_matmul_bn_res_kernel(%arg0: i32, %arg1: i32, %arg2: i32, %arg3: memref<128x128xf32, #tpu.memory_space<vmem>>, %arg4: memref<128x128xf32, #tpu.memory_space<vmem>>, %arg5: memref<1x128xf32, #tpu.memory_space<vmem>>, %arg6: memref<1x128xf32, #tpu.memory_space<vmem>>, %arg7: memref<128x128xf32, #tpu.memory_space<vmem>>, %arg8: memref<128x128xf32, #tpu.memory_space<vmem>>, %arg9: memref<128x128xf32, #tpu.memory_space<vmem>>) attributes {dimension_semantics = [#tpu.dimension_semantics<parallel>, #tpu.dimension_semantics<parallel>, #tpu.dimension_semantics<arbitrary>], iteration_bounds = array<i64: 1, 1, 5>, scalar_prefetch = 0 : i64, scratch_operands = 1 : i64, tpu.core_type = #tpu.core_type<tc>, window_params = [{transform_indices = @transform_0, window_bounds = array<i64: 128, 128>}, {transform_indices = @transform_1, window_bounds = array<i64: 128, 128>}, {transform_indices = @transform_2, window_bounds = array<i64: 1, 128>}, {transform_indices = @transform_3, window_bounds = array<i64: 1, 128>}, {transform_indices = @transform_4, window_bounds = array<i64: 128, 128>}, {transform_indices = @transform_5, window_bounds = array<i64: 128, 128>}]} {
    %c0_i32 = arith.constant 0 : i32
    %0 = arith.cmpi eq, %arg2, %c0_i32 : i32
    %1 = arith.extui %0 : i1 to i32
    %c0_i32_0 = arith.constant 0 : i32
    %2 = arith.cmpi ne, %1, %c0_i32_0 : i32
    scf.if %2 {
      %cst_9 = arith.constant 0.000000e+00 : f32
      %12 = vector.broadcast %cst_9 : f32 to vector<128x128xf32>
      %c0_10 = arith.constant 0 : index
      %c0_11 = arith.constant 0 : index
      %13 = vector.load %arg9[%c0_10, %c0_11] : memref<128x128xf32, #tpu.memory_space<vmem>>, vector<128x128xf32>
      tpu.vector_store %arg9[%c0_10, %c0_11], %12 {strides = array<i32>} : memref<128x128xf32, #tpu.memory_space<vmem>>, vector<128x128xf32>,
    } else {
    }
    %c0 = arith.constant 0 : index
    %c0_1 = arith.constant 0 : index
    %3 = vector.load %arg9[%c0, %c0_1] : memref<128x128xf32, #tpu.memory_space<vmem>>, vector<128x128xf32>
    %c0_2 = arith.constant 0 : index
    %c0_3 = arith.constant 0 : index
    %4 = vector.load %arg3[%c0_2, %c0_3] : memref<128x128xf32, #tpu.memory_space<vmem>>, vector<128x128xf32>
    %c0_4 = arith.constant 0 : index
    %c0_5 = arith.constant 0 : index
    %5 = vector.load %arg4[%c0_4, %c0_5] : memref<128x128xf32, #tpu.memory_space<vmem>>, vector<128x128xf32>
    %cst = arith.constant dense<0.000000e+00> : vector<128x128xf32>
    %6 = tpu.matmul %4, %5, %cst {dimension_numbers = #tpu.dot_dimension_numbers<[1], [0], [0], [1], [0, 0, 1, 1], [], []>} : vector<128x128xf32>, vector<128x128xf32>, vector<128x128xf32> -> vector<128x128xf32>
    %7 = arith.addf %3, %6 : vector<128x128xf32>
    %c0_6 = arith.constant 0 : index
    %c0_7 = arith.constant 0 : index
    %8 = vector.load %arg9[%c0_6, %c0_7] : memref<128x128xf32, #tpu.memory_space<vmem>>, vector<128x128xf32>
    tpu.vector_store %arg9[%c0_6, %c0_7], %7 {strides = array<i32>} : memref<128x128xf32, #tpu.memory_space<vmem>>, vector<128x128xf32>,
    %c4_i32 = arith.constant 4 : i32
    %9 = arith.cmpi eq, %arg2, %c4_i32 : i32
    %10 = arith.extui %9 : i1 to i32
    %c0_i32_8 = arith.constant 0 : i32
    %11 = arith.cmpi ne, %10, %c0_i32_8 : i32
    scf.if %11 {
      %c0_9 = arith.constant 0 : index
      %c0_10 = arith.constant 0 : index
      %12 = vector.load %arg9[%c0_9, %c0_10] : memref<128x128xf32, #tpu.memory_space<vmem>>, vector<128x128xf32>
      %c0_11 = arith.constant 0 : index
      %c0_12 = arith.constant 0 : index
      %13 = vector.load %arg5[%c0_11, %c0_12] : memref<1x128xf32, #tpu.memory_space<vmem>>, vector<1x128xf32>
      %c0_13 = arith.constant 0 : index
      %c0_14 = arith.constant 0 : index
      %14 = vector.load %arg6[%c0_13, %c0_14] : memref<1x128xf32, #tpu.memory_space<vmem>>, vector<1x128xf32>
      %c0_15 = arith.constant 0 : index
      %c0_16 = arith.constant 0 : index
      %15 = vector.load %arg7[%c0_15, %c0_16] : memref<128x128xf32, #tpu.memory_space<vmem>>, vector<128x128xf32>
      %16 = vector.broadcast %13 : vector<1x128xf32> to vector<128x128xf32>
      %17 = arith.mulf %12, %16 : vector<128x128xf32>
      %18 = vector.broadcast %14 : vector<1x128xf32> to vector<128x128xf32>
      %19 = arith.addf %17, %18 : vector<128x128xf32>
      %20 = arith.addf %19, %15 : vector<128x128xf32>
      %c0_17 = arith.constant 0 : index
      %c0_18 = arith.constant 0 : index
      %21 = vector.load %arg8[%c0_17, %c0_18] : memref<128x128xf32, #tpu.memory_space<vmem>>, vector<128x128xf32>
      tpu.vector_store %arg8[%c0_17, %c0_18], %20 {strides = array<i32>} : memref<128x128xf32, #tpu.memory_space<vmem>>, vector<128x128xf32>,
    } else {
    }
    return
  }
  func.func @transform_0(%arg0: i32, %arg1: i32, %arg2: i32) -> (i32, i32) {
    %c0_i32 = arith.constant 0 : i32
    return %arg0, %arg2 : i32, i32
  }
  func.func @transform_1(%arg0: i32, %arg1: i32, %arg2: i32) -> (i32, i32) {
    %c0_i32 = arith.constant 0 : i32
    return %arg2, %arg1 : i32, i32
  }
  func.func @transform_2(%arg0: i32, %arg1: i32, %arg2: i32) -> (i32, i32) {
    %c0_i32 = arith.constant 0 : i32
    %c0_i32_0 = arith.constant 0 : i32
    return %c0_i32, %arg1 : i32, i32
  }
  func.func @transform_3(%arg0: i32, %arg1: i32, %arg2: i32) -> (i32, i32) {
    %c0_i32 = arith.constant 0 : i32
    %c0_i32_0 = arith.constant 0 : i32
    return %c0_i32, %arg1 : i32, i32
  }
  func.func @transform_4(%arg0: i32, %arg1: i32, %arg2: i32) -> (i32, i32) {
    %c0_i32 = arith.constant 0 : i32
    return %arg0, %arg1 : i32, i32
  }
  func.func @transform_5(%arg0: i32, %arg1: i32, %arg2: i32) -> (i32, i32) {
    %c0_i32 = arith.constant 0 : i32
    return %arg0, %arg1 : i32, i32
  }
}

</mosaic_0001>

<llo_original>
// kernel: forward.16
$region0: #{forward.16}
  #allocation0 [shape = 'u32[]', space=smem, size = 0x4, offset = 0x4, fixed_abs, tag = 'smem constant byte address 0x4 - core index']
  #allocation1 [shape = 'u32[144,128]{1,0:T(1,128)}', space=vmem, size = 0x12000, scoped, tag = 'internal scratch']
  #allocation2 [shape = 'f32[128,128]{1,0:T(8,128)}', space=vmem, size = 0x10000, scoped, tag = 'scratch operand']
  %s0 = inlined_call_operand.vmem [shape: f32[128,256], index: 0, kind: input, shape index: {}]
  %s1 = inlined_call_operand.vmem [shape: f32[256,128], index: 1, kind: input, shape index: {}]
  %s2 = inlined_call_operand.vmem [shape: f32[1,128], index: 2, kind: input, shape index: {}]
  %s3 = inlined_call_operand.vmem [shape: f32[1,128], index: 3, kind: input, shape index: {}]
  %s4 = inlined_call_operand.vmem [shape: f32[128,128], index: 4, kind: output, shape index: {}]
  %s5 = sld [smem:[#allocation0]]
  $region95: #{forward.16} parent=0
    _
  %s7 = ssub.s32 1, %s5
  %s8 = scalar_select 0, %s7, %s5
  $region1: #{forward.16} parent=0
    #allocation3 [shape = 'u8[131072]{0}', space=vmem, size = 0x20000, scoped, tag = 'input window, operand 0']
    loop: start=0, step=1, limit=4
    $region2: #{forward.16} parent=1 // loop_pre_header
      _
    $region3: #{forward.16} parent=1 // loop_header
      %s10 = sphi 0, %s14
      %p11 = scmp.ge.s32.totalorder %s10, 4
      %s17 = sphi 0, %s36
      %s18 = sphi 0, %s32
      %s19 = sphi 0, %s28
      %s20 = sphi 0, %s17
      %s21 = sphi 0, %s18
      %s22 = sphi 0, %s19
      %s23 = sphi 0, %s20
      %s24 = sphi 0, %s21
      %s25 = sphi 0, %s22
      %s41 = sphi 0, %s43
      %s44 = sphi 0, %s41
      %s45 = sphi 0, %s44
      %s61 = sphi 0, %s45
      %s69 = sphi 0, %s71
      %s72 = sphi 0, %s69
      %s73 = sphi 0, %s72
      %s89 = sphi 0, %s73
      %s95 = sphi 0, %s97
      %s98 = sphi 0, %s95
      %s99 = sphi 0, %s98
      %s115 = sphi 0, %s99
      %s121 = sphi 0, %s123
      %s124 = sphi 0, %s121
      %s125 = sphi 0, %s124
      %s141 = sphi 0, %s125
      %s149 = sphi 0, %s151
      %s152 = sphi 0, %s149
      %s153 = sphi 0, %s152
      %s169 = sphi 0, %s153
    $region4: #{forward.16} parent=1 // loop_header_branch
      %13 = sbr.rel (%p11) target = $region8
    $region5: #{forward.16} parent=1 // loop_body
      %s15 = ssub.s32 %s10, 1
      %s16 = ssub.s32 %s10, 2
      %s26 = sadd.s32 1, %s19
      %p27 = scmp.ge.s32.totalorder %s26, 2
      %s28 = scalar_select %p27, 0, %s26
      %s29 = sadd.s32 1, %s18
      %s30 = scalar_select %p27, %s29, %s18
      %p31 = scmp.ge.s32.totalorder %s30, 1
      %s32 = scalar_select %p31, 0, %s30
      %s33 = sadd.s32 1, %s17
      %s34 = scalar_select %p31, %s33, %s17
      %p35 = scmp.ge.s32.totalorder %s34, 1
      %s36 = scalar_select %p35, 0, %s34
      %s37 = ssub.s32 %s17, %s36
      %s38 = ssub.s32 %s19, %s28
      %s39 = sor.u32 %s37, %s38
      %p40 = scmp.eq.s32.totalorder %s39, 0
      %s42 = sadd.s32 %s41, 1
      %s43 = scalar_select %p40, %s41, %s42
      %p46 = pneg %p40
      %p47 = scmp.eq.s32.totalorder %s10, 1
      %p48 = por %p46, %p47
      %p49 = scmp.ne.s32.totalorder %s41, %s44
      %p50 = scmp.eq.s32.totalorder %s10, 0
      %p51 = por %p49, %p50
      %p52 = scmp.ne.s32.totalorder %s41, %s44
      %p53 = scmp.eq.s32.totalorder %s15, 1
      %p54 = por %p52, %p53
      %p55 = scmp.ne.s32.totalorder %s44, %s45
      %p56 = scmp.eq.s32.totalorder %s15, 0
      %p57 = por %p55, %p56
      %p58 = scmp.ne.s32.totalorder %s44, %s45
      %p59 = scmp.eq.s32.totalorder %s16, 1
      %p60 = por %p58, %p59
      %p62 = scmp.ne.s32.totalorder %s45, %s61
      %p63 = scmp.eq.s32.totalorder %s16, 0
      %p64 = por %p62, %p63
      %s65 = ssub.s32 %s19, %s28
      %s66 = ssub.s32 %s18, %s32
      %s67 = sor.u32 %s65, %s66
      %p68 = scmp.eq.s32.totalorder %s67, 0
      %s70 = sadd.s32 %s69, 1
      %s71 = scalar_select %p68, %s69, %s70
      %p74 = pneg %p68
      %p75 = scmp.eq.s32.totalorder %s10, 1
      %p76 = por %p74, %p75
      %p77 = scmp.ne.s32.totalorder %s69, %s72
      %p78 = scmp.eq.s32.totalorder %s10, 0
      %p79 = por %p77, %p78
      %p80 = scmp.ne.s32.totalorder %s69, %s72
      %p81 = scmp.eq.s32.totalorder %s15, 1
      %p82 = por %p80, %p81
      %p83 = scmp.ne.s32.totalorder %s72, %s73
      %p84 = scmp.eq.s32.totalorder %s15, 0
      %p85 = por %p83, %p84
      %p86 = scmp.ne.s32.totalorder %s72, %s73
      %p87 = scmp.eq.s32.totalorder %s16, 1
      %p88 = por %p86, %p87
      %p90 = scmp.ne.s32.totalorder %s73, %s89
      %p91 = scmp.eq.s32.totalorder %s16, 0
      %p92 = por %p90, %p91
      %s93 = ssub.s32 %s18, %s32
      %p94 = scmp.eq.s32.totalorder %s93, 0
      %s96 = sadd.s32 %s95, 1
      %s97 = scalar_select %p94, %s95, %s96
      %p100 = pneg %p94
      %p101 = scmp.eq.s32.totalorder %s10, 1
      %p102 = por %p100, %p101
      %p103 = scmp.ne.s32.totalorder %s95, %s98
      %p104 = scmp.eq.s32.totalorder %s10, 0
      %p105 = por %p103, %p104
      %p106 = scmp.ne.s32.totalorder %s95, %s98
      %p107 = scmp.eq.s32.totalorder %s15, 1
      %p108 = por %p106, %p107
      %p109 = scmp.ne.s32.totalorder %s98, %s99
      %p110 = scmp.eq.s32.totalorder %s15, 0
      %p111 = por %p109, %p110
      %p112 = scmp.ne.s32.totalorder %s98, %s99
      %p113 = scmp.eq.s32.totalorder %s16, 1
      %p114 = por %p112, %p113
      %p116 = scmp.ne.s32.totalorder %s99, %s115
      %p117 = scmp.eq.s32.totalorder %s16, 0
      %p118 = por %p116, %p117
      %s119 = ssub.s32 %s18, %s32
      %p120 = scmp.eq.s32.totalorder %s119, 0
      %s122 = sadd.s32 %s121, 1
      %s123 = scalar_select %p120, %s121, %s122
      %p126 = pneg %p120
      %p127 = scmp.eq.s32.totalorder %s10, 1
      %p128 = por %p126, %p127
      %p129 = scmp.ne.s32.totalorder %s121, %s124
      %p130 = scmp.eq.s32.totalorder %s10, 0
      %p131 = por %p129, %p130
      %p132 = scmp.ne.s32.totalorder %s121, %s124
      %p133 = scmp.eq.s32.totalorder %s15, 1
      %p134 = por %p132, %p133
      %p135 = scmp.ne.s32.totalorder %s124, %s125
      %p136 = scmp.eq.s32.totalorder %s15, 0
      %p137 = por %p135, %p136
      %p138 = scmp.ne.s32.totalorder %s124, %s125
      %p139 = scmp.eq.s32.totalorder %s16, 1
      %p140 = por %p138, %p139
      %p142 = scmp.ne.s32.totalorder %s125, %s141
      %p143 = scmp.eq.s32.totalorder %s16, 0
      %p144 = por %p142, %p143
      %s145 = ssub.s32 %s17, %s36
      %s146 = ssub.s32 %s18, %s32
      %s147 = sor.u32 %s145, %s146
      %p148 = scmp.eq.s32.totalorder %s147, 0
      %s150 = sadd.s32 %s149, 1
      %s151 = scalar_select %p148, %s149, %s150
      %p154 = pneg %p148
      %p155 = scmp.eq.s32.totalorder %s10, 1
      %p156 = por %p154, %p155
      %p157 = scmp.ne.s32.totalorder %s149, %s152
      %p158 = scmp.eq.s32.totalorder %s10, 0
      %p159 = por %p157, %p158
      %p160 = scmp.ne.s32.totalorder %s149, %s152
      %p161 = scmp.eq.s32.totalorder %s15, 1
      %p162 = por %p160, %p161
      %p163 = scmp.ne.s32.totalorder %s152, %s153
      %p164 = scmp.eq.s32.totalorder %s15, 0
      %p165 = por %p163, %p164
      %p166 = scmp.ne.s32.totalorder %s152, %s153
      %p167 = scmp.eq.s32.totalorder %s16, 1
      %p168 = por %p166, %p167
      %p170 = scmp.ne.s32.totalorder %s153, %s169
      %p171 = scmp.eq.s32.totalorder %s16, 0
      %p172 = por %p170, %p171
      %p173 = scmp.le.s32.totalorder 1, %s10
      %p174 = scmp.lt.s32.totalorder %s10, 3
      %p175 = pnand %p173, %p174
      %p176 = pneg %p175
      // Predicated region
      $region9: #{forward.16} parent=5 // pred_check
        _
      $region10: #{forward.16} parent=5 // pred_check_branch
        %178 = sbr.rel (%p175) target = $region12
      $region11: #{forward.16} parent=5 // pred_region
        %s179 = ssub.s32 %s10, 1
        // Predicated region
        $region13: #{forward.16} parent=11 // pred_check
          %p180 = pneg %p111
        $region14: #{forward.16} parent=11 // pred_check_branch
          %182 = sbr.rel (%p180) target = $region16
        $region15: #{forward.16} parent=11 // pred_region
          %p183 = scmp.lt.s32.totalorder %s21, 0
          %s184 = scalar_select %p183, %s21, 0
          %s185 = scalar_lea.vmem %s2, %s184
        $region16: #{forward.16} parent=11 // pred_fallthru
          _
        // Predicated region
        $region17: #{forward.16} parent=11 // pred_check
          %p186 = pneg %p137
        $region18: #{forward.16} parent=11 // pred_check_branch
          %188 = sbr.rel (%p186) target = $region20
        $region19: #{forward.16} parent=11 // pred_region
          %p189 = scmp.lt.s32.totalorder %s21, 0
          %s190 = scalar_select %p189, %s21, 0
          %s191 = scalar_lea.vmem %s3, %s190
        $region20: #{forward.16} parent=11 // pred_fallthru
          _
      $region12: #{forward.16} parent=5 // pred_fallthru
        _
      %p192 = scmp.lt.s32.totalorder %s10, 2
      // Predicated region
      $region21: #{forward.16} parent=5 // pred_check
        %p193 = pneg %p192
      $region22: #{forward.16} parent=5 // pred_check_branch
        %195 = sbr.rel (%p193) target = $region24
      $region23: #{forward.16} parent=5 // pred_region
        // Predicated region
        $region25: #{forward.16} parent=23 // pred_check
          %p196 = pneg %p51
        $region26: #{forward.16} parent=23 // pred_check_branch
          %198 = sbr.rel (%p196) target = $region28
        $region27: #{forward.16} parent=23 // pred_region
          %s199 = sand.u32 %s41, 1
          %s200 = sand.u32 %s41, 1
          %s201 = smul.addr %s200, 128
          %s202 = scalar_lea.vmem [#allocation3], %s201
          %s203 = smul.u32 16, %s17
          %s204 = smul.addr %s203, 2
          %s205 = sadd.s32 %s19, %s204
          %s206 = smul.addr %s205, 8
          %s207 = scalar_lea.vmem %s0, %s206
          // Predicated region
          $region29: #{forward.16} parent=27 // pred_check
            _
          $region30: #{forward.16} parent=27 // pred_check_branch
            %209 = sbr.rel (0) target = $region32
          $region31: #{forward.16} parent=27 // pred_region
            // Predicated region
            $region33: #{forward.16} parent=31 // pred_check
              _
            $region34: #{forward.16} parent=31 // pred_check_branch
              %211 = sbr.rel (0) target = $region36
            $region35: #{forward.16} parent=31 // pred_region
              // Predicated region
              $region48: #{forward.16} parent=35 // pred_check
                _
              $region49: #{forward.16} parent=35 // pred_check_branch
                %256 = sbr.rel (0) target = $region51
              $region50: #{forward.16} parent=35 // pred_region
                loop: start=0, step=1, limit=1
                $region52: #{forward.16} parent=50 // loop_pre_header
                  _
                $region53: #{forward.16} parent=50 // loop_header
                  %s258 = sphi 0, %s262
                  %p259 = scmp.ge.s32.totalorder %s258, 1
                  %s263 = sphi %s207, %s207
                  %s264 = sphi %s202, %s202
                $region54: #{forward.16} parent=50 // loop_header_branch
                  %261 = sbr.rel (%p259) target = $region58
                $region55: #{forward.16} parent=50 // loop_body
                  %v265 = vld [vmem:[%s263] sm:$0xff]
                  %266 = vst [vmem:[%s264] sm:$0xff] %v265
                  %v267 = vld [vmem:[%s263 + $0x10] sm:$0xff]
                  %268 = vst [vmem:[%s264 + $0x8] sm:$0xff] %v267
                  %v269 = vld [vmem:[%s263 + $0x20] sm:$0xff]
                  %270 = vst [vmem:[%s264 + $0x10] sm:$0xff] %v269
                  %v271 = vld [vmem:[%s263 + $0x30] sm:$0xff]
                  %272 = vst [vmem:[%s264 + $0x18] sm:$0xff] %v271
                  %v273 = vld [vmem:[%s263 + $0x40] sm:$0xff]
                  %274 = vst [vmem:[%s264 + $0x20] sm:$0xff] %v273
                  %v275 = vld [vmem:[%s263 + $0x50] sm:$0xff]
                  %276 = vst [vmem:[%s264 + $0x28] sm:$0xff] %v275
                  %v277 = vld [vmem:[%s263 + $0x60] sm:$0xff]
                  %278 = vst [vmem:[%s264 + $0x30] sm:$0xff] %v277
                  %v279 = vld [vmem:[%s263 + $0x70] sm:$0xff]
                  %280 = vst [vmem:[%s264 + $0x38] sm:$0xff] %v279
                  %v281 = vld [vmem:[%s263 + $0x80] sm:$0xff]
                  %282 = vst [vmem:[%s264 + $0x40] sm:$0xff] %v281
                  %v283 = vld [vmem:[%s263 + $0x90] sm:$0xff]
                  %284 = vst [vmem:[%s264 + $0x48] sm:$0xff] %v283
                  %v285 = vld [vmem:[%s263 + $0xa0] sm:$0xff]
                  %286 = vst [vmem:[%s264 + $0x50] sm:$0xff] %v285
                  %v287 = vld [vmem:[%s263 + $0xb0] sm:$0xff]
                  %288 = vst [vmem:[%s264 + $0x58] sm:$0xff] %v287
                  %v289 = vld [vmem:[%s263 + $0xc0] sm:$0xff]
                  %290 = vst [vmem:[%s264 + $0x60] sm:$0xff] %v289
                  %v291 = vld [vmem:[%s263 + $0xd0] sm:$0xff]
                  %292 = vst [vmem:[%s264 + $0x68] sm:$0xff] %v291
                  %v293 = vld [vmem:[%s263 + $0xe0] sm:$0xff]
                  %294 = vst [vmem:[%s264 + $0x70] sm:$0xff] %v293
                  %v295 = vld [vmem:[%s263 + $0xf0] sm:$0xff]
                  %296 = vst [vmem:[%s264 + $0x78] sm:$0xff] %v295
                $region56: #{forward.16} parent=50 // loop_footer
                  %s262 = sadd.s32 1, %s258
                $region57: #{forward.16} parent=50 // loop_footer_branch
                  %257 = sbr.rel target = $region53
                $region58: #{forward.16} parent=50 // loop_exit
                  _
              $region51: #{forward.16} parent=35 // pred_fallthru
                _
              // Predicated region
              $region59: #{forward.16} parent=35 // pred_check
                _
              $region60: #{forward.16} parent=35 // pred_check_branch
                %298 = sbr.rel target = $region62
              $region61: #{forward.16} parent=35 // pred_region
                _
              $region62: #{forward.16} parent=35 // pred_fallthru
                _
            $region36: #{forward.16} parent=31 // pred_fallthru
              _
            // Predicated region
            $region37: #{forward.16} parent=31 // pred_check
              _
            $region38: #{forward.16} parent=31 // pred_check_branch
              %213 = sbr.rel target = $region40
            $region39: #{forward.16} parent=31 // pred_region
              loop: start=0, step=1, limit=1
              $region41: #{forward.16} parent=39 // loop_pre_header
                _
              $region42: #{forward.16} parent=39 // loop_header
                %s216 = sphi 0, %s220
                %p217 = scmp.ge.s32.totalorder %s216, 1
                %s221 = sphi %s207, %s207
                %s222 = sphi %s202, %s202
              $region43: #{forward.16} parent=39 // loop_header_branch
                %219 = sbr.rel (%p217) target = $region47
              $region44: #{forward.16} parent=39 // loop_body
                %v223 = vld [vmem:[%s221] sm:$0xff]
                %224 = vst [vmem:[%s222] sm:$0xff] %v223
                %v225 = vld [vmem:[%s221 + $0x10] sm:$0xff]
                %226 = vst [vmem:[%s222 + $0x8] sm:$0xff] %v225
                %v227 = vld [vmem:[%s221 + $0x20] sm:$0xff]
                %228 = vst [vmem:[%s222 + $0x10] sm:$0xff] %v227
                %v229 = vld [vmem:[%s221 + $0x30] sm:$0xff]
                %230 = vst [vmem:[%s222 + $0x18] sm:$0xff] %v229
                %v231 = vld [vmem:[%s221 + $0x40] sm:$0xff]
                %232 = vst [vmem:[%s222 + $0x20] sm:$0xff] %v231
                %v233 = vld [vmem:[%s221 + $0x50] sm:$0xff]
                %234 = vst [vmem:[%s222 + $0x28] sm:$0xff] %v233
                %v235 = vld [vmem:[%s221 + $0x60] sm:$0xff]
                %236 = vst [vmem:[%s222 + $0x30] sm:$0xff] %v235
                %v237 = vld [vmem:[%s221 + $0x70] sm:$0xff]
                %238 = vst [vmem:[%s222 + $0x38] sm:$0xff] %v237
                %v239 = vld [vmem:[%s221 + $0x80] sm:$0xff]
                %240 = vst [vmem:[%s222 + $0x40] sm:$0xff] %v239
                %v241 = vld [vmem:[%s221 + $0x90] sm:$0xff]
                %242 = vst [vmem:[%s222 + $0x48] sm:$0xff] %v241
                %v243 = vld [vmem:[%s221 + $0xa0] sm:$0xff]
                %244 = vst [vmem:[%s222 + $0x50] sm:$0xff] %v243
                %v245 = vld [vmem:[%s221 + $0xb0] sm:$0xff]
                %246 = vst [vmem:[%s222 + $0x58] sm:$0xff] %v245
                %v247 = vld [vmem:[%s221 + $0xc0] sm:$0xff]
                %248 = vst [vmem:[%s222 + $0x60] sm:$0xff] %v247
                %v249 = vld [vmem:[%s221 + $0xd0] sm:$0xff]
                %250 = vst [vmem:[%s222 + $0x68] sm:$0xff] %v249
                %v251 = vld [vmem:[%s221 + $0xe0] sm:$0xff]
                %252 = vst [vmem:[%s222 + $0x70] sm:$0xff] %v251
                %v253 = vld [vmem:[%s221 + $0xf0] sm:$0xff]
                %254 = vst [vmem:[%s222 + $0x78] sm:$0xff] %v253
              $region45: #{forward.16} parent=39 // loop_footer
                %s220 = sadd.s32 1, %s216
              $region46: #{forward.16} parent=39 // loop_footer_branch
                %215 = sbr.rel target = $region42
              $region47: #{forward.16} parent=39 // loop_exit
                _
            $region40: #{forward.16} parent=31 // pred_fallthru
              _
          $region32: #{forward.16} parent=27 // pred_fallthru
            _
          %299 = vnop
        $region28: #{forward.16} parent=23 // pred_fallthru
          _
        // Predicated region
        $region63: #{forward.16} parent=23 // pred_check
          %p300 = pneg %p79
        $region64: #{forward.16} parent=23 // pred_check_branch
          %302 = sbr.rel (%p300) target = $region66
        $region65: #{forward.16} parent=23 // pred_region
          %s303 = smul.u32 16, %s19
          %p304 = scmp.lt.s32.totalorder %s303, 31
          %s305 = scalar_select %p304, %s303, 31
          %p306 = scmp.lt.s32.totalorder %s18, 0
          %s307 = scalar_select %p306, %s18, 0
          %s308 = sadd.s32 %s307, %s305
          %s309 = smul.addr %s308, 8
          %s310 = scalar_lea.vmem %s1, %s309
          %s311 = smul.u32 16, %s19
        $region66: #{forward.16} parent=23 // pred_fallthru
          _
      $region24: #{forward.16} parent=5 // pred_fallthru
        _
      %p312 = scmp.le.s32.totalorder 1, %s10
      %p313 = scmp.lt.s32.totalorder %s10, 3
      %p314 = pnand %p312, %p313
      %p315 = pneg %p314
      // Predicated region
      $region67: #{forward.16} parent=5 // pred_check
        _
      $region68: #{forward.16} parent=5 // pred_check_branch
        %317 = sbr.rel (%p314) target = $region70
      $region69: #{forward.16} parent=5 // pred_region
        %s318 = ssub.s32 %s10, 1
        %s319 = sand.u32 %s44, 1
        %s320 = sand.u32 %s44, 1
        %s321 = smul.addr %s320, 128
        %s322 = scalar_lea.vmem [#allocation3], %s321
        // Predicated region
        $region71: #{forward.16} parent=69 // pred_check
          %p323 = pneg %p57
        $region72: #{forward.16} parent=69 // pred_check_branch
          %325 = sbr.rel (%p323) target = $region74
        $region73: #{forward.16} parent=69 // pred_region
          _
        $region74: #{forward.16} parent=69 // pred_fallthru
          _
        %s326 = sand.u32 %s44, 1
        %s327 = sand.u32 %s44, 1
        %s328 = smul.addr %s327, 128
        %s329 = scalar_lea.vmem [#allocation3], %s328
        %p330 = pneg %p57
        %p331 = pneg %p54
        %s332 = smul.u32 16, %s22
        %p333 = scmp.lt.s32.totalorder %s332, 31
        %s334 = scalar_select %p333, %s332, 31
        %p335 = scmp.lt.s32.totalorder %s21, 0
        %s336 = scalar_select %p335, %s21, 0
        %s337 = sadd.s32 %s336, %s334
        %s338 = smul.addr %s337, 8
        %s339 = scalar_lea.vmem %s1, %s338
        %p340 = pneg %p85
        %p341 = pneg %p82
        %p342 = scmp.lt.s32.totalorder %s21, 0
        %s343 = scalar_select %p342, %s21, 0
        %s344 = scalar_lea.vmem %s2, %s343
        %p345 = pneg %p111
        %p346 = pneg %p108
        %p347 = scmp.lt.s32.totalorder %s21, 0
        %s348 = scalar_select %p347, %s21, 0
        %s349 = scalar_lea.vmem %s3, %s348
        %p350 = pneg %p137
        %p351 = pneg %p134
        %p352 = pneg %p165
        %p353 = pneg %p162
        %s354 = smul.u32 16, %s20
        %p355 = scmp.lt.s32.totalorder %s354, 15
        %s356 = scalar_select %p355, %s354, 15
        %p357 = scmp.lt.s32.totalorder %s21, 0
        %s358 = scalar_select %p357, %s21, 0
        %s359 = sadd.s32 %s358, %s356
        %s360 = smul.addr %s359, 8
        %s361 = scalar_lea.vmem %s4, %s360
        %s362 = smul.u32 16, %s20
        %s363 = smul.u32 16, %s22
        %p364 = scmp.lt.s32.totalorder %s363, 31
        %s365 = scalar_select %p364, %s363, 31
        %p366 = scmp.lt.s32.totalorder %s21, 0
        %s367 = scalar_select %p366, %s21, 0
        %s368 = sadd.s32 %s367, %s365
        %s369 = smul.addr %s368, 8
        %s370 = scalar_lea.vmem %s1, %s369
        %s371 = smul.u32 16, %s22
        %p372 = scmp.lt.s32.totalorder %s21, 0
        %s373 = scalar_select %p372, %s21, 0
        %s374 = scalar_lea.vmem %s2, %s373
        %p375 = scmp.lt.s32.totalorder %s21, 0
        %s376 = scalar_select %p375, %s21, 0
        %s377 = scalar_lea.vmem %s3, %s376
        %s378 = smul.u32 16, %s20
        %p379 = scmp.lt.s32.totalorder %s378, 15
        %s380 = scalar_select %p379, %s378, 15
        %p381 = scmp.lt.s32.totalorder %s21, 0
        %s382 = scalar_select %p381, %s21, 0
        %s383 = sadd.s32 %s382, %s380
        %s384 = smul.addr %s383, 8
        %s385 = scalar_lea.vmem %s4, %s384
        %s386 = smul.u32 16, %s20
        %p387 = scmp.eq.s32.totalorder %s22, 0
        // Predicated region
        $region75: #{forward.16} parent=69 // pred_check
          %p388 = pneg %p387
        $region76: #{forward.16} parent=69 // pred_check_branch
          %390 = sbr.rel (%p388) target = $region78
        $region77: #{forward.16} parent=69 // pred_region
          %391 = vst [vmem:[#allocation2] sm:$0xff] 0.0
          %392 = vst [vmem:[#allocation2 + $0x8] sm:$0xff] 0.0
          %393 = vst [vmem:[#allocation2 + $0x10] sm:$0xff] 0.0
          %394 = vst [vmem:[#allocation2 + $0x18] sm:$0xff] 0.0
          %395 = vst [vmem:[#allocation2 + $0x20] sm:$0xff] 0.0
          %396 = vst [vmem:[#allocation2 + $0x28] sm:$0xff] 0.0
          %397 = vst [vmem:[#allocation2 + $0x30] sm:$0xff] 0.0
          %398 = vst [vmem:[#allocation2 + $0x38] sm:$0xff] 0.0
          %399 = vst [vmem:[#allocation2 + $0x40] sm:$0xff] 0.0
          %400 = vst [vmem:[#allocation2 + $0x48] sm:$0xff] 0.0
          %401 = vst [vmem:[#allocation2 + $0x50] sm:$0xff] 0.0
          %402 = vst [vmem:[#allocation2 + $0x58] sm:$0xff] 0.0
          %403 = vst [vmem:[#allocation2 + $0x60] sm:$0xff] 0.0
          %404 = vst [vmem:[#allocation2 + $0x68] sm:$0xff] 0.0
          %405 = vst [vmem:[#allocation2 + $0x70] sm:$0xff] 0.0
          %406 = vst [vmem:[#allocation2 + $0x78] sm:$0xff] 0.0
        $region78: #{forward.16} parent=69 // pred_fallthru
          _
        %v407 = vld [vmem:[#allocation2] sm:$0xff]
        %v408 = vld [vmem:[#allocation2 + $0x8] sm:$0xff]
        %v409 = vld [vmem:[#allocation2 + $0x10] sm:$0xff]
        %v410 = vld [vmem:[#allocation2 + $0x18] sm:$0xff]
        %v411 = vld [vmem:[#allocation2 + $0x20] sm:$0xff]
        %v412 = vld [vmem:[#allocation2 + $0x28] sm:$0xff]
        %v413 = vld [vmem:[#allocation2 + $0x30] sm:$0xff]
        %v414 = vld [vmem:[#allocation2 + $0x38] sm:$0xff]
        %v415 = vld [vmem:[#allocation2 + $0x40] sm:$0xff]
        %v416 = vld [vmem:[#allocation2 + $0x48] sm:$0xff]
        %v417 = vld [vmem:[#allocation2 + $0x50] sm:$0xff]
        %v418 = vld [vmem:[#allocation2 + $0x58] sm:$0xff]
        %v419 = vld [vmem:[#allocation2 + $0x60] sm:$0xff]
        %v420 = vld [vmem:[#allocation2 + $0x68] sm:$0xff]
        %v421 = vld [vmem:[#allocation2 + $0x70] sm:$0xff]
        %v422 = vld [vmem:[#allocation2 + $0x78] sm:$0xff]
        %v423 = vld [vmem:[%s322] sm:$0xff]
        %v424 = vld [vmem:[%s322 + $0x8] sm:$0xff]
        %v425 = vld [vmem:[%s322 + $0x10] sm:$0xff]
        %v426 = vld [vmem:[%s322 + $0x18] sm:$0xff]
        %v427 = vld [vmem:[%s322 + $0x20] sm:$0xff]
        %v428 = vld [vmem:[%s322 + $0x28] sm:$0xff]
        %v429 = vld [vmem:[%s322 + $0x30] sm:$0xff]
        %v430 = vld [vmem:[%s322 + $0x38] sm:$0xff]
        %v431 = vld [vmem:[%s322 + $0x40] sm:$0xff]
        %v432 = vld [vmem:[%s322 + $0x48] sm:$0xff]
        %v433 = vld [vmem:[%s322 + $0x50] sm:$0xff]
        %v434 = vld [vmem:[%s322 + $0x58] sm:$0xff]
        %v435 = vld [vmem:[%s322 + $0x60] sm:$0xff]
        %v436 = vld [vmem:[%s322 + $0x68] sm:$0xff]
        %v437 = vld [vmem:[%s322 + $0x70] sm:$0xff]
        %v438 = vld [vmem:[%s322 + $0x78] sm:$0xff]
        %v439 = vld [vmem:[%s370] sm:$0xff]
        %v440 = vld [vmem:[%s370 + $0x8] sm:$0xff]
        %v441 = vld [vmem:[%s370 + $0x10] sm:$0xff]
        %v442 = vld [vmem:[%s370 + $0x18] sm:$0xff]
        %v443 = vld [vmem:[%s370 + $0x20] sm:$0xff]
        %v444 = vld [vmem:[%s370 + $0x28] sm:$0xff]
        %v445 = vld [vmem:[%s370 + $0x30] sm:$0xff]
        %v446 = vld [vmem:[%s370 + $0x38] sm:$0xff]
        %v447 = vld [vmem:[%s370 + $0x40] sm:$0xff]
        %v448 = vld [vmem:[%s370 + $0x48] sm:$0xff]
        %v449 = vld [vmem:[%s370 + $0x50] sm:$0xff]
        %v450 = vld [vmem:[%s370 + $0x58] sm:$0xff]
        %v451 = vld [vmem:[%s370 + $0x60] sm:$0xff]
        %v452 = vld [vmem:[%s370 + $0x68] sm:$0xff]
        %v453 = vld [vmem:[%s370 + $0x70] sm:$0xff]
        %v454 = vld [vmem:[%s370 + $0x78] sm:$0xff]
        %455 = vmatprep.subr.mxu0 0.0
        %456 = vmatpush1.msra.mxu0 %v439
        %457 = vmatprep.subr.mxu0 0.0
        %458 = vmatpush1.msra.mxu0 %v440
        %459 = vmatprep.subr.mxu0 0.0
        %460 = vmatpush1.msra.mxu0 %v441
        %461 = vmatprep.subr.mxu0 0.0
        %462 = vmatpush1.msra.mxu0 %v442
        %463 = vmatprep.subr.mxu0 0.0
        %464 = vmatpush1.msra.mxu0 %v443
        %465 = vmatprep.subr.mxu0 0.0
        %466 = vmatpush1.msra.mxu0 %v444
        %467 = vmatprep.subr.mxu0 0.0
        %468 = vmatpush1.msra.mxu0 %v445
        %469 = vmatprep.subr.mxu0 0.0
        %470 = vmatpush1.msra.mxu0 %v446
        %471 = vmatprep.subr.mxu0 0.0
        %472 = vmatpush1.msra.mxu0 %v447
        %473 = vmatprep.subr.mxu0 0.0
        %474 = vmatpush1.msra.mxu0 %v448
        %475 = vmatprep.subr.mxu0 0.0
        %476 = vmatpush1.msra.mxu0 %v449
        %477 = vmatprep.subr.mxu0 0.0
        %478 = vmatpush1.msra.mxu0 %v450
        %479 = vmatprep.subr.mxu0 0.0
        %480 = vmatpush1.msra.mxu0 %v451
        %481 = vmatprep.subr.mxu0 0.0
        %482 = vmatpush1.msra.mxu0 %v452
        %483 = vmatprep.subr.mxu0 0.0
        %484 = vmatpush1.msra.mxu0 %v453
        %485 = vmatprep.subr.mxu0 0.0
        %486 = vmatpush1.msra.mxu0 %v454
        %487 = vmatprep.subr.mxu0 0.0
        %488 = vmatpush1.msra.mxu0 0.0
        %489 = vmatprep.subr.mxu0 0.0
        %490 = vmatpush1.msra.mxu0 0.0
        %491 = vmatprep.subr.mxu0 0.0
        %492 = vmatpush1.msra.mxu0 0.0
        %493 = vmatprep.subr.mxu0 0.0
        %494 = vmatpush1.msra.mxu0 0.0
        %495 = vmatprep.subr.mxu0 0.0
        %496 = vmatpush1.msra.mxu0 0.0
        %497 = vmatprep.subr.mxu0 0.0
        %498 = vmatpush1.msra.mxu0 0.0
        %499 = vmatprep.subr.mxu0 0.0
        %500 = vmatpush1.msra.mxu0 0.0
        %501 = vmatprep.subr.mxu0 0.0
        %502 = vmatpush1.msra.mxu0 0.0
        %503 = vmatprep.subr.mxu0 0.0
        %504 = vmatpush1.msra.mxu0 0.0
        %505 = vmatprep.subr.mxu0 0.0
        %506 = vmatpush1.msra.mxu0 0.0
        %507 = vmatprep.subr.mxu0 0.0
        %508 = vmatpush1.msra.mxu0 0.0
        %509 = vmatprep.subr.mxu0 0.0
        %510 = vmatpush1.msra.mxu0 0.0
        %511 = vmatprep.subr.mxu0 0.0
        %512 = vmatpush1.msra.mxu0 0.0
        %513 = vmatprep.subr.mxu0 0.0
        %514 = vmatpush1.msra.mxu0 0.0
        %515 = vmatprep.subr.mxu0 0.0
        %516 = vmatpush1.msra.mxu0 0.0
        %517 = vmatprep.subr.mxu0 0.0
        %518 = vmatpush1.msra.mxu0 0.0
        %519 = vmatprep.mubr.f32.mxu0 0.0
        %520 = vmatmul.mubr.f32.gmra.mrb[0].mxu0 %v423
        %v521 = vpop.f32.mrb[0].mxu0
        %v522 = vadd.f32 0.0, %v521
        %v523 = vpop.f32.mrb[0].mxu0
        %524 = vmatprep.mubr.f32.mxu0 0.0
        %525 = vmatmul.mubr.f32.gmra.mrb[0].mxu0 %v424
        %v526 = vpop.f32.mrb[0].mxu0
        %v527 = vadd.f32 0.0, %v526
        %v528 = vpop.f32.mrb[0].mxu0
        %529 = vmatprep.mubr.f32.mxu0 0.0
        %530 = vmatmul.mubr.f32.gmra.mrb[0].mxu0 %v425
        %v531 = vpop.f32.mrb[0].mxu0
        %v532 = vadd.f32 0.0, %v531
        %v533 = vpop.f32.mrb[0].mxu0
        %534 = vmatprep.mubr.f32.mxu0 0.0
        %535 = vmatmul.mubr.f32.gmra.mrb[0].mxu0 %v426
        %v536 = vpop.f32.mrb[0].mxu0
        %v537 = vadd.f32 0.0, %v536
        %v538 = vpop.f32.mrb[0].mxu0
        %539 = vmatprep.mubr.f32.mxu0 0.0
        %540 = vmatmul.mubr.f32.gmra.mrb[0].mxu0 %v427
        %v541 = vpop.f32.mrb[0].mxu0
        %v542 = vadd.f32 0.0, %v541
        %v543 = vpop.f32.mrb[0].mxu0
        %544 = vmatprep.mubr.f32.mxu0 0.0
        %545 = vmatmul.mubr.f32.gmra.mrb[0].mxu0 %v428
        %v546 = vpop.f32.mrb[0].mxu0
        %v547 = vadd.f32 0.0, %v546
        %v548 = vpop.f32.mrb[0].mxu0
        %549 = vmatprep.mubr.f32.mxu0 0.0
        %550 = vmatmul.mubr.f32.gmra.mrb[0].mxu0 %v429
        %v551 = vpop.f32.mrb[0].mxu0
        %v552 = vadd.f32 0.0, %v551
        %v553 = vpop.f32.mrb[0].mxu0
        %554 = vmatprep.mubr.f32.mxu0 0.0
        %555 = vmatmul.mubr.f32.gmra.mrb[0].mxu0 %v430
        %v556 = vpop.f32.mrb[0].mxu0
        %v557 = vadd.f32 0.0, %v556
        %v558 = vpop.f32.mrb[0].mxu0
        %559 = vmatprep.mubr.f32.mxu0 0.0
        %560 = vmatmul.mubr.f32.gmra.mrb[0].mxu0 %v431
        %v561 = vpop.f32.mrb[0].mxu0
        %v562 = vadd.f32 0.0, %v561
        %v563 = vpop.f32.mrb[0].mxu0
        %564 = vmatprep.mubr.f32.mxu0 0.0
        %565 = vmatmul.mubr.f32.gmra.mrb[0].mxu0 %v432
        %v566 = vpop.f32.mrb[0].mxu0
        %v567 = vadd.f32 0.0, %v566
        %v568 = vpop.f32.mrb[0].mxu0
        %569 = vmatprep.mubr.f32.mxu0 0.0
        %570 = vmatmul.mubr.f32.gmra.mrb[0].mxu0 %v433
        %v571 = vpop.f32.mrb[0].mxu0
        %v572 = vadd.f32 0.0, %v571
        %v573 = vpop.f32.mrb[0].mxu0
        %574 = vmatprep.mubr.f32.mxu0 0.0
        %575 = vmatmul.mubr.f32.gmra.mrb[0].mxu0 %v434
        %v576 = vpop.f32.mrb[0].mxu0
        %v577 = vadd.f32 0.0, %v576
        %v578 = vpop.f32.mrb[0].mxu0
        %579 = vmatprep.mubr.f32.mxu0 0.0
        %580 = vmatmul.mubr.f32.gmra.mrb[0].mxu0 %v435
        %v581 = vpop.f32.mrb[0].mxu0
        %v582 = vadd.f32 0.0, %v581
        %v583 = vpop.f32.mrb[0].mxu0
        %584 = vmatprep.mubr.f32.mxu0 0.0
        %585 = vmatmul.mubr.f32.gmra.mrb[0].mxu0 %v436
        %v586 = vpop.f32.mrb[0].mxu0
        %v587 = vadd.f32 0.0, %v586
        %v588 = vpop.f32.mrb[0].mxu0
        %589 = vmatprep.mubr.f32.mxu0 0.0
        %590 = vmatmul.mubr.f32.gmra.mrb[0].mxu0 %v437
        %v591 = vpop.f32.mrb[0].mxu0
        %v592 = vadd.f32 0.0, %v591
        %v593 = vpop.f32.mrb[0].mxu0
        %594 = vmatprep.mubr.f32.mxu0 0.0
        %595 = vmatmul.mubr.f32.gmra.mrb[0].mxu0 %v438
        %v596 = vpop.f32.mrb[0].mxu0
        %v597 = vadd.f32 0.0, %v596
        %v598 = vpop.f32.mrb[0].mxu0
        %599 = vdwg.mxu0
        %v600 = vadd.f32 %v407, %v522
        %v601 = vadd.f32 %v408, %v527
        %v602 = vadd.f32 %v409, %v532
        %v603 = vadd.f32 %v410, %v537
        %v604 = vadd.f32 %v411, %v542
        %v605 = vadd.f32 %v412, %v547
        %v606 = vadd.f32 %v413, %v552
        %v607 = vadd.f32 %v414, %v557
        %v608 = vadd.f32 %v415, %v562
        %v609 = vadd.f32 %v416, %v567
        %v610 = vadd.f32 %v417, %v572
        %v611 = vadd.f32 %v418, %v577
        %v612 = vadd.f32 %v419, %v582
        %v613 = vadd.f32 %v420, %v587
        %v614 = vadd.f32 %v421, %v592
        %v615 = vadd.f32 %v422, %v597
        %616 = vst [vmem:[#allocation2] sm:$0xff] %v600
        %617 = vst [vmem:[#allocation2 + $0x8] sm:$0xff] %v601
        %618 = vst [vmem:[#allocation2 + $0x10] sm:$0xff] %v602
        %619 = vst [vmem:[#allocation2 + $0x18] sm:$0xff] %v603
        %620 = vst [vmem:[#allocation2 + $0x20] sm:$0xff] %v604
        %621 = vst [vmem:[#allocation2 + $0x28] sm:$0xff] %v605
        %622 = vst [vmem:[#allocation2 + $0x30] sm:$0xff] %v606
        %623 = vst [vmem:[#allocation2 + $0x38] sm:$0xff] %v607
        %624 = vst [vmem:[#allocation2 + $0x40] sm:$0xff] %v608
        %625 = vst [vmem:[#allocation2 + $0x48] sm:$0xff] %v609
        %626 = vst [vmem:[#allocation2 + $0x50] sm:$0xff] %v610
        %627 = vst [vmem:[#allocation2 + $0x58] sm:$0xff] %v611
        %628 = vst [vmem:[#allocation2 + $0x60] sm:$0xff] %v612
        %629 = vst [vmem:[#allocation2 + $0x68] sm:$0xff] %v613
        %630 = vst [vmem:[#allocation2 + $0x70] sm:$0xff] %v614
        %631 = vst [vmem:[#allocation2 + $0x78] sm:$0xff] %v615
        %p632 = scmp.eq.s32.totalorder %s22, 1
        // Predicated region
        $region79: #{forward.16} parent=69 // pred_check
          %p633 = pneg %p632
        $region80: #{forward.16} parent=69 // pred_check_branch
          %635 = sbr.rel (%p633) target = $region82
        $region81: #{forward.16} parent=69 // pred_region
          %v636 = vld [vmem:[#allocation2] sm:$0xff]
          %v637 = vld [vmem:[#allocation2 + $0x8] sm:$0xff]
          %v638 = vld [vmem:[#allocation2 + $0x10] sm:$0xff]
          %v639 = vld [vmem:[#allocation2 + $0x18] sm:$0xff]
          %v640 = vld [vmem:[#allocation2 + $0x20] sm:$0xff]
          %v641 = vld [vmem:[#allocation2 + $0x28] sm:$0xff]
          %v642 = vld [vmem:[#allocation2 + $0x30] sm:$0xff]
          %v643 = vld [vmem:[#allocation2 + $0x38] sm:$0xff]
          %v644 = vld [vmem:[#allocation2 + $0x40] sm:$0xff]
          %v645 = vld [vmem:[#allocation2 + $0x48] sm:$0xff]
          %v646 = vld [vmem:[#allocation2 + $0x50] sm:$0xff]
          %v647 = vld [vmem:[#allocation2 + $0x58] sm:$0xff]
          %v648 = vld [vmem:[#allocation2 + $0x60] sm:$0xff]
          %v649 = vld [vmem:[#allocation2 + $0x68] sm:$0xff]
          %v650 = vld [vmem:[#allocation2 + $0x70] sm:$0xff]
          %v651 = vld [vmem:[#allocation2 + $0x78] sm:$0xff]
          %v652 = vld [vmem:[%s374] sm:$0x1]
          %v653 = vld [vmem:[%s377] sm:$0x1]
          %v655 = vlaneseq
          %v656 = vshrl.u32 %v655, 7
          %v657 = vsub.s32 0, %v656
          %v658 = vrot.slane %v652, %v657
          %v660 = vmul.f32 %v636, %v658
          %v661 = vmul.f32 %v637, %v658
          %v662 = vmul.f32 %v638, %v658
          %v663 = vmul.f32 %v639, %v658
          %v664 = vmul.f32 %v640, %v658
          %v665 = vmul.f32 %v641, %v658
          %v666 = vmul.f32 %v642, %v658
          %v667 = vmul.f32 %v643, %v658
          %v668 = vmul.f32 %v644, %v658
          %v669 = vmul.f32 %v645, %v658
          %v670 = vmul.f32 %v646, %v658
          %v671 = vmul.f32 %v647, %v658
          %v672 = vmul.f32 %v648, %v658
          %v673 = vmul.f32 %v649, %v658
          %v674 = vmul.f32 %v650, %v658
          %v675 = vmul.f32 %v651, %v658
          %v677 = vlaneseq
          %v678 = vshrl.u32 %v677, 7
          %v679 = vsub.s32 0, %v678
          %v680 = vrot.slane %v653, %v679
          %v682 = vadd.f32 %v660, %v680
          %v683 = vadd.f32 %v661, %v680
          %v684 = vadd.f32 %v662, %v680
          %v685 = vadd.f32 %v663, %v680
          %v686 = vadd.f32 %v664, %v680
          %v687 = vadd.f32 %v665, %v680
          %v688 = vadd.f32 %v666, %v680
          %v689 = vadd.f32 %v667, %v680
          %v690 = vadd.f32 %v668, %v680
          %v691 = vadd.f32 %v669, %v680
          %v692 = vadd.f32 %v670, %v680
          %v693 = vadd.f32 %v671, %v680
          %v694 = vadd.f32 %v672, %v680
          %v695 = vadd.f32 %v673, %v680
          %v696 = vadd.f32 %v674, %v680
          %v697 = vadd.f32 %v675, %v680
          %v698 = vmax.f32 %v682, 0.0
          %v699 = vmax.f32 %v683, 0.0
          %v700 = vmax.f32 %v684, 0.0
          %v701 = vmax.f32 %v685, 0.0
          %v702 = vmax.f32 %v686, 0.0
          %v703 = vmax.f32 %v687, 0.0
          %v704 = vmax.f32 %v688, 0.0
          %v705 = vmax.f32 %v689, 0.0
          %v706 = vmax.f32 %v690, 0.0
          %v707 = vmax.f32 %v691, 0.0
          %v708 = vmax.f32 %v692, 0.0
          %v709 = vmax.f32 %v693, 0.0
          %v710 = vmax.f32 %v694, 0.0
          %v711 = vmax.f32 %v695, 0.0
          %v712 = vmax.f32 %v696, 0.0
          %v713 = vmax.f32 %v697, 0.0
          %714 = vst [vmem:[%s385] sm:$0xff] %v698
          %715 = vst [vmem:[%s385 + $0x8] sm:$0xff] %v699
          %716 = vst [vmem:[%s385 + $0x10] sm:$0xff] %v700
          %717 = vst [vmem:[%s385 + $0x18] sm:$0xff] %v701
          %718 = vst [vmem:[%s385 + $0x20] sm:$0xff] %v702
          %719 = vst [vmem:[%s385 + $0x28] sm:$0xff] %v703
          %720 = vst [vmem:[%s385 + $0x30] sm:$0xff] %v704
          %721 = vst [vmem:[%s385 + $0x38] sm:$0xff] %v705
          %722 = vst [vmem:[%s385 + $0x40] sm:$0xff] %v706
          %723 = vst [vmem:[%s385 + $0x48] sm:$0xff] %v707
          %724 = vst [vmem:[%s385 + $0x50] sm:$0xff] %v708
          %725 = vst [vmem:[%s385 + $0x58] sm:$0xff] %v709
          %726 = vst [vmem:[%s385 + $0x60] sm:$0xff] %v710
          %727 = vst [vmem:[%s385 + $0x68] sm:$0xff] %v711
          %728 = vst [vmem:[%s385 + $0x70] sm:$0xff] %v712
          %729 = vst [vmem:[%s385 + $0x78] sm:$0xff] %v713
        $region82: #{forward.16} parent=69 // pred_fallthru
          _
        %s730 = smul.u32 16, %s20
        %p731 = scmp.lt.s32.totalorder %s730, 15
        %s732 = scalar_select %p731, %s730, 15
        %p733 = scmp.lt.s32.totalorder %s21, 0
        %s734 = scalar_select %p733, %s21, 0
        %s735 = sadd.s32 %s734, %s732
        %s736 = smul.addr %s735, 8
        %s737 = scalar_lea.vmem %s4, %s736
        // Predicated region
        $region83: #{forward.16} parent=69 // pred_check
          %p738 = pneg %p162
        $region84: #{forward.16} parent=69 // pred_check_branch
          %740 = sbr.rel (%p738) target = $region86
        $region85: #{forward.16} parent=69 // pred_region
          %s741 = smul.u32 16, %s20
        $region86: #{forward.16} parent=69 // pred_fallthru
          _
        // Predicated region
        $region87: #{forward.16} parent=69 // pred_check
          %p742 = pneg %p162
        $region88: #{forward.16} parent=69 // pred_check_branch
          %744 = sbr.rel (%p742) target = $region90
        $region89: #{forward.16} parent=69 // pred_region
          %s745 = smul.u32 16, %s20
          %p746 = scmp.lt.s32.totalorder %s745, 15
          %s747 = scalar_select %p746, %s745, 15
          %p748 = scmp.lt.s32.totalorder %s21, 0
          %s749 = scalar_select %p748, %s21, 0
          %s750 = sadd.s32 %s749, %s747
          %s751 = smul.addr %s750, 8
          %s752 = scalar_lea.vmem %s4, %s751
        $region90: #{forward.16} parent=69 // pred_fallthru
          _
      $region70: #{forward.16} parent=5 // pred_fallthru
        _
      %p753 = scmp.le.s32.totalorder 2, %s10
      // Predicated region
      $region91: #{forward.16} parent=5 // pred_check
        %p754 = pneg %p753
      $region92: #{forward.16} parent=5 // pred_check_branch
        %756 = sbr.rel (%p754) target = $region94
      $region93: #{forward.16} parent=5 // pred_region
        %s757 = ssub.s32 %s10, 2
      $region94: #{forward.16} parent=5 // pred_fallthru
        _
    $region6: #{forward.16} parent=1 // loop_footer
      %s14 = sadd.s32 1, %s10
    $region7: #{forward.16} parent=1 // loop_footer_branch
      %9 = sbr.rel target = $region3
    $region8: #{forward.16} parent=1 // loop_exit
      _

// kernel: forward.18
$region0: #{forward.18}
  #allocation0 [shape = 'u32[]', space=smem, size = 0x4, offset = 0x4, fixed_abs, tag = 'smem constant byte address 0x4 - core index']
  #allocation1 [shape = 'u32[144,128]{1,0:T(1,128)}', space=vmem, size = 0x12000, scoped, tag = 'internal scratch']
  #allocation2 [shape = 'f32[128,128]{1,0:T(8,128)}', space=vmem, size = 0x10000, scoped, tag = 'scratch operand']
  %s0 = inlined_call_operand.vmem [shape: f32[128,640], index: 0, kind: input, shape index: {}]
  %s1 = inlined_call_operand.vmem [shape: f32[640,128], index: 1, kind: input, shape index: {}]
  %s2 = inlined_call_operand.vmem [shape: f32[1,128], index: 2, kind: input, shape index: {}]
  %s3 = inlined_call_operand.vmem [shape: f32[1,128], index: 3, kind: input, shape index: {}]
  %s4 = inlined_call_operand.vmem [shape: f32[128,128], index: 4, kind: output, shape index: {}]
  %s5 = sld [smem:[#allocation0]]
  $region95: #{forward.18} parent=0
    _
  %s7 = ssub.s32 1, %s5
  %s8 = scalar_select 0, %s7, %s5
  $region1: #{forward.18} parent=0
    #allocation3 [shape = 'u8[131072]{0}', space=vmem, size = 0x20000, scoped, tag = 'input window, operand 0']
    loop: start=0, step=1, limit=7
    $region2: #{forward.18} parent=1 // loop_pre_header
      _
    $region3: #{forward.18} parent=1 // loop_header
      %s10 = sphi 0, %s14
      %p11 = scmp.ge.s32.totalorder %s10, 7
      %s17 = sphi 0, %s36
      %s18 = sphi 0, %s32
      %s19 = sphi 0, %s28
      %s20 = sphi 0, %s17
      %s21 = sphi 0, %s18
      %s22 = sphi 0, %s19
      %s23 = sphi 0, %s20
      %s24 = sphi 0, %s21
      %s25 = sphi 0, %s22
      %s41 = sphi 0, %s43
      %s44 = sphi 0, %s41
      %s45 = sphi 0, %s44
      %s61 = sphi 0, %s45
      %s69 = sphi 0, %s71
      %s72 = sphi 0, %s69
      %s73 = sphi 0, %s72
      %s89 = sphi 0, %s73
      %s95 = sphi 0, %s97
      %s98 = sphi 0, %s95
      %s99 = sphi 0, %s98
      %s115 = sphi 0, %s99
      %s121 = sphi 0, %s123
      %s124 = sphi 0, %s121
      %s125 = sphi 0, %s124
      %s141 = sphi 0, %s125
      %s149 = sphi 0, %s151
      %s152 = sphi 0, %s149
      %s153 = sphi 0, %s152
      %s169 = sphi 0, %s153
    $region4: #{forward.18} parent=1 // loop_header_branch
      %13 = sbr.rel (%p11) target = $region8
    $region5: #{forward.18} parent=1 // loop_body
      %s15 = ssub.s32 %s10, 1
      %s16 = ssub.s32 %s10, 2
      %s26 = sadd.s32 1, %s19
      %p27 = scmp.ge.s32.totalorder %s26, 5
      %s28 = scalar_select %p27, 0, %s26
      %s29 = sadd.s32 1, %s18
      %s30 = scalar_select %p27, %s29, %s18
      %p31 = scmp.ge.s32.totalorder %s30, 1
      %s32 = scalar_select %p31, 0, %s30
      %s33 = sadd.s32 1, %s17
      %s34 = scalar_select %p31, %s33, %s17
      %p35 = scmp.ge.s32.totalorder %s34, 1
      %s36 = scalar_select %p35, 0, %s34
      %s37 = ssub.s32 %s17, %s36
      %s38 = ssub.s32 %s19, %s28
      %s39 = sor.u32 %s37, %s38
      %p40 = scmp.eq.s32.totalorder %s39, 0
      %s42 = sadd.s32 %s41, 1
      %s43 = scalar_select %p40, %s41, %s42
      %p46 = pneg %p40
      %p47 = scmp.eq.s32.totalorder %s10, 4
      %p48 = por %p46, %p47
      %p49 = scmp.ne.s32.totalorder %s41, %s44
      %p50 = scmp.eq.s32.totalorder %s10, 0
      %p51 = por %p49, %p50
      %p52 = scmp.ne.s32.totalorder %s41, %s44
      %p53 = scmp.eq.s32.totalorder %s15, 4
      %p54 = por %p52, %p53
      %p55 = scmp.ne.s32.totalorder %s44, %s45
      %p56 = scmp.eq.s32.totalorder %s15, 0
      %p57 = por %p55, %p56
      %p58 = scmp.ne.s32.totalorder %s44, %s45
      %p59 = scmp.eq.s32.totalorder %s16, 4
      %p60 = por %p58, %p59
      %p62 = scmp.ne.s32.totalorder %s45, %s61
      %p63 = scmp.eq.s32.totalorder %s16, 0
      %p64 = por %p62, %p63
      %s65 = ssub.s32 %s19, %s28
      %s66 = ssub.s32 %s18, %s32
      %s67 = sor.u32 %s65, %s66
      %p68 = scmp.eq.s32.totalorder %s67, 0
      %s70 = sadd.s32 %s69, 1
      %s71 = scalar_select %p68, %s69, %s70
      %p74 = pneg %p68
      %p75 = scmp.eq.s32.totalorder %s10, 4
      %p76 = por %p74, %p75
      %p77 = scmp.ne.s32.totalorder %s69, %s72
      %p78 = scmp.eq.s32.totalorder %s10, 0
      %p79 = por %p77, %p78
      %p80 = scmp.ne.s32.totalorder %s69, %s72
      %p81 = scmp.eq.s32.totalorder %s15, 4
      %p82 = por %p80, %p81
      %p83 = scmp.ne.s32.totalorder %s72, %s73
      %p84 = scmp.eq.s32.totalorder %s15, 0
      %p85 = por %p83, %p84
      %p86 = scmp.ne.s32.totalorder %s72, %s73
      %p87 = scmp.eq.s32.totalorder %s16, 4
      %p88 = por %p86, %p87
      %p90 = scmp.ne.s32.totalorder %s73, %s89
      %p91 = scmp.eq.s32.totalorder %s16, 0
      %p92 = por %p90, %p91
      %s93 = ssub.s32 %s18, %s32
      %p94 = scmp.eq.s32.totalorder %s93, 0
      %s96 = sadd.s32 %s95, 1
      %s97 = scalar_select %p94, %s95, %s96
      %p100 = pneg %p94
      %p101 = scmp.eq.s32.totalorder %s10, 4
      %p102 = por %p100, %p101
      %p103 = scmp.ne.s32.totalorder %s95, %s98
      %p104 = scmp.eq.s32.totalorder %s10, 0
      %p105 = por %p103, %p104
      %p106 = scmp.ne.s32.totalorder %s95, %s98
      %p107 = scmp.eq.s32.totalorder %s15, 4
      %p108 = por %p106, %p107
      %p109 = scmp.ne.s32.totalorder %s98, %s99
      %p110 = scmp.eq.s32.totalorder %s15, 0
      %p111 = por %p109, %p110
      %p112 = scmp.ne.s32.totalorder %s98, %s99
      %p113 = scmp.eq.s32.totalorder %s16, 4
      %p114 = por %p112, %p113
      %p116 = scmp.ne.s32.totalorder %s99, %s115
      %p117 = scmp.eq.s32.totalorder %s16, 0
      %p118 = por %p116, %p117
      %s119 = ssub.s32 %s18, %s32
      %p120 = scmp.eq.s32.totalorder %s119, 0
      %s122 = sadd.s32 %s121, 1
      %s123 = scalar_select %p120, %s121, %s122
      %p126 = pneg %p120
      %p127 = scmp.eq.s32.totalorder %s10, 4
      %p128 = por %p126, %p127
      %p129 = scmp.ne.s32.totalorder %s121, %s124
      %p130 = scmp.eq.s32.totalorder %s10, 0
      %p131 = por %p129, %p130
      %p132 = scmp.ne.s32.totalorder %s121, %s124
      %p133 = scmp.eq.s32.totalorder %s15, 4
      %p134 = por %p132, %p133
      %p135 = scmp.ne.s32.totalorder %s124, %s125
      %p136 = scmp.eq.s32.totalorder %s15, 0
      %p137 = por %p135, %p136
      %p138 = scmp.ne.s32.totalorder %s124, %s125
      %p139 = scmp.eq.s32.totalorder %s16, 4
      %p140 = por %p138, %p139
      %p142 = scmp.ne.s32.totalorder %s125, %s141
      %p143 = scmp.eq.s32.totalorder %s16, 0
      %p144 = por %p142, %p143
      %s145 = ssub.s32 %s17, %s36
      %s146 = ssub.s32 %s18, %s32
      %s147 = sor.u32 %s145, %s146
      %p148 = scmp.eq.s32.totalorder %s147, 0
      %s150 = sadd.s32 %s149, 1
      %s151 = scalar_select %p148, %s149, %s150
      %p154 = pneg %p148
      %p155 = scmp.eq.s32.totalorder %s10, 4
      %p156 = por %p154, %p155
      %p157 = scmp.ne.s32.totalorder %s149, %s152
      %p158 = scmp.eq.s32.totalorder %s10, 0
      %p159 = por %p157, %p158
      %p160 = scmp.ne.s32.totalorder %s149, %s152
      %p161 = scmp.eq.s32.totalorder %s15, 4
      %p162 = por %p160, %p161
      %p163 = scmp.ne.s32.totalorder %s152, %s153
      %p164 = scmp.eq.s32.totalorder %s15, 0
      %p165 = por %p163, %p164
      %p166 = scmp.ne.s32.totalorder %s152, %s153
      %p167 = scmp.eq.s32.totalorder %s16, 4
      %p168 = por %p166, %p167
      %p170 = scmp.ne.s32.totalorder %s153, %s169
      %p171 = scmp.eq.s32.totalorder %s16, 0
      %p172 = por %p170, %p171
      %p173 = scmp.le.s32.totalorder 1, %s10
      %p174 = scmp.lt.s32.totalorder %s10, 6
      %p175 = pnand %p173, %p174
      %p176 = pneg %p175
      // Predicated region
      $region9: #{forward.18} parent=5 // pred_check
        _
      $region10: #{forward.18} parent=5 // pred_check_branch
        %178 = sbr.rel (%p175) target = $region12
      $region11: #{forward.18} parent=5 // pred_region
        %s179 = ssub.s32 %s10, 1
        // Predicated region
        $region13: #{forward.18} parent=11 // pred_check
          %p180 = pneg %p111
        $region14: #{forward.18} parent=11 // pred_check_branch
          %182 = sbr.rel (%p180) target = $region16
        $region15: #{forward.18} parent=11 // pred_region
          %p183 = scmp.lt.s32.totalorder %s21, 0
          %s184 = scalar_select %p183, %s21, 0
          %s185 = scalar_lea.vmem %s2, %s184
        $region16: #{forward.18} parent=11 // pred_fallthru
          _
        // Predicated region
        $region17: #{forward.18} parent=11 // pred_check
          %p186 = pneg %p137
        $region18: #{forward.18} parent=11 // pred_check_branch
          %188 = sbr.rel (%p186) target = $region20
        $region19: #{forward.18} parent=11 // pred_region
          %p189 = scmp.lt.s32.totalorder %s21, 0
          %s190 = scalar_select %p189, %s21, 0
          %s191 = scalar_lea.vmem %s3, %s190
        $region20: #{forward.18} parent=11 // pred_fallthru
          _
      $region12: #{forward.18} parent=5 // pred_fallthru
        _
      %p192 = scmp.lt.s32.totalorder %s10, 5
      // Predicated region
      $region21: #{forward.18} parent=5 // pred_check
        %p193 = pneg %p192
      $region22: #{forward.18} parent=5 // pred_check_branch
        %195 = sbr.rel (%p193) target = $region24
      $region23: #{forward.18} parent=5 // pred_region
        // Predicated region
        $region25: #{forward.18} parent=23 // pred_check
          %p196 = pneg %p51
        $region26: #{forward.18} parent=23 // pred_check_branch
          %198 = sbr.rel (%p196) target = $region28
        $region27: #{forward.18} parent=23 // pred_region
          %s199 = sand.u32 %s41, 1
          %s200 = sand.u32 %s41, 1
          %s201 = smul.addr %s200, 128
          %s202 = scalar_lea.vmem [#allocation3], %s201
          %s203 = smul.u32 16, %s17
          %s204 = smul.addr %s203, 5
          %s205 = sadd.s32 %s19, %s204
          %s206 = smul.addr %s205, 8
          %s207 = scalar_lea.vmem %s0, %s206
          // Predicated region
          $region29: #{forward.18} parent=27 // pred_check
            _
          $region30: #{forward.18} parent=27 // pred_check_branch
            %209 = sbr.rel (0) target = $region32
          $region31: #{forward.18} parent=27 // pred_region
            // Predicated region
            $region33: #{forward.18} parent=31 // pred_check
              _
            $region34: #{forward.18} parent=31 // pred_check_branch
              %211 = sbr.rel (0) target = $region36
            $region35: #{forward.18} parent=31 // pred_region
              // Predicated region
              $region48: #{forward.18} parent=35 // pred_check
                _
              $region49: #{forward.18} parent=35 // pred_check_branch
                %256 = sbr.rel (0) target = $region51
              $region50: #{forward.18} parent=35 // pred_region
                loop: start=0, step=1, limit=1
                $region52: #{forward.18} parent=50 // loop_pre_header
                  _
                $region53: #{forward.18} parent=50 // loop_header
                  %s258 = sphi 0, %s262
                  %p259 = scmp.ge.s32.totalorder %s258, 1
                  %s263 = sphi %s207, %s207
                  %s264 = sphi %s202, %s202
                $region54: #{forward.18} parent=50 // loop_header_branch
                  %261 = sbr.rel (%p259) target = $region58
                $region55: #{forward.18} parent=50 // loop_body
                  %v265 = vld [vmem:[%s263] sm:$0xff]
                  %266 = vst [vmem:[%s264] sm:$0xff] %v265
                  %v267 = vld [vmem:[%s263 + $0x28] sm:$0xff]
                  %268 = vst [vmem:[%s264 + $0x8] sm:$0xff] %v267
                  %v269 = vld [vmem:[%s263 + $0x50] sm:$0xff]
                  %270 = vst [vmem:[%s264 + $0x10] sm:$0xff] %v269
                  %v271 = vld [vmem:[%s263 + $0x78] sm:$0xff]
                  %272 = vst [vmem:[%s264 + $0x18] sm:$0xff] %v271
                  %v273 = vld [vmem:[%s263 + $0xa0] sm:$0xff]
                  %274 = vst [vmem:[%s264 + $0x20] sm:$0xff] %v273
                  %v275 = vld [vmem:[%s263 + $0xc8] sm:$0xff]
                  %276 = vst [vmem:[%s264 + $0x28] sm:$0xff] %v275
                  %v277 = vld [vmem:[%s263 + $0xf0] sm:$0xff]
                  %278 = vst [vmem:[%s264 + $0x30] sm:$0xff] %v277
                  %v279 = vld [vmem:[%s263 + $0x118] sm:$0xff]
                  %280 = vst [vmem:[%s264 + $0x38] sm:$0xff] %v279
                  %v281 = vld [vmem:[%s263 + $0x140] sm:$0xff]
                  %282 = vst [vmem:[%s264 + $0x40] sm:$0xff] %v281
                  %v283 = vld [vmem:[%s263 + $0x168] sm:$0xff]
                  %284 = vst [vmem:[%s264 + $0x48] sm:$0xff] %v283
                  %v285 = vld [vmem:[%s263 + $0x190] sm:$0xff]
                  %286 = vst [vmem:[%s264 + $0x50] sm:$0xff] %v285
                  %v287 = vld [vmem:[%s263 + $0x1b8] sm:$0xff]
                  %288 = vst [vmem:[%s264 + $0x58] sm:$0xff] %v287
                  %v289 = vld [vmem:[%s263 + $0x1e0] sm:$0xff]
                  %290 = vst [vmem:[%s264 + $0x60] sm:$0xff] %v289
                  %v291 = vld [vmem:[%s263 + $0x208] sm:$0xff]
                  %292 = vst [vmem:[%s264 + $0x68] sm:$0xff] %v291
                  %v293 = vld [vmem:[%s263 + $0x230] sm:$0xff]
                  %294 = vst [vmem:[%s264 + $0x70] sm:$0xff] %v293
                  %v295 = vld [vmem:[%s263 + $0x258] sm:$0xff]
                  %296 = vst [vmem:[%s264 + $0x78] sm:$0xff] %v295
                $region56: #{forward.18} parent=50 // loop_footer
                  %s262 = sadd.s32 1, %s258
                $region57: #{forward.18} parent=50 // loop_footer_branch
                  %257 = sbr.rel target = $region53
                $region58: #{forward.18} parent=50 // loop_exit
                  _
              $region51: #{forward.18} parent=35 // pred_fallthru
                _
              // Predicated region
              $region59: #{forward.18} parent=35 // pred_check
                _
              $region60: #{forward.18} parent=35 // pred_check_branch
                %298 = sbr.rel target = $region62
              $region61: #{forward.18} parent=35 // pred_region
                _
              $region62: #{forward.18} parent=35 // pred_fallthru
                _
            $region36: #{forward.18} parent=31 // pred_fallthru
              _
            // Predicated region
            $region37: #{forward.18} parent=31 // pred_check
              _
            $region38: #{forward.18} parent=31 // pred_check_branch
              %213 = sbr.rel target = $region40
            $region39: #{forward.18} parent=31 // pred_region
              loop: start=0, step=1, limit=1
              $region41: #{forward.18} parent=39 // loop_pre_header
                _
              $region42: #{forward.18} parent=39 // loop_header
                %s216 = sphi 0, %s220
                %p217 = scmp.ge.s32.totalorder %s216, 1
                %s221 = sphi %s207, %s207
                %s222 = sphi %s202, %s202
              $region43: #{forward.18} parent=39 // loop_header_branch
                %219 = sbr.rel (%p217) target = $region47
              $region44: #{forward.18} parent=39 // loop_body
                %v223 = vld [vmem:[%s221] sm:$0xff]
                %224 = vst [vmem:[%s222] sm:$0xff] %v223
                %v225 = vld [vmem:[%s221 + $0x28] sm:$0xff]
                %226 = vst [vmem:[%s222 + $0x8] sm:$0xff] %v225
                %v227 = vld [vmem:[%s221 + $0x50] sm:$0xff]
                %228 = vst [vmem:[%s222 + $0x10] sm:$0xff] %v227
                %v229 = vld [vmem:[%s221 + $0x78] sm:$0xff]
                %230 = vst [vmem:[%s222 + $0x18] sm:$0xff] %v229
                %v231 = vld [vmem:[%s221 + $0xa0] sm:$0xff]
                %232 = vst [vmem:[%s222 + $0x20] sm:$0xff] %v231
                %v233 = vld [vmem:[%s221 + $0xc8] sm:$0xff]
                %234 = vst [vmem:[%s222 + $0x28] sm:$0xff] %v233
                %v235 = vld [vmem:[%s221 + $0xf0] sm:$0xff]
                %236 = vst [vmem:[%s222 + $0x30] sm:$0xff] %v235
                %v237 = vld [vmem:[%s221 + $0x118] sm:$0xff]
                %238 = vst [vmem:[%s222 + $0x38] sm:$0xff] %v237
                %v239 = vld [vmem:[%s221 + $0x140] sm:$0xff]
                %240 = vst [vmem:[%s222 + $0x40] sm:$0xff] %v239
                %v241 = vld [vmem:[%s221 + $0x168] sm:$0xff]
                %242 = vst [vmem:[%s222 + $0x48] sm:$0xff] %v241
                %v243 = vld [vmem:[%s221 + $0x190] sm:$0xff]
                %244 = vst [vmem:[%s222 + $0x50] sm:$0xff] %v243
                %v245 = vld [vmem:[%s221 + $0x1b8] sm:$0xff]
                %246 = vst [vmem:[%s222 + $0x58] sm:$0xff] %v245
                %v247 = vld [vmem:[%s221 + $0x1e0] sm:$0xff]
                %248 = vst [vmem:[%s222 + $0x60] sm:$0xff] %v247
                %v249 = vld [vmem:[%s221 + $0x208] sm:$0xff]
                %250 = vst [vmem:[%s222 + $0x68] sm:$0xff] %v249
                %v251 = vld [vmem:[%s221 + $0x230] sm:$0xff]
                %252 = vst [vmem:[%s222 + $0x70] sm:$0xff] %v251
                %v253 = vld [vmem:[%s221 + $0x258] sm:$0xff]
                %254 = vst [vmem:[%s222 + $0x78] sm:$0xff] %v253
              $region45: #{forward.18} parent=39 // loop_footer
                %s220 = sadd.s32 1, %s216
              $region46: #{forward.18} parent=39 // loop_footer_branch
                %215 = sbr.rel target = $region42
              $region47: #{forward.18} parent=39 // loop_exit
                _
            $region40: #{forward.18} parent=31 // pred_fallthru
              _
          $region32: #{forward.18} parent=27 // pred_fallthru
            _
          %299 = vnop
        $region28: #{forward.18} parent=23 // pred_fallthru
          _
        // Predicated region
        $region63: #{forward.18} parent=23 // pred_check
          %p300 = pneg %p79
        $region64: #{forward.18} parent=23 // pred_check_branch
          %302 = sbr.rel (%p300) target = $region66
        $region65: #{forward.18} parent=23 // pred_region
          %s303 = smul.u32 16, %s19
          %p304 = scmp.lt.s32.totalorder %s303, 79
          %s305 = scalar_select %p304, %s303, 79
          %p306 = scmp.lt.s32.totalorder %s18, 0
          %s307 = scalar_select %p306, %s18, 0
          %s308 = sadd.s32 %s307, %s305
          %s309 = smul.addr %s308, 8
          %s310 = scalar_lea.vmem %s1, %s309
          %s311 = smul.u32 16, %s19
        $region66: #{forward.18} parent=23 // pred_fallthru
          _
      $region24: #{forward.18} parent=5 // pred_fallthru
        _
      %p312 = scmp.le.s32.totalorder 1, %s10
      %p313 = scmp.lt.s32.totalorder %s10, 6
      %p314 = pnand %p312, %p313
      %p315 = pneg %p314
      // Predicated region
      $region67: #{forward.18} parent=5 // pred_check
        _
      $region68: #{forward.18} parent=5 // pred_check_branch
        %317 = sbr.rel (%p314) target = $region70
      $region69: #{forward.18} parent=5 // pred_region
        %s318 = ssub.s32 %s10, 1
        %s319 = sand.u32 %s44, 1
        %s320 = sand.u32 %s44, 1
        %s321 = smul.addr %s320, 128
        %s322 = scalar_lea.vmem [#allocation3], %s321
        // Predicated region
        $region71: #{forward.18} parent=69 // pred_check
          %p323 = pneg %p57
        $region72: #{forward.18} parent=69 // pred_check_branch
          %325 = sbr.rel (%p323) target = $region74
        $region73: #{forward.18} parent=69 // pred_region
          _
        $region74: #{forward.18} parent=69 // pred_fallthru
          _
        %s326 = sand.u32 %s44, 1
        %s327 = sand.u32 %s44, 1
        %s328 = smul.addr %s327, 128
        %s329 = scalar_lea.vmem [#allocation3], %s328
        %p330 = pneg %p57
        %p331 = pneg %p54
        %s332 = smul.u32 16, %s22
        %p333 = scmp.lt.s32.totalorder %s332, 79
        %s334 = scalar_select %p333, %s332, 79
        %p335 = scmp.lt.s32.totalorder %s21, 0
        %s336 = scalar_select %p335, %s21, 0
        %s337 = sadd.s32 %s336, %s334
        %s338 = smul.addr %s337, 8
        %s339 = scalar_lea.vmem %s1, %s338
        %p340 = pneg %p85
        %p341 = pneg %p82
        %p342 = scmp.lt.s32.totalorder %s21, 0
        %s343 = scalar_select %p342, %s21, 0
        %s344 = scalar_lea.vmem %s2, %s343
        %p345 = pneg %p111
        %p346 = pneg %p108
        %p347 = scmp.lt.s32.totalorder %s21, 0
        %s348 = scalar_select %p347, %s21, 0
        %s349 = scalar_lea.vmem %s3, %s348
        %p350 = pneg %p137
        %p351 = pneg %p134
        %p352 = pneg %p165
        %p353 = pneg %p162
        %s354 = smul.u32 16, %s20
        %p355 = scmp.lt.s32.totalorder %s354, 15
        %s356 = scalar_select %p355, %s354, 15
        %p357 = scmp.lt.s32.totalorder %s21, 0
        %s358 = scalar_select %p357, %s21, 0
        %s359 = sadd.s32 %s358, %s356
        %s360 = smul.addr %s359, 8
        %s361 = scalar_lea.vmem %s4, %s360
        %s362 = smul.u32 16, %s20
        %s363 = smul.u32 16, %s22
        %p364 = scmp.lt.s32.totalorder %s363, 79
        %s365 = scalar_select %p364, %s363, 79
        %p366 = scmp.lt.s32.totalorder %s21, 0
        %s367 = scalar_select %p366, %s21, 0
        %s368 = sadd.s32 %s367, %s365
        %s369 = smul.addr %s368, 8
        %s370 = scalar_lea.vmem %s1, %s369
        %s371 = smul.u32 16, %s22
        %p372 = scmp.lt.s32.totalorder %s21, 0
        %s373 = scalar_select %p372, %s21, 0
        %s374 = scalar_lea.vmem %s2, %s373
        %p375 = scmp.lt.s32.totalorder %s21, 0
        %s376 = scalar_select %p375, %s21, 0
        %s377 = scalar_lea.vmem %s3, %s376
        %s378 = smul.u32 16, %s20
        %p379 = scmp.lt.s32.totalorder %s378, 15
        %s380 = scalar_select %p379, %s378, 15
        %p381 = scmp.lt.s32.totalorder %s21, 0
        %s382 = scalar_select %p381, %s21, 0
        %s383 = sadd.s32 %s382, %s380
        %s384 = smul.addr %s383, 8
        %s385 = scalar_lea.vmem %s4, %s384
        %s386 = smul.u32 16, %s20
        %p387 = scmp.eq.s32.totalorder %s22, 0
        // Predicated region
        $region75: #{forward.18} parent=69 // pred_check
          %p388 = pneg %p387
        $region76: #{forward.18} parent=69 // pred_check_branch
          %390 = sbr.rel (%p388) target = $region78
        $region77: #{forward.18} parent=69 // pred_region
          %391 = vst [vmem:[#allocation2] sm:$0xff] 0.0
          %392 = vst [vmem:[#allocation2 + $0x8] sm:$0xff] 0.0
          %393 = vst [vmem:[#allocation2 + $0x10] sm:$0xff] 0.0
          %394 = vst [vmem:[#allocation2 + $0x18] sm:$0xff] 0.0
          %395 = vst [vmem:[#allocation2 + $0x20] sm:$0xff] 0.0
          %396 = vst [vmem:[#allocation2 + $0x28] sm:$0xff] 0.0
          %397 = vst [vmem:[#allocation2 + $0x30] sm:$0xff] 0.0
          %398 = vst [vmem:[#allocation2 + $0x38] sm:$0xff] 0.0
          %399 = vst [vmem:[#allocation2 + $0x40] sm:$0xff] 0.0
          %400 = vst [vmem:[#allocation2 + $0x48] sm:$0xff] 0.0
          %401 = vst [vmem:[#allocation2 + $0x50] sm:$0xff] 0.0
          %402 = vst [vmem:[#allocation2 + $0x58] sm:$0xff] 0.0
          %403 = vst [vmem:[#allocation2 + $0x60] sm:$0xff] 0.0
          %404 = vst [vmem:[#allocation2 + $0x68] sm:$0xff] 0.0
          %405 = vst [vmem:[#allocation2 + $0x70] sm:$0xff] 0.0
          %406 = vst [vmem:[#allocation2 + $0x78] sm:$0xff] 0.0
        $region78: #{forward.18} parent=69 // pred_fallthru
          _
        %v407 = vld [vmem:[#allocation2] sm:$0xff]
        %v408 = vld [vmem:[#allocation2 + $0x8] sm:$0xff]
        %v409 = vld [vmem:[#allocation2 + $0x10] sm:$0xff]
        %v410 = vld [vmem:[#allocation2 + $0x18] sm:$0xff]
        %v411 = vld [vmem:[#allocation2 + $0x20] sm:$0xff]
        %v412 = vld [vmem:[#allocation2 + $0x28] sm:$0xff]
        %v413 = vld [vmem:[#allocation2 + $0x30] sm:$0xff]
        %v414 = vld [vmem:[#allocation2 + $0x38] sm:$0xff]
        %v415 = vld [vmem:[#allocation2 + $0x40] sm:$0xff]
        %v416 = vld [vmem:[#allocation2 + $0x48] sm:$0xff]
        %v417 = vld [vmem:[#allocation2 + $0x50] sm:$0xff]
        %v418 = vld [vmem:[#allocation2 + $0x58] sm:$0xff]
        %v419 = vld [vmem:[#allocation2 + $0x60] sm:$0xff]
        %v420 = vld [vmem:[#allocation2 + $0x68] sm:$0xff]
        %v421 = vld [vmem:[#allocation2 + $0x70] sm:$0xff]
        %v422 = vld [vmem:[#allocation2 + $0x78] sm:$0xff]
        %v423 = vld [vmem:[%s322] sm:$0xff]
        %v424 = vld [vmem:[%s322 + $0x8] sm:$0xff]
        %v425 = vld [vmem:[%s322 + $0x10] sm:$0xff]
        %v426 = vld [vmem:[%s322 + $0x18] sm:$0xff]
        %v427 = vld [vmem:[%s322 + $0x20] sm:$0xff]
        %v428 = vld [vmem:[%s322 + $0x28] sm:$0xff]
        %v429 = vld [vmem:[%s322 + $0x30] sm:$0xff]
        %v430 = vld [vmem:[%s322 + $0x38] sm:$0xff]
        %v431 = vld [vmem:[%s322 + $0x40] sm:$0xff]
        %v432 = vld [vmem:[%s322 + $0x48] sm:$0xff]
        %v433 = vld [vmem:[%s322 + $0x50] sm:$0xff]
        %v434 = vld [vmem:[%s322 + $0x58] sm:$0xff]
        %v435 = vld [vmem:[%s322 + $0x60] sm:$0xff]
        %v436 = vld [vmem:[%s322 + $0x68] sm:$0xff]
        %v437 = vld [vmem:[%s322 + $0x70] sm:$0xff]
        %v438 = vld [vmem:[%s322 + $0x78] sm:$0xff]
        %v439 = vld [vmem:[%s370] sm:$0xff]
        %v440 = vld [vmem:[%s370 + $0x8] sm:$0xff]
        %v441 = vld [vmem:[%s370 + $0x10] sm:$0xff]
        %v442 = vld [vmem:[%s370 + $0x18] sm:$0xff]
        %v443 = vld [vmem:[%s370 + $0x20] sm:$0xff]
        %v444 = vld [vmem:[%s370 + $0x28] sm:$0xff]
        %v445 = vld [vmem:[%s370 + $0x30] sm:$0xff]
        %v446 = vld [vmem:[%s370 + $0x38] sm:$0xff]
        %v447 = vld [vmem:[%s370 + $0x40] sm:$0xff]
        %v448 = vld [vmem:[%s370 + $0x48] sm:$0xff]
        %v449 = vld [vmem:[%s370 + $0x50] sm:$0xff]
        %v450 = vld [vmem:[%s370 + $0x58] sm:$0xff]
        %v451 = vld [vmem:[%s370 + $0x60] sm:$0xff]
        %v452 = vld [vmem:[%s370 + $0x68] sm:$0xff]
        %v453 = vld [vmem:[%s370 + $0x70] sm:$0xff]
        %v454 = vld [vmem:[%s370 + $0x78] sm:$0xff]
        %455 = vmatprep.subr.mxu0 0.0
        %456 = vmatpush1.msra.mxu0 %v439
        %457 = vmatprep.subr.mxu0 0.0
        %458 = vmatpush1.msra.mxu0 %v440
        %459 = vmatprep.subr.mxu0 0.0
        %460 = vmatpush1.msra.mxu0 %v441
        %461 = vmatprep.subr.mxu0 0.0
        %462 = vmatpush1.msra.mxu0 %v442
        %463 = vmatprep.subr.mxu0 0.0
        %464 = vmatpush1.msra.mxu0 %v443
        %465 = vmatprep.subr.mxu0 0.0
        %466 = vmatpush1.msra.mxu0 %v444
        %467 = vmatprep.subr.mxu0 0.0
        %468 = vmatpush1.msra.mxu0 %v445
        %469 = vmatprep.subr.mxu0 0.0
        %470 = vmatpush1.msra.mxu0 %v446
        %471 = vmatprep.subr.mxu0 0.0
        %472 = vmatpush1.msra.mxu0 %v447
        %473 = vmatprep.subr.mxu0 0.0
        %474 = vmatpush1.msra.mxu0 %v448
        %475 = vmatprep.subr.mxu0 0.0
        %476 = vmatpush1.msra.mxu0 %v449
        %477 = vmatprep.subr.mxu0 0.0
        %478 = vmatpush1.msra.mxu0 %v450
        %479 = vmatprep.subr.mxu0 0.0
        %480 = vmatpush1.msra.mxu0 %v451
        %481 = vmatprep.subr.mxu0 0.0
        %482 = vmatpush1.msra.mxu0 %v452
        %483 = vmatprep.subr.mxu0 0.0
        %484 = vmatpush1.msra.mxu0 %v453
        %485 = vmatprep.subr.mxu0 0.0
        %486 = vmatpush1.msra.mxu0 %v454
        %487 = vmatprep.subr.mxu0 0.0
        %488 = vmatpush1.msra.mxu0 0.0
        %489 = vmatprep.subr.mxu0 0.0
        %490 = vmatpush1.msra.mxu0 0.0
        %491 = vmatprep.subr.mxu0 0.0
        %492 = vmatpush1.msra.mxu0 0.0
        %493 = vmatprep.subr.mxu0 0.0
        %494 = vmatpush1.msra.mxu0 0.0
        %495 = vmatprep.subr.mxu0 0.0
        %496 = vmatpush1.msra.mxu0 0.0
        %497 = vmatprep.subr.mxu0 0.0
        %498 = vmatpush1.msra.mxu0 0.0
        %499 = vmatprep.subr.mxu0 0.0
        %500 = vmatpush1.msra.mxu0 0.0
        %501 = vmatprep.subr.mxu0 0.0
        %502 = vmatpush1.msra.mxu0 0.0
        %503 = vmatprep.subr.mxu0 0.0
        %504 = vmatpush1.msra.mxu0 0.0
        %505 = vmatprep.subr.mxu0 0.0
        %506 = vmatpush1.msra.mxu0 0.0
        %507 = vmatprep.subr.mxu0 0.0
        %508 = vmatpush1.msra.mxu0 0.0
        %509 = vmatprep.subr.mxu0 0.0
        %510 = vmatpush1.msra.mxu0 0.0
        %511 = vmatprep.subr.mxu0 0.0
        %512 = vmatpush1.msra.mxu0 0.0
        %513 = vmatprep.subr.mxu0 0.0
        %514 = vmatpush1.msra.mxu0 0.0
        %515 = vmatprep.subr.mxu0 0.0
        %516 = vmatpush1.msra.mxu0 0.0
        %517 = vmatprep.subr.mxu0 0.0
        %518 = vmatpush1.msra.mxu0 0.0
        %519 = vmatprep.mubr.f32.mxu0 0.0
        %520 = vmatmul.mubr.f32.gmra.mrb[0].mxu0 %v423
        %v521 = vpop.f32.mrb[0].mxu0
        %v522 = vadd.f32 0.0, %v521
        %v523 = vpop.f32.mrb[0].mxu0
        %524 = vmatprep.mubr.f32.mxu0 0.0
        %525 = vmatmul.mubr.f32.gmra.mrb[0].mxu0 %v424
        %v526 = vpop.f32.mrb[0].mxu0
        %v527 = vadd.f32 0.0, %v526
        %v528 = vpop.f32.mrb[0].mxu0
        %529 = vmatprep.mubr.f32.mxu0 0.0
        %530 = vmatmul.mubr.f32.gmra.mrb[0].mxu0 %v425
        %v531 = vpop.f32.mrb[0].mxu0
        %v532 = vadd.f32 0.0, %v531
        %v533 = vpop.f32.mrb[0].mxu0
        %534 = vmatprep.mubr.f32.mxu0 0.0
        %535 = vmatmul.mubr.f32.gmra.mrb[0].mxu0 %v426
        %v536 = vpop.f32.mrb[0].mxu0
        %v537 = vadd.f32 0.0, %v536
        %v538 = vpop.f32.mrb[0].mxu0
        %539 = vmatprep.mubr.f32.mxu0 0.0
        %540 = vmatmul.mubr.f32.gmra.mrb[0].mxu0 %v427
        %v541 = vpop.f32.mrb[0].mxu0
        %v542 = vadd.f32 0.0, %v541
        %v543 = vpop.f32.mrb[0].mxu0
        %544 = vmatprep.mubr.f32.mxu0 0.0
        %545 = vmatmul.mubr.f32.gmra.mrb[0].mxu0 %v428
        %v546 = vpop.f32.mrb[0].mxu0
        %v547 = vadd.f32 0.0, %v546
        %v548 = vpop.f32.mrb[0].mxu0
        %549 = vmatprep.mubr.f32.mxu0 0.0
        %550 = vmatmul.mubr.f32.gmra.mrb[0].mxu0 %v429
        %v551 = vpop.f32.mrb[0].mxu0
        %v552 = vadd.f32 0.0, %v551
        %v553 = vpop.f32.mrb[0].mxu0
        %554 = vmatprep.mubr.f32.mxu0 0.0
        %555 = vmatmul.mubr.f32.gmra.mrb[0].mxu0 %v430
        %v556 = vpop.f32.mrb[0].mxu0
        %v557 = vadd.f32 0.0, %v556
        %v558 = vpop.f32.mrb[0].mxu0
        %559 = vmatprep.mubr.f32.mxu0 0.0
        %560 = vmatmul.mubr.f32.gmra.mrb[0].mxu0 %v431
        %v561 = vpop.f32.mrb[0].mxu0
        %v562 = vadd.f32 0.0, %v561
        %v563 = vpop.f32.mrb[0].mxu0
        %564 = vmatprep.mubr.f32.mxu0 0.0
        %565 = vmatmul.mubr.f32.gmra.mrb[0].mxu0 %v432
        %v566 = vpop.f32.mrb[0].mxu0
        %v567 = vadd.f32 0.0, %v566
        %v568 = vpop.f32.mrb[0].mxu0
        %569 = vmatprep.mubr.f32.mxu0 0.0
        %570 = vmatmul.mubr.f32.gmra.mrb[0].mxu0 %v433
        %v571 = vpop.f32.mrb[0].mxu0
        %v572 = vadd.f32 0.0, %v571
        %v573 = vpop.f32.mrb[0].mxu0
        %574 = vmatprep.mubr.f32.mxu0 0.0
        %575 = vmatmul.mubr.f32.gmra.mrb[0].mxu0 %v434
        %v576 = vpop.f32.mrb[0].mxu0
        %v577 = vadd.f32 0.0, %v576
        %v578 = vpop.f32.mrb[0].mxu0
        %579 = vmatprep.mubr.f32.mxu0 0.0
        %580 = vmatmul.mubr.f32.gmra.mrb[0].mxu0 %v435
        %v581 = vpop.f32.mrb[0].mxu0
        %v582 = vadd.f32 0.0, %v581
        %v583 = vpop.f32.mrb[0].mxu0
        %584 = vmatprep.mubr.f32.mxu0 0.0
        %585 = vmatmul.mubr.f32.gmra.mrb[0].mxu0 %v436
        %v586 = vpop.f32.mrb[0].mxu0
        %v587 = vadd.f32 0.0, %v586
        %v588 = vpop.f32.mrb[0].mxu0
        %589 = vmatprep.mubr.f32.mxu0 0.0
        %590 = vmatmul.mubr.f32.gmra.mrb[0].mxu0 %v437
        %v591 = vpop.f32.mrb[0].mxu0
        %v592 = vadd.f32 0.0, %v591
        %v593 = vpop.f32.mrb[0].mxu0
        %594 = vmatprep.mubr.f32.mxu0 0.0
        %595 = vmatmul.mubr.f32.gmra.mrb[0].mxu0 %v438
        %v596 = vpop.f32.mrb[0].mxu0
        %v597 = vadd.f32 0.0, %v596
        %v598 = vpop.f32.mrb[0].mxu0
        %599 = vdwg.mxu0
        %v600 = vadd.f32 %v407, %v522
        %v601 = vadd.f32 %v408, %v527
        %v602 = vadd.f32 %v409, %v532
        %v603 = vadd.f32 %v410, %v537
        %v604 = vadd.f32 %v411, %v542
        %v605 = vadd.f32 %v412, %v547
        %v606 = vadd.f32 %v413, %v552
        %v607 = vadd.f32 %v414, %v557
        %v608 = vadd.f32 %v415, %v562
        %v609 = vadd.f32 %v416, %v567
        %v610 = vadd.f32 %v417, %v572
        %v611 = vadd.f32 %v418, %v577
        %v612 = vadd.f32 %v419, %v582
        %v613 = vadd.f32 %v420, %v587
        %v614 = vadd.f32 %v421, %v592
        %v615 = vadd.f32 %v422, %v597
        %616 = vst [vmem:[#allocation2] sm:$0xff] %v600
        %617 = vst [vmem:[#allocation2 + $0x8] sm:$0xff] %v601
        %618 = vst [vmem:[#allocation2 + $0x10] sm:$0xff] %v602
        %619 = vst [vmem:[#allocation2 + $0x18] sm:$0xff] %v603
        %620 = vst [vmem:[#allocation2 + $0x20] sm:$0xff] %v604
        %621 = vst [vmem:[#allocation2 + $0x28] sm:$0xff] %v605
        %622 = vst [vmem:[#allocation2 + $0x30] sm:$0xff] %v606
        %623 = vst [vmem:[#allocation2 + $0x38] sm:$0xff] %v607
        %624 = vst [vmem:[#allocation2 + $0x40] sm:$0xff] %v608
        %625 = vst [vmem:[#allocation2 + $0x48] sm:$0xff] %v609
        %626 = vst [vmem:[#allocation2 + $0x50] sm:$0xff] %v610
        %627 = vst [vmem:[#allocation2 + $0x58] sm:$0xff] %v611
        %628 = vst [vmem:[#allocation2 + $0x60] sm:$0xff] %v612
        %629 = vst [vmem:[#allocation2 + $0x68] sm:$0xff] %v613
        %630 = vst [vmem:[#allocation2 + $0x70] sm:$0xff] %v614
        %631 = vst [vmem:[#allocation2 + $0x78] sm:$0xff] %v615
        %p632 = scmp.eq.s32.totalorder %s22, 4
        // Predicated region
        $region79: #{forward.18} parent=69 // pred_check
          %p633 = pneg %p632
        $region80: #{forward.18} parent=69 // pred_check_branch
          %635 = sbr.rel (%p633) target = $region82
        $region81: #{forward.18} parent=69 // pred_region
          %v636 = vld [vmem:[#allocation2] sm:$0xff]
          %v637 = vld [vmem:[#allocation2 + $0x8] sm:$0xff]
          %v638 = vld [vmem:[#allocation2 + $0x10] sm:$0xff]
          %v639 = vld [vmem:[#allocation2 + $0x18] sm:$0xff]
          %v640 = vld [vmem:[#allocation2 + $0x20] sm:$0xff]
          %v641 = vld [vmem:[#allocation2 + $0x28] sm:$0xff]
          %v642 = vld [vmem:[#allocation2 + $0x30] sm:$0xff]
          %v643 = vld [vmem:[#allocation2 + $0x38] sm:$0xff]
          %v644 = vld [vmem:[#allocation2 + $0x40] sm:$0xff]
          %v645 = vld [vmem:[#allocation2 + $0x48] sm:$0xff]
          %v646 = vld [vmem:[#allocation2 + $0x50] sm:$0xff]
          %v647 = vld [vmem:[#allocation2 + $0x58] sm:$0xff]
          %v648 = vld [vmem:[#allocation2 + $0x60] sm:$0xff]
          %v649 = vld [vmem:[#allocation2 + $0x68] sm:$0xff]
          %v650 = vld [vmem:[#allocation2 + $0x70] sm:$0xff]
          %v651 = vld [vmem:[#allocation2 + $0x78] sm:$0xff]
          %v652 = vld [vmem:[%s374] sm:$0x1]
          %v653 = vld [vmem:[%s377] sm:$0x1]
          %v655 = vlaneseq
          %v656 = vshrl.u32 %v655, 7
          %v657 = vsub.s32 0, %v656
          %v658 = vrot.slane %v652, %v657
          %v660 = vmul.f32 %v636, %v658
          %v661 = vmul.f32 %v637, %v658
          %v662 = vmul.f32 %v638, %v658
          %v663 = vmul.f32 %v639, %v658
          %v664 = vmul.f32 %v640, %v658
          %v665 = vmul.f32 %v641, %v658
          %v666 = vmul.f32 %v642, %v658
          %v667 = vmul.f32 %v643, %v658
          %v668 = vmul.f32 %v644, %v658
          %v669 = vmul.f32 %v645, %v658
          %v670 = vmul.f32 %v646, %v658
          %v671 = vmul.f32 %v647, %v658
          %v672 = vmul.f32 %v648, %v658
          %v673 = vmul.f32 %v649, %v658
          %v674 = vmul.f32 %v650, %v658
          %v675 = vmul.f32 %v651, %v658
          %v677 = vlaneseq
          %v678 = vshrl.u32 %v677, 7
          %v679 = vsub.s32 0, %v678
          %v680 = vrot.slane %v653, %v679
          %v682 = vadd.f32 %v660, %v680
          %v683 = vadd.f32 %v661, %v680
          %v684 = vadd.f32 %v662, %v680
          %v685 = vadd.f32 %v663, %v680
          %v686 = vadd.f32 %v664, %v680
          %v687 = vadd.f32 %v665, %v680
          %v688 = vadd.f32 %v666, %v680
          %v689 = vadd.f32 %v667, %v680
          %v690 = vadd.f32 %v668, %v680
          %v691 = vadd.f32 %v669, %v680
          %v692 = vadd.f32 %v670, %v680
          %v693 = vadd.f32 %v671, %v680
          %v694 = vadd.f32 %v672, %v680
          %v695 = vadd.f32 %v673, %v680
          %v696 = vadd.f32 %v674, %v680
          %v697 = vadd.f32 %v675, %v680
          %v698 = vmax.f32 %v682, 0.0
          %v699 = vmax.f32 %v683, 0.0
          %v700 = vmax.f32 %v684, 0.0
          %v701 = vmax.f32 %v685, 0.0
          %v702 = vmax.f32 %v686, 0.0
          %v703 = vmax.f32 %v687, 0.0
          %v704 = vmax.f32 %v688, 0.0
          %v705 = vmax.f32 %v689, 0.0
          %v706 = vmax.f32 %v690, 0.0
          %v707 = vmax.f32 %v691, 0.0
          %v708 = vmax.f32 %v692, 0.0
          %v709 = vmax.f32 %v693, 0.0
          %v710 = vmax.f32 %v694, 0.0
          %v711 = vmax.f32 %v695, 0.0
          %v712 = vmax.f32 %v696, 0.0
          %v713 = vmax.f32 %v697, 0.0
          %714 = vst [vmem:[%s385] sm:$0xff] %v698
          %715 = vst [vmem:[%s385 + $0x8] sm:$0xff] %v699
          %716 = vst [vmem:[%s385 + $0x10] sm:$0xff] %v700
          %717 = vst [vmem:[%s385 + $0x18] sm:$0xff] %v701
          %718 = vst [vmem:[%s385 + $0x20] sm:$0xff] %v702
          %719 = vst [vmem:[%s385 + $0x28] sm:$0xff] %v703
          %720 = vst [vmem:[%s385 + $0x30] sm:$0xff] %v704
          %721 = vst [vmem:[%s385 + $0x38] sm:$0xff] %v705
          %722 = vst [vmem:[%s385 + $0x40] sm:$0xff] %v706
          %723 = vst [vmem:[%s385 + $0x48] sm:$0xff] %v707
          %724 = vst [vmem:[%s385 + $0x50] sm:$0xff] %v708
          %725 = vst [vmem:[%s385 + $0x58] sm:$0xff] %v709
          %726 = vst [vmem:[%s385 + $0x60] sm:$0xff] %v710
          %727 = vst [vmem:[%s385 + $0x68] sm:$0xff] %v711
          %728 = vst [vmem:[%s385 + $0x70] sm:$0xff] %v712
          %729 = vst [vmem:[%s385 + $0x78] sm:$0xff] %v713
        $region82: #{forward.18} parent=69 // pred_fallthru
          _
        %s730 = smul.u32 16, %s20
        %p731 = scmp.lt.s32.totalorder %s730, 15
        %s732 = scalar_select %p731, %s730, 15
        %p733 = scmp.lt.s32.totalorder %s21, 0
        %s734 = scalar_select %p733, %s21, 0
        %s735 = sadd.s32 %s734, %s732
        %s736 = smul.addr %s735, 8
        %s737 = scalar_lea.vmem %s4, %s736
        // Predicated region
        $region83: #{forward.18} parent=69 // pred_check
          %p738 = pneg %p162
        $region84: #{forward.18} parent=69 // pred_check_branch
          %740 = sbr.rel (%p738) target = $region86
        $region85: #{forward.18} parent=69 // pred_region
          %s741 = smul.u32 16, %s20
        $region86: #{forward.18} parent=69 // pred_fallthru
          _
        // Predicated region
        $region87: #{forward.18} parent=69 // pred_check
          %p742 = pneg %p162
        $region88: #{forward.18} parent=69 // pred_check_branch
          %744 = sbr.rel (%p742) target = $region90
        $region89: #{forward.18} parent=69 // pred_region
          %s745 = smul.u32 16, %s20
          %p746 = scmp.lt.s32.totalorder %s745, 15
          %s747 = scalar_select %p746, %s745, 15
          %p748 = scmp.lt.s32.totalorder %s21, 0
          %s749 = scalar_select %p748, %s21, 0
          %s750 = sadd.s32 %s749, %s747
          %s751 = smul.addr %s750, 8
          %s752 = scalar_lea.vmem %s4, %s751
        $region90: #{forward.18} parent=69 // pred_fallthru
          _
      $region70: #{forward.18} parent=5 // pred_fallthru
        _
      %p753 = scmp.le.s32.totalorder 2, %s10
      // Predicated region
      $region91: #{forward.18} parent=5 // pred_check
        %p754 = pneg %p753
      $region92: #{forward.18} parent=5 // pred_check_branch
        %756 = sbr.rel (%p754) target = $region94
      $region93: #{forward.18} parent=5 // pred_region
        %s757 = ssub.s32 %s10, 2
      $region94: #{forward.18} parent=5 // pred_fallthru
        _
    $region6: #{forward.18} parent=1 // loop_footer
      %s14 = sadd.s32 1, %s10
    $region7: #{forward.18} parent=1 // loop_footer_branch
      %9 = sbr.rel target = $region3
    $region8: #{forward.18} parent=1 // loop_exit
      _

// kernel: forward.17
$region0: #{forward.17}
  #allocation0 [shape = 'u32[]', space=smem, size = 0x4, offset = 0x4, fixed_abs, tag = 'smem constant byte address 0x4 - core index']
  #allocation1 [shape = 'u32[144,128]{1,0:T(1,128)}', space=vmem, size = 0x12000, scoped, tag = 'internal scratch']
  #allocation2 [shape = 'f32[128,128]{1,0:T(8,128)}', space=vmem, size = 0x10000, scoped, tag = 'scratch operand']
  %s0 = inlined_call_operand.vmem [shape: f32[128,128], index: 0, kind: input, shape index: {}]
  %s1 = inlined_call_operand.vmem [shape: f32[128,128], index: 1, kind: input, shape index: {}]
  %s2 = inlined_call_operand.vmem [shape: f32[1,128], index: 2, kind: input, shape index: {}]
  %s3 = inlined_call_operand.vmem [shape: f32[1,128], index: 3, kind: input, shape index: {}]
  %s4 = inlined_call_operand.vmem [shape: f32[128,128], index: 4, kind: output, shape index: {}]
  %s5 = sld [smem:[#allocation0]]
  $region34: #{forward.17} parent=0
    _
  %s7 = ssub.s32 1, %s5
  %s8 = scalar_select 0, %s7, %s5
  // Predicated region
  $region2: #{forward.17} parent=0 // pred_check
    _
  $region3: #{forward.17} parent=0 // pred_check_branch
    %10 = sbr.rel (0) target = $region5
  $region4: #{forward.17} parent=0 // pred_region
    _
  $region5: #{forward.17} parent=0 // pred_fallthru
    _
  // Predicated region
  $region6: #{forward.17} parent=0 // pred_check
    _
  $region7: #{forward.17} parent=0 // pred_check_branch
    %12 = sbr.rel (0) target = $region9
  $region8: #{forward.17} parent=0 // pred_region
    _
  $region9: #{forward.17} parent=0 // pred_fallthru
    _
  // Predicated region
  $region10: #{forward.17} parent=0 // pred_check
    _
  $region11: #{forward.17} parent=0 // pred_check_branch
    %14 = sbr.rel (0) target = $region13
  $region12: #{forward.17} parent=0 // pred_region
    _
  $region13: #{forward.17} parent=0 // pred_fallthru
    _
  // Predicated region
  $region14: #{forward.17} parent=0 // pred_check
    _
  $region15: #{forward.17} parent=0 // pred_check_branch
    %16 = sbr.rel (0) target = $region17
  $region16: #{forward.17} parent=0 // pred_region
    _
  $region17: #{forward.17} parent=0 // pred_fallthru
    _
  %p17 = scmp.eq.s32.totalorder 0, 0
  // Predicated region
  $region18: #{forward.17} parent=0 // pred_check
    %p18 = pneg %p17
  $region19: #{forward.17} parent=0 // pred_check_branch
    %20 = sbr.rel (%p18) target = $region21
  $region20: #{forward.17} parent=0 // pred_region
    %21 = vst [vmem:[#allocation2] sm:$0xff] 0.0
    %22 = vst [vmem:[#allocation2 + $0x8] sm:$0xff] 0.0
    %23 = vst [vmem:[#allocation2 + $0x10] sm:$0xff] 0.0
    %24 = vst [vmem:[#allocation2 + $0x18] sm:$0xff] 0.0
    %25 = vst [vmem:[#allocation2 + $0x20] sm:$0xff] 0.0
    %26 = vst [vmem:[#allocation2 + $0x28] sm:$0xff] 0.0
    %27 = vst [vmem:[#allocation2 + $0x30] sm:$0xff] 0.0
    %28 = vst [vmem:[#allocation2 + $0x38] sm:$0xff] 0.0
    %29 = vst [vmem:[#allocation2 + $0x40] sm:$0xff] 0.0
    %30 = vst [vmem:[#allocation2 + $0x48] sm:$0xff] 0.0
    %31 = vst [vmem:[#allocation2 + $0x50] sm:$0xff] 0.0
    %32 = vst [vmem:[#allocation2 + $0x58] sm:$0xff] 0.0
    %33 = vst [vmem:[#allocation2 + $0x60] sm:$0xff] 0.0
    %34 = vst [vmem:[#allocation2 + $0x68] sm:$0xff] 0.0
    %35 = vst [vmem:[#allocation2 + $0x70] sm:$0xff] 0.0
    %36 = vst [vmem:[#allocation2 + $0x78] sm:$0xff] 0.0
  $region21: #{forward.17} parent=0 // pred_fallthru
    _
  %v37 = vld [vmem:[#allocation2] sm:$0xff]
  %v38 = vld [vmem:[#allocation2 + $0x8] sm:$0xff]
  %v39 = vld [vmem:[#allocation2 + $0x10] sm:$0xff]
  %v40 = vld [vmem:[#allocation2 + $0x18] sm:$0xff]
  %v41 = vld [vmem:[#allocation2 + $0x20] sm:$0xff]
  %v42 = vld [vmem:[#allocation2 + $0x28] sm:$0xff]
  %v43 = vld [vmem:[#allocation2 + $0x30] sm:$0xff]
  %v44 = vld [vmem:[#allocation2 + $0x38] sm:$0xff]
  %v45 = vld [vmem:[#allocation2 + $0x40] sm:$0xff]
  %v46 = vld [vmem:[#allocation2 + $0x48] sm:$0xff]
  %v47 = vld [vmem:[#allocation2 + $0x50] sm:$0xff]
  %v48 = vld [vmem:[#allocation2 + $0x58] sm:$0xff]
  %v49 = vld [vmem:[#allocation2 + $0x60] sm:$0xff]
  %v50 = vld [vmem:[#allocation2 + $0x68] sm:$0xff]
  %v51 = vld [vmem:[#allocation2 + $0x70] sm:$0xff]
  %v52 = vld [vmem:[#allocation2 + $0x78] sm:$0xff]
  %v53 = vld [vmem:[%s0] sm:$0xff]
  %v54 = vld [vmem:[%s0 + $0x8] sm:$0xff]
  %v55 = vld [vmem:[%s0 + $0x10] sm:$0xff]
  %v56 = vld [vmem:[%s0 + $0x18] sm:$0xff]
  %v57 = vld [vmem:[%s0 + $0x20] sm:$0xff]
  %v58 = vld [vmem:[%s0 + $0x28] sm:$0xff]
  %v59 = vld [vmem:[%s0 + $0x30] sm:$0xff]
  %v60 = vld [vmem:[%s0 + $0x38] sm:$0xff]
  %v61 = vld [vmem:[%s0 + $0x40] sm:$0xff]
  %v62 = vld [vmem:[%s0 + $0x48] sm:$0xff]
  %v63 = vld [vmem:[%s0 + $0x50] sm:$0xff]
  %v64 = vld [vmem:[%s0 + $0x58] sm:$0xff]
  %v65 = vld [vmem:[%s0 + $0x60] sm:$0xff]
  %v66 = vld [vmem:[%s0 + $0x68] sm:$0xff]
  %v67 = vld [vmem:[%s0 + $0x70] sm:$0xff]
  %v68 = vld [vmem:[%s0 + $0x78] sm:$0xff]
  %v69 = vld [vmem:[%s1] sm:$0xff]
  %v70 = vld [vmem:[%s1 + $0x8] sm:$0xff]
  %v71 = vld [vmem:[%s1 + $0x10] sm:$0xff]
  %v72 = vld [vmem:[%s1 + $0x18] sm:$0xff]
  %v73 = vld [vmem:[%s1 + $0x20] sm:$0xff]
  %v74 = vld [vmem:[%s1 + $0x28] sm:$0xff]
  %v75 = vld [vmem:[%s1 + $0x30] sm:$0xff]
  %v76 = vld [vmem:[%s1 + $0x38] sm:$0xff]
  %v77 = vld [vmem:[%s1 + $0x40] sm:$0xff]
  %v78 = vld [vmem:[%s1 + $0x48] sm:$0xff]
  %v79 = vld [vmem:[%s1 + $0x50] sm:$0xff]
  %v80 = vld [vmem:[%s1 + $0x58] sm:$0xff]
  %v81 = vld [vmem:[%s1 + $0x60] sm:$0xff]
  %v82 = vld [vmem:[%s1 + $0x68] sm:$0xff]
  %v83 = vld [vmem:[%s1 + $0x70] sm:$0xff]
  %v84 = vld [vmem:[%s1 + $0x78] sm:$0xff]
  %85 = vmatprep.subr.mxu0 0.0
  %86 = vmatpush1.msra.mxu0 %v69
  %87 = vmatprep.subr.mxu0 0.0
  %88 = vmatpush1.msra.mxu0 %v70
  %89 = vmatprep.subr.mxu0 0.0
  %90 = vmatpush1.msra.mxu0 %v71
  %91 = vmatprep.subr.mxu0 0.0
  %92 = vmatpush1.msra.mxu0 %v72
  %93 = vmatprep.subr.mxu0 0.0
  %94 = vmatpush1.msra.mxu0 %v73
  %95 = vmatprep.subr.mxu0 0.0
  %96 = vmatpush1.msra.mxu0 %v74
  %97 = vmatprep.subr.mxu0 0.0
  %98 = vmatpush1.msra.mxu0 %v75
  %99 = vmatprep.subr.mxu0 0.0
  %100 = vmatpush1.msra.mxu0 %v76
  %101 = vmatprep.subr.mxu0 0.0
  %102 = vmatpush1.msra.mxu0 %v77
  %103 = vmatprep.subr.mxu0 0.0
  %104 = vmatpush1.msra.mxu0 %v78
  %105 = vmatprep.subr.mxu0 0.0
  %106 = vmatpush1.msra.mxu0 %v79
  %107 = vmatprep.subr.mxu0 0.0
  %108 = vmatpush1.msra.mxu0 %v80
  %109 = vmatprep.subr.mxu0 0.0
  %110 = vmatpush1.msra.mxu0 %v81
  %111 = vmatprep.subr.mxu0 0.0
  %112 = vmatpush1.msra.mxu0 %v82
  %113 = vmatprep.subr.mxu0 0.0
  %114 = vmatpush1.msra.mxu0 %v83
  %115 = vmatprep.subr.mxu0 0.0
  %116 = vmatpush1.msra.mxu0 %v84
  %117 = vmatprep.subr.mxu0 0.0
  %118 = vmatpush1.msra.mxu0 0.0
  %119 = vmatprep.subr.mxu0 0.0
  %120 = vmatpush1.msra.mxu0 0.0
  %121 = vmatprep.subr.mxu0 0.0
  %122 = vmatpush1.msra.mxu0 0.0
  %123 = vmatprep.subr.mxu0 0.0
  %124 = vmatpush1.msra.mxu0 0.0
  %125 = vmatprep.subr.mxu0 0.0
  %126 = vmatpush1.msra.mxu0 0.0
  %127 = vmatprep.subr.mxu0 0.0
  %128 = vmatpush1.msra.mxu0 0.0
  %129 = vmatprep.subr.mxu0 0.0
  %130 = vmatpush1.msra.mxu0 0.0
  %131 = vmatprep.subr.mxu0 0.0
  %132 = vmatpush1.msra.mxu0 0.0
  %133 = vmatprep.subr.mxu0 0.0
  %134 = vmatpush1.msra.mxu0 0.0
  %135 = vmatprep.subr.mxu0 0.0
  %136 = vmatpush1.msra.mxu0 0.0
  %137 = vmatprep.subr.mxu0 0.0
  %138 = vmatpush1.msra.mxu0 0.0
  %139 = vmatprep.subr.mxu0 0.0
  %140 = vmatpush1.msra.mxu0 0.0
  %141 = vmatprep.subr.mxu0 0.0
  %142 = vmatpush1.msra.mxu0 0.0
  %143 = vmatprep.subr.mxu0 0.0
  %144 = vmatpush1.msra.mxu0 0.0
  %145 = vmatprep.subr.mxu0 0.0
  %146 = vmatpush1.msra.mxu0 0.0
  %147 = vmatprep.subr.mxu0 0.0
  %148 = vmatpush1.msra.mxu0 0.0
  %149 = vmatprep.mubr.f32.mxu0 0.0
  %150 = vmatmul.mubr.f32.gmra.mrb[0].mxu0 %v53
  %v151 = vpop.f32.mrb[0].mxu0
  %v152 = vadd.f32 0.0, %v151
  %v153 = vpop.f32.mrb[0].mxu0
  %154 = vmatprep.mubr.f32.mxu0 0.0
  %155 = vmatmul.mubr.f32.gmra.mrb[0].mxu0 %v54
  %v156 = vpop.f32.mrb[0].mxu0
  %v157 = vadd.f32 0.0, %v156
  %v158 = vpop.f32.mrb[0].mxu0
  %159 = vmatprep.mubr.f32.mxu0 0.0
  %160 = vmatmul.mubr.f32.gmra.mrb[0].mxu0 %v55
  %v161 = vpop.f32.mrb[0].mxu0
  %v162 = vadd.f32 0.0, %v161
  %v163 = vpop.f32.mrb[0].mxu0
  %164 = vmatprep.mubr.f32.mxu0 0.0
  %165 = vmatmul.mubr.f32.gmra.mrb[0].mxu0 %v56
  %v166 = vpop.f32.mrb[0].mxu0
  %v167 = vadd.f32 0.0, %v166
  %v168 = vpop.f32.mrb[0].mxu0
  %169 = vmatprep.mubr.f32.mxu0 0.0
  %170 = vmatmul.mubr.f32.gmra.mrb[0].mxu0 %v57
  %v171 = vpop.f32.mrb[0].mxu0
  %v172 = vadd.f32 0.0, %v171
  %v173 = vpop.f32.mrb[0].mxu0
  %174 = vmatprep.mubr.f32.mxu0 0.0
  %175 = vmatmul.mubr.f32.gmra.mrb[0].mxu0 %v58
  %v176 = vpop.f32.mrb[0].mxu0
  %v177 = vadd.f32 0.0, %v176
  %v178 = vpop.f32.mrb[0].mxu0
  %179 = vmatprep.mubr.f32.mxu0 0.0
  %180 = vmatmul.mubr.f32.gmra.mrb[0].mxu0 %v59
  %v181 = vpop.f32.mrb[0].mxu0
  %v182 = vadd.f32 0.0, %v181
  %v183 = vpop.f32.mrb[0].mxu0
  %184 = vmatprep.mubr.f32.mxu0 0.0
  %185 = vmatmul.mubr.f32.gmra.mrb[0].mxu0 %v60
  %v186 = vpop.f32.mrb[0].mxu0
  %v187 = vadd.f32 0.0, %v186
  %v188 = vpop.f32.mrb[0].mxu0
  %189 = vmatprep.mubr.f32.mxu0 0.0
  %190 = vmatmul.mubr.f32.gmra.mrb[0].mxu0 %v61
  %v191 = vpop.f32.mrb[0].mxu0
  %v192 = vadd.f32 0.0, %v191
  %v193 = vpop.f32.mrb[0].mxu0
  %194 = vmatprep.mubr.f32.mxu0 0.0
  %195 = vmatmul.mubr.f32.gmra.mrb[0].mxu0 %v62
  %v196 = vpop.f32.mrb[0].mxu0
  %v197 = vadd.f32 0.0, %v196
  %v198 = vpop.f32.mrb[0].mxu0
  %199 = vmatprep.mubr.f32.mxu0 0.0
  %200 = vmatmul.mubr.f32.gmra.mrb[0].mxu0 %v63
  %v201 = vpop.f32.mrb[0].mxu0
  %v202 = vadd.f32 0.0, %v201
  %v203 = vpop.f32.mrb[0].mxu0
  %204 = vmatprep.mubr.f32.mxu0 0.0
  %205 = vmatmul.mubr.f32.gmra.mrb[0].mxu0 %v64
  %v206 = vpop.f32.mrb[0].mxu0
  %v207 = vadd.f32 0.0, %v206
  %v208 = vpop.f32.mrb[0].mxu0
  %209 = vmatprep.mubr.f32.mxu0 0.0
  %210 = vmatmul.mubr.f32.gmra.mrb[0].mxu0 %v65
  %v211 = vpop.f32.mrb[0].mxu0
  %v212 = vadd.f32 0.0, %v211
  %v213 = vpop.f32.mrb[0].mxu0
  %214 = vmatprep.mubr.f32.mxu0 0.0
  %215 = vmatmul.mubr.f32.gmra.mrb[0].mxu0 %v66
  %v216 = vpop.f32.mrb[0].mxu0
  %v217 = vadd.f32 0.0, %v216
  %v218 = vpop.f32.mrb[0].mxu0
  %219 = vmatprep.mubr.f32.mxu0 0.0
  %220 = vmatmul.mubr.f32.gmra.mrb[0].mxu0 %v67
  %v221 = vpop.f32.mrb[0].mxu0
  %v222 = vadd.f32 0.0, %v221
  %v223 = vpop.f32.mrb[0].mxu0
  %224 = vmatprep.mubr.f32.mxu0 0.0
  %225 = vmatmul.mubr.f32.gmra.mrb[0].mxu0 %v68
  %v226 = vpop.f32.mrb[0].mxu0
  %v227 = vadd.f32 0.0, %v226
  %v228 = vpop.f32.mrb[0].mxu0
  %229 = vdwg.mxu0
  %v230 = vadd.f32 %v37, %v152
  %v231 = vadd.f32 %v38, %v157
  %v232 = vadd.f32 %v39, %v162
  %v233 = vadd.f32 %v40, %v167
  %v234 = vadd.f32 %v41, %v172
  %v235 = vadd.f32 %v42, %v177
  %v236 = vadd.f32 %v43, %v182
  %v237 = vadd.f32 %v44, %v187
  %v238 = vadd.f32 %v45, %v192
  %v239 = vadd.f32 %v46, %v197
  %v240 = vadd.f32 %v47, %v202
  %v241 = vadd.f32 %v48, %v207
  %v242 = vadd.f32 %v49, %v212
  %v243 = vadd.f32 %v50, %v217
  %v244 = vadd.f32 %v51, %v222
  %v245 = vadd.f32 %v52, %v227
  %246 = vst [vmem:[#allocation2] sm:$0xff] %v230
  %247 = vst [vmem:[#allocation2 + $0x8] sm:$0xff] %v231
  %248 = vst [vmem:[#allocation2 + $0x10] sm:$0xff] %v232
  %249 = vst [vmem:[#allocation2 + $0x18] sm:$0xff] %v233
  %250 = vst [vmem:[#allocation2 + $0x20] sm:$0xff] %v234
  %251 = vst [vmem:[#allocation2 + $0x28] sm:$0xff] %v235
  %252 = vst [vmem:[#allocation2 + $0x30] sm:$0xff] %v236
  %253 = vst [vmem:[#allocation2 + $0x38] sm:$0xff] %v237
  %254 = vst [vmem:[#allocation2 + $0x40] sm:$0xff] %v238
  %255 = vst [vmem:[#allocation2 + $0x48] sm:$0xff] %v239
  %256 = vst [vmem:[#allocation2 + $0x50] sm:$0xff] %v240
  %257 = vst [vmem:[#allocation2 + $0x58] sm:$0xff] %v241
  %258 = vst [vmem:[#allocation2 + $0x60] sm:$0xff] %v242
  %259 = vst [vmem:[#allocation2 + $0x68] sm:$0xff] %v243
  %260 = vst [vmem:[#allocation2 + $0x70] sm:$0xff] %v244
  %261 = vst [vmem:[#allocation2 + $0x78] sm:$0xff] %v245
  // Predicated region
  $region22: #{forward.17} parent=0 // pred_check
    %p262 = pneg %p17
  $region23: #{forward.17} parent=0 // pred_check_branch
    %264 = sbr.rel (%p262) target = $region25
  $region24: #{forward.17} parent=0 // pred_region
    %v265 = vld [vmem:[#allocation2] sm:$0xff]
    %v266 = vld [vmem:[#allocation2 + $0x8] sm:$0xff]
    %v267 = vld [vmem:[#allocation2 + $0x10] sm:$0xff]
    %v268 = vld [vmem:[#allocation2 + $0x18] sm:$0xff]
    %v269 = vld [vmem:[#allocation2 + $0x20] sm:$0xff]
    %v270 = vld [vmem:[#allocation2 + $0x28] sm:$0xff]
    %v271 = vld [vmem:[#allocation2 + $0x30] sm:$0xff]
    %v272 = vld [vmem:[#allocation2 + $0x38] sm:$0xff]
    %v273 = vld [vmem:[#allocation2 + $0x40] sm:$0xff]
    %v274 = vld [vmem:[#allocation2 + $0x48] sm:$0xff]
    %v275 = vld [vmem:[#allocation2 + $0x50] sm:$0xff]
    %v276 = vld [vmem:[#allocation2 + $0x58] sm:$0xff]
    %v277 = vld [vmem:[#allocation2 + $0x60] sm:$0xff]
    %v278 = vld [vmem:[#allocation2 + $0x68] sm:$0xff]
    %v279 = vld [vmem:[#allocation2 + $0x70] sm:$0xff]
    %v280 = vld [vmem:[#allocation2 + $0x78] sm:$0xff]
    %v281 = vld [vmem:[%s2] sm:$0x1]
    %v282 = vld [vmem:[%s3] sm:$0x1]
    %v284 = vlaneseq
    %v285 = vshrl.u32 %v284, 7
    %v286 = vsub.s32 0, %v285
    %v287 = vrot.slane %v281, %v286
    %v289 = vmul.f32 %v265, %v287
    %v290 = vmul.f32 %v266, %v287
    %v291 = vmul.f32 %v267, %v287
    %v292 = vmul.f32 %v268, %v287
    %v293 = vmul.f32 %v269, %v287
    %v294 = vmul.f32 %v270, %v287
    %v295 = vmul.f32 %v271, %v287
    %v296 = vmul.f32 %v272, %v287
    %v297 = vmul.f32 %v273, %v287
    %v298 = vmul.f32 %v274, %v287
    %v299 = vmul.f32 %v275, %v287
    %v300 = vmul.f32 %v276, %v287
    %v301 = vmul.f32 %v277, %v287
    %v302 = vmul.f32 %v278, %v287
    %v303 = vmul.f32 %v279, %v287
    %v304 = vmul.f32 %v280, %v287
    %v306 = vlaneseq
    %v307 = vshrl.u32 %v306, 7
    %v308 = vsub.s32 0, %v307
    %v309 = vrot.slane %v282, %v308
    %v311 = vadd.f32 %v289, %v309
    %v312 = vadd.f32 %v290, %v309
    %v313 = vadd.f32 %v291, %v309
    %v314 = vadd.f32 %v292, %v309
    %v315 = vadd.f32 %v293, %v309
    %v316 = vadd.f32 %v294, %v309
    %v317 = vadd.f32 %v295, %v309
    %v318 = vadd.f32 %v296, %v309
    %v319 = vadd.f32 %v297, %v309
    %v320 = vadd.f32 %v298, %v309
    %v321 = vadd.f32 %v299, %v309
    %v322 = vadd.f32 %v300, %v309
    %v323 = vadd.f32 %v301, %v309
    %v324 = vadd.f32 %v302, %v309
    %v325 = vadd.f32 %v303, %v309
    %v326 = vadd.f32 %v304, %v309
    %327 = vst [vmem:[%s4] sm:$0xff] %v311
    %328 = vst [vmem:[%s4 + $0x8] sm:$0xff] %v312
    %329 = vst [vmem:[%s4 + $0x10] sm:$0xff] %v313
    %330 = vst [vmem:[%s4 + $0x18] sm:$0xff] %v314
    %331 = vst [vmem:[%s4 + $0x20] sm:$0xff] %v315
    %332 = vst [vmem:[%s4 + $0x28] sm:$0xff] %v316
    %333 = vst [vmem:[%s4 + $0x30] sm:$0xff] %v317
    %334 = vst [vmem:[%s4 + $0x38] sm:$0xff] %v318
    %335 = vst [vmem:[%s4 + $0x40] sm:$0xff] %v319
    %336 = vst [vmem:[%s4 + $0x48] sm:$0xff] %v320
    %337 = vst [vmem:[%s4 + $0x50] sm:$0xff] %v321
    %338 = vst [vmem:[%s4 + $0x58] sm:$0xff] %v322
    %339 = vst [vmem:[%s4 + $0x60] sm:$0xff] %v323
    %340 = vst [vmem:[%s4 + $0x68] sm:$0xff] %v324
    %341 = vst [vmem:[%s4 + $0x70] sm:$0xff] %v325
    %342 = vst [vmem:[%s4 + $0x78] sm:$0xff] %v326
  $region25: #{forward.17} parent=0 // pred_fallthru
    _
  // Predicated region
  $region26: #{forward.17} parent=0 // pred_check
    _
  $region27: #{forward.17} parent=0 // pred_check_branch
    %344 = sbr.rel (0) target = $region29
  $region28: #{forward.17} parent=0 // pred_region
    _
  $region29: #{forward.17} parent=0 // pred_fallthru
    _
  // Predicated region
  $region30: #{forward.17} parent=0 // pred_check
    _
  $region31: #{forward.17} parent=0 // pred_check_branch
    %346 = sbr.rel (0) target = $region33
  $region32: #{forward.17} parent=0 // pred_region
    _
  $region33: #{forward.17} parent=0 // pred_fallthru
    _

// kernel: forward.19
$region0: #{forward.19}
  #allocation0 [shape = 'u32[]', space=smem, size = 0x4, offset = 0x4, fixed_abs, tag = 'smem constant byte address 0x4 - core index']
  #allocation1 [shape = 'u32[144,128]{1,0:T(1,128)}', space=vmem, size = 0x12000, scoped, tag = 'internal scratch']
  #allocation2 [shape = 'f32[128,128]{1,0:T(8,128)}', space=vmem, size = 0x10000, scoped, tag = 'scratch operand']
  %s0 = inlined_call_operand.vmem [shape: f32[128,128], index: 0, kind: input, shape index: {}]
  %s1 = inlined_call_operand.vmem [shape: f32[128,128], index: 1, kind: input, shape index: {}]
  %s2 = inlined_call_operand.vmem [shape: f32[1,128], index: 2, kind: input, shape index: {}]
  %s3 = inlined_call_operand.vmem [shape: f32[1,128], index: 3, kind: input, shape index: {}]
  %s4 = inlined_call_operand.vmem [shape: f32[128,128], index: 4, kind: input, shape index: {}]
  %s5 = inlined_call_operand.vmem [shape: f32[128,128], index: 5, kind: output, shape index: {}]
  %s6 = sld [smem:[#allocation0]]
  $region38: #{forward.19} parent=0
    _
  %s8 = ssub.s32 1, %s6
  %s9 = scalar_select 0, %s8, %s6
  // Predicated region
  $region2: #{forward.19} parent=0 // pred_check
    _
  $region3: #{forward.19} parent=0 // pred_check_branch
    %11 = sbr.rel (0) target = $region5
  $region4: #{forward.19} parent=0 // pred_region
    _
  $region5: #{forward.19} parent=0 // pred_fallthru
    _
  // Predicated region
  $region6: #{forward.19} parent=0 // pred_check
    _
  $region7: #{forward.19} parent=0 // pred_check_branch
    %13 = sbr.rel (0) target = $region9
  $region8: #{forward.19} parent=0 // pred_region
    _
  $region9: #{forward.19} parent=0 // pred_fallthru
    _
  // Predicated region
  $region10: #{forward.19} parent=0 // pred_check
    _
  $region11: #{forward.19} parent=0 // pred_check_branch
    %15 = sbr.rel (0) target = $region13
  $region12: #{forward.19} parent=0 // pred_region
    _
  $region13: #{forward.19} parent=0 // pred_fallthru
    _
  // Predicated region
  $region14: #{forward.19} parent=0 // pred_check
    _
  $region15: #{forward.19} parent=0 // pred_check_branch
    %17 = sbr.rel (0) target = $region17
  $region16: #{forward.19} parent=0 // pred_region
    _
  $region17: #{forward.19} parent=0 // pred_fallthru
    _
  // Predicated region
  $region18: #{forward.19} parent=0 // pred_check
    _
  $region19: #{forward.19} parent=0 // pred_check_branch
    %19 = sbr.rel (0) target = $region21
  $region20: #{forward.19} parent=0 // pred_region
    _
  $region21: #{forward.19} parent=0 // pred_fallthru
    _
  %p20 = scmp.eq.s32.totalorder 0, 0
  // Predicated region
  $region22: #{forward.19} parent=0 // pred_check
    %p21 = pneg %p20
  $region23: #{forward.19} parent=0 // pred_check_branch
    %23 = sbr.rel (%p21) target = $region25
  $region24: #{forward.19} parent=0 // pred_region
    %24 = vst [vmem:[#allocation2] sm:$0xff] 0.0
    %25 = vst [vmem:[#allocation2 + $0x8] sm:$0xff] 0.0
    %26 = vst [vmem:[#allocation2 + $0x10] sm:$0xff] 0.0
    %27 = vst [vmem:[#allocation2 + $0x18] sm:$0xff] 0.0
    %28 = vst [vmem:[#allocation2 + $0x20] sm:$0xff] 0.0
    %29 = vst [vmem:[#allocation2 + $0x28] sm:$0xff] 0.0
    %30 = vst [vmem:[#allocation2 + $0x30] sm:$0xff] 0.0
    %31 = vst [vmem:[#allocation2 + $0x38] sm:$0xff] 0.0
    %32 = vst [vmem:[#allocation2 + $0x40] sm:$0xff] 0.0
    %33 = vst [vmem:[#allocation2 + $0x48] sm:$0xff] 0.0
    %34 = vst [vmem:[#allocation2 + $0x50] sm:$0xff] 0.0
    %35 = vst [vmem:[#allocation2 + $0x58] sm:$0xff] 0.0
    %36 = vst [vmem:[#allocation2 + $0x60] sm:$0xff] 0.0
    %37 = vst [vmem:[#allocation2 + $0x68] sm:$0xff] 0.0
    %38 = vst [vmem:[#allocation2 + $0x70] sm:$0xff] 0.0
    %39 = vst [vmem:[#allocation2 + $0x78] sm:$0xff] 0.0
  $region25: #{forward.19} parent=0 // pred_fallthru
    _
  %v40 = vld [vmem:[#allocation2] sm:$0xff]
  %v41 = vld [vmem:[#allocation2 + $0x8] sm:$0xff]
  %v42 = vld [vmem:[#allocation2 + $0x10] sm:$0xff]
  %v43 = vld [vmem:[#allocation2 + $0x18] sm:$0xff]
  %v44 = vld [vmem:[#allocation2 + $0x20] sm:$0xff]
  %v45 = vld [vmem:[#allocation2 + $0x28] sm:$0xff]
  %v46 = vld [vmem:[#allocation2 + $0x30] sm:$0xff]
  %v47 = vld [vmem:[#allocation2 + $0x38] sm:$0xff]
  %v48 = vld [vmem:[#allocation2 + $0x40] sm:$0xff]
  %v49 = vld [vmem:[#allocation2 + $0x48] sm:$0xff]
  %v50 = vld [vmem:[#allocation2 + $0x50] sm:$0xff]
  %v51 = vld [vmem:[#allocation2 + $0x58] sm:$0xff]
  %v52 = vld [vmem:[#allocation2 + $0x60] sm:$0xff]
  %v53 = vld [vmem:[#allocation2 + $0x68] sm:$0xff]
  %v54 = vld [vmem:[#allocation2 + $0x70] sm:$0xff]
  %v55 = vld [vmem:[#allocation2 + $0x78] sm:$0xff]
  %v56 = vld [vmem:[%s0] sm:$0xff]
  %v57 = vld [vmem:[%s0 + $0x8] sm:$0xff]
  %v58 = vld [vmem:[%s0 + $0x10] sm:$0xff]
  %v59 = vld [vmem:[%s0 + $0x18] sm:$0xff]
  %v60 = vld [vmem:[%s0 + $0x20] sm:$0xff]
  %v61 = vld [vmem:[%s0 + $0x28] sm:$0xff]
  %v62 = vld [vmem:[%s0 + $0x30] sm:$0xff]
  %v63 = vld [vmem:[%s0 + $0x38] sm:$0xff]
  %v64 = vld [vmem:[%s0 + $0x40] sm:$0xff]
  %v65 = vld [vmem:[%s0 + $0x48] sm:$0xff]
  %v66 = vld [vmem:[%s0 + $0x50] sm:$0xff]
  %v67 = vld [vmem:[%s0 + $0x58] sm:$0xff]
  %v68 = vld [vmem:[%s0 + $0x60] sm:$0xff]
  %v69 = vld [vmem:[%s0 + $0x68] sm:$0xff]
  %v70 = vld [vmem:[%s0 + $0x70] sm:$0xff]
  %v71 = vld [vmem:[%s0 + $0x78] sm:$0xff]
  %v72 = vld [vmem:[%s1] sm:$0xff]
  %v73 = vld [vmem:[%s1 + $0x8] sm:$0xff]
  %v74 = vld [vmem:[%s1 + $0x10] sm:$0xff]
  %v75 = vld [vmem:[%s1 + $0x18] sm:$0xff]
  %v76 = vld [vmem:[%s1 + $0x20] sm:$0xff]
  %v77 = vld [vmem:[%s1 + $0x28] sm:$0xff]
  %v78 = vld [vmem:[%s1 + $0x30] sm:$0xff]
  %v79 = vld [vmem:[%s1 + $0x38] sm:$0xff]
  %v80 = vld [vmem:[%s1 + $0x40] sm:$0xff]
  %v81 = vld [vmem:[%s1 + $0x48] sm:$0xff]
  %v82 = vld [vmem:[%s1 + $0x50] sm:$0xff]
  %v83 = vld [vmem:[%s1 + $0x58] sm:$0xff]
  %v84 = vld [vmem:[%s1 + $0x60] sm:$0xff]
  %v85 = vld [vmem:[%s1 + $0x68] sm:$0xff]
  %v86 = vld [vmem:[%s1 + $0x70] sm:$0xff]
  %v87 = vld [vmem:[%s1 + $0x78] sm:$0xff]
  %88 = vmatprep.subr.mxu0 0.0
  %89 = vmatpush1.msra.mxu0 %v72
  %90 = vmatprep.subr.mxu0 0.0
  %91 = vmatpush1.msra.mxu0 %v73
  %92 = vmatprep.subr.mxu0 0.0
  %93 = vmatpush1.msra.mxu0 %v74
  %94 = vmatprep.subr.mxu0 0.0
  %95 = vmatpush1.msra.mxu0 %v75
  %96 = vmatprep.subr.mxu0 0.0
  %97 = vmatpush1.msra.mxu0 %v76
  %98 = vmatprep.subr.mxu0 0.0
  %99 = vmatpush1.msra.mxu0 %v77
  %100 = vmatprep.subr.mxu0 0.0
  %101 = vmatpush1.msra.mxu0 %v78
  %102 = vmatprep.subr.mxu0 0.0
  %103 = vmatpush1.msra.mxu0 %v79
  %104 = vmatprep.subr.mxu0 0.0
  %105 = vmatpush1.msra.mxu0 %v80
  %106 = vmatprep.subr.mxu0 0.0
  %107 = vmatpush1.msra.mxu0 %v81
  %108 = vmatprep.subr.mxu0 0.0
  %109 = vmatpush1.msra.mxu0 %v82
  %110 = vmatprep.subr.mxu0 0.0
  %111 = vmatpush1.msra.mxu0 %v83
  %112 = vmatprep.subr.mxu0 0.0
  %113 = vmatpush1.msra.mxu0 %v84
  %114 = vmatprep.subr.mxu0 0.0
  %115 = vmatpush1.msra.mxu0 %v85
  %116 = vmatprep.subr.mxu0 0.0
  %117 = vmatpush1.msra.mxu0 %v86
  %118 = vmatprep.subr.mxu0 0.0
  %119 = vmatpush1.msra.mxu0 %v87
  %120 = vmatprep.subr.mxu0 0.0
  %121 = vmatpush1.msra.mxu0 0.0
  %122 = vmatprep.subr.mxu0 0.0
  %123 = vmatpush1.msra.mxu0 0.0
  %124 = vmatprep.subr.mxu0 0.0
  %125 = vmatpush1.msra.mxu0 0.0
  %126 = vmatprep.subr.mxu0 0.0
  %127 = vmatpush1.msra.mxu0 0.0
  %128 = vmatprep.subr.mxu0 0.0
  %129 = vmatpush1.msra.mxu0 0.0
  %130 = vmatprep.subr.mxu0 0.0
  %131 = vmatpush1.msra.mxu0 0.0
  %132 = vmatprep.subr.mxu0 0.0
  %133 = vmatpush1.msra.mxu0 0.0
  %134 = vmatprep.subr.mxu0 0.0
  %135 = vmatpush1.msra.mxu0 0.0
  %136 = vmatprep.subr.mxu0 0.0
  %137 = vmatpush1.msra.mxu0 0.0
  %138 = vmatprep.subr.mxu0 0.0
  %139 = vmatpush1.msra.mxu0 0.0
  %140 = vmatprep.subr.mxu0 0.0
  %141 = vmatpush1.msra.mxu0 0.0
  %142 = vmatprep.subr.mxu0 0.0
  %143 = vmatpush1.msra.mxu0 0.0
  %144 = vmatprep.subr.mxu0 0.0
  %145 = vmatpush1.msra.mxu0 0.0
  %146 = vmatprep.subr.mxu0 0.0
  %147 = vmatpush1.msra.mxu0 0.0
  %148 = vmatprep.subr.mxu0 0.0
  %149 = vmatpush1.msra.mxu0 0.0
  %150 = vmatprep.subr.mxu0 0.0
  %151 = vmatpush1.msra.mxu0 0.0
  %152 = vmatprep.mubr.f32.mxu0 0.0
  %153 = vmatmul.mubr.f32.gmra.mrb[0].mxu0 %v56
  %v154 = vpop.f32.mrb[0].mxu0
  %v155 = vadd.f32 0.0, %v154
  %v156 = vpop.f32.mrb[0].mxu0
  %157 = vmatprep.mubr.f32.mxu0 0.0
  %158 = vmatmul.mubr.f32.gmra.mrb[0].mxu0 %v57
  %v159 = vpop.f32.mrb[0].mxu0
  %v160 = vadd.f32 0.0, %v159
  %v161 = vpop.f32.mrb[0].mxu0
  %162 = vmatprep.mubr.f32.mxu0 0.0
  %163 = vmatmul.mubr.f32.gmra.mrb[0].mxu0 %v58
  %v164 = vpop.f32.mrb[0].mxu0
  %v165 = vadd.f32 0.0, %v164
  %v166 = vpop.f32.mrb[0].mxu0
  %167 = vmatprep.mubr.f32.mxu0 0.0
  %168 = vmatmul.mubr.f32.gmra.mrb[0].mxu0 %v59
  %v169 = vpop.f32.mrb[0].mxu0
  %v170 = vadd.f32 0.0, %v169
  %v171 = vpop.f32.mrb[0].mxu0
  %172 = vmatprep.mubr.f32.mxu0 0.0
  %173 = vmatmul.mubr.f32.gmra.mrb[0].mxu0 %v60
  %v174 = vpop.f32.mrb[0].mxu0
  %v175 = vadd.f32 0.0, %v174
  %v176 = vpop.f32.mrb[0].mxu0
  %177 = vmatprep.mubr.f32.mxu0 0.0
  %178 = vmatmul.mubr.f32.gmra.mrb[0].mxu0 %v61
  %v179 = vpop.f32.mrb[0].mxu0
  %v180 = vadd.f32 0.0, %v179
  %v181 = vpop.f32.mrb[0].mxu0
  %182 = vmatprep.mubr.f32.mxu0 0.0
  %183 = vmatmul.mubr.f32.gmra.mrb[0].mxu0 %v62
  %v184 = vpop.f32.mrb[0].mxu0
  %v185 = vadd.f32 0.0, %v184
  %v186 = vpop.f32.mrb[0].mxu0
  %187 = vmatprep.mubr.f32.mxu0 0.0
  %188 = vmatmul.mubr.f32.gmra.mrb[0].mxu0 %v63
  %v189 = vpop.f32.mrb[0].mxu0
  %v190 = vadd.f32 0.0, %v189
  %v191 = vpop.f32.mrb[0].mxu0
  %192 = vmatprep.mubr.f32.mxu0 0.0
  %193 = vmatmul.mubr.f32.gmra.mrb[0].mxu0 %v64
  %v194 = vpop.f32.mrb[0].mxu0
  %v195 = vadd.f32 0.0, %v194
  %v196 = vpop.f32.mrb[0].mxu0
  %197 = vmatprep.mubr.f32.mxu0 0.0
  %198 = vmatmul.mubr.f32.gmra.mrb[0].mxu0 %v65
  %v199 = vpop.f32.mrb[0].mxu0
  %v200 = vadd.f32 0.0, %v199
  %v201 = vpop.f32.mrb[0].mxu0
  %202 = vmatprep.mubr.f32.mxu0 0.0
  %203 = vmatmul.mubr.f32.gmra.mrb[0].mxu0 %v66
  %v204 = vpop.f32.mrb[0].mxu0
  %v205 = vadd.f32 0.0, %v204
  %v206 = vpop.f32.mrb[0].mxu0
  %207 = vmatprep.mubr.f32.mxu0 0.0
  %208 = vmatmul.mubr.f32.gmra.mrb[0].mxu0 %v67
  %v209 = vpop.f32.mrb[0].mxu0
  %v210 = vadd.f32 0.0, %v209
  %v211 = vpop.f32.mrb[0].mxu0
  %212 = vmatprep.mubr.f32.mxu0 0.0
  %213 = vmatmul.mubr.f32.gmra.mrb[0].mxu0 %v68
  %v214 = vpop.f32.mrb[0].mxu0
  %v215 = vadd.f32 0.0, %v214
  %v216 = vpop.f32.mrb[0].mxu0
  %217 = vmatprep.mubr.f32.mxu0 0.0
  %218 = vmatmul.mubr.f32.gmra.mrb[0].mxu0 %v69
  %v219 = vpop.f32.mrb[0].mxu0
  %v220 = vadd.f32 0.0, %v219
  %v221 = vpop.f32.mrb[0].mxu0
  %222 = vmatprep.mubr.f32.mxu0 0.0
  %223 = vmatmul.mubr.f32.gmra.mrb[0].mxu0 %v70
  %v224 = vpop.f32.mrb[0].mxu0
  %v225 = vadd.f32 0.0, %v224
  %v226 = vpop.f32.mrb[0].mxu0
  %227 = vmatprep.mubr.f32.mxu0 0.0
  %228 = vmatmul.mubr.f32.gmra.mrb[0].mxu0 %v71
  %v229 = vpop.f32.mrb[0].mxu0
  %v230 = vadd.f32 0.0, %v229
  %v231 = vpop.f32.mrb[0].mxu0
  %232 = vdwg.mxu0
  %v233 = vadd.f32 %v40, %v155
  %v234 = vadd.f32 %v41, %v160
  %v235 = vadd.f32 %v42, %v165
  %v236 = vadd.f32 %v43, %v170
  %v237 = vadd.f32 %v44, %v175
  %v238 = vadd.f32 %v45, %v180
  %v239 = vadd.f32 %v46, %v185
  %v240 = vadd.f32 %v47, %v190
  %v241 = vadd.f32 %v48, %v195
  %v242 = vadd.f32 %v49, %v200
  %v243 = vadd.f32 %v50, %v205
  %v244 = vadd.f32 %v51, %v210
  %v245 = vadd.f32 %v52, %v215
  %v246 = vadd.f32 %v53, %v220
  %v247 = vadd.f32 %v54, %v225
  %v248 = vadd.f32 %v55, %v230
  %249 = vst [vmem:[#allocation2] sm:$0xff] %v233
  %250 = vst [vmem:[#allocation2 + $0x8] sm:$0xff] %v234
  %251 = vst [vmem:[#allocation2 + $0x10] sm:$0xff] %v235
  %252 = vst [vmem:[#allocation2 + $0x18] sm:$0xff] %v236
  %253 = vst [vmem:[#allocation2 + $0x20] sm:$0xff] %v237
  %254 = vst [vmem:[#allocation2 + $0x28] sm:$0xff] %v238
  %255 = vst [vmem:[#allocation2 + $0x30] sm:$0xff] %v239
  %256 = vst [vmem:[#allocation2 + $0x38] sm:$0xff] %v240
  %257 = vst [vmem:[#allocation2 + $0x40] sm:$0xff] %v241
  %258 = vst [vmem:[#allocation2 + $0x48] sm:$0xff] %v242
  %259 = vst [vmem:[#allocation2 + $0x50] sm:$0xff] %v243
  %260 = vst [vmem:[#allocation2 + $0x58] sm:$0xff] %v244
  %261 = vst [vmem:[#allocation2 + $0x60] sm:$0xff] %v245
  %262 = vst [vmem:[#allocation2 + $0x68] sm:$0xff] %v246
  %263 = vst [vmem:[#allocation2 + $0x70] sm:$0xff] %v247
  %264 = vst [vmem:[#allocation2 + $0x78] sm:$0xff] %v248
  // Predicated region
  $region26: #{forward.19} parent=0 // pred_check
    %p265 = pneg %p20
  $region27: #{forward.19} parent=0 // pred_check_branch
    %267 = sbr.rel (%p265) target = $region29
  $region28: #{forward.19} parent=0 // pred_region
    %v268 = vld [vmem:[#allocation2] sm:$0xff]
    %v269 = vld [vmem:[#allocation2 + $0x8] sm:$0xff]
    %v270 = vld [vmem:[#allocation2 + $0x10] sm:$0xff]
    %v271 = vld [vmem:[#allocation2 + $0x18] sm:$0xff]
    %v272 = vld [vmem:[#allocation2 + $0x20] sm:$0xff]
    %v273 = vld [vmem:[#allocation2 + $0x28] sm:$0xff]
    %v274 = vld [vmem:[#allocation2 + $0x30] sm:$0xff]
    %v275 = vld [vmem:[#allocation2 + $0x38] sm:$0xff]
    %v276 = vld [vmem:[#allocation2 + $0x40] sm:$0xff]
    %v277 = vld [vmem:[#allocation2 + $0x48] sm:$0xff]
    %v278 = vld [vmem:[#allocation2 + $0x50] sm:$0xff]
    %v279 = vld [vmem:[#allocation2 + $0x58] sm:$0xff]
    %v280 = vld [vmem:[#allocation2 + $0x60] sm:$0xff]
    %v281 = vld [vmem:[#allocation2 + $0x68] sm:$0xff]
    %v282 = vld [vmem:[#allocation2 + $0x70] sm:$0xff]
    %v283 = vld [vmem:[#allocation2 + $0x78] sm:$0xff]
    %v284 = vld [vmem:[%s2] sm:$0x1]
    %v285 = vld [vmem:[%s3] sm:$0x1]
    %v286 = vld [vmem:[%s4] sm:$0xff]
    %v287 = vld [vmem:[%s4 + $0x8] sm:$0xff]
    %v288 = vld [vmem:[%s4 + $0x10] sm:$0xff]
    %v289 = vld [vmem:[%s4 + $0x18] sm:$0xff]
    %v290 = vld [vmem:[%s4 + $0x20] sm:$0xff]
    %v291 = vld [vmem:[%s4 + $0x28] sm:$0xff]
    %v292 = vld [vmem:[%s4 + $0x30] sm:$0xff]
    %v293 = vld [vmem:[%s4 + $0x38] sm:$0xff]
    %v294 = vld [vmem:[%s4 + $0x40] sm:$0xff]
    %v295 = vld [vmem:[%s4 + $0x48] sm:$0xff]
    %v296 = vld [vmem:[%s4 + $0x50] sm:$0xff]
    %v297 = vld [vmem:[%s4 + $0x58] sm:$0xff]
    %v298 = vld [vmem:[%s4 + $0x60] sm:$0xff]
    %v299 = vld [vmem:[%s4 + $0x68] sm:$0xff]
    %v300 = vld [vmem:[%s4 + $0x70] sm:$0xff]
    %v301 = vld [vmem:[%s4 + $0x78] sm:$0xff]
    %v303 = vlaneseq
    %v304 = vshrl.u32 %v303, 7
    %v305 = vsub.s32 0, %v304
    %v306 = vrot.slane %v284, %v305
    %v308 = vmul.f32 %v268, %v306
    %v309 = vmul.f32 %v269, %v306
    %v310 = vmul.f32 %v270, %v306
    %v311 = vmul.f32 %v271, %v306
    %v312 = vmul.f32 %v272, %v306
    %v313 = vmul.f32 %v273, %v306
    %v314 = vmul.f32 %v274, %v306
    %v315 = vmul.f32 %v275, %v306
    %v316 = vmul.f32 %v276, %v306
    %v317 = vmul.f32 %v277, %v306
    %v318 = vmul.f32 %v278, %v306
    %v319 = vmul.f32 %v279, %v306
    %v320 = vmul.f32 %v280, %v306
    %v321 = vmul.f32 %v281, %v306
    %v322 = vmul.f32 %v282, %v306
    %v323 = vmul.f32 %v283, %v306
    %v325 = vlaneseq
    %v326 = vshrl.u32 %v325, 7
    %v327 = vsub.s32 0, %v326
    %v328 = vrot.slane %v285, %v327
    %v330 = vadd.f32 %v308, %v328
    %v331 = vadd.f32 %v309, %v328
    %v332 = vadd.f32 %v310, %v328
    %v333 = vadd.f32 %v311, %v328
    %v334 = vadd.f32 %v312, %v328
    %v335 = vadd.f32 %v313, %v328
    %v336 = vadd.f32 %v314, %v328
    %v337 = vadd.f32 %v315, %v328
    %v338 = vadd.f32 %v316, %v328
    %v339 = vadd.f32 %v317, %v328
    %v340 = vadd.f32 %v318, %v328
    %v341 = vadd.f32 %v319, %v328
    %v342 = vadd.f32 %v320, %v328
    %v343 = vadd.f32 %v321, %v328
    %v344 = vadd.f32 %v322, %v328
    %v345 = vadd.f32 %v323, %v328
    %v346 = vadd.f32 %v330, %v286
    %v347 = vadd.f32 %v331, %v287
    %v348 = vadd.f32 %v332, %v288
    %v349 = vadd.f32 %v333, %v289
    %v350 = vadd.f32 %v334, %v290
    %v351 = vadd.f32 %v335, %v291
    %v352 = vadd.f32 %v336, %v292
    %v353 = vadd.f32 %v337, %v293
    %v354 = vadd.f32 %v338, %v294
    %v355 = vadd.f32 %v339, %v295
    %v356 = vadd.f32 %v340, %v296
    %v357 = vadd.f32 %v341, %v297
    %v358 = vadd.f32 %v342, %v298
    %v359 = vadd.f32 %v343, %v299
    %v360 = vadd.f32 %v344, %v300
    %v361 = vadd.f32 %v345, %v301
    %362 = vst [vmem:[%s5] sm:$0xff] %v346
    %363 = vst [vmem:[%s5 + $0x8] sm:$0xff] %v347
    %364 = vst [vmem:[%s5 + $0x10] sm:$0xff] %v348
    %365 = vst [vmem:[%s5 + $0x18] sm:$0xff] %v349
    %366 = vst [vmem:[%s5 + $0x20] sm:$0xff] %v350
    %367 = vst [vmem:[%s5 + $0x28] sm:$0xff] %v351
    %368 = vst [vmem:[%s5 + $0x30] sm:$0xff] %v352
    %369 = vst [vmem:[%s5 + $0x38] sm:$0xff] %v353
    %370 = vst [vmem:[%s5 + $0x40] sm:$0xff] %v354
    %371 = vst [vmem:[%s5 + $0x48] sm:$0xff] %v355
    %372 = vst [vmem:[%s5 + $0x50] sm:$0xff] %v356
    %373 = vst [vmem:[%s5 + $0x58] sm:$0xff] %v357
    %374 = vst [vmem:[%s5 + $0x60] sm:$0xff] %v358
    %375 = vst [vmem:[%s5 + $0x68] sm:$0xff] %v359
    %376 = vst [vmem:[%s5 + $0x70] sm:$0xff] %v360
    %377 = vst [vmem:[%s5 + $0x78] sm:$0xff] %v361
  $region29: #{forward.19} parent=0 // pred_fallthru
    _
  // Predicated region
  $region30: #{forward.19} parent=0 // pred_check
    _
  $region31: #{forward.19} parent=0 // pred_check_branch
    %379 = sbr.rel (0) target = $region33
  $region32: #{forward.19} parent=0 // pred_region
    _
  $region33: #{forward.19} parent=0 // pred_fallthru
    _
  // Predicated region
  $region34: #{forward.19} parent=0 // pred_check
    _
  $region35: #{forward.19} parent=0 // pred_check_branch
    %381 = sbr.rel (0) target = $region37
  $region36: #{forward.19} parent=0 // pred_region
    _
  $region37: #{forward.19} parent=0 // pred_fallthru
    _

// kernel: forward.20
$region0: #{forward.20}
  #allocation0 [shape = 'u32[]', space=smem, size = 0x4, offset = 0x4, fixed_abs, tag = 'smem constant byte address 0x4 - core index']
  #allocation1 [shape = 'u32[144,128]{1,0:T(1,128)}', space=vmem, size = 0x12000, scoped, tag = 'internal scratch']
  #allocation2 [shape = 'f32[128,128]{1,0:T(8,128)}', space=vmem, size = 0x10000, scoped, tag = 'scratch operand']
  %s0 = inlined_call_operand.vmem [shape: f32[128,128], index: 0, kind: input, shape index: {}]
  %s1 = inlined_call_operand.vmem [shape: f32[128,128], index: 1, kind: input, shape index: {}]
  %s2 = inlined_call_operand.vmem [shape: f32[1,128], index: 2, kind: input, shape index: {}]
  %s3 = inlined_call_operand.vmem [shape: f32[1,128], index: 3, kind: input, shape index: {}]
  %s4 = inlined_call_operand.vmem [shape: f32[128,128], index: 4, kind: output, shape index: {}]
  %s5 = sld [smem:[#allocation0]]
  $region34: #{forward.20} parent=0
    _
  %s7 = ssub.s32 1, %s5
  %s8 = scalar_select 0, %s7, %s5
  // Predicated region
  $region2: #{forward.20} parent=0 // pred_check
    _
  $region3: #{forward.20} parent=0 // pred_check_branch
    %10 = sbr.rel (0) target = $region5
  $region4: #{forward.20} parent=0 // pred_region
    _
  $region5: #{forward.20} parent=0 // pred_fallthru
    _
  // Predicated region
  $region6: #{forward.20} parent=0 // pred_check
    _
  $region7: #{forward.20} parent=0 // pred_check_branch
    %12 = sbr.rel (0) target = $region9
  $region8: #{forward.20} parent=0 // pred_region
    _
  $region9: #{forward.20} parent=0 // pred_fallthru
    _
  // Predicated region
  $region10: #{forward.20} parent=0 // pred_check
    _
  $region11: #{forward.20} parent=0 // pred_check_branch
    %14 = sbr.rel (0) target = $region13
  $region12: #{forward.20} parent=0 // pred_region
    _
  $region13: #{forward.20} parent=0 // pred_fallthru
    _
  // Predicated region
  $region14: #{forward.20} parent=0 // pred_check
    _
  $region15: #{forward.20} parent=0 // pred_check_branch
    %16 = sbr.rel (0) target = $region17
  $region16: #{forward.20} parent=0 // pred_region
    _
  $region17: #{forward.20} parent=0 // pred_fallthru
    _
  %p17 = scmp.eq.s32.totalorder 0, 0
  // Predicated region
  $region18: #{forward.20} parent=0 // pred_check
    %p18 = pneg %p17
  $region19: #{forward.20} parent=0 // pred_check_branch
    %20 = sbr.rel (%p18) target = $region21
  $region20: #{forward.20} parent=0 // pred_region
    %21 = vst [vmem:[#allocation2] sm:$0xff] 0.0
    %22 = vst [vmem:[#allocation2 + $0x8] sm:$0xff] 0.0
    %23 = vst [vmem:[#allocation2 + $0x10] sm:$0xff] 0.0
    %24 = vst [vmem:[#allocation2 + $0x18] sm:$0xff] 0.0
    %25 = vst [vmem:[#allocation2 + $0x20] sm:$0xff] 0.0
    %26 = vst [vmem:[#allocation2 + $0x28] sm:$0xff] 0.0
    %27 = vst [vmem:[#allocation2 + $0x30] sm:$0xff] 0.0
    %28 = vst [vmem:[#allocation2 + $0x38] sm:$0xff] 0.0
    %29 = vst [vmem:[#allocation2 + $0x40] sm:$0xff] 0.0
    %30 = vst [vmem:[#allocation2 + $0x48] sm:$0xff] 0.0
    %31 = vst [vmem:[#allocation2 + $0x50] sm:$0xff] 0.0
    %32 = vst [vmem:[#allocation2 + $0x58] sm:$0xff] 0.0
    %33 = vst [vmem:[#allocation2 + $0x60] sm:$0xff] 0.0
    %34 = vst [vmem:[#allocation2 + $0x68] sm:$0xff] 0.0
    %35 = vst [vmem:[#allocation2 + $0x70] sm:$0xff] 0.0
    %36 = vst [vmem:[#allocation2 + $0x78] sm:$0xff] 0.0
  $region21: #{forward.20} parent=0 // pred_fallthru
    _
  %v37 = vld [vmem:[#allocation2] sm:$0xff]
  %v38 = vld [vmem:[#allocation2 + $0x8] sm:$0xff]
  %v39 = vld [vmem:[#allocation2 + $0x10] sm:$0xff]
  %v40 = vld [vmem:[#allocation2 + $0x18] sm:$0xff]
  %v41 = vld [vmem:[#allocation2 + $0x20] sm:$0xff]
  %v42 = vld [vmem:[#allocation2 + $0x28] sm:$0xff]
  %v43 = vld [vmem:[#allocation2 + $0x30] sm:$0xff]
  %v44 = vld [vmem:[#allocation2 + $0x38] sm:$0xff]
  %v45 = vld [vmem:[#allocation2 + $0x40] sm:$0xff]
  %v46 = vld [vmem:[#allocation2 + $0x48] sm:$0xff]
  %v47 = vld [vmem:[#allocation2 + $0x50] sm:$0xff]
  %v48 = vld [vmem:[#allocation2 + $0x58] sm:$0xff]
  %v49 = vld [vmem:[#allocation2 + $0x60] sm:$0xff]
  %v50 = vld [vmem:[#allocation2 + $0x68] sm:$0xff]
  %v51 = vld [vmem:[#allocation2 + $0x70] sm:$0xff]
  %v52 = vld [vmem:[#allocation2 + $0x78] sm:$0xff]
  %v53 = vld [vmem:[%s0] sm:$0xff]
  %v54 = vld [vmem:[%s0 + $0x8] sm:$0xff]
  %v55 = vld [vmem:[%s0 + $0x10] sm:$0xff]
  %v56 = vld [vmem:[%s0 + $0x18] sm:$0xff]
  %v57 = vld [vmem:[%s0 + $0x20] sm:$0xff]
  %v58 = vld [vmem:[%s0 + $0x28] sm:$0xff]
  %v59 = vld [vmem:[%s0 + $0x30] sm:$0xff]
  %v60 = vld [vmem:[%s0 + $0x38] sm:$0xff]
  %v61 = vld [vmem:[%s0 + $0x40] sm:$0xff]
  %v62 = vld [vmem:[%s0 + $0x48] sm:$0xff]
  %v63 = vld [vmem:[%s0 + $0x50] sm:$0xff]
  %v64 = vld [vmem:[%s0 + $0x58] sm:$0xff]
  %v65 = vld [vmem:[%s0 + $0x60] sm:$0xff]
  %v66 = vld [vmem:[%s0 + $0x68] sm:$0xff]
  %v67 = vld [vmem:[%s0 + $0x70] sm:$0xff]
  %v68 = vld [vmem:[%s0 + $0x78] sm:$0xff]
  %v69 = vld [vmem:[%s1] sm:$0xff]
  %v70 = vld [vmem:[%s1 + $0x8] sm:$0xff]
  %v71 = vld [vmem:[%s1 + $0x10] sm:$0xff]
  %v72 = vld [vmem:[%s1 + $0x18] sm:$0xff]
  %v73 = vld [vmem:[%s1 + $0x20] sm:$0xff]
  %v74 = vld [vmem:[%s1 + $0x28] sm:$0xff]
  %v75 = vld [vmem:[%s1 + $0x30] sm:$0xff]
  %v76 = vld [vmem:[%s1 + $0x38] sm:$0xff]
  %v77 = vld [vmem:[%s1 + $0x40] sm:$0xff]
  %v78 = vld [vmem:[%s1 + $0x48] sm:$0xff]
  %v79 = vld [vmem:[%s1 + $0x50] sm:$0xff]
  %v80 = vld [vmem:[%s1 + $0x58] sm:$0xff]
  %v81 = vld [vmem:[%s1 + $0x60] sm:$0xff]
  %v82 = vld [vmem:[%s1 + $0x68] sm:$0xff]
  %v83 = vld [vmem:[%s1 + $0x70] sm:$0xff]
  %v84 = vld [vmem:[%s1 + $0x78] sm:$0xff]
  %85 = vmatprep.subr.mxu0 0.0
  %86 = vmatpush1.msra.mxu0 %v69
  %87 = vmatprep.subr.mxu0 0.0
  %88 = vmatpush1.msra.mxu0 %v70
  %89 = vmatprep.subr.mxu0 0.0
  %90 = vmatpush1.msra.mxu0 %v71
  %91 = vmatprep.subr.mxu0 0.0
  %92 = vmatpush1.msra.mxu0 %v72
  %93 = vmatprep.subr.mxu0 0.0
  %94 = vmatpush1.msra.mxu0 %v73
  %95 = vmatprep.subr.mxu0 0.0
  %96 = vmatpush1.msra.mxu0 %v74
  %97 = vmatprep.subr.mxu0 0.0
  %98 = vmatpush1.msra.mxu0 %v75
  %99 = vmatprep.subr.mxu0 0.0
  %100 = vmatpush1.msra.mxu0 %v76
  %101 = vmatprep.subr.mxu0 0.0
  %102 = vmatpush1.msra.mxu0 %v77
  %103 = vmatprep.subr.mxu0 0.0
  %104 = vmatpush1.msra.mxu0 %v78
  %105 = vmatprep.subr.mxu0 0.0
  %106 = vmatpush1.msra.mxu0 %v79
  %107 = vmatprep.subr.mxu0 0.0
  %108 = vmatpush1.msra.mxu0 %v80
  %109 = vmatprep.subr.mxu0 0.0
  %110 = vmatpush1.msra.mxu0 %v81
  %111 = vmatprep.subr.mxu0 0.0
  %112 = vmatpush1.msra.mxu0 %v82
  %113 = vmatprep.subr.mxu0 0.0
  %114 = vmatpush1.msra.mxu0 %v83
  %115 = vmatprep.subr.mxu0 0.0
  %116 = vmatpush1.msra.mxu0 %v84
  %117 = vmatprep.subr.mxu0 0.0
  %118 = vmatpush1.msra.mxu0 0.0
  %119 = vmatprep.subr.mxu0 0.0
  %120 = vmatpush1.msra.mxu0 0.0
  %121 = vmatprep.subr.mxu0 0.0
  %122 = vmatpush1.msra.mxu0 0.0
  %123 = vmatprep.subr.mxu0 0.0
  %124 = vmatpush1.msra.mxu0 0.0
  %125 = vmatprep.subr.mxu0 0.0
  %126 = vmatpush1.msra.mxu0 0.0
  %127 = vmatprep.subr.mxu0 0.0
  %128 = vmatpush1.msra.mxu0 0.0
  %129 = vmatprep.subr.mxu0 0.0
  %130 = vmatpush1.msra.mxu0 0.0
  %131 = vmatprep.subr.mxu0 0.0
  %132 = vmatpush1.msra.mxu0 0.0
  %133 = vmatprep.subr.mxu0 0.0
  %134 = vmatpush1.msra.mxu0 0.0
  %135 = vmatprep.subr.mxu0 0.0
  %136 = vmatpush1.msra.mxu0 0.0
  %137 = vmatprep.subr.mxu0 0.0
  %138 = vmatpush1.msra.mxu0 0.0
  %139 = vmatprep.subr.mxu0 0.0
  %140 = vmatpush1.msra.mxu0 0.0
  %141 = vmatprep.subr.mxu0 0.0
  %142 = vmatpush1.msra.mxu0 0.0
  %143 = vmatprep.subr.mxu0 0.0
  %144 = vmatpush1.msra.mxu0 0.0
  %145 = vmatprep.subr.mxu0 0.0
  %146 = vmatpush1.msra.mxu0 0.0
  %147 = vmatprep.subr.mxu0 0.0
  %148 = vmatpush1.msra.mxu0 0.0
  %149 = vmatprep.mubr.f32.mxu0 0.0
  %150 = vmatmul.mubr.f32.gmra.mrb[0].mxu0 %v53
  %v151 = vpop.f32.mrb[0].mxu0
  %v152 = vadd.f32 0.0, %v151
  %v153 = vpop.f32.mrb[0].mxu0
  %154 = vmatprep.mubr.f32.mxu0 0.0
  %155 = vmatmul.mubr.f32.gmra.mrb[0].mxu0 %v54
  %v156 = vpop.f32.mrb[0].mxu0
  %v157 = vadd.f32 0.0, %v156
  %v158 = vpop.f32.mrb[0].mxu0
  %159 = vmatprep.mubr.f32.mxu0 0.0
  %160 = vmatmul.mubr.f32.gmra.mrb[0].mxu0 %v55
  %v161 = vpop.f32.mrb[0].mxu0
  %v162 = vadd.f32 0.0, %v161
  %v163 = vpop.f32.mrb[0].mxu0
  %164 = vmatprep.mubr.f32.mxu0 0.0
  %165 = vmatmul.mubr.f32.gmra.mrb[0].mxu0 %v56
  %v166 = vpop.f32.mrb[0].mxu0
  %v167 = vadd.f32 0.0, %v166
  %v168 = vpop.f32.mrb[0].mxu0
  %169 = vmatprep.mubr.f32.mxu0 0.0
  %170 = vmatmul.mubr.f32.gmra.mrb[0].mxu0 %v57
  %v171 = vpop.f32.mrb[0].mxu0
  %v172 = vadd.f32 0.0, %v171
  %v173 = vpop.f32.mrb[0].mxu0
  %174 = vmatprep.mubr.f32.mxu0 0.0
  %175 = vmatmul.mubr.f32.gmra.mrb[0].mxu0 %v58
  %v176 = vpop.f32.mrb[0].mxu0
  %v177 = vadd.f32 0.0, %v176
  %v178 = vpop.f32.mrb[0].mxu0
  %179 = vmatprep.mubr.f32.mxu0 0.0
  %180 = vmatmul.mubr.f32.gmra.mrb[0].mxu0 %v59
  %v181 = vpop.f32.mrb[0].mxu0
  %v182 = vadd.f32 0.0, %v181
  %v183 = vpop.f32.mrb[0].mxu0
  %184 = vmatprep.mubr.f32.mxu0 0.0
  %185 = vmatmul.mubr.f32.gmra.mrb[0].mxu0 %v60
  %v186 = vpop.f32.mrb[0].mxu0
  %v187 = vadd.f32 0.0, %v186
  %v188 = vpop.f32.mrb[0].mxu0
  %189 = vmatprep.mubr.f32.mxu0 0.0
  %190 = vmatmul.mubr.f32.gmra.mrb[0].mxu0 %v61
  %v191 = vpop.f32.mrb[0].mxu0
  %v192 = vadd.f32 0.0, %v191
  %v193 = vpop.f32.mrb[0].mxu0
  %194 = vmatprep.mubr.f32.mxu0 0.0
  %195 = vmatmul.mubr.f32.gmra.mrb[0].mxu0 %v62
  %v196 = vpop.f32.mrb[0].mxu0
  %v197 = vadd.f32 0.0, %v196
  %v198 = vpop.f32.mrb[0].mxu0
  %199 = vmatprep.mubr.f32.mxu0 0.0
  %200 = vmatmul.mubr.f32.gmra.mrb[0].mxu0 %v63
  %v201 = vpop.f32.mrb[0].mxu0
  %v202 = vadd.f32 0.0, %v201
  %v203 = vpop.f32.mrb[0].mxu0
  %204 = vmatprep.mubr.f32.mxu0 0.0
  %205 = vmatmul.mubr.f32.gmra.mrb[0].mxu0 %v64
  %v206 = vpop.f32.mrb[0].mxu0
  %v207 = vadd.f32 0.0, %v206
  %v208 = vpop.f32.mrb[0].mxu0
  %209 = vmatprep.mubr.f32.mxu0 0.0
  %210 = vmatmul.mubr.f32.gmra.mrb[0].mxu0 %v65
  %v211 = vpop.f32.mrb[0].mxu0
  %v212 = vadd.f32 0.0, %v211
  %v213 = vpop.f32.mrb[0].mxu0
  %214 = vmatprep.mubr.f32.mxu0 0.0
  %215 = vmatmul.mubr.f32.gmra.mrb[0].mxu0 %v66
  %v216 = vpop.f32.mrb[0].mxu0
  %v217 = vadd.f32 0.0, %v216
  %v218 = vpop.f32.mrb[0].mxu0
  %219 = vmatprep.mubr.f32.mxu0 0.0
  %220 = vmatmul.mubr.f32.gmra.mrb[0].mxu0 %v67
  %v221 = vpop.f32.mrb[0].mxu0
  %v222 = vadd.f32 0.0, %v221
  %v223 = vpop.f32.mrb[0].mxu0
  %224 = vmatprep.mubr.f32.mxu0 0.0
  %225 = vmatmul.mubr.f32.gmra.mrb[0].mxu0 %v68
  %v226 = vpop.f32.mrb[0].mxu0
  %v227 = vadd.f32 0.0, %v226
  %v228 = vpop.f32.mrb[0].mxu0
  %229 = vdwg.mxu0
  %v230 = vadd.f32 %v37, %v152
  %v231 = vadd.f32 %v38, %v157
  %v232 = vadd.f32 %v39, %v162
  %v233 = vadd.f32 %v40, %v167
  %v234 = vadd.f32 %v41, %v172
  %v235 = vadd.f32 %v42, %v177
  %v236 = vadd.f32 %v43, %v182
  %v237 = vadd.f32 %v44, %v187
  %v238 = vadd.f32 %v45, %v192
  %v239 = vadd.f32 %v46, %v197
  %v240 = vadd.f32 %v47, %v202
  %v241 = vadd.f32 %v48, %v207
  %v242 = vadd.f32 %v49, %v212
  %v243 = vadd.f32 %v50, %v217
  %v244 = vadd.f32 %v51, %v222
  %v245 = vadd.f32 %v52, %v227
  %246 = vst [vmem:[#allocation2] sm:$0xff] %v230
  %247 = vst [vmem:[#allocation2 + $0x8] sm:$0xff] %v231
  %248 = vst [vmem:[#allocation2 + $0x10] sm:$0xff] %v232
  %249 = vst [vmem:[#allocation2 + $0x18] sm:$0xff] %v233
  %250 = vst [vmem:[#allocation2 + $0x20] sm:$0xff] %v234
  %251 = vst [vmem:[#allocation2 + $0x28] sm:$0xff] %v235
  %252 = vst [vmem:[#allocation2 + $0x30] sm:$0xff] %v236
  %253 = vst [vmem:[#allocation2 + $0x38] sm:$0xff] %v237
  %254 = vst [vmem:[#allocation2 + $0x40] sm:$0xff] %v238
  %255 = vst [vmem:[#allocation2 + $0x48] sm:$0xff] %v239
  %256 = vst [vmem:[#allocation2 + $0x50] sm:$0xff] %v240
  %257 = vst [vmem:[#allocation2 + $0x58] sm:$0xff] %v241
  %258 = vst [vmem:[#allocation2 + $0x60] sm:$0xff] %v242
  %259 = vst [vmem:[#allocation2 + $0x68] sm:$0xff] %v243
  %260 = vst [vmem:[#allocation2 + $0x70] sm:$0xff] %v244
  %261 = vst [vmem:[#allocation2 + $0x78] sm:$0xff] %v245
  // Predicated region
  $region22: #{forward.20} parent=0 // pred_check
    %p262 = pneg %p17
  $region23: #{forward.20} parent=0 // pred_check_branch
    %264 = sbr.rel (%p262) target = $region25
  $region24: #{forward.20} parent=0 // pred_region
    %v265 = vld [vmem:[#allocation2] sm:$0xff]
    %v266 = vld [vmem:[#allocation2 + $0x8] sm:$0xff]
    %v267 = vld [vmem:[#allocation2 + $0x10] sm:$0xff]
    %v268 = vld [vmem:[#allocation2 + $0x18] sm:$0xff]
    %v269 = vld [vmem:[#allocation2 + $0x20] sm:$0xff]
    %v270 = vld [vmem:[#allocation2 + $0x28] sm:$0xff]
    %v271 = vld [vmem:[#allocation2 + $0x30] sm:$0xff]
    %v272 = vld [vmem:[#allocation2 + $0x38] sm:$0xff]
    %v273 = vld [vmem:[#allocation2 + $0x40] sm:$0xff]
    %v274 = vld [vmem:[#allocation2 + $0x48] sm:$0xff]
    %v275 = vld [vmem:[#allocation2 + $0x50] sm:$0xff]
    %v276 = vld [vmem:[#allocation2 + $0x58] sm:$0xff]
    %v277 = vld [vmem:[#allocation2 + $0x60] sm:$0xff]
    %v278 = vld [vmem:[#allocation2 + $0x68] sm:$0xff]
    %v279 = vld [vmem:[#allocation2 + $0x70] sm:$0xff]
    %v280 = vld [vmem:[#allocation2 + $0x78] sm:$0xff]
    %v281 = vld [vmem:[%s2] sm:$0x1]
    %v282 = vld [vmem:[%s3] sm:$0x1]
    %v284 = vlaneseq
    %v285 = vshrl.u32 %v284, 7
    %v286 = vsub.s32 0, %v285
    %v287 = vrot.slane %v281, %v286
    %v289 = vmul.f32 %v265, %v287
    %v290 = vmul.f32 %v266, %v287
    %v291 = vmul.f32 %v267, %v287
    %v292 = vmul.f32 %v268, %v287
    %v293 = vmul.f32 %v269, %v287
    %v294 = vmul.f32 %v270, %v287
    %v295 = vmul.f32 %v271, %v287
    %v296 = vmul.f32 %v272, %v287
    %v297 = vmul.f32 %v273, %v287
    %v298 = vmul.f32 %v274, %v287
    %v299 = vmul.f32 %v275, %v287
    %v300 = vmul.f32 %v276, %v287
    %v301 = vmul.f32 %v277, %v287
    %v302 = vmul.f32 %v278, %v287
    %v303 = vmul.f32 %v279, %v287
    %v304 = vmul.f32 %v280, %v287
    %v306 = vlaneseq
    %v307 = vshrl.u32 %v306, 7
    %v308 = vsub.s32 0, %v307
    %v309 = vrot.slane %v282, %v308
    %v311 = vadd.f32 %v289, %v309
    %v312 = vadd.f32 %v290, %v309
    %v313 = vadd.f32 %v291, %v309
    %v314 = vadd.f32 %v292, %v309
    %v315 = vadd.f32 %v293, %v309
    %v316 = vadd.f32 %v294, %v309
    %v317 = vadd.f32 %v295, %v309
    %v318 = vadd.f32 %v296, %v309
    %v319 = vadd.f32 %v297, %v309
    %v320 = vadd.f32 %v298, %v309
    %v321 = vadd.f32 %v299, %v309
    %v322 = vadd.f32 %v300, %v309
    %v323 = vadd.f32 %v301, %v309
    %v324 = vadd.f32 %v302, %v309
    %v325 = vadd.f32 %v303, %v309
    %v326 = vadd.f32 %v304, %v309
    %v327 = vmax.f32 %v311, 0.0
    %v328 = vmax.f32 %v312, 0.0
    %v329 = vmax.f32 %v313, 0.0
    %v330 = vmax.f32 %v314, 0.0
    %v331 = vmax.f32 %v315, 0.0
    %v332 = vmax.f32 %v316, 0.0
    %v333 = vmax.f32 %v317, 0.0
    %v334 = vmax.f32 %v318, 0.0
    %v335 = vmax.f32 %v319, 0.0
    %v336 = vmax.f32 %v320, 0.0
    %v337 = vmax.f32 %v321, 0.0
    %v338 = vmax.f32 %v322, 0.0
    %v339 = vmax.f32 %v323, 0.0
    %v340 = vmax.f32 %v324, 0.0
    %v341 = vmax.f32 %v325, 0.0
    %v342 = vmax.f32 %v326, 0.0
    %343 = vst [vmem:[%s4] sm:$0xff] %v327
    %344 = vst [vmem:[%s4 + $0x8] sm:$0xff] %v328
    %345 = vst [vmem:[%s4 + $0x10] sm:$0xff] %v329
    %346 = vst [vmem:[%s4 + $0x18] sm:$0xff] %v330
    %347 = vst [vmem:[%s4 + $0x20] sm:$0xff] %v331
    %348 = vst [vmem:[%s4 + $0x28] sm:$0xff] %v332
    %349 = vst [vmem:[%s4 + $0x30] sm:$0xff] %v333
    %350 = vst [vmem:[%s4 + $0x38] sm:$0xff] %v334
    %351 = vst [vmem:[%s4 + $0x40] sm:$0xff] %v335
    %352 = vst [vmem:[%s4 + $0x48] sm:$0xff] %v336
    %353 = vst [vmem:[%s4 + $0x50] sm:$0xff] %v337
    %354 = vst [vmem:[%s4 + $0x58] sm:$0xff] %v338
    %355 = vst [vmem:[%s4 + $0x60] sm:$0xff] %v339
    %356 = vst [vmem:[%s4 + $0x68] sm:$0xff] %v340
    %357 = vst [vmem:[%s4 + $0x70] sm:$0xff] %v341
    %358 = vst [vmem:[%s4 + $0x78] sm:$0xff] %v342
  $region25: #{forward.20} parent=0 // pred_fallthru
    _
  // Predicated region
  $region26: #{forward.20} parent=0 // pred_check
    _
  $region27: #{forward.20} parent=0 // pred_check_branch
    %360 = sbr.rel (0) target = $region29
  $region28: #{forward.20} parent=0 // pred_region
    _
  $region29: #{forward.20} parent=0 // pred_fallthru
    _
  // Predicated region
  $region30: #{forward.20} parent=0 // pred_check
    _
  $region31: #{forward.20} parent=0 // pred_check_branch
    %362 = sbr.rel (0) target = $region33
  $region32: #{forward.20} parent=0 // pred_region
    _
  $region33: #{forward.20} parent=0 // pred_fallthru
    _

// kernel: forward.24
$region0: #{forward.24}
  #allocation0 [shape = 'u32[]', space=smem, size = 0x4, offset = 0x4, fixed_abs, tag = 'smem constant byte address 0x4 - core index']
  #allocation1 [shape = 'u32[144,128]{1,0:T(1,128)}', space=vmem, size = 0x12000, scoped, tag = 'internal scratch']
  #allocation2 [shape = 'f32[128,128]{1,0:T(8,128)}', space=vmem, size = 0x10000, scoped, tag = 'scratch operand']
  %s0 = inlined_call_operand.vmem [shape: f32[128,256], index: 0, kind: input, shape index: {}]
  %s1 = inlined_call_operand.vmem [shape: f32[256,128], index: 1, kind: input, shape index: {}]
  %s2 = inlined_call_operand.vmem [shape: f32[1,128], index: 2, kind: input, shape index: {}]
  %s3 = inlined_call_operand.vmem [shape: f32[1,128], index: 3, kind: input, shape index: {}]
  %s4 = inlined_call_operand.vmem [shape: f32[128,128], index: 4, kind: input, shape index: {}]
  %s5 = inlined_call_operand.vmem [shape: f32[128,128], index: 5, kind: output, shape index: {}]
  %s6 = sld [smem:[#allocation0]]
  $region99: #{forward.24} parent=0
    _
  %s8 = ssub.s32 1, %s6
  %s9 = scalar_select 0, %s8, %s6
  $region1: #{forward.24} parent=0
    #allocation3 [shape = 'u8[131072]{0}', space=vmem, size = 0x20000, scoped, tag = 'input window, operand 0']
    loop: start=0, step=1, limit=4
    $region2: #{forward.24} parent=1 // loop_pre_header
      _
    $region3: #{forward.24} parent=1 // loop_header
      %s11 = sphi 0, %s15
      %p12 = scmp.ge.s32.totalorder %s11, 4
      %s18 = sphi 0, %s37
      %s19 = sphi 0, %s33
      %s20 = sphi 0, %s29
      %s21 = sphi 0, %s18
      %s22 = sphi 0, %s19
      %s23 = sphi 0, %s20
      %s24 = sphi 0, %s21
      %s25 = sphi 0, %s22
      %s26 = sphi 0, %s23
      %s42 = sphi 0, %s44
      %s45 = sphi 0, %s42
      %s46 = sphi 0, %s45
      %s62 = sphi 0, %s46
      %s70 = sphi 0, %s72
      %s73 = sphi 0, %s70
      %s74 = sphi 0, %s73
      %s90 = sphi 0, %s74
      %s96 = sphi 0, %s98
      %s99 = sphi 0, %s96
      %s100 = sphi 0, %s99
      %s116 = sphi 0, %s100
      %s122 = sphi 0, %s124
      %s125 = sphi 0, %s122
      %s126 = sphi 0, %s125
      %s142 = sphi 0, %s126
      %s150 = sphi 0, %s152
      %s153 = sphi 0, %s150
      %s154 = sphi 0, %s153
      %s170 = sphi 0, %s154
      %s178 = sphi 0, %s180
      %s181 = sphi 0, %s178
      %s182 = sphi 0, %s181
      %s198 = sphi 0, %s182
    $region4: #{forward.24} parent=1 // loop_header_branch
      %14 = sbr.rel (%p12) target = $region8
    $region5: #{forward.24} parent=1 // loop_body
      %s16 = ssub.s32 %s11, 1
      %s17 = ssub.s32 %s11, 2
      %s27 = sadd.s32 1, %s20
      %p28 = scmp.ge.s32.totalorder %s27, 2
      %s29 = scalar_select %p28, 0, %s27
      %s30 = sadd.s32 1, %s19
      %s31 = scalar_select %p28, %s30, %s19
      %p32 = scmp.ge.s32.totalorder %s31, 1
      %s33 = scalar_select %p32, 0, %s31
      %s34 = sadd.s32 1, %s18
      %s35 = scalar_select %p32, %s34, %s18
      %p36 = scmp.ge.s32.totalorder %s35, 1
      %s37 = scalar_select %p36, 0, %s35
      %s38 = ssub.s32 %s18, %s37
      %s39 = ssub.s32 %s20, %s29
      %s40 = sor.u32 %s38, %s39
      %p41 = scmp.eq.s32.totalorder %s40, 0
      %s43 = sadd.s32 %s42, 1
      %s44 = scalar_select %p41, %s42, %s43
      %p47 = pneg %p41
      %p48 = scmp.eq.s32.totalorder %s11, 1
      %p49 = por %p47, %p48
      %p50 = scmp.ne.s32.totalorder %s42, %s45
      %p51 = scmp.eq.s32.totalorder %s11, 0
      %p52 = por %p50, %p51
      %p53 = scmp.ne.s32.totalorder %s42, %s45
      %p54 = scmp.eq.s32.totalorder %s16, 1
      %p55 = por %p53, %p54
      %p56 = scmp.ne.s32.totalorder %s45, %s46
      %p57 = scmp.eq.s32.totalorder %s16, 0
      %p58 = por %p56, %p57
      %p59 = scmp.ne.s32.totalorder %s45, %s46
      %p60 = scmp.eq.s32.totalorder %s17, 1
      %p61 = por %p59, %p60
      %p63 = scmp.ne.s32.totalorder %s46, %s62
      %p64 = scmp.eq.s32.totalorder %s17, 0
      %p65 = por %p63, %p64
      %s66 = ssub.s32 %s20, %s29
      %s67 = ssub.s32 %s19, %s33
      %s68 = sor.u32 %s66, %s67
      %p69 = scmp.eq.s32.totalorder %s68, 0
      %s71 = sadd.s32 %s70, 1
      %s72 = scalar_select %p69, %s70, %s71
      %p75 = pneg %p69
      %p76 = scmp.eq.s32.totalorder %s11, 1
      %p77 = por %p75, %p76
      %p78 = scmp.ne.s32.totalorder %s70, %s73
      %p79 = scmp.eq.s32.totalorder %s11, 0
      %p80 = por %p78, %p79
      %p81 = scmp.ne.s32.totalorder %s70, %s73
      %p82 = scmp.eq.s32.totalorder %s16, 1
      %p83 = por %p81, %p82
      %p84 = scmp.ne.s32.totalorder %s73, %s74
      %p85 = scmp.eq.s32.totalorder %s16, 0
      %p86 = por %p84, %p85
      %p87 = scmp.ne.s32.totalorder %s73, %s74
      %p88 = scmp.eq.s32.totalorder %s17, 1
      %p89 = por %p87, %p88
      %p91 = scmp.ne.s32.totalorder %s74, %s90
      %p92 = scmp.eq.s32.totalorder %s17, 0
      %p93 = por %p91, %p92
      %s94 = ssub.s32 %s19, %s33
      %p95 = scmp.eq.s32.totalorder %s94, 0
      %s97 = sadd.s32 %s96, 1
      %s98 = scalar_select %p95, %s96, %s97
      %p101 = pneg %p95
      %p102 = scmp.eq.s32.totalorder %s11, 1
      %p103 = por %p101, %p102
      %p104 = scmp.ne.s32.totalorder %s96, %s99
      %p105 = scmp.eq.s32.totalorder %s11, 0
      %p106 = por %p104, %p105
      %p107 = scmp.ne.s32.totalorder %s96, %s99
      %p108 = scmp.eq.s32.totalorder %s16, 1
      %p109 = por %p107, %p108
      %p110 = scmp.ne.s32.totalorder %s99, %s100
      %p111 = scmp.eq.s32.totalorder %s16, 0
      %p112 = por %p110, %p111
      %p113 = scmp.ne.s32.totalorder %s99, %s100
      %p114 = scmp.eq.s32.totalorder %s17, 1
      %p115 = por %p113, %p114
      %p117 = scmp.ne.s32.totalorder %s100, %s116
      %p118 = scmp.eq.s32.totalorder %s17, 0
      %p119 = por %p117, %p118
      %s120 = ssub.s32 %s19, %s33
      %p121 = scmp.eq.s32.totalorder %s120, 0
      %s123 = sadd.s32 %s122, 1
      %s124 = scalar_select %p121, %s122, %s123
      %p127 = pneg %p121
      %p128 = scmp.eq.s32.totalorder %s11, 1
      %p129 = por %p127, %p128
      %p130 = scmp.ne.s32.totalorder %s122, %s125
      %p131 = scmp.eq.s32.totalorder %s11, 0
      %p132 = por %p130, %p131
      %p133 = scmp.ne.s32.totalorder %s122, %s125
      %p134 = scmp.eq.s32.totalorder %s16, 1
      %p135 = por %p133, %p134
      %p136 = scmp.ne.s32.totalorder %s125, %s126
      %p137 = scmp.eq.s32.totalorder %s16, 0
      %p138 = por %p136, %p137
      %p139 = scmp.ne.s32.totalorder %s125, %s126
      %p140 = scmp.eq.s32.totalorder %s17, 1
      %p141 = por %p139, %p140
      %p143 = scmp.ne.s32.totalorder %s126, %s142
      %p144 = scmp.eq.s32.totalorder %s17, 0
      %p145 = por %p143, %p144
      %s146 = ssub.s32 %s18, %s37
      %s147 = ssub.s32 %s19, %s33
      %s148 = sor.u32 %s146, %s147
      %p149 = scmp.eq.s32.totalorder %s148, 0
      %s151 = sadd.s32 %s150, 1
      %s152 = scalar_select %p149, %s150, %s151
      %p155 = pneg %p149
      %p156 = scmp.eq.s32.totalorder %s11, 1
      %p157 = por %p155, %p156
      %p158 = scmp.ne.s32.totalorder %s150, %s153
      %p159 = scmp.eq.s32.totalorder %s11, 0
      %p160 = por %p158, %p159
      %p161 = scmp.ne.s32.totalorder %s150, %s153
      %p162 = scmp.eq.s32.totalorder %s16, 1
      %p163 = por %p161, %p162
      %p164 = scmp.ne.s32.totalorder %s153, %s154
      %p165 = scmp.eq.s32.totalorder %s16, 0
      %p166 = por %p164, %p165
      %p167 = scmp.ne.s32.totalorder %s153, %s154
      %p168 = scmp.eq.s32.totalorder %s17, 1
      %p169 = por %p167, %p168
      %p171 = scmp.ne.s32.totalorder %s154, %s170
      %p172 = scmp.eq.s32.totalorder %s17, 0
      %p173 = por %p171, %p172
      %s174 = ssub.s32 %s18, %s37
      %s175 = ssub.s32 %s19, %s33
      %s176 = sor.u32 %s174, %s175
      %p177 = scmp.eq.s32.totalorder %s176, 0
      %s179 = sadd.s32 %s178, 1
      %s180 = scalar_select %p177, %s178, %s179
      %p183 = pneg %p177
      %p184 = scmp.eq.s32.totalorder %s11, 1
      %p185 = por %p183, %p184
      %p186 = scmp.ne.s32.totalorder %s178, %s181
      %p187 = scmp.eq.s32.totalorder %s11, 0
      %p188 = por %p186, %p187
      %p189 = scmp.ne.s32.totalorder %s178, %s181
      %p190 = scmp.eq.s32.totalorder %s16, 1
      %p191 = por %p189, %p190
      %p192 = scmp.ne.s32.totalorder %s181, %s182
      %p193 = scmp.eq.s32.totalorder %s16, 0
      %p194 = por %p192, %p193
      %p195 = scmp.ne.s32.totalorder %s181, %s182
      %p196 = scmp.eq.s32.totalorder %s17, 1
      %p197 = por %p195, %p196
      %p199 = scmp.ne.s32.totalorder %s182, %s198
      %p200 = scmp.eq.s32.totalorder %s17, 0
      %p201 = por %p199, %p200
      %p202 = scmp.le.s32.totalorder 1, %s11
      %p203 = scmp.lt.s32.totalorder %s11, 3
      %p204 = pnand %p202, %p203
      %p205 = pneg %p204
      // Predicated region
      $region9: #{forward.24} parent=5 // pred_check
        _
      $region10: #{forward.24} parent=5 // pred_check_branch
        %207 = sbr.rel (%p204) target = $region12
      $region11: #{forward.24} parent=5 // pred_region
        %s208 = ssub.s32 %s11, 1
        // Predicated region
        $region13: #{forward.24} parent=11 // pred_check
          %p209 = pneg %p112
        $region14: #{forward.24} parent=11 // pred_check_branch
          %211 = sbr.rel (%p209) target = $region16
        $region15: #{forward.24} parent=11 // pred_region
          %p212 = scmp.lt.s32.totalorder %s22, 0
          %s213 = scalar_select %p212, %s22, 0
          %s214 = scalar_lea.vmem %s2, %s213
        $region16: #{forward.24} parent=11 // pred_fallthru
          _
        // Predicated region
        $region17: #{forward.24} parent=11 // pred_check
          %p215 = pneg %p138
        $region18: #{forward.24} parent=11 // pred_check_branch
          %217 = sbr.rel (%p215) target = $region20
        $region19: #{forward.24} parent=11 // pred_region
          %p218 = scmp.lt.s32.totalorder %s22, 0
          %s219 = scalar_select %p218, %s22, 0
          %s220 = scalar_lea.vmem %s3, %s219
        $region20: #{forward.24} parent=11 // pred_fallthru
          _
        // Predicated region
        $region21: #{forward.24} parent=11 // pred_check
          %p221 = pneg %p166
        $region22: #{forward.24} parent=11 // pred_check_branch
          %223 = sbr.rel (%p221) target = $region24
        $region23: #{forward.24} parent=11 // pred_region
          %s224 = smul.u32 16, %s21
          %p225 = scmp.lt.s32.totalorder %s224, 15
          %s226 = scalar_select %p225, %s224, 15
          %p227 = scmp.lt.s32.totalorder %s22, 0
          %s228 = scalar_select %p227, %s22, 0
          %s229 = sadd.s32 %s228, %s226
          %s230 = smul.addr %s229, 8
          %s231 = scalar_lea.vmem %s4, %s230
          %s232 = smul.u32 16, %s21
        $region24: #{forward.24} parent=11 // pred_fallthru
          _
      $region12: #{forward.24} parent=5 // pred_fallthru
        _
      %p233 = scmp.lt.s32.totalorder %s11, 2
      // Predicated region
      $region25: #{forward.24} parent=5 // pred_check
        %p234 = pneg %p233
      $region26: #{forward.24} parent=5 // pred_check_branch
        %236 = sbr.rel (%p234) target = $region28
      $region27: #{forward.24} parent=5 // pred_region
        // Predicated region
        $region29: #{forward.24} parent=27 // pred_check
          %p237 = pneg %p52
        $region30: #{forward.24} parent=27 // pred_check_branch
          %239 = sbr.rel (%p237) target = $region32
        $region31: #{forward.24} parent=27 // pred_region
          %s240 = sand.u32 %s42, 1
          %s241 = sand.u32 %s42, 1
          %s242 = smul.addr %s241, 128
          %s243 = scalar_lea.vmem [#allocation3], %s242
          %s244 = smul.u32 16, %s18
          %s245 = smul.addr %s244, 2
          %s246 = sadd.s32 %s20, %s245
          %s247 = smul.addr %s246, 8
          %s248 = scalar_lea.vmem %s0, %s247
          // Predicated region
          $region33: #{forward.24} parent=31 // pred_check
            _
          $region34: #{forward.24} parent=31 // pred_check_branch
            %250 = sbr.rel (0) target = $region36
          $region35: #{forward.24} parent=31 // pred_region
            // Predicated region
            $region37: #{forward.24} parent=35 // pred_check
              _
            $region38: #{forward.24} parent=35 // pred_check_branch
              %252 = sbr.rel (0) target = $region40
            $region39: #{forward.24} parent=35 // pred_region
              // Predicated region
              $region52: #{forward.24} parent=39 // pred_check
                _
              $region53: #{forward.24} parent=39 // pred_check_branch
                %297 = sbr.rel (0) target = $region55
              $region54: #{forward.24} parent=39 // pred_region
                loop: start=0, step=1, limit=1
                $region56: #{forward.24} parent=54 // loop_pre_header
                  _
                $region57: #{forward.24} parent=54 // loop_header
                  %s299 = sphi 0, %s303
                  %p300 = scmp.ge.s32.totalorder %s299, 1
                  %s304 = sphi %s248, %s248
                  %s305 = sphi %s243, %s243
                $region58: #{forward.24} parent=54 // loop_header_branch
                  %302 = sbr.rel (%p300) target = $region62
                $region59: #{forward.24} parent=54 // loop_body
                  %v306 = vld [vmem:[%s304] sm:$0xff]
                  %307 = vst [vmem:[%s305] sm:$0xff] %v306
                  %v308 = vld [vmem:[%s304 + $0x10] sm:$0xff]
                  %309 = vst [vmem:[%s305 + $0x8] sm:$0xff] %v308
                  %v310 = vld [vmem:[%s304 + $0x20] sm:$0xff]
                  %311 = vst [vmem:[%s305 + $0x10] sm:$0xff] %v310
                  %v312 = vld [vmem:[%s304 + $0x30] sm:$0xff]
                  %313 = vst [vmem:[%s305 + $0x18] sm:$0xff] %v312
                  %v314 = vld [vmem:[%s304 + $0x40] sm:$0xff]
                  %315 = vst [vmem:[%s305 + $0x20] sm:$0xff] %v314
                  %v316 = vld [vmem:[%s304 + $0x50] sm:$0xff]
                  %317 = vst [vmem:[%s305 + $0x28] sm:$0xff] %v316
                  %v318 = vld [vmem:[%s304 + $0x60] sm:$0xff]
                  %319 = vst [vmem:[%s305 + $0x30] sm:$0xff] %v318
                  %v320 = vld [vmem:[%s304 + $0x70] sm:$0xff]
                  %321 = vst [vmem:[%s305 + $0x38] sm:$0xff] %v320
                  %v322 = vld [vmem:[%s304 + $0x80] sm:$0xff]
                  %323 = vst [vmem:[%s305 + $0x40] sm:$0xff] %v322
                  %v324 = vld [vmem:[%s304 + $0x90] sm:$0xff]
                  %325 = vst [vmem:[%s305 + $0x48] sm:$0xff] %v324
                  %v326 = vld [vmem:[%s304 + $0xa0] sm:$0xff]
                  %327 = vst [vmem:[%s305 + $0x50] sm:$0xff] %v326
                  %v328 = vld [vmem:[%s304 + $0xb0] sm:$0xff]
                  %329 = vst [vmem:[%s305 + $0x58] sm:$0xff] %v328
                  %v330 = vld [vmem:[%s304 + $0xc0] sm:$0xff]
                  %331 = vst [vmem:[%s305 + $0x60] sm:$0xff] %v330
                  %v332 = vld [vmem:[%s304 + $0xd0] sm:$0xff]
                  %333 = vst [vmem:[%s305 + $0x68] sm:$0xff] %v332
                  %v334 = vld [vmem:[%s304 + $0xe0] sm:$0xff]
                  %335 = vst [vmem:[%s305 + $0x70] sm:$0xff] %v334
                  %v336 = vld [vmem:[%s304 + $0xf0] sm:$0xff]
                  %337 = vst [vmem:[%s305 + $0x78] sm:$0xff] %v336
                $region60: #{forward.24} parent=54 // loop_footer
                  %s303 = sadd.s32 1, %s299
                $region61: #{forward.24} parent=54 // loop_footer_branch
                  %298 = sbr.rel target = $region57
                $region62: #{forward.24} parent=54 // loop_exit
                  _
              $region55: #{forward.24} parent=39 // pred_fallthru
                _
              // Predicated region
              $region63: #{forward.24} parent=39 // pred_check
                _
              $region64: #{forward.24} parent=39 // pred_check_branch
                %339 = sbr.rel target = $region66
              $region65: #{forward.24} parent=39 // pred_region
                _
              $region66: #{forward.24} parent=39 // pred_fallthru
                _
            $region40: #{forward.24} parent=35 // pred_fallthru
              _
            // Predicated region
            $region41: #{forward.24} parent=35 // pred_check
              _
            $region42: #{forward.24} parent=35 // pred_check_branch
              %254 = sbr.rel target = $region44
            $region43: #{forward.24} parent=35 // pred_region
              loop: start=0, step=1, limit=1
              $region45: #{forward.24} parent=43 // loop_pre_header
                _
              $region46: #{forward.24} parent=43 // loop_header
                %s257 = sphi 0, %s261
                %p258 = scmp.ge.s32.totalorder %s257, 1
                %s262 = sphi %s248, %s248
                %s263 = sphi %s243, %s243
              $region47: #{forward.24} parent=43 // loop_header_branch
                %260 = sbr.rel (%p258) target = $region51
              $region48: #{forward.24} parent=43 // loop_body
                %v264 = vld [vmem:[%s262] sm:$0xff]
                %265 = vst [vmem:[%s263] sm:$0xff] %v264
                %v266 = vld [vmem:[%s262 + $0x10] sm:$0xff]
                %267 = vst [vmem:[%s263 + $0x8] sm:$0xff] %v266
                %v268 = vld [vmem:[%s262 + $0x20] sm:$0xff]
                %269 = vst [vmem:[%s263 + $0x10] sm:$0xff] %v268
                %v270 = vld [vmem:[%s262 + $0x30] sm:$0xff]
                %271 = vst [vmem:[%s263 + $0x18] sm:$0xff] %v270
                %v272 = vld [vmem:[%s262 + $0x40] sm:$0xff]
                %273 = vst [vmem:[%s263 + $0x20] sm:$0xff] %v272
                %v274 = vld [vmem:[%s262 + $0x50] sm:$0xff]
                %275 = vst [vmem:[%s263 + $0x28] sm:$0xff] %v274
                %v276 = vld [vmem:[%s262 + $0x60] sm:$0xff]
                %277 = vst [vmem:[%s263 + $0x30] sm:$0xff] %v276
                %v278 = vld [vmem:[%s262 + $0x70] sm:$0xff]
                %279 = vst [vmem:[%s263 + $0x38] sm:$0xff] %v278
                %v280 = vld [vmem:[%s262 + $0x80] sm:$0xff]
                %281 = vst [vmem:[%s263 + $0x40] sm:$0xff] %v280
                %v282 = vld [vmem:[%s262 + $0x90] sm:$0xff]
                %283 = vst [vmem:[%s263 + $0x48] sm:$0xff] %v282
                %v284 = vld [vmem:[%s262 + $0xa0] sm:$0xff]
                %285 = vst [vmem:[%s263 + $0x50] sm:$0xff] %v284
                %v286 = vld [vmem:[%s262 + $0xb0] sm:$0xff]
                %287 = vst [vmem:[%s263 + $0x58] sm:$0xff] %v286
                %v288 = vld [vmem:[%s262 + $0xc0] sm:$0xff]
                %289 = vst [vmem:[%s263 + $0x60] sm:$0xff] %v288
                %v290 = vld [vmem:[%s262 + $0xd0] sm:$0xff]
                %291 = vst [vmem:[%s263 + $0x68] sm:$0xff] %v290
                %v292 = vld [vmem:[%s262 + $0xe0] sm:$0xff]
                %293 = vst [vmem:[%s263 + $0x70] sm:$0xff] %v292
                %v294 = vld [vmem:[%s262 + $0xf0] sm:$0xff]
                %295 = vst [vmem:[%s263 + $0x78] sm:$0xff] %v294
              $region49: #{forward.24} parent=43 // loop_footer
                %s261 = sadd.s32 1, %s257
              $region50: #{forward.24} parent=43 // loop_footer_branch
                %256 = sbr.rel target = $region46
              $region51: #{forward.24} parent=43 // loop_exit
                _
            $region44: #{forward.24} parent=35 // pred_fallthru
              _
          $region36: #{forward.24} parent=31 // pred_fallthru
            _
          %340 = vnop
        $region32: #{forward.24} parent=27 // pred_fallthru
          _
        // Predicated region
        $region67: #{forward.24} parent=27 // pred_check
          %p341 = pneg %p80
        $region68: #{forward.24} parent=27 // pred_check_branch
          %343 = sbr.rel (%p341) target = $region70
        $region69: #{forward.24} parent=27 // pred_region
          %s344 = smul.u32 16, %s20
          %p345 = scmp.lt.s32.totalorder %s344, 31
          %s346 = scalar_select %p345, %s344, 31
          %p347 = scmp.lt.s32.totalorder %s19, 0
          %s348 = scalar_select %p347, %s19, 0
          %s349 = sadd.s32 %s348, %s346
          %s350 = smul.addr %s349, 8
          %s351 = scalar_lea.vmem %s1, %s350
          %s352 = smul.u32 16, %s20
        $region70: #{forward.24} parent=27 // pred_fallthru
          _
      $region28: #{forward.24} parent=5 // pred_fallthru
        _
      %p353 = scmp.le.s32.totalorder 1, %s11
      %p354 = scmp.lt.s32.totalorder %s11, 3
      %p355 = pnand %p353, %p354
      %p356 = pneg %p355
      // Predicated region
      $region71: #{forward.24} parent=5 // pred_check
        _
      $region72: #{forward.24} parent=5 // pred_check_branch
        %358 = sbr.rel (%p355) target = $region74
      $region73: #{forward.24} parent=5 // pred_region
        %s359 = ssub.s32 %s11, 1
        %s360 = sand.u32 %s45, 1
        %s361 = sand.u32 %s45, 1
        %s362 = smul.addr %s361, 128
        %s363 = scalar_lea.vmem [#allocation3], %s362
        // Predicated region
        $region75: #{forward.24} parent=73 // pred_check
          %p364 = pneg %p58
        $region76: #{forward.24} parent=73 // pred_check_branch
          %366 = sbr.rel (%p364) target = $region78
        $region77: #{forward.24} parent=73 // pred_region
          _
        $region78: #{forward.24} parent=73 // pred_fallthru
          _
        %s367 = sand.u32 %s45, 1
        %s368 = sand.u32 %s45, 1
        %s369 = smul.addr %s368, 128
        %s370 = scalar_lea.vmem [#allocation3], %s369
        %p371 = pneg %p58
        %p372 = pneg %p55
        %s373 = smul.u32 16, %s23
        %p374 = scmp.lt.s32.totalorder %s373, 31
        %s375 = scalar_select %p374, %s373, 31
        %p376 = scmp.lt.s32.totalorder %s22, 0
        %s377 = scalar_select %p376, %s22, 0
        %s378 = sadd.s32 %s377, %s375
        %s379 = smul.addr %s378, 8
        %s380 = scalar_lea.vmem %s1, %s379
        %p381 = pneg %p86
        %p382 = pneg %p83
        %p383 = scmp.lt.s32.totalorder %s22, 0
        %s384 = scalar_select %p383, %s22, 0
        %s385 = scalar_lea.vmem %s2, %s384
        %p386 = pneg %p112
        %p387 = pneg %p109
        %p388 = scmp.lt.s32.totalorder %s22, 0
        %s389 = scalar_select %p388, %s22, 0
        %s390 = scalar_lea.vmem %s3, %s389
        %p391 = pneg %p138
        %p392 = pneg %p135
        %s393 = smul.u32 16, %s21
        %p394 = scmp.lt.s32.totalorder %s393, 15
        %s395 = scalar_select %p394, %s393, 15
        %p396 = scmp.lt.s32.totalorder %s22, 0
        %s397 = scalar_select %p396, %s22, 0
        %s398 = sadd.s32 %s397, %s395
        %s399 = smul.addr %s398, 8
        %s400 = scalar_lea.vmem %s4, %s399
        %p401 = pneg %p166
        %p402 = pneg %p163
        %p403 = pneg %p194
        %p404 = pneg %p191
        %s405 = smul.u32 16, %s21
        %p406 = scmp.lt.s32.totalorder %s405, 15
        %s407 = scalar_select %p406, %s405, 15
        %p408 = scmp.lt.s32.totalorder %s22, 0
        %s409 = scalar_select %p408, %s22, 0
        %s410 = sadd.s32 %s409, %s407
        %s411 = smul.addr %s410, 8
        %s412 = scalar_lea.vmem %s5, %s411
        %s413 = smul.u32 16, %s21
        %s414 = smul.u32 16, %s23
        %p415 = scmp.lt.s32.totalorder %s414, 31
        %s416 = scalar_select %p415, %s414, 31
        %p417 = scmp.lt.s32.totalorder %s22, 0
        %s418 = scalar_select %p417, %s22, 0
        %s419 = sadd.s32 %s418, %s416
        %s420 = smul.addr %s419, 8
        %s421 = scalar_lea.vmem %s1, %s420
        %s422 = smul.u32 16, %s23
        %p423 = scmp.lt.s32.totalorder %s22, 0
        %s424 = scalar_select %p423, %s22, 0
        %s425 = scalar_lea.vmem %s2, %s424
        %p426 = scmp.lt.s32.totalorder %s22, 0
        %s427 = scalar_select %p426, %s22, 0
        %s428 = scalar_lea.vmem %s3, %s427
        %s429 = smul.u32 16, %s21
        %p430 = scmp.lt.s32.totalorder %s429, 15
        %s431 = scalar_select %p430, %s429, 15
        %p432 = scmp.lt.s32.totalorder %s22, 0
        %s433 = scalar_select %p432, %s22, 0
        %s434 = sadd.s32 %s433, %s431
        %s435 = smul.addr %s434, 8
        %s436 = scalar_lea.vmem %s4, %s435
        %s437 = smul.u32 16, %s21
        %s438 = smul.u32 16, %s21
        %p439 = scmp.lt.s32.totalorder %s438, 15
        %s440 = scalar_select %p439, %s438, 15
        %p441 = scmp.lt.s32.totalorder %s22, 0
        %s442 = scalar_select %p441, %s22, 0
        %s443 = sadd.s32 %s442, %s440
        %s444 = smul.addr %s443, 8
        %s445 = scalar_lea.vmem %s5, %s444
        %s446 = smul.u32 16, %s21
        %p447 = scmp.eq.s32.totalorder %s23, 0
        // Predicated region
        $region79: #{forward.24} parent=73 // pred_check
          %p448 = pneg %p447
        $region80: #{forward.24} parent=73 // pred_check_branch
          %450 = sbr.rel (%p448) target = $region82
        $region81: #{forward.24} parent=73 // pred_region
          %451 = vst [vmem:[#allocation2] sm:$0xff] 0.0
          %452 = vst [vmem:[#allocation2 + $0x8] sm:$0xff] 0.0
          %453 = vst [vmem:[#allocation2 + $0x10] sm:$0xff] 0.0
          %454 = vst [vmem:[#allocation2 + $0x18] sm:$0xff] 0.0
          %455 = vst [vmem:[#allocation2 + $0x20] sm:$0xff] 0.0
          %456 = vst [vmem:[#allocation2 + $0x28] sm:$0xff] 0.0
          %457 = vst [vmem:[#allocation2 + $0x30] sm:$0xff] 0.0
          %458 = vst [vmem:[#allocation2 + $0x38] sm:$0xff] 0.0
          %459 = vst [vmem:[#allocation2 + $0x40] sm:$0xff] 0.0
          %460 = vst [vmem:[#allocation2 + $0x48] sm:$0xff] 0.0
          %461 = vst [vmem:[#allocation2 + $0x50] sm:$0xff] 0.0
          %462 = vst [vmem:[#allocation2 + $0x58] sm:$0xff] 0.0
          %463 = vst [vmem:[#allocation2 + $0x60] sm:$0xff] 0.0
          %464 = vst [vmem:[#allocation2 + $0x68] sm:$0xff] 0.0
          %465 = vst [vmem:[#allocation2 + $0x70] sm:$0xff] 0.0
          %466 = vst [vmem:[#allocation2 + $0x78] sm:$0xff] 0.0
        $region82: #{forward.24} parent=73 // pred_fallthru
          _
        %v467 = vld [vmem:[#allocation2] sm:$0xff]
        %v468 = vld [vmem:[#allocation2 + $0x8] sm:$0xff]
        %v469 = vld [vmem:[#allocation2 + $0x10] sm:$0xff]
        %v470 = vld [vmem:[#allocation2 + $0x18] sm:$0xff]
        %v471 = vld [vmem:[#allocation2 + $0x20] sm:$0xff]
        %v472 = vld [vmem:[#allocation2 + $0x28] sm:$0xff]
        %v473 = vld [vmem:[#allocation2 + $0x30] sm:$0xff]
        %v474 = vld [vmem:[#allocation2 + $0x38] sm:$0xff]
        %v475 = vld [vmem:[#allocation2 + $0x40] sm:$0xff]
        %v476 = vld [vmem:[#allocation2 + $0x48] sm:$0xff]
        %v477 = vld [vmem:[#allocation2 + $0x50] sm:$0xff]
        %v478 = vld [vmem:[#allocation2 + $0x58] sm:$0xff]
        %v479 = vld [vmem:[#allocation2 + $0x60] sm:$0xff]
        %v480 = vld [vmem:[#allocation2 + $0x68] sm:$0xff]
        %v481 = vld [vmem:[#allocation2 + $0x70] sm:$0xff]
        %v482 = vld [vmem:[#allocation2 + $0x78] sm:$0xff]
        %v483 = vld [vmem:[%s363] sm:$0xff]
        %v484 = vld [vmem:[%s363 + $0x8] sm:$0xff]
        %v485 = vld [vmem:[%s363 + $0x10] sm:$0xff]
        %v486 = vld [vmem:[%s363 + $0x18] sm:$0xff]
        %v487 = vld [vmem:[%s363 + $0x20] sm:$0xff]
        %v488 = vld [vmem:[%s363 + $0x28] sm:$0xff]
        %v489 = vld [vmem:[%s363 + $0x30] sm:$0xff]
        %v490 = vld [vmem:[%s363 + $0x38] sm:$0xff]
        %v491 = vld [vmem:[%s363 + $0x40] sm:$0xff]
        %v492 = vld [vmem:[%s363 + $0x48] sm:$0xff]
        %v493 = vld [vmem:[%s363 + $0x50] sm:$0xff]
        %v494 = vld [vmem:[%s363 + $0x58] sm:$0xff]
        %v495 = vld [vmem:[%s363 + $0x60] sm:$0xff]
        %v496 = vld [vmem:[%s363 + $0x68] sm:$0xff]
        %v497 = vld [vmem:[%s363 + $0x70] sm:$0xff]
        %v498 = vld [vmem:[%s363 + $0x78] sm:$0xff]
        %v499 = vld [vmem:[%s421] sm:$0xff]
        %v500 = vld [vmem:[%s421 + $0x8] sm:$0xff]
        %v501 = vld [vmem:[%s421 + $0x10] sm:$0xff]
        %v502 = vld [vmem:[%s421 + $0x18] sm:$0xff]
        %v503 = vld [vmem:[%s421 + $0x20] sm:$0xff]
        %v504 = vld [vmem:[%s421 + $0x28] sm:$0xff]
        %v505 = vld [vmem:[%s421 + $0x30] sm:$0xff]
        %v506 = vld [vmem:[%s421 + $0x38] sm:$0xff]
        %v507 = vld [vmem:[%s421 + $0x40] sm:$0xff]
        %v508 = vld [vmem:[%s421 + $0x48] sm:$0xff]
        %v509 = vld [vmem:[%s421 + $0x50] sm:$0xff]
        %v510 = vld [vmem:[%s421 + $0x58] sm:$0xff]
        %v511 = vld [vmem:[%s421 + $0x60] sm:$0xff]
        %v512 = vld [vmem:[%s421 + $0x68] sm:$0xff]
        %v513 = vld [vmem:[%s421 + $0x70] sm:$0xff]
        %v514 = vld [vmem:[%s421 + $0x78] sm:$0xff]
        %515 = vmatprep.subr.mxu0 0.0
        %516 = vmatpush1.msra.mxu0 %v499
        %517 = vmatprep.subr.mxu0 0.0
        %518 = vmatpush1.msra.mxu0 %v500
        %519 = vmatprep.subr.mxu0 0.0
        %520 = vmatpush1.msra.mxu0 %v501
        %521 = vmatprep.subr.mxu0 0.0
        %522 = vmatpush1.msra.mxu0 %v502
        %523 = vmatprep.subr.mxu0 0.0
        %524 = vmatpush1.msra.mxu0 %v503
        %525 = vmatprep.subr.mxu0 0.0
        %526 = vmatpush1.msra.mxu0 %v504
        %527 = vmatprep.subr.mxu0 0.0
        %528 = vmatpush1.msra.mxu0 %v505
        %529 = vmatprep.subr.mxu0 0.0
        %530 = vmatpush1.msra.mxu0 %v506
        %531 = vmatprep.subr.mxu0 0.0
        %532 = vmatpush1.msra.mxu0 %v507
        %533 = vmatprep.subr.mxu0 0.0
        %534 = vmatpush1.msra.mxu0 %v508
        %535 = vmatprep.subr.mxu0 0.0
        %536 = vmatpush1.msra.mxu0 %v509
        %537 = vmatprep.subr.mxu0 0.0
        %538 = vmatpush1.msra.mxu0 %v510
        %539 = vmatprep.subr.mxu0 0.0
        %540 = vmatpush1.msra.mxu0 %v511
        %541 = vmatprep.subr.mxu0 0.0
        %542 = vmatpush1.msra.mxu0 %v512
        %543 = vmatprep.subr.mxu0 0.0
        %544 = vmatpush1.msra.mxu0 %v513
        %545 = vmatprep.subr.mxu0 0.0
        %546 = vmatpush1.msra.mxu0 %v514
        %547 = vmatprep.subr.mxu0 0.0
        %548 = vmatpush1.msra.mxu0 0.0
        %549 = vmatprep.subr.mxu0 0.0
        %550 = vmatpush1.msra.mxu0 0.0
        %551 = vmatprep.subr.mxu0 0.0
        %552 = vmatpush1.msra.mxu0 0.0
        %553 = vmatprep.subr.mxu0 0.0
        %554 = vmatpush1.msra.mxu0 0.0
        %555 = vmatprep.subr.mxu0 0.0
        %556 = vmatpush1.msra.mxu0 0.0
        %557 = vmatprep.subr.mxu0 0.0
        %558 = vmatpush1.msra.mxu0 0.0
        %559 = vmatprep.subr.mxu0 0.0
        %560 = vmatpush1.msra.mxu0 0.0
        %561 = vmatprep.subr.mxu0 0.0
        %562 = vmatpush1.msra.mxu0 0.0
        %563 = vmatprep.subr.mxu0 0.0
        %564 = vmatpush1.msra.mxu0 0.0
        %565 = vmatprep.subr.mxu0 0.0
        %566 = vmatpush1.msra.mxu0 0.0
        %567 = vmatprep.subr.mxu0 0.0
        %568 = vmatpush1.msra.mxu0 0.0
        %569 = vmatprep.subr.mxu0 0.0
        %570 = vmatpush1.msra.mxu0 0.0
        %571 = vmatprep.subr.mxu0 0.0
        %572 = vmatpush1.msra.mxu0 0.0
        %573 = vmatprep.subr.mxu0 0.0
        %574 = vmatpush1.msra.mxu0 0.0
        %575 = vmatprep.subr.mxu0 0.0
        %576 = vmatpush1.msra.mxu0 0.0
        %577 = vmatprep.subr.mxu0 0.0
        %578 = vmatpush1.msra.mxu0 0.0
        %579 = vmatprep.mubr.f32.mxu0 0.0
        %580 = vmatmul.mubr.f32.gmra.mrb[0].mxu0 %v483
        %v581 = vpop.f32.mrb[0].mxu0
        %v582 = vadd.f32 0.0, %v581
        %v583 = vpop.f32.mrb[0].mxu0
        %584 = vmatprep.mubr.f32.mxu0 0.0
        %585 = vmatmul.mubr.f32.gmra.mrb[0].mxu0 %v484
        %v586 = vpop.f32.mrb[0].mxu0
        %v587 = vadd.f32 0.0, %v586
        %v588 = vpop.f32.mrb[0].mxu0
        %589 = vmatprep.mubr.f32.mxu0 0.0
        %590 = vmatmul.mubr.f32.gmra.mrb[0].mxu0 %v485
        %v591 = vpop.f32.mrb[0].mxu0
        %v592 = vadd.f32 0.0, %v591
        %v593 = vpop.f32.mrb[0].mxu0
        %594 = vmatprep.mubr.f32.mxu0 0.0
        %595 = vmatmul.mubr.f32.gmra.mrb[0].mxu0 %v486
        %v596 = vpop.f32.mrb[0].mxu0
        %v597 = vadd.f32 0.0, %v596
        %v598 = vpop.f32.mrb[0].mxu0
        %599 = vmatprep.mubr.f32.mxu0 0.0
        %600 = vmatmul.mubr.f32.gmra.mrb[0].mxu0 %v487
        %v601 = vpop.f32.mrb[0].mxu0
        %v602 = vadd.f32 0.0, %v601
        %v603 = vpop.f32.mrb[0].mxu0
        %604 = vmatprep.mubr.f32.mxu0 0.0
        %605 = vmatmul.mubr.f32.gmra.mrb[0].mxu0 %v488
        %v606 = vpop.f32.mrb[0].mxu0
        %v607 = vadd.f32 0.0, %v606
        %v608 = vpop.f32.mrb[0].mxu0
        %609 = vmatprep.mubr.f32.mxu0 0.0
        %610 = vmatmul.mubr.f32.gmra.mrb[0].mxu0 %v489
        %v611 = vpop.f32.mrb[0].mxu0
        %v612 = vadd.f32 0.0, %v611
        %v613 = vpop.f32.mrb[0].mxu0
        %614 = vmatprep.mubr.f32.mxu0 0.0
        %615 = vmatmul.mubr.f32.gmra.mrb[0].mxu0 %v490
        %v616 = vpop.f32.mrb[0].mxu0
        %v617 = vadd.f32 0.0, %v616
        %v618 = vpop.f32.mrb[0].mxu0
        %619 = vmatprep.mubr.f32.mxu0 0.0
        %620 = vmatmul.mubr.f32.gmra.mrb[0].mxu0 %v491
        %v621 = vpop.f32.mrb[0].mxu0
        %v622 = vadd.f32 0.0, %v621
        %v623 = vpop.f32.mrb[0].mxu0
        %624 = vmatprep.mubr.f32.mxu0 0.0
        %625 = vmatmul.mubr.f32.gmra.mrb[0].mxu0 %v492
        %v626 = vpop.f32.mrb[0].mxu0
        %v627 = vadd.f32 0.0, %v626
        %v628 = vpop.f32.mrb[0].mxu0
        %629 = vmatprep.mubr.f32.mxu0 0.0
        %630 = vmatmul.mubr.f32.gmra.mrb[0].mxu0 %v493
        %v631 = vpop.f32.mrb[0].mxu0
        %v632 = vadd.f32 0.0, %v631
        %v633 = vpop.f32.mrb[0].mxu0
        %634 = vmatprep.mubr.f32.mxu0 0.0
        %635 = vmatmul.mubr.f32.gmra.mrb[0].mxu0 %v494
        %v636 = vpop.f32.mrb[0].mxu0
        %v637 = vadd.f32 0.0, %v636
        %v638 = vpop.f32.mrb[0].mxu0
        %639 = vmatprep.mubr.f32.mxu0 0.0
        %640 = vmatmul.mubr.f32.gmra.mrb[0].mxu0 %v495
        %v641 = vpop.f32.mrb[0].mxu0
        %v642 = vadd.f32 0.0, %v641
        %v643 = vpop.f32.mrb[0].mxu0
        %644 = vmatprep.mubr.f32.mxu0 0.0
        %645 = vmatmul.mubr.f32.gmra.mrb[0].mxu0 %v496
        %v646 = vpop.f32.mrb[0].mxu0
        %v647 = vadd.f32 0.0, %v646
        %v648 = vpop.f32.mrb[0].mxu0
        %649 = vmatprep.mubr.f32.mxu0 0.0
        %650 = vmatmul.mubr.f32.gmra.mrb[0].mxu0 %v497
        %v651 = vpop.f32.mrb[0].mxu0
        %v652 = vadd.f32 0.0, %v651
        %v653 = vpop.f32.mrb[0].mxu0
        %654 = vmatprep.mubr.f32.mxu0 0.0
        %655 = vmatmul.mubr.f32.gmra.mrb[0].mxu0 %v498
        %v656 = vpop.f32.mrb[0].mxu0
        %v657 = vadd.f32 0.0, %v656
        %v658 = vpop.f32.mrb[0].mxu0
        %659 = vdwg.mxu0
        %v660 = vadd.f32 %v467, %v582
        %v661 = vadd.f32 %v468, %v587
        %v662 = vadd.f32 %v469, %v592
        %v663 = vadd.f32 %v470, %v597
        %v664 = vadd.f32 %v471, %v602
        %v665 = vadd.f32 %v472, %v607
        %v666 = vadd.f32 %v473, %v612
        %v667 = vadd.f32 %v474, %v617
        %v668 = vadd.f32 %v475, %v622
        %v669 = vadd.f32 %v476, %v627
        %v670 = vadd.f32 %v477, %v632
        %v671 = vadd.f32 %v478, %v637
        %v672 = vadd.f32 %v479, %v642
        %v673 = vadd.f32 %v480, %v647
        %v674 = vadd.f32 %v481, %v652
        %v675 = vadd.f32 %v482, %v657
        %676 = vst [vmem:[#allocation2] sm:$0xff] %v660
        %677 = vst [vmem:[#allocation2 + $0x8] sm:$0xff] %v661
        %678 = vst [vmem:[#allocation2 + $0x10] sm:$0xff] %v662
        %679 = vst [vmem:[#allocation2 + $0x18] sm:$0xff] %v663
        %680 = vst [vmem:[#allocation2 + $0x20] sm:$0xff] %v664
        %681 = vst [vmem:[#allocation2 + $0x28] sm:$0xff] %v665
        %682 = vst [vmem:[#allocation2 + $0x30] sm:$0xff] %v666
        %683 = vst [vmem:[#allocation2 + $0x38] sm:$0xff] %v667
        %684 = vst [vmem:[#allocation2 + $0x40] sm:$0xff] %v668
        %685 = vst [vmem:[#allocation2 + $0x48] sm:$0xff] %v669
        %686 = vst [vmem:[#allocation2 + $0x50] sm:$0xff] %v670
        %687 = vst [vmem:[#allocation2 + $0x58] sm:$0xff] %v671
        %688 = vst [vmem:[#allocation2 + $0x60] sm:$0xff] %v672
        %689 = vst [vmem:[#allocation2 + $0x68] sm:$0xff] %v673
        %690 = vst [vmem:[#allocation2 + $0x70] sm:$0xff] %v674
        %691 = vst [vmem:[#allocation2 + $0x78] sm:$0xff] %v675
        %p692 = scmp.eq.s32.totalorder %s23, 1
        // Predicated region
        $region83: #{forward.24} parent=73 // pred_check
          %p693 = pneg %p692
        $region84: #{forward.24} parent=73 // pred_check_branch
          %695 = sbr.rel (%p693) target = $region86
        $region85: #{forward.24} parent=73 // pred_region
          %v696 = vld [vmem:[#allocation2] sm:$0xff]
          %v697 = vld [vmem:[#allocation2 + $0x8] sm:$0xff]
          %v698 = vld [vmem:[#allocation2 + $0x10] sm:$0xff]
          %v699 = vld [vmem:[#allocation2 + $0x18] sm:$0xff]
          %v700 = vld [vmem:[#allocation2 + $0x20] sm:$0xff]
          %v701 = vld [vmem:[#allocation2 + $0x28] sm:$0xff]
          %v702 = vld [vmem:[#allocation2 + $0x30] sm:$0xff]
          %v703 = vld [vmem:[#allocation2 + $0x38] sm:$0xff]
          %v704 = vld [vmem:[#allocation2 + $0x40] sm:$0xff]
          %v705 = vld [vmem:[#allocation2 + $0x48] sm:$0xff]
          %v706 = vld [vmem:[#allocation2 + $0x50] sm:$0xff]
          %v707 = vld [vmem:[#allocation2 + $0x58] sm:$0xff]
          %v708 = vld [vmem:[#allocation2 + $0x60] sm:$0xff]
          %v709 = vld [vmem:[#allocation2 + $0x68] sm:$0xff]
          %v710 = vld [vmem:[#allocation2 + $0x70] sm:$0xff]
          %v711 = vld [vmem:[#allocation2 + $0x78] sm:$0xff]
          %v712 = vld [vmem:[%s425] sm:$0x1]
          %v713 = vld [vmem:[%s428] sm:$0x1]
          %v714 = vld [vmem:[%s436] sm:$0xff]
          %v715 = vld [vmem:[%s436 + $0x8] sm:$0xff]
          %v716 = vld [vmem:[%s436 + $0x10] sm:$0xff]
          %v717 = vld [vmem:[%s436 + $0x18] sm:$0xff]
          %v718 = vld [vmem:[%s436 + $0x20] sm:$0xff]
          %v719 = vld [vmem:[%s436 + $0x28] sm:$0xff]
          %v720 = vld [vmem:[%s436 + $0x30] sm:$0xff]
          %v721 = vld [vmem:[%s436 + $0x38] sm:$0xff]
          %v722 = vld [vmem:[%s436 + $0x40] sm:$0xff]
          %v723 = vld [vmem:[%s436 + $0x48] sm:$0xff]
          %v724 = vld [vmem:[%s436 + $0x50] sm:$0xff]
          %v725 = vld [vmem:[%s436 + $0x58] sm:$0xff]
          %v726 = vld [vmem:[%s436 + $0x60] sm:$0xff]
          %v727 = vld [vmem:[%s436 + $0x68] sm:$0xff]
          %v728 = vld [vmem:[%s436 + $0x70] sm:$0xff]
          %v729 = vld [vmem:[%s436 + $0x78] sm:$0xff]
          %v731 = vlaneseq
          %v732 = vshrl.u32 %v731, 7
          %v733 = vsub.s32 0, %v732
          %v734 = vrot.slane %v712, %v733
          %v736 = vmul.f32 %v696, %v734
          %v737 = vmul.f32 %v697, %v734
          %v738 = vmul.f32 %v698, %v734
          %v739 = vmul.f32 %v699, %v734
          %v740 = vmul.f32 %v700, %v734
          %v741 = vmul.f32 %v701, %v734
          %v742 = vmul.f32 %v702, %v734
          %v743 = vmul.f32 %v703, %v734
          %v744 = vmul.f32 %v704, %v734
          %v745 = vmul.f32 %v705, %v734
          %v746 = vmul.f32 %v706, %v734
          %v747 = vmul.f32 %v707, %v734
          %v748 = vmul.f32 %v708, %v734
          %v749 = vmul.f32 %v709, %v734
          %v750 = vmul.f32 %v710, %v734
          %v751 = vmul.f32 %v711, %v734
          %v753 = vlaneseq
          %v754 = vshrl.u32 %v753, 7
          %v755 = vsub.s32 0, %v754
          %v756 = vrot.slane %v713, %v755
          %v758 = vadd.f32 %v736, %v756
          %v759 = vadd.f32 %v737, %v756
          %v760 = vadd.f32 %v738, %v756
          %v761 = vadd.f32 %v739, %v756
          %v762 = vadd.f32 %v740, %v756
          %v763 = vadd.f32 %v741, %v756
          %v764 = vadd.f32 %v742, %v756
          %v765 = vadd.f32 %v743, %v756
          %v766 = vadd.f32 %v744, %v756
          %v767 = vadd.f32 %v745, %v756
          %v768 = vadd.f32 %v746, %v756
          %v769 = vadd.f32 %v747, %v756
          %v770 = vadd.f32 %v748, %v756
          %v771 = vadd.f32 %v749, %v756
          %v772 = vadd.f32 %v750, %v756
          %v773 = vadd.f32 %v751, %v756
          %v774 = vadd.f32 %v758, %v714
          %v775 = vadd.f32 %v759, %v715
          %v776 = vadd.f32 %v760, %v716
          %v777 = vadd.f32 %v761, %v717
          %v778 = vadd.f32 %v762, %v718
          %v779 = vadd.f32 %v763, %v719
          %v780 = vadd.f32 %v764, %v720
          %v781 = vadd.f32 %v765, %v721
          %v782 = vadd.f32 %v766, %v722
          %v783 = vadd.f32 %v767, %v723
          %v784 = vadd.f32 %v768, %v724
          %v785 = vadd.f32 %v769, %v725
          %v786 = vadd.f32 %v770, %v726
          %v787 = vadd.f32 %v771, %v727
          %v788 = vadd.f32 %v772, %v728
          %v789 = vadd.f32 %v773, %v729
          %790 = vst [vmem:[%s445] sm:$0xff] %v774
          %791 = vst [vmem:[%s445 + $0x8] sm:$0xff] %v775
          %792 = vst [vmem:[%s445 + $0x10] sm:$0xff] %v776
          %793 = vst [vmem:[%s445 + $0x18] sm:$0xff] %v777
          %794 = vst [vmem:[%s445 + $0x20] sm:$0xff] %v778
          %795 = vst [vmem:[%s445 + $0x28] sm:$0xff] %v779
          %796 = vst [vmem:[%s445 + $0x30] sm:$0xff] %v780
          %797 = vst [vmem:[%s445 + $0x38] sm:$0xff] %v781
          %798 = vst [vmem:[%s445 + $0x40] sm:$0xff] %v782
          %799 = vst [vmem:[%s445 + $0x48] sm:$0xff] %v783
          %800 = vst [vmem:[%s445 + $0x50] sm:$0xff] %v784
          %801 = vst [vmem:[%s445 + $0x58] sm:$0xff] %v785
          %802 = vst [vmem:[%s445 + $0x60] sm:$0xff] %v786
          %803 = vst [vmem:[%s445 + $0x68] sm:$0xff] %v787
          %804 = vst [vmem:[%s445 + $0x70] sm:$0xff] %v788
          %805 = vst [vmem:[%s445 + $0x78] sm:$0xff] %v789
        $region86: #{forward.24} parent=73 // pred_fallthru
          _
        %s806 = smul.u32 16, %s21
        %p807 = scmp.lt.s32.totalorder %s806, 15
        %s808 = scalar_select %p807, %s806, 15
        %p809 = scmp.lt.s32.totalorder %s22, 0
        %s810 = scalar_select %p809, %s22, 0
        %s811 = sadd.s32 %s810, %s808
        %s812 = smul.addr %s811, 8
        %s813 = scalar_lea.vmem %s5, %s812
        // Predicated region
        $region87: #{forward.24} parent=73 // pred_check
          %p814 = pneg %p191
        $region88: #{forward.24} parent=73 // pred_check_branch
          %816 = sbr.rel (%p814) target = $region90
        $region89: #{forward.24} parent=73 // pred_region
          %s817 = smul.u32 16, %s21
        $region90: #{forward.24} parent=73 // pred_fallthru
          _
        // Predicated region
        $region91: #{forward.24} parent=73 // pred_check
          %p818 = pneg %p191
        $region92: #{forward.24} parent=73 // pred_check_branch
          %820 = sbr.rel (%p818) target = $region94
        $region93: #{forward.24} parent=73 // pred_region
          %s821 = smul.u32 16, %s21
          %p822 = scmp.lt.s32.totalorder %s821, 15
          %s823 = scalar_select %p822, %s821, 15
          %p824 = scmp.lt.s32.totalorder %s22, 0
          %s825 = scalar_select %p824, %s22, 0
          %s826 = sadd.s32 %s825, %s823
          %s827 = smul.addr %s826, 8
          %s828 = scalar_lea.vmem %s5, %s827
        $region94: #{forward.24} parent=73 // pred_fallthru
          _
      $region74: #{forward.24} parent=5 // pred_fallthru
        _
      %p829 = scmp.le.s32.totalorder 2, %s11
      // Predicated region
      $region95: #{forward.24} parent=5 // pred_check
        %p830 = pneg %p829
      $region96: #{forward.24} parent=5 // pred_check_branch
        %832 = sbr.rel (%p830) target = $region98
      $region97: #{forward.24} parent=5 // pred_region
        %s833 = ssub.s32 %s11, 2
      $region98: #{forward.24} parent=5 // pred_fallthru
        _
    $region6: #{forward.24} parent=1 // loop_footer
      %s15 = sadd.s32 1, %s11
    $region7: #{forward.24} parent=1 // loop_footer_branch
      %10 = sbr.rel target = $region3
    $region8: #{forward.24} parent=1 // loop_exit
      _

// kernel: forward.27
$region0: #{forward.27}
  #allocation0 [shape = 'u32[]', space=smem, size = 0x4, offset = 0x4, fixed_abs, tag = 'smem constant byte address 0x4 - core index']
  #allocation1 [shape = 'u32[144,128]{1,0:T(1,128)}', space=vmem, size = 0x12000, scoped, tag = 'internal scratch']
  #allocation2 [shape = 'f32[128,128]{1,0:T(8,128)}', space=vmem, size = 0x10000, scoped, tag = 'scratch operand']
  %s0 = inlined_call_operand.vmem [shape: f32[128,384], index: 0, kind: input, shape index: {}]
  %s1 = inlined_call_operand.vmem [shape: f32[384,128], index: 1, kind: input, shape index: {}]
  %s2 = inlined_call_operand.vmem [shape: f32[1,128], index: 2, kind: input, shape index: {}]
  %s3 = inlined_call_operand.vmem [shape: f32[1,128], index: 3, kind: input, shape index: {}]
  %s4 = inlined_call_operand.vmem [shape: f32[128,128], index: 4, kind: input, shape index: {}]
  %s5 = inlined_call_operand.vmem [shape: f32[128,128], index: 5, kind: output, shape index: {}]
  %s6 = sld [smem:[#allocation0]]
  $region99: #{forward.27} parent=0
    _
  %s8 = ssub.s32 1, %s6
  %s9 = scalar_select 0, %s8, %s6
  $region1: #{forward.27} parent=0
    #allocation3 [shape = 'u8[131072]{0}', space=vmem, size = 0x20000, scoped, tag = 'input window, operand 0']
    loop: start=0, step=1, limit=5
    $region2: #{forward.27} parent=1 // loop_pre_header
      _
    $region3: #{forward.27} parent=1 // loop_header
      %s11 = sphi 0, %s15
      %p12 = scmp.ge.s32.totalorder %s11, 5
      %s18 = sphi 0, %s37
      %s19 = sphi 0, %s33
      %s20 = sphi 0, %s29
      %s21 = sphi 0, %s18
      %s22 = sphi 0, %s19
      %s23 = sphi 0, %s20
      %s24 = sphi 0, %s21
      %s25 = sphi 0, %s22
      %s26 = sphi 0, %s23
      %s42 = sphi 0, %s44
      %s45 = sphi 0, %s42
      %s46 = sphi 0, %s45
      %s62 = sphi 0, %s46
      %s70 = sphi 0, %s72
      %s73 = sphi 0, %s70
      %s74 = sphi 0, %s73
      %s90 = sphi 0, %s74
      %s96 = sphi 0, %s98
      %s99 = sphi 0, %s96
      %s100 = sphi 0, %s99
      %s116 = sphi 0, %s100
      %s122 = sphi 0, %s124
      %s125 = sphi 0, %s122
      %s126 = sphi 0, %s125
      %s142 = sphi 0, %s126
      %s150 = sphi 0, %s152
      %s153 = sphi 0, %s150
      %s154 = sphi 0, %s153
      %s170 = sphi 0, %s154
      %s178 = sphi 0, %s180
      %s181 = sphi 0, %s178
      %s182 = sphi 0, %s181
      %s198 = sphi 0, %s182
    $region4: #{forward.27} parent=1 // loop_header_branch
      %14 = sbr.rel (%p12) target = $region8
    $region5: #{forward.27} parent=1 // loop_body
      %s16 = ssub.s32 %s11, 1
      %s17 = ssub.s32 %s11, 2
      %s27 = sadd.s32 1, %s20
      %p28 = scmp.ge.s32.totalorder %s27, 3
      %s29 = scalar_select %p28, 0, %s27
      %s30 = sadd.s32 1, %s19
      %s31 = scalar_select %p28, %s30, %s19
      %p32 = scmp.ge.s32.totalorder %s31, 1
      %s33 = scalar_select %p32, 0, %s31
      %s34 = sadd.s32 1, %s18
      %s35 = scalar_select %p32, %s34, %s18
      %p36 = scmp.ge.s32.totalorder %s35, 1
      %s37 = scalar_select %p36, 0, %s35
      %s38 = ssub.s32 %s18, %s37
      %s39 = ssub.s32 %s20, %s29
      %s40 = sor.u32 %s38, %s39
      %p41 = scmp.eq.s32.totalorder %s40, 0
      %s43 = sadd.s32 %s42, 1
      %s44 = scalar_select %p41, %s42, %s43
      %p47 = pneg %p41
      %p48 = scmp.eq.s32.totalorder %s11, 2
      %p49 = por %p47, %p48
      %p50 = scmp.ne.s32.totalorder %s42, %s45
      %p51 = scmp.eq.s32.totalorder %s11, 0
      %p52 = por %p50, %p51
      %p53 = scmp.ne.s32.totalorder %s42, %s45
      %p54 = scmp.eq.s32.totalorder %s16, 2
      %p55 = por %p53, %p54
      %p56 = scmp.ne.s32.totalorder %s45, %s46
      %p57 = scmp.eq.s32.totalorder %s16, 0
      %p58 = por %p56, %p57
      %p59 = scmp.ne.s32.totalorder %s45, %s46
      %p60 = scmp.eq.s32.totalorder %s17, 2
      %p61 = por %p59, %p60
      %p63 = scmp.ne.s32.totalorder %s46, %s62
      %p64 = scmp.eq.s32.totalorder %s17, 0
      %p65 = por %p63, %p64
      %s66 = ssub.s32 %s20, %s29
      %s67 = ssub.s32 %s19, %s33
      %s68 = sor.u32 %s66, %s67
      %p69 = scmp.eq.s32.totalorder %s68, 0
      %s71 = sadd.s32 %s70, 1
      %s72 = scalar_select %p69, %s70, %s71
      %p75 = pneg %p69
      %p76 = scmp.eq.s32.totalorder %s11, 2
      %p77 = por %p75, %p76
      %p78 = scmp.ne.s32.totalorder %s70, %s73
      %p79 = scmp.eq.s32.totalorder %s11, 0
      %p80 = por %p78, %p79
      %p81 = scmp.ne.s32.totalorder %s70, %s73
      %p82 = scmp.eq.s32.totalorder %s16, 2
      %p83 = por %p81, %p82
      %p84 = scmp.ne.s32.totalorder %s73, %s74
      %p85 = scmp.eq.s32.totalorder %s16, 0
      %p86 = por %p84, %p85
      %p87 = scmp.ne.s32.totalorder %s73, %s74
      %p88 = scmp.eq.s32.totalorder %s17, 2
      %p89 = por %p87, %p88
      %p91 = scmp.ne.s32.totalorder %s74, %s90
      %p92 = scmp.eq.s32.totalorder %s17, 0
      %p93 = por %p91, %p92
      %s94 = ssub.s32 %s19, %s33
      %p95 = scmp.eq.s32.totalorder %s94, 0
      %s97 = sadd.s32 %s96, 1
      %s98 = scalar_select %p95, %s96, %s97
      %p101 = pneg %p95
      %p102 = scmp.eq.s32.totalorder %s11, 2
      %p103 = por %p101, %p102
      %p104 = scmp.ne.s32.totalorder %s96, %s99
      %p105 = scmp.eq.s32.totalorder %s11, 0
      %p106 = por %p104, %p105
      %p107 = scmp.ne.s32.totalorder %s96, %s99
      %p108 = scmp.eq.s32.totalorder %s16, 2
      %p109 = por %p107, %p108
      %p110 = scmp.ne.s32.totalorder %s99, %s100
      %p111 = scmp.eq.s32.totalorder %s16, 0
      %p112 = por %p110, %p111
      %p113 = scmp.ne.s32.totalorder %s99, %s100
      %p114 = scmp.eq.s32.totalorder %s17, 2
      %p115 = por %p113, %p114
      %p117 = scmp.ne.s32.totalorder %s100, %s116
      %p118 = scmp.eq.s32.totalorder %s17, 0
      %p119 = por %p117, %p118
      %s120 = ssub.s32 %s19, %s33
      %p121 = scmp.eq.s32.totalorder %s120, 0
      %s123 = sadd.s32 %s122, 1
      %s124 = scalar_select %p121, %s122, %s123
      %p127 = pneg %p121
      %p128 = scmp.eq.s32.totalorder %s11, 2
      %p129 = por %p127, %p128
      %p130 = scmp.ne.s32.totalorder %s122, %s125
      %p131 = scmp.eq.s32.totalorder %s11, 0
      %p132 = por %p130, %p131
      %p133 = scmp.ne.s32.totalorder %s122, %s125
      %p134 = scmp.eq.s32.totalorder %s16, 2
      %p135 = por %p133, %p134
      %p136 = scmp.ne.s32.totalorder %s125, %s126
      %p137 = scmp.eq.s32.totalorder %s16, 0
      %p138 = por %p136, %p137
      %p139 = scmp.ne.s32.totalorder %s125, %s126
      %p140 = scmp.eq.s32.totalorder %s17, 2
      %p141 = por %p139, %p140
      %p143 = scmp.ne.s32.totalorder %s126, %s142
      %p144 = scmp.eq.s32.totalorder %s17, 0
      %p145 = por %p143, %p144
      %s146 = ssub.s32 %s18, %s37
      %s147 = ssub.s32 %s19, %s33
      %s148 = sor.u32 %s146, %s147
      %p149 = scmp.eq.s32.totalorder %s148, 0
      %s151 = sadd.s32 %s150, 1
      %s152 = scalar_select %p149, %s150, %s151
      %p155 = pneg %p149
      %p156 = scmp.eq.s32.totalorder %s11, 2
      %p157 = por %p155, %p156
      %p158 = scmp.ne.s32.totalorder %s150, %s153
      %p159 = scmp.eq.s32.totalorder %s11, 0
      %p160 = por %p158, %p159
      %p161 = scmp.ne.s32.totalorder %s150, %s153
      %p162 = scmp.eq.s32.totalorder %s16, 2
      %p163 = por %p161, %p162
      %p164 = scmp.ne.s32.totalorder %s153, %s154
      %p165 = scmp.eq.s32.totalorder %s16, 0
      %p166 = por %p164, %p165
      %p167 = scmp.ne.s32.totalorder %s153, %s154
      %p168 = scmp.eq.s32.totalorder %s17, 2
      %p169 = por %p167, %p168
      %p171 = scmp.ne.s32.totalorder %s154, %s170
      %p172 = scmp.eq.s32.totalorder %s17, 0
      %p173 = por %p171, %p172
      %s174 = ssub.s32 %s18, %s37
      %s175 = ssub.s32 %s19, %s33
      %s176 = sor.u32 %s174, %s175
      %p177 = scmp.eq.s32.totalorder %s176, 0
      %s179 = sadd.s32 %s178, 1
      %s180 = scalar_select %p177, %s178, %s179
      %p183 = pneg %p177
      %p184 = scmp.eq.s32.totalorder %s11, 2
      %p185 = por %p183, %p184
      %p186 = scmp.ne.s32.totalorder %s178, %s181
      %p187 = scmp.eq.s32.totalorder %s11, 0
      %p188 = por %p186, %p187
      %p189 = scmp.ne.s32.totalorder %s178, %s181
      %p190 = scmp.eq.s32.totalorder %s16, 2
      %p191 = por %p189, %p190
      %p192 = scmp.ne.s32.totalorder %s181, %s182
      %p193 = scmp.eq.s32.totalorder %s16, 0
      %p194 = por %p192, %p193
      %p195 = scmp.ne.s32.totalorder %s181, %s182
      %p196 = scmp.eq.s32.totalorder %s17, 2
      %p197 = por %p195, %p196
      %p199 = scmp.ne.s32.totalorder %s182, %s198
      %p200 = scmp.eq.s32.totalorder %s17, 0
      %p201 = por %p199, %p200
      %p202 = scmp.le.s32.totalorder 1, %s11
      %p203 = scmp.lt.s32.totalorder %s11, 4
      %p204 = pnand %p202, %p203
      %p205 = pneg %p204
      // Predicated region
      $region9: #{forward.27} parent=5 // pred_check
        _
      $region10: #{forward.27} parent=5 // pred_check_branch
        %207 = sbr.rel (%p204) target = $region12
      $region11: #{forward.27} parent=5 // pred_region
        %s208 = ssub.s32 %s11, 1
        // Predicated region
        $region13: #{forward.27} parent=11 // pred_check
          %p209 = pneg %p112
        $region14: #{forward.27} parent=11 // pred_check_branch
          %211 = sbr.rel (%p209) target = $region16
        $region15: #{forward.27} parent=11 // pred_region
          %p212 = scmp.lt.s32.totalorder %s22, 0
          %s213 = scalar_select %p212, %s22, 0
          %s214 = scalar_lea.vmem %s2, %s213
        $region16: #{forward.27} parent=11 // pred_fallthru
          _
        // Predicated region
        $region17: #{forward.27} parent=11 // pred_check
          %p215 = pneg %p138
        $region18: #{forward.27} parent=11 // pred_check_branch
          %217 = sbr.rel (%p215) target = $region20
        $region19: #{forward.27} parent=11 // pred_region
          %p218 = scmp.lt.s32.totalorder %s22, 0
          %s219 = scalar_select %p218, %s22, 0
          %s220 = scalar_lea.vmem %s3, %s219
        $region20: #{forward.27} parent=11 // pred_fallthru
          _
        // Predicated region
        $region21: #{forward.27} parent=11 // pred_check
          %p221 = pneg %p166
        $region22: #{forward.27} parent=11 // pred_check_branch
          %223 = sbr.rel (%p221) target = $region24
        $region23: #{forward.27} parent=11 // pred_region
          %s224 = smul.u32 16, %s21
          %p225 = scmp.lt.s32.totalorder %s224, 15
          %s226 = scalar_select %p225, %s224, 15
          %p227 = scmp.lt.s32.totalorder %s22, 0
          %s228 = scalar_select %p227, %s22, 0
          %s229 = sadd.s32 %s228, %s226
          %s230 = smul.addr %s229, 8
          %s231 = scalar_lea.vmem %s4, %s230
          %s232 = smul.u32 16, %s21
        $region24: #{forward.27} parent=11 // pred_fallthru
          _
      $region12: #{forward.27} parent=5 // pred_fallthru
        _
      %p233 = scmp.lt.s32.totalorder %s11, 3
      // Predicated region
      $region25: #{forward.27} parent=5 // pred_check
        %p234 = pneg %p233
      $region26: #{forward.27} parent=5 // pred_check_branch
        %236 = sbr.rel (%p234) target = $region28
      $region27: #{forward.27} parent=5 // pred_region
        // Predicated region
        $region29: #{forward.27} parent=27 // pred_check
          %p237 = pneg %p52
        $region30: #{forward.27} parent=27 // pred_check_branch
          %239 = sbr.rel (%p237) target = $region32
        $region31: #{forward.27} parent=27 // pred_region
          %s240 = sand.u32 %s42, 1
          %s241 = sand.u32 %s42, 1
          %s242 = smul.addr %s241, 128
          %s243 = scalar_lea.vmem [#allocation3], %s242
          %s244 = smul.u32 16, %s18
          %s245 = smul.addr %s244, 3
          %s246 = sadd.s32 %s20, %s245
          %s247 = smul.addr %s246, 8
          %s248 = scalar_lea.vmem %s0, %s247
          // Predicated region
          $region33: #{forward.27} parent=31 // pred_check
            _
          $region34: #{forward.27} parent=31 // pred_check_branch
            %250 = sbr.rel (0) target = $region36
          $region35: #{forward.27} parent=31 // pred_region
            // Predicated region
            $region37: #{forward.27} parent=35 // pred_check
              _
            $region38: #{forward.27} parent=35 // pred_check_branch
              %252 = sbr.rel (0) target = $region40
            $region39: #{forward.27} parent=35 // pred_region
              // Predicated region
              $region52: #{forward.27} parent=39 // pred_check
                _
              $region53: #{forward.27} parent=39 // pred_check_branch
                %297 = sbr.rel (0) target = $region55
              $region54: #{forward.27} parent=39 // pred_region
                loop: start=0, step=1, limit=1
                $region56: #{forward.27} parent=54 // loop_pre_header
                  _
                $region57: #{forward.27} parent=54 // loop_header
                  %s299 = sphi 0, %s303
                  %p300 = scmp.ge.s32.totalorder %s299, 1
                  %s304 = sphi %s248, %s248
                  %s305 = sphi %s243, %s243
                $region58: #{forward.27} parent=54 // loop_header_branch
                  %302 = sbr.rel (%p300) target = $region62
                $region59: #{forward.27} parent=54 // loop_body
                  %v306 = vld [vmem:[%s304] sm:$0xff]
                  %307 = vst [vmem:[%s305] sm:$0xff] %v306
                  %v308 = vld [vmem:[%s304 + $0x18] sm:$0xff]
                  %309 = vst [vmem:[%s305 + $0x8] sm:$0xff] %v308
                  %v310 = vld [vmem:[%s304 + $0x30] sm:$0xff]
                  %311 = vst [vmem:[%s305 + $0x10] sm:$0xff] %v310
                  %v312 = vld [vmem:[%s304 + $0x48] sm:$0xff]
                  %313 = vst [vmem:[%s305 + $0x18] sm:$0xff] %v312
                  %v314 = vld [vmem:[%s304 + $0x60] sm:$0xff]
                  %315 = vst [vmem:[%s305 + $0x20] sm:$0xff] %v314
                  %v316 = vld [vmem:[%s304 + $0x78] sm:$0xff]
                  %317 = vst [vmem:[%s305 + $0x28] sm:$0xff] %v316
                  %v318 = vld [vmem:[%s304 + $0x90] sm:$0xff]
                  %319 = vst [vmem:[%s305 + $0x30] sm:$0xff] %v318
                  %v320 = vld [vmem:[%s304 + $0xa8] sm:$0xff]
                  %321 = vst [vmem:[%s305 + $0x38] sm:$0xff] %v320
                  %v322 = vld [vmem:[%s304 + $0xc0] sm:$0xff]
                  %323 = vst [vmem:[%s305 + $0x40] sm:$0xff] %v322
                  %v324 = vld [vmem:[%s304 + $0xd8] sm:$0xff]
                  %325 = vst [vmem:[%s305 + $0x48] sm:$0xff] %v324
                  %v326 = vld [vmem:[%s304 + $0xf0] sm:$0xff]
                  %327 = vst [vmem:[%s305 + $0x50] sm:$0xff] %v326
                  %v328 = vld [vmem:[%s304 + $0x108] sm:$0xff]
                  %329 = vst [vmem:[%s305 + $0x58] sm:$0xff] %v328
                  %v330 = vld [vmem:[%s304 + $0x120] sm:$0xff]
                  %331 = vst [vmem:[%s305 + $0x60] sm:$0xff] %v330
                  %v332 = vld [vmem:[%s304 + $0x138] sm:$0xff]
                  %333 = vst [vmem:[%s305 + $0x68] sm:$0xff] %v332
                  %v334 = vld [vmem:[%s304 + $0x150] sm:$0xff]
                  %335 = vst [vmem:[%s305 + $0x70] sm:$0xff] %v334
                  %v336 = vld [vmem:[%s304 + $0x168] sm:$0xff]
                  %337 = vst [vmem:[%s305 + $0x78] sm:$0xff] %v336
                $region60: #{forward.27} parent=54 // loop_footer
                  %s303 = sadd.s32 1, %s299
                $region61: #{forward.27} parent=54 // loop_footer_branch
                  %298 = sbr.rel target = $region57
                $region62: #{forward.27} parent=54 // loop_exit
                  _
              $region55: #{forward.27} parent=39 // pred_fallthru
                _
              // Predicated region
              $region63: #{forward.27} parent=39 // pred_check
                _
              $region64: #{forward.27} parent=39 // pred_check_branch
                %339 = sbr.rel target = $region66
              $region65: #{forward.27} parent=39 // pred_region
                _
              $region66: #{forward.27} parent=39 // pred_fallthru
                _
            $region40: #{forward.27} parent=35 // pred_fallthru
              _
            // Predicated region
            $region41: #{forward.27} parent=35 // pred_check
              _
            $region42: #{forward.27} parent=35 // pred_check_branch
              %254 = sbr.rel target = $region44
            $region43: #{forward.27} parent=35 // pred_region
              loop: start=0, step=1, limit=1
              $region45: #{forward.27} parent=43 // loop_pre_header
                _
              $region46: #{forward.27} parent=43 // loop_header
                %s257 = sphi 0, %s261
                %p258 = scmp.ge.s32.totalorder %s257, 1
                %s262 = sphi %s248, %s248
                %s263 = sphi %s243, %s243
              $region47: #{forward.27} parent=43 // loop_header_branch
                %260 = sbr.rel (%p258) target = $region51
              $region48: #{forward.27} parent=43 // loop_body
                %v264 = vld [vmem:[%s262] sm:$0xff]
                %265 = vst [vmem:[%s263] sm:$0xff] %v264
                %v266 = vld [vmem:[%s262 + $0x18] sm:$0xff]
                %267 = vst [vmem:[%s263 + $0x8] sm:$0xff] %v266
                %v268 = vld [vmem:[%s262 + $0x30] sm:$0xff]
                %269 = vst [vmem:[%s263 + $0x10] sm:$0xff] %v268
                %v270 = vld [vmem:[%s262 + $0x48] sm:$0xff]
                %271 = vst [vmem:[%s263 + $0x18] sm:$0xff] %v270
                %v272 = vld [vmem:[%s262 + $0x60] sm:$0xff]
                %273 = vst [vmem:[%s263 + $0x20] sm:$0xff] %v272
                %v274 = vld [vmem:[%s262 + $0x78] sm:$0xff]
                %275 = vst [vmem:[%s263 + $0x28] sm:$0xff] %v274
                %v276 = vld [vmem:[%s262 + $0x90] sm:$0xff]
                %277 = vst [vmem:[%s263 + $0x30] sm:$0xff] %v276
                %v278 = vld [vmem:[%s262 + $0xa8] sm:$0xff]
                %279 = vst [vmem:[%s263 + $0x38] sm:$0xff] %v278
                %v280 = vld [vmem:[%s262 + $0xc0] sm:$0xff]
                %281 = vst [vmem:[%s263 + $0x40] sm:$0xff] %v280
                %v282 = vld [vmem:[%s262 + $0xd8] sm:$0xff]
                %283 = vst [vmem:[%s263 + $0x48] sm:$0xff] %v282
                %v284 = vld [vmem:[%s262 + $0xf0] sm:$0xff]
                %285 = vst [vmem:[%s263 + $0x50] sm:$0xff] %v284
                %v286 = vld [vmem:[%s262 + $0x108] sm:$0xff]
                %287 = vst [vmem:[%s263 + $0x58] sm:$0xff] %v286
                %v288 = vld [vmem:[%s262 + $0x120] sm:$0xff]
                %289 = vst [vmem:[%s263 + $0x60] sm:$0xff] %v288
                %v290 = vld [vmem:[%s262 + $0x138] sm:$0xff]
                %291 = vst [vmem:[%s263 + $0x68] sm:$0xff] %v290
                %v292 = vld [vmem:[%s262 + $0x150] sm:$0xff]
                %293 = vst [vmem:[%s263 + $0x70] sm:$0xff] %v292
                %v294 = vld [vmem:[%s262 + $0x168] sm:$0xff]
                %295 = vst [vmem:[%s263 + $0x78] sm:$0xff] %v294
              $region49: #{forward.27} parent=43 // loop_footer
                %s261 = sadd.s32 1, %s257
              $region50: #{forward.27} parent=43 // loop_footer_branch
                %256 = sbr.rel target = $region46
              $region51: #{forward.27} parent=43 // loop_exit
                _
            $region44: #{forward.27} parent=35 // pred_fallthru
              _
          $region36: #{forward.27} parent=31 // pred_fallthru
            _
          %340 = vnop
        $region32: #{forward.27} parent=27 // pred_fallthru
          _
        // Predicated region
        $region67: #{forward.27} parent=27 // pred_check
          %p341 = pneg %p80
        $region68: #{forward.27} parent=27 // pred_check_branch
          %343 = sbr.rel (%p341) target = $region70
        $region69: #{forward.27} parent=27 // pred_region
          %s344 = smul.u32 16, %s20
          %p345 = scmp.lt.s32.totalorder %s344, 47
          %s346 = scalar_select %p345, %s344, 47
          %p347 = scmp.lt.s32.totalorder %s19, 0
          %s348 = scalar_select %p347, %s19, 0
          %s349 = sadd.s32 %s348, %s346
          %s350 = smul.addr %s349, 8
          %s351 = scalar_lea.vmem %s1, %s350
          %s352 = smul.u32 16, %s20
        $region70: #{forward.27} parent=27 // pred_fallthru
          _
      $region28: #{forward.27} parent=5 // pred_fallthru
        _
      %p353 = scmp.le.s32.totalorder 1, %s11
      %p354 = scmp.lt.s32.totalorder %s11, 4
      %p355 = pnand %p353, %p354
      %p356 = pneg %p355
      // Predicated region
      $region71: #{forward.27} parent=5 // pred_check
        _
      $region72: #{forward.27} parent=5 // pred_check_branch
        %358 = sbr.rel (%p355) target = $region74
      $region73: #{forward.27} parent=5 // pred_region
        %s359 = ssub.s32 %s11, 1
        %s360 = sand.u32 %s45, 1
        %s361 = sand.u32 %s45, 1
        %s362 = smul.addr %s361, 128
        %s363 = scalar_lea.vmem [#allocation3], %s362
        // Predicated region
        $region75: #{forward.27} parent=73 // pred_check
          %p364 = pneg %p58
        $region76: #{forward.27} parent=73 // pred_check_branch
          %366 = sbr.rel (%p364) target = $region78
        $region77: #{forward.27} parent=73 // pred_region
          _
        $region78: #{forward.27} parent=73 // pred_fallthru
          _
        %s367 = sand.u32 %s45, 1
        %s368 = sand.u32 %s45, 1
        %s369 = smul.addr %s368, 128
        %s370 = scalar_lea.vmem [#allocation3], %s369
        %p371 = pneg %p58
        %p372 = pneg %p55
        %s373 = smul.u32 16, %s23
        %p374 = scmp.lt.s32.totalorder %s373, 47
        %s375 = scalar_select %p374, %s373, 47
        %p376 = scmp.lt.s32.totalorder %s22, 0
        %s377 = scalar_select %p376, %s22, 0
        %s378 = sadd.s32 %s377, %s375
        %s379 = smul.addr %s378, 8
        %s380 = scalar_lea.vmem %s1, %s379
        %p381 = pneg %p86
        %p382 = pneg %p83
        %p383 = scmp.lt.s32.totalorder %s22, 0
        %s384 = scalar_select %p383, %s22, 0
        %s385 = scalar_lea.vmem %s2, %s384
        %p386 = pneg %p112
        %p387 = pneg %p109
        %p388 = scmp.lt.s32.totalorder %s22, 0
        %s389 = scalar_select %p388, %s22, 0
        %s390 = scalar_lea.vmem %s3, %s389
        %p391 = pneg %p138
        %p392 = pneg %p135
        %s393 = smul.u32 16, %s21
        %p394 = scmp.lt.s32.totalorder %s393, 15
        %s395 = scalar_select %p394, %s393, 15
        %p396 = scmp.lt.s32.totalorder %s22, 0
        %s397 = scalar_select %p396, %s22, 0
        %s398 = sadd.s32 %s397, %s395
        %s399 = smul.addr %s398, 8
        %s400 = scalar_lea.vmem %s4, %s399
        %p401 = pneg %p166
        %p402 = pneg %p163
        %p403 = pneg %p194
        %p404 = pneg %p191
        %s405 = smul.u32 16, %s21
        %p406 = scmp.lt.s32.totalorder %s405, 15
        %s407 = scalar_select %p406, %s405, 15
        %p408 = scmp.lt.s32.totalorder %s22, 0
        %s409 = scalar_select %p408, %s22, 0
        %s410 = sadd.s32 %s409, %s407
        %s411 = smul.addr %s410, 8
        %s412 = scalar_lea.vmem %s5, %s411
        %s413 = smul.u32 16, %s21
        %s414 = smul.u32 16, %s23
        %p415 = scmp.lt.s32.totalorder %s414, 47
        %s416 = scalar_select %p415, %s414, 47
        %p417 = scmp.lt.s32.totalorder %s22, 0
        %s418 = scalar_select %p417, %s22, 0
        %s419 = sadd.s32 %s418, %s416
        %s420 = smul.addr %s419, 8
        %s421 = scalar_lea.vmem %s1, %s420
        %s422 = smul.u32 16, %s23
        %p423 = scmp.lt.s32.totalorder %s22, 0
        %s424 = scalar_select %p423, %s22, 0
        %s425 = scalar_lea.vmem %s2, %s424
        %p426 = scmp.lt.s32.totalorder %s22, 0
        %s427 = scalar_select %p426, %s22, 0
        %s428 = scalar_lea.vmem %s3, %s427
        %s429 = smul.u32 16, %s21
        %p430 = scmp.lt.s32.totalorder %s429, 15
        %s431 = scalar_select %p430, %s429, 15
        %p432 = scmp.lt.s32.totalorder %s22, 0
        %s433 = scalar_select %p432, %s22, 0
        %s434 = sadd.s32 %s433, %s431
        %s435 = smul.addr %s434, 8
        %s436 = scalar_lea.vmem %s4, %s435
        %s437 = smul.u32 16, %s21
        %s438 = smul.u32 16, %s21
        %p439 = scmp.lt.s32.totalorder %s438, 15
        %s440 = scalar_select %p439, %s438, 15
        %p441 = scmp.lt.s32.totalorder %s22, 0
        %s442 = scalar_select %p441, %s22, 0
        %s443 = sadd.s32 %s442, %s440
        %s444 = smul.addr %s443, 8
        %s445 = scalar_lea.vmem %s5, %s444
        %s446 = smul.u32 16, %s21
        %p447 = scmp.eq.s32.totalorder %s23, 0
        // Predicated region
        $region79: #{forward.27} parent=73 // pred_check
          %p448 = pneg %p447
        $region80: #{forward.27} parent=73 // pred_check_branch
          %450 = sbr.rel (%p448) target = $region82
        $region81: #{forward.27} parent=73 // pred_region
          %451 = vst [vmem:[#allocation2] sm:$0xff] 0.0
          %452 = vst [vmem:[#allocation2 + $0x8] sm:$0xff] 0.0
          %453 = vst [vmem:[#allocation2 + $0x10] sm:$0xff] 0.0
          %454 = vst [vmem:[#allocation2 + $0x18] sm:$0xff] 0.0
          %455 = vst [vmem:[#allocation2 + $0x20] sm:$0xff] 0.0
          %456 = vst [vmem:[#allocation2 + $0x28] sm:$0xff] 0.0
          %457 = vst [vmem:[#allocation2 + $0x30] sm:$0xff] 0.0
          %458 = vst [vmem:[#allocation2 + $0x38] sm:$0xff] 0.0
          %459 = vst [vmem:[#allocation2 + $0x40] sm:$0xff] 0.0
          %460 = vst [vmem:[#allocation2 + $0x48] sm:$0xff] 0.0
          %461 = vst [vmem:[#allocation2 + $0x50] sm:$0xff] 0.0
          %462 = vst [vmem:[#allocation2 + $0x58] sm:$0xff] 0.0
          %463 = vst [vmem:[#allocation2 + $0x60] sm:$0xff] 0.0
          %464 = vst [vmem:[#allocation2 + $0x68] sm:$0xff] 0.0
          %465 = vst [vmem:[#allocation2 + $0x70] sm:$0xff] 0.0
          %466 = vst [vmem:[#allocation2 + $0x78] sm:$0xff] 0.0
        $region82: #{forward.27} parent=73 // pred_fallthru
          _
        %v467 = vld [vmem:[#allocation2] sm:$0xff]
        %v468 = vld [vmem:[#allocation2 + $0x8] sm:$0xff]
        %v469 = vld [vmem:[#allocation2 + $0x10] sm:$0xff]
        %v470 = vld [vmem:[#allocation2 + $0x18] sm:$0xff]
        %v471 = vld [vmem:[#allocation2 + $0x20] sm:$0xff]
        %v472 = vld [vmem:[#allocation2 + $0x28] sm:$0xff]
        %v473 = vld [vmem:[#allocation2 + $0x30] sm:$0xff]
        %v474 = vld [vmem:[#allocation2 + $0x38] sm:$0xff]
        %v475 = vld [vmem:[#allocation2 + $0x40] sm:$0xff]
        %v476 = vld [vmem:[#allocation2 + $0x48] sm:$0xff]
        %v477 = vld [vmem:[#allocation2 + $0x50] sm:$0xff]
        %v478 = vld [vmem:[#allocation2 + $0x58] sm:$0xff]
        %v479 = vld [vmem:[#allocation2 + $0x60] sm:$0xff]
        %v480 = vld [vmem:[#allocation2 + $0x68] sm:$0xff]
        %v481 = vld [vmem:[#allocation2 + $0x70] sm:$0xff]
        %v482 = vld [vmem:[#allocation2 + $0x78] sm:$0xff]
        %v483 = vld [vmem:[%s363] sm:$0xff]
        %v484 = vld [vmem:[%s363 + $0x8] sm:$0xff]
        %v485 = vld [vmem:[%s363 + $0x10] sm:$0xff]
        %v486 = vld [vmem:[%s363 + $0x18] sm:$0xff]
        %v487 = vld [vmem:[%s363 + $0x20] sm:$0xff]
        %v488 = vld [vmem:[%s363 + $0x28] sm:$0xff]
        %v489 = vld [vmem:[%s363 + $0x30] sm:$0xff]
        %v490 = vld [vmem:[%s363 + $0x38] sm:$0xff]
        %v491 = vld [vmem:[%s363 + $0x40] sm:$0xff]
        %v492 = vld [vmem:[%s363 + $0x48] sm:$0xff]
        %v493 = vld [vmem:[%s363 + $0x50] sm:$0xff]
        %v494 = vld [vmem:[%s363 + $0x58] sm:$0xff]
        %v495 = vld [vmem:[%s363 + $0x60] sm:$0xff]
        %v496 = vld [vmem:[%s363 + $0x68] sm:$0xff]
        %v497 = vld [vmem:[%s363 + $0x70] sm:$0xff]
        %v498 = vld [vmem:[%s363 + $0x78] sm:$0xff]
        %v499 = vld [vmem:[%s421] sm:$0xff]
        %v500 = vld [vmem:[%s421 + $0x8] sm:$0xff]
        %v501 = vld [vmem:[%s421 + $0x10] sm:$0xff]
        %v502 = vld [vmem:[%s421 + $0x18] sm:$0xff]
        %v503 = vld [vmem:[%s421 + $0x20] sm:$0xff]
        %v504 = vld [vmem:[%s421 + $0x28] sm:$0xff]
        %v505 = vld [vmem:[%s421 + $0x30] sm:$0xff]
        %v506 = vld [vmem:[%s421 + $0x38] sm:$0xff]
        %v507 = vld [vmem:[%s421 + $0x40] sm:$0xff]
        %v508 = vld [vmem:[%s421 + $0x48] sm:$0xff]
        %v509 = vld [vmem:[%s421 + $0x50] sm:$0xff]
        %v510 = vld [vmem:[%s421 + $0x58] sm:$0xff]
        %v511 = vld [vmem:[%s421 + $0x60] sm:$0xff]
        %v512 = vld [vmem:[%s421 + $0x68] sm:$0xff]
        %v513 = vld [vmem:[%s421 + $0x70] sm:$0xff]
        %v514 = vld [vmem:[%s421 + $0x78] sm:$0xff]
        %515 = vmatprep.subr.mxu0 0.0
        %516 = vmatpush1.msra.mxu0 %v499
        %517 = vmatprep.subr.mxu0 0.0
        %518 = vmatpush1.msra.mxu0 %v500
        %519 = vmatprep.subr.mxu0 0.0
        %520 = vmatpush1.msra.mxu0 %v501
        %521 = vmatprep.subr.mxu0 0.0
        %522 = vmatpush1.msra.mxu0 %v502
        %523 = vmatprep.subr.mxu0 0.0
        %524 = vmatpush1.msra.mxu0 %v503
        %525 = vmatprep.subr.mxu0 0.0
        %526 = vmatpush1.msra.mxu0 %v504
        %527 = vmatprep.subr.mxu0 0.0
        %528 = vmatpush1.msra.mxu0 %v505
        %529 = vmatprep.subr.mxu0 0.0
        %530 = vmatpush1.msra.mxu0 %v506
        %531 = vmatprep.subr.mxu0 0.0
        %532 = vmatpush1.msra.mxu0 %v507
        %533 = vmatprep.subr.mxu0 0.0
        %534 = vmatpush1.msra.mxu0 %v508
        %535 = vmatprep.subr.mxu0 0.0
        %536 = vmatpush1.msra.mxu0 %v509
        %537 = vmatprep.subr.mxu0 0.0
        %538 = vmatpush1.msra.mxu0 %v510
        %539 = vmatprep.subr.mxu0 0.0
        %540 = vmatpush1.msra.mxu0 %v511
        %541 = vmatprep.subr.mxu0 0.0
        %542 = vmatpush1.msra.mxu0 %v512
        %543 = vmatprep.subr.mxu0 0.0
        %544 = vmatpush1.msra.mxu0 %v513
        %545 = vmatprep.subr.mxu0 0.0
        %546 = vmatpush1.msra.mxu0 %v514
        %547 = vmatprep.subr.mxu0 0.0
        %548 = vmatpush1.msra.mxu0 0.0
        %549 = vmatprep.subr.mxu0 0.0
        %550 = vmatpush1.msra.mxu0 0.0
        %551 = vmatprep.subr.mxu0 0.0
        %552 = vmatpush1.msra.mxu0 0.0
        %553 = vmatprep.subr.mxu0 0.0
        %554 = vmatpush1.msra.mxu0 0.0
        %555 = vmatprep.subr.mxu0 0.0
        %556 = vmatpush1.msra.mxu0 0.0
        %557 = vmatprep.subr.mxu0 0.0
        %558 = vmatpush1.msra.mxu0 0.0
        %559 = vmatprep.subr.mxu0 0.0
        %560 = vmatpush1.msra.mxu0 0.0
        %561 = vmatprep.subr.mxu0 0.0
        %562 = vmatpush1.msra.mxu0 0.0
        %563 = vmatprep.subr.mxu0 0.0
        %564 = vmatpush1.msra.mxu0 0.0
        %565 = vmatprep.subr.mxu0 0.0
        %566 = vmatpush1.msra.mxu0 0.0
        %567 = vmatprep.subr.mxu0 0.0
        %568 = vmatpush1.msra.mxu0 0.0
        %569 = vmatprep.subr.mxu0 0.0
        %570 = vmatpush1.msra.mxu0 0.0
        %571 = vmatprep.subr.mxu0 0.0
        %572 = vmatpush1.msra.mxu0 0.0
        %573 = vmatprep.subr.mxu0 0.0
        %574 = vmatpush1.msra.mxu0 0.0
        %575 = vmatprep.subr.mxu0 0.0
        %576 = vmatpush1.msra.mxu0 0.0
        %577 = vmatprep.subr.mxu0 0.0
        %578 = vmatpush1.msra.mxu0 0.0
        %579 = vmatprep.mubr.f32.mxu0 0.0
        %580 = vmatmul.mubr.f32.gmra.mrb[0].mxu0 %v483
        %v581 = vpop.f32.mrb[0].mxu0
        %v582 = vadd.f32 0.0, %v581
        %v583 = vpop.f32.mrb[0].mxu0
        %584 = vmatprep.mubr.f32.mxu0 0.0
        %585 = vmatmul.mubr.f32.gmra.mrb[0].mxu0 %v484
        %v586 = vpop.f32.mrb[0].mxu0
        %v587 = vadd.f32 0.0, %v586
        %v588 = vpop.f32.mrb[0].mxu0
        %589 = vmatprep.mubr.f32.mxu0 0.0
        %590 = vmatmul.mubr.f32.gmra.mrb[0].mxu0 %v485
        %v591 = vpop.f32.mrb[0].mxu0
        %v592 = vadd.f32 0.0, %v591
        %v593 = vpop.f32.mrb[0].mxu0
        %594 = vmatprep.mubr.f32.mxu0 0.0
        %595 = vmatmul.mubr.f32.gmra.mrb[0].mxu0 %v486
        %v596 = vpop.f32.mrb[0].mxu0
        %v597 = vadd.f32 0.0, %v596
        %v598 = vpop.f32.mrb[0].mxu0
        %599 = vmatprep.mubr.f32.mxu0 0.0
        %600 = vmatmul.mubr.f32.gmra.mrb[0].mxu0 %v487
        %v601 = vpop.f32.mrb[0].mxu0
        %v602 = vadd.f32 0.0, %v601
        %v603 = vpop.f32.mrb[0].mxu0
        %604 = vmatprep.mubr.f32.mxu0 0.0
        %605 = vmatmul.mubr.f32.gmra.mrb[0].mxu0 %v488
        %v606 = vpop.f32.mrb[0].mxu0
        %v607 = vadd.f32 0.0, %v606
        %v608 = vpop.f32.mrb[0].mxu0
        %609 = vmatprep.mubr.f32.mxu0 0.0
        %610 = vmatmul.mubr.f32.gmra.mrb[0].mxu0 %v489
        %v611 = vpop.f32.mrb[0].mxu0
        %v612 = vadd.f32 0.0, %v611
        %v613 = vpop.f32.mrb[0].mxu0
        %614 = vmatprep.mubr.f32.mxu0 0.0
        %615 = vmatmul.mubr.f32.gmra.mrb[0].mxu0 %v490
        %v616 = vpop.f32.mrb[0].mxu0
        %v617 = vadd.f32 0.0, %v616
        %v618 = vpop.f32.mrb[0].mxu0
        %619 = vmatprep.mubr.f32.mxu0 0.0
        %620 = vmatmul.mubr.f32.gmra.mrb[0].mxu0 %v491
        %v621 = vpop.f32.mrb[0].mxu0
        %v622 = vadd.f32 0.0, %v621
        %v623 = vpop.f32.mrb[0].mxu0
        %624 = vmatprep.mubr.f32.mxu0 0.0
        %625 = vmatmul.mubr.f32.gmra.mrb[0].mxu0 %v492
        %v626 = vpop.f32.mrb[0].mxu0
        %v627 = vadd.f32 0.0, %v626
        %v628 = vpop.f32.mrb[0].mxu0
        %629 = vmatprep.mubr.f32.mxu0 0.0
        %630 = vmatmul.mubr.f32.gmra.mrb[0].mxu0 %v493
        %v631 = vpop.f32.mrb[0].mxu0
        %v632 = vadd.f32 0.0, %v631
        %v633 = vpop.f32.mrb[0].mxu0
        %634 = vmatprep.mubr.f32.mxu0 0.0
        %635 = vmatmul.mubr.f32.gmra.mrb[0].mxu0 %v494
        %v636 = vpop.f32.mrb[0].mxu0
        %v637 = vadd.f32 0.0, %v636
        %v638 = vpop.f32.mrb[0].mxu0
        %639 = vmatprep.mubr.f32.mxu0 0.0
        %640 = vmatmul.mubr.f32.gmra.mrb[0].mxu0 %v495
        %v641 = vpop.f32.mrb[0].mxu0
        %v642 = vadd.f32 0.0, %v641
        %v643 = vpop.f32.mrb[0].mxu0
        %644 = vmatprep.mubr.f32.mxu0 0.0
        %645 = vmatmul.mubr.f32.gmra.mrb[0].mxu0 %v496
        %v646 = vpop.f32.mrb[0].mxu0
        %v647 = vadd.f32 0.0, %v646
        %v648 = vpop.f32.mrb[0].mxu0
        %649 = vmatprep.mubr.f32.mxu0 0.0
        %650 = vmatmul.mubr.f32.gmra.mrb[0].mxu0 %v497
        %v651 = vpop.f32.mrb[0].mxu0
        %v652 = vadd.f32 0.0, %v651
        %v653 = vpop.f32.mrb[0].mxu0
        %654 = vmatprep.mubr.f32.mxu0 0.0
        %655 = vmatmul.mubr.f32.gmra.mrb[0].mxu0 %v498
        %v656 = vpop.f32.mrb[0].mxu0
        %v657 = vadd.f32 0.0, %v656
        %v658 = vpop.f32.mrb[0].mxu0
        %659 = vdwg.mxu0
        %v660 = vadd.f32 %v467, %v582
        %v661 = vadd.f32 %v468, %v587
        %v662 = vadd.f32 %v469, %v592
        %v663 = vadd.f32 %v470, %v597
        %v664 = vadd.f32 %v471, %v602
        %v665 = vadd.f32 %v472, %v607
        %v666 = vadd.f32 %v473, %v612
        %v667 = vadd.f32 %v474, %v617
        %v668 = vadd.f32 %v475, %v622
        %v669 = vadd.f32 %v476, %v627
        %v670 = vadd.f32 %v477, %v632
        %v671 = vadd.f32 %v478, %v637
        %v672 = vadd.f32 %v479, %v642
        %v673 = vadd.f32 %v480, %v647
        %v674 = vadd.f32 %v481, %v652
        %v675 = vadd.f32 %v482, %v657
        %676 = vst [vmem:[#allocation2] sm:$0xff] %v660
        %677 = vst [vmem:[#allocation2 + $0x8] sm:$0xff] %v661
        %678 = vst [vmem:[#allocation2 + $0x10] sm:$0xff] %v662
        %679 = vst [vmem:[#allocation2 + $0x18] sm:$0xff] %v663
        %680 = vst [vmem:[#allocation2 + $0x20] sm:$0xff] %v664
        %681 = vst [vmem:[#allocation2 + $0x28] sm:$0xff] %v665
        %682 = vst [vmem:[#allocation2 + $0x30] sm:$0xff] %v666
        %683 = vst [vmem:[#allocation2 + $0x38] sm:$0xff] %v667
        %684 = vst [vmem:[#allocation2 + $0x40] sm:$0xff] %v668
        %685 = vst [vmem:[#allocation2 + $0x48] sm:$0xff] %v669
        %686 = vst [vmem:[#allocation2 + $0x50] sm:$0xff] %v670
        %687 = vst [vmem:[#allocation2 + $0x58] sm:$0xff] %v671
        %688 = vst [vmem:[#allocation2 + $0x60] sm:$0xff] %v672
        %689 = vst [vmem:[#allocation2 + $0x68] sm:$0xff] %v673
        %690 = vst [vmem:[#allocation2 + $0x70] sm:$0xff] %v674
        %691 = vst [vmem:[#allocation2 + $0x78] sm:$0xff] %v675
        %p692 = scmp.eq.s32.totalorder %s23, 2
        // Predicated region
        $region83: #{forward.27} parent=73 // pred_check
          %p693 = pneg %p692
        $region84: #{forward.27} parent=73 // pred_check_branch
          %695 = sbr.rel (%p693) target = $region86
        $region85: #{forward.27} parent=73 // pred_region
          %v696 = vld [vmem:[#allocation2] sm:$0xff]
          %v697 = vld [vmem:[#allocation2 + $0x8] sm:$0xff]
          %v698 = vld [vmem:[#allocation2 + $0x10] sm:$0xff]
          %v699 = vld [vmem:[#allocation2 + $0x18] sm:$0xff]
          %v700 = vld [vmem:[#allocation2 + $0x20] sm:$0xff]
          %v701 = vld [vmem:[#allocation2 + $0x28] sm:$0xff]
          %v702 = vld [vmem:[#allocation2 + $0x30] sm:$0xff]
          %v703 = vld [vmem:[#allocation2 + $0x38] sm:$0xff]
          %v704 = vld [vmem:[#allocation2 + $0x40] sm:$0xff]
          %v705 = vld [vmem:[#allocation2 + $0x48] sm:$0xff]
          %v706 = vld [vmem:[#allocation2 + $0x50] sm:$0xff]
          %v707 = vld [vmem:[#allocation2 + $0x58] sm:$0xff]
          %v708 = vld [vmem:[#allocation2 + $0x60] sm:$0xff]
          %v709 = vld [vmem:[#allocation2 + $0x68] sm:$0xff]
          %v710 = vld [vmem:[#allocation2 + $0x70] sm:$0xff]
          %v711 = vld [vmem:[#allocation2 + $0x78] sm:$0xff]
          %v712 = vld [vmem:[%s425] sm:$0x1]
          %v713 = vld [vmem:[%s428] sm:$0x1]
          %v714 = vld [vmem:[%s436] sm:$0xff]
          %v715 = vld [vmem:[%s436 + $0x8] sm:$0xff]
          %v716 = vld [vmem:[%s436 + $0x10] sm:$0xff]
          %v717 = vld [vmem:[%s436 + $0x18] sm:$0xff]
          %v718 = vld [vmem:[%s436 + $0x20] sm:$0xff]
          %v719 = vld [vmem:[%s436 + $0x28] sm:$0xff]
          %v720 = vld [vmem:[%s436 + $0x30] sm:$0xff]
          %v721 = vld [vmem:[%s436 + $0x38] sm:$0xff]
          %v722 = vld [vmem:[%s436 + $0x40] sm:$0xff]
          %v723 = vld [vmem:[%s436 + $0x48] sm:$0xff]
          %v724 = vld [vmem:[%s436 + $0x50] sm:$0xff]
          %v725 = vld [vmem:[%s436 + $0x58] sm:$0xff]
          %v726 = vld [vmem:[%s436 + $0x60] sm:$0xff]
          %v727 = vld [vmem:[%s436 + $0x68] sm:$0xff]
          %v728 = vld [vmem:[%s436 + $0x70] sm:$0xff]
          %v729 = vld [vmem:[%s436 + $0x78] sm:$0xff]
          %v731 = vlaneseq
          %v732 = vshrl.u32 %v731, 7
          %v733 = vsub.s32 0, %v732
          %v734 = vrot.slane %v712, %v733
          %v736 = vmul.f32 %v696, %v734
          %v737 = vmul.f32 %v697, %v734
          %v738 = vmul.f32 %v698, %v734
          %v739 = vmul.f32 %v699, %v734
          %v740 = vmul.f32 %v700, %v734
          %v741 = vmul.f32 %v701, %v734
          %v742 = vmul.f32 %v702, %v734
          %v743 = vmul.f32 %v703, %v734
          %v744 = vmul.f32 %v704, %v734
          %v745 = vmul.f32 %v705, %v734
          %v746 = vmul.f32 %v706, %v734
          %v747 = vmul.f32 %v707, %v734
          %v748 = vmul.f32 %v708, %v734
          %v749 = vmul.f32 %v709, %v734
          %v750 = vmul.f32 %v710, %v734
          %v751 = vmul.f32 %v711, %v734
          %v753 = vlaneseq
          %v754 = vshrl.u32 %v753, 7
          %v755 = vsub.s32 0, %v754
          %v756 = vrot.slane %v713, %v755
          %v758 = vadd.f32 %v736, %v756
          %v759 = vadd.f32 %v737, %v756
          %v760 = vadd.f32 %v738, %v756
          %v761 = vadd.f32 %v739, %v756
          %v762 = vadd.f32 %v740, %v756
          %v763 = vadd.f32 %v741, %v756
          %v764 = vadd.f32 %v742, %v756
          %v765 = vadd.f32 %v743, %v756
          %v766 = vadd.f32 %v744, %v756
          %v767 = vadd.f32 %v745, %v756
          %v768 = vadd.f32 %v746, %v756
          %v769 = vadd.f32 %v747, %v756
          %v770 = vadd.f32 %v748, %v756
          %v771 = vadd.f32 %v749, %v756
          %v772 = vadd.f32 %v750, %v756
          %v773 = vadd.f32 %v751, %v756
          %v774 = vadd.f32 %v758, %v714
          %v775 = vadd.f32 %v759, %v715
          %v776 = vadd.f32 %v760, %v716
          %v777 = vadd.f32 %v761, %v717
          %v778 = vadd.f32 %v762, %v718
          %v779 = vadd.f32 %v763, %v719
          %v780 = vadd.f32 %v764, %v720
          %v781 = vadd.f32 %v765, %v721
          %v782 = vadd.f32 %v766, %v722
          %v783 = vadd.f32 %v767, %v723
          %v784 = vadd.f32 %v768, %v724
          %v785 = vadd.f32 %v769, %v725
          %v786 = vadd.f32 %v770, %v726
          %v787 = vadd.f32 %v771, %v727
          %v788 = vadd.f32 %v772, %v728
          %v789 = vadd.f32 %v773, %v729
          %790 = vst [vmem:[%s445] sm:$0xff] %v774
          %791 = vst [vmem:[%s445 + $0x8] sm:$0xff] %v775
          %792 = vst [vmem:[%s445 + $0x10] sm:$0xff] %v776
          %793 = vst [vmem:[%s445 + $0x18] sm:$0xff] %v777
          %794 = vst [vmem:[%s445 + $0x20] sm:$0xff] %v778
          %795 = vst [vmem:[%s445 + $0x28] sm:$0xff] %v779
          %796 = vst [vmem:[%s445 + $0x30] sm:$0xff] %v780
          %797 = vst [vmem:[%s445 + $0x38] sm:$0xff] %v781
          %798 = vst [vmem:[%s445 + $0x40] sm:$0xff] %v782
          %799 = vst [vmem:[%s445 + $0x48] sm:$0xff] %v783
          %800 = vst [vmem:[%s445 + $0x50] sm:$0xff] %v784
          %801 = vst [vmem:[%s445 + $0x58] sm:$0xff] %v785
          %802 = vst [vmem:[%s445 + $0x60] sm:$0xff] %v786
          %803 = vst [vmem:[%s445 + $0x68] sm:$0xff] %v787
          %804 = vst [vmem:[%s445 + $0x70] sm:$0xff] %v788
          %805 = vst [vmem:[%s445 + $0x78] sm:$0xff] %v789
        $region86: #{forward.27} parent=73 // pred_fallthru
          _
        %s806 = smul.u32 16, %s21
        %p807 = scmp.lt.s32.totalorder %s806, 15
        %s808 = scalar_select %p807, %s806, 15
        %p809 = scmp.lt.s32.totalorder %s22, 0
        %s810 = scalar_select %p809, %s22, 0
        %s811 = sadd.s32 %s810, %s808
        %s812 = smul.addr %s811, 8
        %s813 = scalar_lea.vmem %s5, %s812
        // Predicated region
        $region87: #{forward.27} parent=73 // pred_check
          %p814 = pneg %p191
        $region88: #{forward.27} parent=73 // pred_check_branch
          %816 = sbr.rel (%p814) target = $region90
        $region89: #{forward.27} parent=73 // pred_region
          %s817 = smul.u32 16, %s21
        $region90: #{forward.27} parent=73 // pred_fallthru
          _
        // Predicated region
        $region91: #{forward.27} parent=73 // pred_check
          %p818 = pneg %p191
        $region92: #{forward.27} parent=73 // pred_check_branch
          %820 = sbr.rel (%p818) target = $region94
        $region93: #{forward.27} parent=73 // pred_region
          %s821 = smul.u32 16, %s21
          %p822 = scmp.lt.s32.totalorder %s821, 15
          %s823 = scalar_select %p822, %s821, 15
          %p824 = scmp.lt.s32.totalorder %s22, 0
          %s825 = scalar_select %p824, %s22, 0
          %s826 = sadd.s32 %s825, %s823
          %s827 = smul.addr %s826, 8
          %s828 = scalar_lea.vmem %s5, %s827
        $region94: #{forward.27} parent=73 // pred_fallthru
          _
      $region74: #{forward.27} parent=5 // pred_fallthru
        _
      %p829 = scmp.le.s32.totalorder 2, %s11
      // Predicated region
      $region95: #{forward.27} parent=5 // pred_check
        %p830 = pneg %p829
      $region96: #{forward.27} parent=5 // pred_check_branch
        %832 = sbr.rel (%p830) target = $region98
      $region97: #{forward.27} parent=5 // pred_region
        %s833 = ssub.s32 %s11, 2
      $region98: #{forward.27} parent=5 // pred_fallthru
        _
    $region6: #{forward.27} parent=1 // loop_footer
      %s15 = sadd.s32 1, %s11
    $region7: #{forward.27} parent=1 // loop_footer_branch
      %10 = sbr.rel target = $region3
    $region8: #{forward.27} parent=1 // loop_exit
      _

// kernel: forward.29
$region0: #{forward.29}
  #allocation0 [shape = 'u32[]', space=smem, size = 0x4, offset = 0x4, fixed_abs, tag = 'smem constant byte address 0x4 - core index']
  #allocation1 [shape = 'u32[144,128]{1,0:T(1,128)}', space=vmem, size = 0x12000, scoped, tag = 'internal scratch']
  #allocation2 [shape = 'f32[128,128]{1,0:T(8,128)}', space=vmem, size = 0x10000, scoped, tag = 'scratch operand']
  %s0 = inlined_call_operand.vmem [shape: f32[128,384], index: 0, kind: input, shape index: {}]
  %s1 = inlined_call_operand.vmem [shape: f32[384,128], index: 1, kind: input, shape index: {}]
  %s2 = inlined_call_operand.vmem [shape: f32[1,128], index: 2, kind: input, shape index: {}]
  %s3 = inlined_call_operand.vmem [shape: f32[1,128], index: 3, kind: input, shape index: {}]
  %s4 = inlined_call_operand.vmem [shape: f32[128,128], index: 4, kind: output, shape index: {}]
  %s5 = sld [smem:[#allocation0]]
  $region95: #{forward.29} parent=0
    _
  %s7 = ssub.s32 1, %s5
  %s8 = scalar_select 0, %s7, %s5
  $region1: #{forward.29} parent=0
    #allocation3 [shape = 'u8[131072]{0}', space=vmem, size = 0x20000, scoped, tag = 'input window, operand 0']
    loop: start=0, step=1, limit=5
    $region2: #{forward.29} parent=1 // loop_pre_header
      _
    $region3: #{forward.29} parent=1 // loop_header
      %s10 = sphi 0, %s14
      %p11 = scmp.ge.s32.totalorder %s10, 5
      %s17 = sphi 0, %s36
      %s18 = sphi 0, %s32
      %s19 = sphi 0, %s28
      %s20 = sphi 0, %s17
      %s21 = sphi 0, %s18
      %s22 = sphi 0, %s19
      %s23 = sphi 0, %s20
      %s24 = sphi 0, %s21
      %s25 = sphi 0, %s22
      %s41 = sphi 0, %s43
      %s44 = sphi 0, %s41
      %s45 = sphi 0, %s44
      %s61 = sphi 0, %s45
      %s69 = sphi 0, %s71
      %s72 = sphi 0, %s69
      %s73 = sphi 0, %s72
      %s89 = sphi 0, %s73
      %s95 = sphi 0, %s97
      %s98 = sphi 0, %s95
      %s99 = sphi 0, %s98
      %s115 = sphi 0, %s99
      %s121 = sphi 0, %s123
      %s124 = sphi 0, %s121
      %s125 = sphi 0, %s124
      %s141 = sphi 0, %s125
      %s149 = sphi 0, %s151
      %s152 = sphi 0, %s149
      %s153 = sphi 0, %s152
      %s169 = sphi 0, %s153
    $region4: #{forward.29} parent=1 // loop_header_branch
      %13 = sbr.rel (%p11) target = $region8
    $region5: #{forward.29} parent=1 // loop_body
      %s15 = ssub.s32 %s10, 1
      %s16 = ssub.s32 %s10, 2
      %s26 = sadd.s32 1, %s19
      %p27 = scmp.ge.s32.totalorder %s26, 3
      %s28 = scalar_select %p27, 0, %s26
      %s29 = sadd.s32 1, %s18
      %s30 = scalar_select %p27, %s29, %s18
      %p31 = scmp.ge.s32.totalorder %s30, 1
      %s32 = scalar_select %p31, 0, %s30
      %s33 = sadd.s32 1, %s17
      %s34 = scalar_select %p31, %s33, %s17
      %p35 = scmp.ge.s32.totalorder %s34, 1
      %s36 = scalar_select %p35, 0, %s34
      %s37 = ssub.s32 %s17, %s36
      %s38 = ssub.s32 %s19, %s28
      %s39 = sor.u32 %s37, %s38
      %p40 = scmp.eq.s32.totalorder %s39, 0
      %s42 = sadd.s32 %s41, 1
      %s43 = scalar_select %p40, %s41, %s42
      %p46 = pneg %p40
      %p47 = scmp.eq.s32.totalorder %s10, 2
      %p48 = por %p46, %p47
      %p49 = scmp.ne.s32.totalorder %s41, %s44
      %p50 = scmp.eq.s32.totalorder %s10, 0
      %p51 = por %p49, %p50
      %p52 = scmp.ne.s32.totalorder %s41, %s44
      %p53 = scmp.eq.s32.totalorder %s15, 2
      %p54 = por %p52, %p53
      %p55 = scmp.ne.s32.totalorder %s44, %s45
      %p56 = scmp.eq.s32.totalorder %s15, 0
      %p57 = por %p55, %p56
      %p58 = scmp.ne.s32.totalorder %s44, %s45
      %p59 = scmp.eq.s32.totalorder %s16, 2
      %p60 = por %p58, %p59
      %p62 = scmp.ne.s32.totalorder %s45, %s61
      %p63 = scmp.eq.s32.totalorder %s16, 0
      %p64 = por %p62, %p63
      %s65 = ssub.s32 %s19, %s28
      %s66 = ssub.s32 %s18, %s32
      %s67 = sor.u32 %s65, %s66
      %p68 = scmp.eq.s32.totalorder %s67, 0
      %s70 = sadd.s32 %s69, 1
      %s71 = scalar_select %p68, %s69, %s70
      %p74 = pneg %p68
      %p75 = scmp.eq.s32.totalorder %s10, 2
      %p76 = por %p74, %p75
      %p77 = scmp.ne.s32.totalorder %s69, %s72
      %p78 = scmp.eq.s32.totalorder %s10, 0
      %p79 = por %p77, %p78
      %p80 = scmp.ne.s32.totalorder %s69, %s72
      %p81 = scmp.eq.s32.totalorder %s15, 2
      %p82 = por %p80, %p81
      %p83 = scmp.ne.s32.totalorder %s72, %s73
      %p84 = scmp.eq.s32.totalorder %s15, 0
      %p85 = por %p83, %p84
      %p86 = scmp.ne.s32.totalorder %s72, %s73
      %p87 = scmp.eq.s32.totalorder %s16, 2
      %p88 = por %p86, %p87
      %p90 = scmp.ne.s32.totalorder %s73, %s89
      %p91 = scmp.eq.s32.totalorder %s16, 0
      %p92 = por %p90, %p91
      %s93 = ssub.s32 %s18, %s32
      %p94 = scmp.eq.s32.totalorder %s93, 0
      %s96 = sadd.s32 %s95, 1
      %s97 = scalar_select %p94, %s95, %s96
      %p100 = pneg %p94
      %p101 = scmp.eq.s32.totalorder %s10, 2
      %p102 = por %p100, %p101
      %p103 = scmp.ne.s32.totalorder %s95, %s98
      %p104 = scmp.eq.s32.totalorder %s10, 0
      %p105 = por %p103, %p104
      %p106 = scmp.ne.s32.totalorder %s95, %s98
      %p107 = scmp.eq.s32.totalorder %s15, 2
      %p108 = por %p106, %p107
      %p109 = scmp.ne.s32.totalorder %s98, %s99
      %p110 = scmp.eq.s32.totalorder %s15, 0
      %p111 = por %p109, %p110
      %p112 = scmp.ne.s32.totalorder %s98, %s99
      %p113 = scmp.eq.s32.totalorder %s16, 2
      %p114 = por %p112, %p113
      %p116 = scmp.ne.s32.totalorder %s99, %s115
      %p117 = scmp.eq.s32.totalorder %s16, 0
      %p118 = por %p116, %p117
      %s119 = ssub.s32 %s18, %s32
      %p120 = scmp.eq.s32.totalorder %s119, 0
      %s122 = sadd.s32 %s121, 1
      %s123 = scalar_select %p120, %s121, %s122
      %p126 = pneg %p120
      %p127 = scmp.eq.s32.totalorder %s10, 2
      %p128 = por %p126, %p127
      %p129 = scmp.ne.s32.totalorder %s121, %s124
      %p130 = scmp.eq.s32.totalorder %s10, 0
      %p131 = por %p129, %p130
      %p132 = scmp.ne.s32.totalorder %s121, %s124
      %p133 = scmp.eq.s32.totalorder %s15, 2
      %p134 = por %p132, %p133
      %p135 = scmp.ne.s32.totalorder %s124, %s125
      %p136 = scmp.eq.s32.totalorder %s15, 0
      %p137 = por %p135, %p136
      %p138 = scmp.ne.s32.totalorder %s124, %s125
      %p139 = scmp.eq.s32.totalorder %s16, 2
      %p140 = por %p138, %p139
      %p142 = scmp.ne.s32.totalorder %s125, %s141
      %p143 = scmp.eq.s32.totalorder %s16, 0
      %p144 = por %p142, %p143
      %s145 = ssub.s32 %s17, %s36
      %s146 = ssub.s32 %s18, %s32
      %s147 = sor.u32 %s145, %s146
      %p148 = scmp.eq.s32.totalorder %s147, 0
      %s150 = sadd.s32 %s149, 1
      %s151 = scalar_select %p148, %s149, %s150
      %p154 = pneg %p148
      %p155 = scmp.eq.s32.totalorder %s10, 2
      %p156 = por %p154, %p155
      %p157 = scmp.ne.s32.totalorder %s149, %s152
      %p158 = scmp.eq.s32.totalorder %s10, 0
      %p159 = por %p157, %p158
      %p160 = scmp.ne.s32.totalorder %s149, %s152
      %p161 = scmp.eq.s32.totalorder %s15, 2
      %p162 = por %p160, %p161
      %p163 = scmp.ne.s32.totalorder %s152, %s153
      %p164 = scmp.eq.s32.totalorder %s15, 0
      %p165 = por %p163, %p164
      %p166 = scmp.ne.s32.totalorder %s152, %s153
      %p167 = scmp.eq.s32.totalorder %s16, 2
      %p168 = por %p166, %p167
      %p170 = scmp.ne.s32.totalorder %s153, %s169
      %p171 = scmp.eq.s32.totalorder %s16, 0
      %p172 = por %p170, %p171
      %p173 = scmp.le.s32.totalorder 1, %s10
      %p174 = scmp.lt.s32.totalorder %s10, 4
      %p175 = pnand %p173, %p174
      %p176 = pneg %p175
      // Predicated region
      $region9: #{forward.29} parent=5 // pred_check
        _
      $region10: #{forward.29} parent=5 // pred_check_branch
        %178 = sbr.rel (%p175) target = $region12
      $region11: #{forward.29} parent=5 // pred_region
        %s179 = ssub.s32 %s10, 1
        // Predicated region
        $region13: #{forward.29} parent=11 // pred_check
          %p180 = pneg %p111
        $region14: #{forward.29} parent=11 // pred_check_branch
          %182 = sbr.rel (%p180) target = $region16
        $region15: #{forward.29} parent=11 // pred_region
          %p183 = scmp.lt.s32.totalorder %s21, 0
          %s184 = scalar_select %p183, %s21, 0
          %s185 = scalar_lea.vmem %s2, %s184
        $region16: #{forward.29} parent=11 // pred_fallthru
          _
        // Predicated region
        $region17: #{forward.29} parent=11 // pred_check
          %p186 = pneg %p137
        $region18: #{forward.29} parent=11 // pred_check_branch
          %188 = sbr.rel (%p186) target = $region20
        $region19: #{forward.29} parent=11 // pred_region
          %p189 = scmp.lt.s32.totalorder %s21, 0
          %s190 = scalar_select %p189, %s21, 0
          %s191 = scalar_lea.vmem %s3, %s190
        $region20: #{forward.29} parent=11 // pred_fallthru
          _
      $region12: #{forward.29} parent=5 // pred_fallthru
        _
      %p192 = scmp.lt.s32.totalorder %s10, 3
      // Predicated region
      $region21: #{forward.29} parent=5 // pred_check
        %p193 = pneg %p192
      $region22: #{forward.29} parent=5 // pred_check_branch
        %195 = sbr.rel (%p193) target = $region24
      $region23: #{forward.29} parent=5 // pred_region
        // Predicated region
        $region25: #{forward.29} parent=23 // pred_check
          %p196 = pneg %p51
        $region26: #{forward.29} parent=23 // pred_check_branch
          %198 = sbr.rel (%p196) target = $region28
        $region27: #{forward.29} parent=23 // pred_region
          %s199 = sand.u32 %s41, 1
          %s200 = sand.u32 %s41, 1
          %s201 = smul.addr %s200, 128
          %s202 = scalar_lea.vmem [#allocation3], %s201
          %s203 = smul.u32 16, %s17
          %s204 = smul.addr %s203, 3
          %s205 = sadd.s32 %s19, %s204
          %s206 = smul.addr %s205, 8
          %s207 = scalar_lea.vmem %s0, %s206
          // Predicated region
          $region29: #{forward.29} parent=27 // pred_check
            _
          $region30: #{forward.29} parent=27 // pred_check_branch
            %209 = sbr.rel (0) target = $region32
          $region31: #{forward.29} parent=27 // pred_region
            // Predicated region
            $region33: #{forward.29} parent=31 // pred_check
              _
            $region34: #{forward.29} parent=31 // pred_check_branch
              %211 = sbr.rel (0) target = $region36
            $region35: #{forward.29} parent=31 // pred_region
              // Predicated region
              $region48: #{forward.29} parent=35 // pred_check
                _
              $region49: #{forward.29} parent=35 // pred_check_branch
                %256 = sbr.rel (0) target = $region51
              $region50: #{forward.29} parent=35 // pred_region
                loop: start=0, step=1, limit=1
                $region52: #{forward.29} parent=50 // loop_pre_header
                  _
                $region53: #{forward.29} parent=50 // loop_header
                  %s258 = sphi 0, %s262
                  %p259 = scmp.ge.s32.totalorder %s258, 1
                  %s263 = sphi %s207, %s207
                  %s264 = sphi %s202, %s202
                $region54: #{forward.29} parent=50 // loop_header_branch
                  %261 = sbr.rel (%p259) target = $region58
                $region55: #{forward.29} parent=50 // loop_body
                  %v265 = vld [vmem:[%s263] sm:$0xff]
                  %266 = vst [vmem:[%s264] sm:$0xff] %v265
                  %v267 = vld [vmem:[%s263 + $0x18] sm:$0xff]
                  %268 = vst [vmem:[%s264 + $0x8] sm:$0xff] %v267
                  %v269 = vld [vmem:[%s263 + $0x30] sm:$0xff]
                  %270 = vst [vmem:[%s264 + $0x10] sm:$0xff] %v269
                  %v271 = vld [vmem:[%s263 + $0x48] sm:$0xff]
                  %272 = vst [vmem:[%s264 + $0x18] sm:$0xff] %v271
                  %v273 = vld [vmem:[%s263 + $0x60] sm:$0xff]
                  %274 = vst [vmem:[%s264 + $0x20] sm:$0xff] %v273
                  %v275 = vld [vmem:[%s263 + $0x78] sm:$0xff]
                  %276 = vst [vmem:[%s264 + $0x28] sm:$0xff] %v275
                  %v277 = vld [vmem:[%s263 + $0x90] sm:$0xff]
                  %278 = vst [vmem:[%s264 + $0x30] sm:$0xff] %v277
                  %v279 = vld [vmem:[%s263 + $0xa8] sm:$0xff]
                  %280 = vst [vmem:[%s264 + $0x38] sm:$0xff] %v279
                  %v281 = vld [vmem:[%s263 + $0xc0] sm:$0xff]
                  %282 = vst [vmem:[%s264 + $0x40] sm:$0xff] %v281
                  %v283 = vld [vmem:[%s263 + $0xd8] sm:$0xff]
                  %284 = vst [vmem:[%s264 + $0x48] sm:$0xff] %v283
                  %v285 = vld [vmem:[%s263 + $0xf0] sm:$0xff]
                  %286 = vst [vmem:[%s264 + $0x50] sm:$0xff] %v285
                  %v287 = vld [vmem:[%s263 + $0x108] sm:$0xff]
                  %288 = vst [vmem:[%s264 + $0x58] sm:$0xff] %v287
                  %v289 = vld [vmem:[%s263 + $0x120] sm:$0xff]
                  %290 = vst [vmem:[%s264 + $0x60] sm:$0xff] %v289
                  %v291 = vld [vmem:[%s263 + $0x138] sm:$0xff]
                  %292 = vst [vmem:[%s264 + $0x68] sm:$0xff] %v291
                  %v293 = vld [vmem:[%s263 + $0x150] sm:$0xff]
                  %294 = vst [vmem:[%s264 + $0x70] sm:$0xff] %v293
                  %v295 = vld [vmem:[%s263 + $0x168] sm:$0xff]
                  %296 = vst [vmem:[%s264 + $0x78] sm:$0xff] %v295
                $region56: #{forward.29} parent=50 // loop_footer
                  %s262 = sadd.s32 1, %s258
                $region57: #{forward.29} parent=50 // loop_footer_branch
                  %257 = sbr.rel target = $region53
                $region58: #{forward.29} parent=50 // loop_exit
                  _
              $region51: #{forward.29} parent=35 // pred_fallthru
                _
              // Predicated region
              $region59: #{forward.29} parent=35 // pred_check
                _
              $region60: #{forward.29} parent=35 // pred_check_branch
                %298 = sbr.rel target = $region62
              $region61: #{forward.29} parent=35 // pred_region
                _
              $region62: #{forward.29} parent=35 // pred_fallthru
                _
            $region36: #{forward.29} parent=31 // pred_fallthru
              _
            // Predicated region
            $region37: #{forward.29} parent=31 // pred_check
              _
            $region38: #{forward.29} parent=31 // pred_check_branch
              %213 = sbr.rel target = $region40
            $region39: #{forward.29} parent=31 // pred_region
              loop: start=0, step=1, limit=1
              $region41: #{forward.29} parent=39 // loop_pre_header
                _
              $region42: #{forward.29} parent=39 // loop_header
                %s216 = sphi 0, %s220
                %p217 = scmp.ge.s32.totalorder %s216, 1
                %s221 = sphi %s207, %s207
                %s222 = sphi %s202, %s202
              $region43: #{forward.29} parent=39 // loop_header_branch
                %219 = sbr.rel (%p217) target = $region47
              $region44: #{forward.29} parent=39 // loop_body
                %v223 = vld [vmem:[%s221] sm:$0xff]
                %224 = vst [vmem:[%s222] sm:$0xff] %v223
                %v225 = vld [vmem:[%s221 + $0x18] sm:$0xff]
                %226 = vst [vmem:[%s222 + $0x8] sm:$0xff] %v225
                %v227 = vld [vmem:[%s221 + $0x30] sm:$0xff]
                %228 = vst [vmem:[%s222 + $0x10] sm:$0xff] %v227
                %v229 = vld [vmem:[%s221 + $0x48] sm:$0xff]
                %230 = vst [vmem:[%s222 + $0x18] sm:$0xff] %v229
                %v231 = vld [vmem:[%s221 + $0x60] sm:$0xff]
                %232 = vst [vmem:[%s222 + $0x20] sm:$0xff] %v231
                %v233 = vld [vmem:[%s221 + $0x78] sm:$0xff]
                %234 = vst [vmem:[%s222 + $0x28] sm:$0xff] %v233
                %v235 = vld [vmem:[%s221 + $0x90] sm:$0xff]
                %236 = vst [vmem:[%s222 + $0x30] sm:$0xff] %v235
                %v237 = vld [vmem:[%s221 + $0xa8] sm:$0xff]
                %238 = vst [vmem:[%s222 + $0x38] sm:$0xff] %v237
                %v239 = vld [vmem:[%s221 + $0xc0] sm:$0xff]
                %240 = vst [vmem:[%s222 + $0x40] sm:$0xff] %v239
                %v241 = vld [vmem:[%s221 + $0xd8] sm:$0xff]
                %242 = vst [vmem:[%s222 + $0x48] sm:$0xff] %v241
                %v243 = vld [vmem:[%s221 + $0xf0] sm:$0xff]
                %244 = vst [vmem:[%s222 + $0x50] sm:$0xff] %v243
                %v245 = vld [vmem:[%s221 + $0x108] sm:$0xff]
                %246 = vst [vmem:[%s222 + $0x58] sm:$0xff] %v245
                %v247 = vld [vmem:[%s221 + $0x120] sm:$0xff]
                %248 = vst [vmem:[%s222 + $0x60] sm:$0xff] %v247
                %v249 = vld [vmem:[%s221 + $0x138] sm:$0xff]
                %250 = vst [vmem:[%s222 + $0x68] sm:$0xff] %v249
                %v251 = vld [vmem:[%s221 + $0x150] sm:$0xff]
                %252 = vst [vmem:[%s222 + $0x70] sm:$0xff] %v251
                %v253 = vld [vmem:[%s221 + $0x168] sm:$0xff]
                %254 = vst [vmem:[%s222 + $0x78] sm:$0xff] %v253
              $region45: #{forward.29} parent=39 // loop_footer
                %s220 = sadd.s32 1, %s216
              $region46: #{forward.29} parent=39 // loop_footer_branch
                %215 = sbr.rel target = $region42
              $region47: #{forward.29} parent=39 // loop_exit
                _
            $region40: #{forward.29} parent=31 // pred_fallthru
              _
          $region32: #{forward.29} parent=27 // pred_fallthru
            _
          %299 = vnop
        $region28: #{forward.29} parent=23 // pred_fallthru
          _
        // Predicated region
        $region63: #{forward.29} parent=23 // pred_check
          %p300 = pneg %p79
        $region64: #{forward.29} parent=23 // pred_check_branch
          %302 = sbr.rel (%p300) target = $region66
        $region65: #{forward.29} parent=23 // pred_region
          %s303 = smul.u32 16, %s19
          %p304 = scmp.lt.s32.totalorder %s303, 47
          %s305 = scalar_select %p304, %s303, 47
          %p306 = scmp.lt.s32.totalorder %s18, 0
          %s307 = scalar_select %p306, %s18, 0
          %s308 = sadd.s32 %s307, %s305
          %s309 = smul.addr %s308, 8
          %s310 = scalar_lea.vmem %s1, %s309
          %s311 = smul.u32 16, %s19
        $region66: #{forward.29} parent=23 // pred_fallthru
          _
      $region24: #{forward.29} parent=5 // pred_fallthru
        _
      %p312 = scmp.le.s32.totalorder 1, %s10
      %p313 = scmp.lt.s32.totalorder %s10, 4
      %p314 = pnand %p312, %p313
      %p315 = pneg %p314
      // Predicated region
      $region67: #{forward.29} parent=5 // pred_check
        _
      $region68: #{forward.29} parent=5 // pred_check_branch
        %317 = sbr.rel (%p314) target = $region70
      $region69: #{forward.29} parent=5 // pred_region
        %s318 = ssub.s32 %s10, 1
        %s319 = sand.u32 %s44, 1
        %s320 = sand.u32 %s44, 1
        %s321 = smul.addr %s320, 128
        %s322 = scalar_lea.vmem [#allocation3], %s321
        // Predicated region
        $region71: #{forward.29} parent=69 // pred_check
          %p323 = pneg %p57
        $region72: #{forward.29} parent=69 // pred_check_branch
          %325 = sbr.rel (%p323) target = $region74
        $region73: #{forward.29} parent=69 // pred_region
          _
        $region74: #{forward.29} parent=69 // pred_fallthru
          _
        %s326 = sand.u32 %s44, 1
        %s327 = sand.u32 %s44, 1
        %s328 = smul.addr %s327, 128
        %s329 = scalar_lea.vmem [#allocation3], %s328
        %p330 = pneg %p57
        %p331 = pneg %p54
        %s332 = smul.u32 16, %s22
        %p333 = scmp.lt.s32.totalorder %s332, 47
        %s334 = scalar_select %p333, %s332, 47
        %p335 = scmp.lt.s32.totalorder %s21, 0
        %s336 = scalar_select %p335, %s21, 0
        %s337 = sadd.s32 %s336, %s334
        %s338 = smul.addr %s337, 8
        %s339 = scalar_lea.vmem %s1, %s338
        %p340 = pneg %p85
        %p341 = pneg %p82
        %p342 = scmp.lt.s32.totalorder %s21, 0
        %s343 = scalar_select %p342, %s21, 0
        %s344 = scalar_lea.vmem %s2, %s343
        %p345 = pneg %p111
        %p346 = pneg %p108
        %p347 = scmp.lt.s32.totalorder %s21, 0
        %s348 = scalar_select %p347, %s21, 0
        %s349 = scalar_lea.vmem %s3, %s348
        %p350 = pneg %p137
        %p351 = pneg %p134
        %p352 = pneg %p165
        %p353 = pneg %p162
        %s354 = smul.u32 16, %s20
        %p355 = scmp.lt.s32.totalorder %s354, 15
        %s356 = scalar_select %p355, %s354, 15
        %p357 = scmp.lt.s32.totalorder %s21, 0
        %s358 = scalar_select %p357, %s21, 0
        %s359 = sadd.s32 %s358, %s356
        %s360 = smul.addr %s359, 8
        %s361 = scalar_lea.vmem %s4, %s360
        %s362 = smul.u32 16, %s20
        %s363 = smul.u32 16, %s22
        %p364 = scmp.lt.s32.totalorder %s363, 47
        %s365 = scalar_select %p364, %s363, 47
        %p366 = scmp.lt.s32.totalorder %s21, 0
        %s367 = scalar_select %p366, %s21, 0
        %s368 = sadd.s32 %s367, %s365
        %s369 = smul.addr %s368, 8
        %s370 = scalar_lea.vmem %s1, %s369
        %s371 = smul.u32 16, %s22
        %p372 = scmp.lt.s32.totalorder %s21, 0
        %s373 = scalar_select %p372, %s21, 0
        %s374 = scalar_lea.vmem %s2, %s373
        %p375 = scmp.lt.s32.totalorder %s21, 0
        %s376 = scalar_select %p375, %s21, 0
        %s377 = scalar_lea.vmem %s3, %s376
        %s378 = smul.u32 16, %s20
        %p379 = scmp.lt.s32.totalorder %s378, 15
        %s380 = scalar_select %p379, %s378, 15
        %p381 = scmp.lt.s32.totalorder %s21, 0
        %s382 = scalar_select %p381, %s21, 0
        %s383 = sadd.s32 %s382, %s380
        %s384 = smul.addr %s383, 8
        %s385 = scalar_lea.vmem %s4, %s384
        %s386 = smul.u32 16, %s20
        %p387 = scmp.eq.s32.totalorder %s22, 0
        // Predicated region
        $region75: #{forward.29} parent=69 // pred_check
          %p388 = pneg %p387
        $region76: #{forward.29} parent=69 // pred_check_branch
          %390 = sbr.rel (%p388) target = $region78
        $region77: #{forward.29} parent=69 // pred_region
          %391 = vst [vmem:[#allocation2] sm:$0xff] 0.0
          %392 = vst [vmem:[#allocation2 + $0x8] sm:$0xff] 0.0
          %393 = vst [vmem:[#allocation2 + $0x10] sm:$0xff] 0.0
          %394 = vst [vmem:[#allocation2 + $0x18] sm:$0xff] 0.0
          %395 = vst [vmem:[#allocation2 + $0x20] sm:$0xff] 0.0
          %396 = vst [vmem:[#allocation2 + $0x28] sm:$0xff] 0.0
          %397 = vst [vmem:[#allocation2 + $0x30] sm:$0xff] 0.0
          %398 = vst [vmem:[#allocation2 + $0x38] sm:$0xff] 0.0
          %399 = vst [vmem:[#allocation2 + $0x40] sm:$0xff] 0.0
          %400 = vst [vmem:[#allocation2 + $0x48] sm:$0xff] 0.0
          %401 = vst [vmem:[#allocation2 + $0x50] sm:$0xff] 0.0
          %402 = vst [vmem:[#allocation2 + $0x58] sm:$0xff] 0.0
          %403 = vst [vmem:[#allocation2 + $0x60] sm:$0xff] 0.0
          %404 = vst [vmem:[#allocation2 + $0x68] sm:$0xff] 0.0
          %405 = vst [vmem:[#allocation2 + $0x70] sm:$0xff] 0.0
          %406 = vst [vmem:[#allocation2 + $0x78] sm:$0xff] 0.0
        $region78: #{forward.29} parent=69 // pred_fallthru
          _
        %v407 = vld [vmem:[#allocation2] sm:$0xff]
        %v408 = vld [vmem:[#allocation2 + $0x8] sm:$0xff]
        %v409 = vld [vmem:[#allocation2 + $0x10] sm:$0xff]
        %v410 = vld [vmem:[#allocation2 + $0x18] sm:$0xff]
        %v411 = vld [vmem:[#allocation2 + $0x20] sm:$0xff]
        %v412 = vld [vmem:[#allocation2 + $0x28] sm:$0xff]
        %v413 = vld [vmem:[#allocation2 + $0x30] sm:$0xff]
        %v414 = vld [vmem:[#allocation2 + $0x38] sm:$0xff]
        %v415 = vld [vmem:[#allocation2 + $0x40] sm:$0xff]
        %v416 = vld [vmem:[#allocation2 + $0x48] sm:$0xff]
        %v417 = vld [vmem:[#allocation2 + $0x50] sm:$0xff]
        %v418 = vld [vmem:[#allocation2 + $0x58] sm:$0xff]
        %v419 = vld [vmem:[#allocation2 + $0x60] sm:$0xff]
        %v420 = vld [vmem:[#allocation2 + $0x68] sm:$0xff]
        %v421 = vld [vmem:[#allocation2 + $0x70] sm:$0xff]
        %v422 = vld [vmem:[#allocation2 + $0x78] sm:$0xff]
        %v423 = vld [vmem:[%s322] sm:$0xff]
        %v424 = vld [vmem:[%s322 + $0x8] sm:$0xff]
        %v425 = vld [vmem:[%s322 + $0x10] sm:$0xff]
        %v426 = vld [vmem:[%s322 + $0x18] sm:$0xff]
        %v427 = vld [vmem:[%s322 + $0x20] sm:$0xff]
        %v428 = vld [vmem:[%s322 + $0x28] sm:$0xff]
        %v429 = vld [vmem:[%s322 + $0x30] sm:$0xff]
        %v430 = vld [vmem:[%s322 + $0x38] sm:$0xff]
        %v431 = vld [vmem:[%s322 + $0x40] sm:$0xff]
        %v432 = vld [vmem:[%s322 + $0x48] sm:$0xff]
        %v433 = vld [vmem:[%s322 + $0x50] sm:$0xff]
        %v434 = vld [vmem:[%s322 + $0x58] sm:$0xff]
        %v435 = vld [vmem:[%s322 + $0x60] sm:$0xff]
        %v436 = vld [vmem:[%s322 + $0x68] sm:$0xff]
        %v437 = vld [vmem:[%s322 + $0x70] sm:$0xff]
        %v438 = vld [vmem:[%s322 + $0x78] sm:$0xff]
        %v439 = vld [vmem:[%s370] sm:$0xff]
        %v440 = vld [vmem:[%s370 + $0x8] sm:$0xff]
        %v441 = vld [vmem:[%s370 + $0x10] sm:$0xff]
        %v442 = vld [vmem:[%s370 + $0x18] sm:$0xff]
        %v443 = vld [vmem:[%s370 + $0x20] sm:$0xff]
        %v444 = vld [vmem:[%s370 + $0x28] sm:$0xff]
        %v445 = vld [vmem:[%s370 + $0x30] sm:$0xff]
        %v446 = vld [vmem:[%s370 + $0x38] sm:$0xff]
        %v447 = vld [vmem:[%s370 + $0x40] sm:$0xff]
        %v448 = vld [vmem:[%s370 + $0x48] sm:$0xff]
        %v449 = vld [vmem:[%s370 + $0x50] sm:$0xff]
        %v450 = vld [vmem:[%s370 + $0x58] sm:$0xff]
        %v451 = vld [vmem:[%s370 + $0x60] sm:$0xff]
        %v452 = vld [vmem:[%s370 + $0x68] sm:$0xff]
        %v453 = vld [vmem:[%s370 + $0x70] sm:$0xff]
        %v454 = vld [vmem:[%s370 + $0x78] sm:$0xff]
        %455 = vmatprep.subr.mxu0 0.0
        %456 = vmatpush1.msra.mxu0 %v439
        %457 = vmatprep.subr.mxu0 0.0
        %458 = vmatpush1.msra.mxu0 %v440
        %459 = vmatprep.subr.mxu0 0.0
        %460 = vmatpush1.msra.mxu0 %v441
        %461 = vmatprep.subr.mxu0 0.0
        %462 = vmatpush1.msra.mxu0 %v442
        %463 = vmatprep.subr.mxu0 0.0
        %464 = vmatpush1.msra.mxu0 %v443
        %465 = vmatprep.subr.mxu0 0.0
        %466 = vmatpush1.msra.mxu0 %v444
        %467 = vmatprep.subr.mxu0 0.0
        %468 = vmatpush1.msra.mxu0 %v445
        %469 = vmatprep.subr.mxu0 0.0
        %470 = vmatpush1.msra.mxu0 %v446
        %471 = vmatprep.subr.mxu0 0.0
        %472 = vmatpush1.msra.mxu0 %v447
        %473 = vmatprep.subr.mxu0 0.0
        %474 = vmatpush1.msra.mxu0 %v448
        %475 = vmatprep.subr.mxu0 0.0
        %476 = vmatpush1.msra.mxu0 %v449
        %477 = vmatprep.subr.mxu0 0.0
        %478 = vmatpush1.msra.mxu0 %v450
        %479 = vmatprep.subr.mxu0 0.0
        %480 = vmatpush1.msra.mxu0 %v451
        %481 = vmatprep.subr.mxu0 0.0
        %482 = vmatpush1.msra.mxu0 %v452
        %483 = vmatprep.subr.mxu0 0.0
        %484 = vmatpush1.msra.mxu0 %v453
        %485 = vmatprep.subr.mxu0 0.0
        %486 = vmatpush1.msra.mxu0 %v454
        %487 = vmatprep.subr.mxu0 0.0
        %488 = vmatpush1.msra.mxu0 0.0
        %489 = vmatprep.subr.mxu0 0.0
        %490 = vmatpush1.msra.mxu0 0.0
        %491 = vmatprep.subr.mxu0 0.0
        %492 = vmatpush1.msra.mxu0 0.0
        %493 = vmatprep.subr.mxu0 0.0
        %494 = vmatpush1.msra.mxu0 0.0
        %495 = vmatprep.subr.mxu0 0.0
        %496 = vmatpush1.msra.mxu0 0.0
        %497 = vmatprep.subr.mxu0 0.0
        %498 = vmatpush1.msra.mxu0 0.0
        %499 = vmatprep.subr.mxu0 0.0
        %500 = vmatpush1.msra.mxu0 0.0
        %501 = vmatprep.subr.mxu0 0.0
        %502 = vmatpush1.msra.mxu0 0.0
        %503 = vmatprep.subr.mxu0 0.0
        %504 = vmatpush1.msra.mxu0 0.0
        %505 = vmatprep.subr.mxu0 0.0
        %506 = vmatpush1.msra.mxu0 0.0
        %507 = vmatprep.subr.mxu0 0.0
        %508 = vmatpush1.msra.mxu0 0.0
        %509 = vmatprep.subr.mxu0 0.0
        %510 = vmatpush1.msra.mxu0 0.0
        %511 = vmatprep.subr.mxu0 0.0
        %512 = vmatpush1.msra.mxu0 0.0
        %513 = vmatprep.subr.mxu0 0.0
        %514 = vmatpush1.msra.mxu0 0.0
        %515 = vmatprep.subr.mxu0 0.0
        %516 = vmatpush1.msra.mxu0 0.0
        %517 = vmatprep.subr.mxu0 0.0
        %518 = vmatpush1.msra.mxu0 0.0
        %519 = vmatprep.mubr.f32.mxu0 0.0
        %520 = vmatmul.mubr.f32.gmra.mrb[0].mxu0 %v423
        %v521 = vpop.f32.mrb[0].mxu0
        %v522 = vadd.f32 0.0, %v521
        %v523 = vpop.f32.mrb[0].mxu0
        %524 = vmatprep.mubr.f32.mxu0 0.0
        %525 = vmatmul.mubr.f32.gmra.mrb[0].mxu0 %v424
        %v526 = vpop.f32.mrb[0].mxu0
        %v527 = vadd.f32 0.0, %v526
        %v528 = vpop.f32.mrb[0].mxu0
        %529 = vmatprep.mubr.f32.mxu0 0.0
        %530 = vmatmul.mubr.f32.gmra.mrb[0].mxu0 %v425
        %v531 = vpop.f32.mrb[0].mxu0
        %v532 = vadd.f32 0.0, %v531
        %v533 = vpop.f32.mrb[0].mxu0
        %534 = vmatprep.mubr.f32.mxu0 0.0
        %535 = vmatmul.mubr.f32.gmra.mrb[0].mxu0 %v426
        %v536 = vpop.f32.mrb[0].mxu0
        %v537 = vadd.f32 0.0, %v536
        %v538 = vpop.f32.mrb[0].mxu0
        %539 = vmatprep.mubr.f32.mxu0 0.0
        %540 = vmatmul.mubr.f32.gmra.mrb[0].mxu0 %v427
        %v541 = vpop.f32.mrb[0].mxu0
        %v542 = vadd.f32 0.0, %v541
        %v543 = vpop.f32.mrb[0].mxu0
        %544 = vmatprep.mubr.f32.mxu0 0.0
        %545 = vmatmul.mubr.f32.gmra.mrb[0].mxu0 %v428
        %v546 = vpop.f32.mrb[0].mxu0
        %v547 = vadd.f32 0.0, %v546
        %v548 = vpop.f32.mrb[0].mxu0
        %549 = vmatprep.mubr.f32.mxu0 0.0
        %550 = vmatmul.mubr.f32.gmra.mrb[0].mxu0 %v429
        %v551 = vpop.f32.mrb[0].mxu0
        %v552 = vadd.f32 0.0, %v551
        %v553 = vpop.f32.mrb[0].mxu0
        %554 = vmatprep.mubr.f32.mxu0 0.0
        %555 = vmatmul.mubr.f32.gmra.mrb[0].mxu0 %v430
        %v556 = vpop.f32.mrb[0].mxu0
        %v557 = vadd.f32 0.0, %v556
        %v558 = vpop.f32.mrb[0].mxu0
        %559 = vmatprep.mubr.f32.mxu0 0.0
        %560 = vmatmul.mubr.f32.gmra.mrb[0].mxu0 %v431
        %v561 = vpop.f32.mrb[0].mxu0
        %v562 = vadd.f32 0.0, %v561
        %v563 = vpop.f32.mrb[0].mxu0
        %564 = vmatprep.mubr.f32.mxu0 0.0
        %565 = vmatmul.mubr.f32.gmra.mrb[0].mxu0 %v432
        %v566 = vpop.f32.mrb[0].mxu0
        %v567 = vadd.f32 0.0, %v566
        %v568 = vpop.f32.mrb[0].mxu0
        %569 = vmatprep.mubr.f32.mxu0 0.0
        %570 = vmatmul.mubr.f32.gmra.mrb[0].mxu0 %v433
        %v571 = vpop.f32.mrb[0].mxu0
        %v572 = vadd.f32 0.0, %v571
        %v573 = vpop.f32.mrb[0].mxu0
        %574 = vmatprep.mubr.f32.mxu0 0.0
        %575 = vmatmul.mubr.f32.gmra.mrb[0].mxu0 %v434
        %v576 = vpop.f32.mrb[0].mxu0
        %v577 = vadd.f32 0.0, %v576
        %v578 = vpop.f32.mrb[0].mxu0
        %579 = vmatprep.mubr.f32.mxu0 0.0
        %580 = vmatmul.mubr.f32.gmra.mrb[0].mxu0 %v435
        %v581 = vpop.f32.mrb[0].mxu0
        %v582 = vadd.f32 0.0, %v581
        %v583 = vpop.f32.mrb[0].mxu0
        %584 = vmatprep.mubr.f32.mxu0 0.0
        %585 = vmatmul.mubr.f32.gmra.mrb[0].mxu0 %v436
        %v586 = vpop.f32.mrb[0].mxu0
        %v587 = vadd.f32 0.0, %v586
        %v588 = vpop.f32.mrb[0].mxu0
        %589 = vmatprep.mubr.f32.mxu0 0.0
        %590 = vmatmul.mubr.f32.gmra.mrb[0].mxu0 %v437
        %v591 = vpop.f32.mrb[0].mxu0
        %v592 = vadd.f32 0.0, %v591
        %v593 = vpop.f32.mrb[0].mxu0
        %594 = vmatprep.mubr.f32.mxu0 0.0
        %595 = vmatmul.mubr.f32.gmra.mrb[0].mxu0 %v438
        %v596 = vpop.f32.mrb[0].mxu0
        %v597 = vadd.f32 0.0, %v596
        %v598 = vpop.f32.mrb[0].mxu0
        %599 = vdwg.mxu0
        %v600 = vadd.f32 %v407, %v522
        %v601 = vadd.f32 %v408, %v527
        %v602 = vadd.f32 %v409, %v532
        %v603 = vadd.f32 %v410, %v537
        %v604 = vadd.f32 %v411, %v542
        %v605 = vadd.f32 %v412, %v547
        %v606 = vadd.f32 %v413, %v552
        %v607 = vadd.f32 %v414, %v557
        %v608 = vadd.f32 %v415, %v562
        %v609 = vadd.f32 %v416, %v567
        %v610 = vadd.f32 %v417, %v572
        %v611 = vadd.f32 %v418, %v577
        %v612 = vadd.f32 %v419, %v582
        %v613 = vadd.f32 %v420, %v587
        %v614 = vadd.f32 %v421, %v592
        %v615 = vadd.f32 %v422, %v597
        %616 = vst [vmem:[#allocation2] sm:$0xff] %v600
        %617 = vst [vmem:[#allocation2 + $0x8] sm:$0xff] %v601
        %618 = vst [vmem:[#allocation2 + $0x10] sm:$0xff] %v602
        %619 = vst [vmem:[#allocation2 + $0x18] sm:$0xff] %v603
        %620 = vst [vmem:[#allocation2 + $0x20] sm:$0xff] %v604
        %621 = vst [vmem:[#allocation2 + $0x28] sm:$0xff] %v605
        %622 = vst [vmem:[#allocation2 + $0x30] sm:$0xff] %v606
        %623 = vst [vmem:[#allocation2 + $0x38] sm:$0xff] %v607
        %624 = vst [vmem:[#allocation2 + $0x40] sm:$0xff] %v608
        %625 = vst [vmem:[#allocation2 + $0x48] sm:$0xff] %v609
        %626 = vst [vmem:[#allocation2 + $0x50] sm:$0xff] %v610
        %627 = vst [vmem:[#allocation2 + $0x58] sm:$0xff] %v611
        %628 = vst [vmem:[#allocation2 + $0x60] sm:$0xff] %v612
        %629 = vst [vmem:[#allocation2 + $0x68] sm:$0xff] %v613
        %630 = vst [vmem:[#allocation2 + $0x70] sm:$0xff] %v614
        %631 = vst [vmem:[#allocation2 + $0x78] sm:$0xff] %v615
        %p632 = scmp.eq.s32.totalorder %s22, 2
        // Predicated region
        $region79: #{forward.29} parent=69 // pred_check
          %p633 = pneg %p632
        $region80: #{forward.29} parent=69 // pred_check_branch
          %635 = sbr.rel (%p633) target = $region82
        $region81: #{forward.29} parent=69 // pred_region
          %v636 = vld [vmem:[#allocation2] sm:$0xff]
          %v637 = vld [vmem:[#allocation2 + $0x8] sm:$0xff]
          %v638 = vld [vmem:[#allocation2 + $0x10] sm:$0xff]
          %v639 = vld [vmem:[#allocation2 + $0x18] sm:$0xff]
          %v640 = vld [vmem:[#allocation2 + $0x20] sm:$0xff]
          %v641 = vld [vmem:[#allocation2 + $0x28] sm:$0xff]
          %v642 = vld [vmem:[#allocation2 + $0x30] sm:$0xff]
          %v643 = vld [vmem:[#allocation2 + $0x38] sm:$0xff]
          %v644 = vld [vmem:[#allocation2 + $0x40] sm:$0xff]
          %v645 = vld [vmem:[#allocation2 + $0x48] sm:$0xff]
          %v646 = vld [vmem:[#allocation2 + $0x50] sm:$0xff]
          %v647 = vld [vmem:[#allocation2 + $0x58] sm:$0xff]
          %v648 = vld [vmem:[#allocation2 + $0x60] sm:$0xff]
          %v649 = vld [vmem:[#allocation2 + $0x68] sm:$0xff]
          %v650 = vld [vmem:[#allocation2 + $0x70] sm:$0xff]
          %v651 = vld [vmem:[#allocation2 + $0x78] sm:$0xff]
          %v652 = vld [vmem:[%s374] sm:$0x1]
          %v653 = vld [vmem:[%s377] sm:$0x1]
          %v655 = vlaneseq
          %v656 = vshrl.u32 %v655, 7
          %v657 = vsub.s32 0, %v656
          %v658 = vrot.slane %v652, %v657
          %v660 = vmul.f32 %v636, %v658
          %v661 = vmul.f32 %v637, %v658
          %v662 = vmul.f32 %v638, %v658
          %v663 = vmul.f32 %v639, %v658
          %v664 = vmul.f32 %v640, %v658
          %v665 = vmul.f32 %v641, %v658
          %v666 = vmul.f32 %v642, %v658
          %v667 = vmul.f32 %v643, %v658
          %v668 = vmul.f32 %v644, %v658
          %v669 = vmul.f32 %v645, %v658
          %v670 = vmul.f32 %v646, %v658
          %v671 = vmul.f32 %v647, %v658
          %v672 = vmul.f32 %v648, %v658
          %v673 = vmul.f32 %v649, %v658
          %v674 = vmul.f32 %v650, %v658
          %v675 = vmul.f32 %v651, %v658
          %v677 = vlaneseq
          %v678 = vshrl.u32 %v677, 7
          %v679 = vsub.s32 0, %v678
          %v680 = vrot.slane %v653, %v679
          %v682 = vadd.f32 %v660, %v680
          %v683 = vadd.f32 %v661, %v680
          %v684 = vadd.f32 %v662, %v680
          %v685 = vadd.f32 %v663, %v680
          %v686 = vadd.f32 %v664, %v680
          %v687 = vadd.f32 %v665, %v680
          %v688 = vadd.f32 %v666, %v680
          %v689 = vadd.f32 %v667, %v680
          %v690 = vadd.f32 %v668, %v680
          %v691 = vadd.f32 %v669, %v680
          %v692 = vadd.f32 %v670, %v680
          %v693 = vadd.f32 %v671, %v680
          %v694 = vadd.f32 %v672, %v680
          %v695 = vadd.f32 %v673, %v680
          %v696 = vadd.f32 %v674, %v680
          %v697 = vadd.f32 %v675, %v680
          %v698 = vmax.f32 %v682, 0.0
          %v699 = vmax.f32 %v683, 0.0
          %v700 = vmax.f32 %v684, 0.0
          %v701 = vmax.f32 %v685, 0.0
          %v702 = vmax.f32 %v686, 0.0
          %v703 = vmax.f32 %v687, 0.0
          %v704 = vmax.f32 %v688, 0.0
          %v705 = vmax.f32 %v689, 0.0
          %v706 = vmax.f32 %v690, 0.0
          %v707 = vmax.f32 %v691, 0.0
          %v708 = vmax.f32 %v692, 0.0
          %v709 = vmax.f32 %v693, 0.0
          %v710 = vmax.f32 %v694, 0.0
          %v711 = vmax.f32 %v695, 0.0
          %v712 = vmax.f32 %v696, 0.0
          %v713 = vmax.f32 %v697, 0.0
          %714 = vst [vmem:[%s385] sm:$0xff] %v698
          %715 = vst [vmem:[%s385 + $0x8] sm:$0xff] %v699
          %716 = vst [vmem:[%s385 + $0x10] sm:$0xff] %v700
          %717 = vst [vmem:[%s385 + $0x18] sm:$0xff] %v701
          %718 = vst [vmem:[%s385 + $0x20] sm:$0xff] %v702
          %719 = vst [vmem:[%s385 + $0x28] sm:$0xff] %v703
          %720 = vst [vmem:[%s385 + $0x30] sm:$0xff] %v704
          %721 = vst [vmem:[%s385 + $0x38] sm:$0xff] %v705
          %722 = vst [vmem:[%s385 + $0x40] sm:$0xff] %v706
          %723 = vst [vmem:[%s385 + $0x48] sm:$0xff] %v707
          %724 = vst [vmem:[%s385 + $0x50] sm:$0xff] %v708
          %725 = vst [vmem:[%s385 + $0x58] sm:$0xff] %v709
          %726 = vst [vmem:[%s385 + $0x60] sm:$0xff] %v710
          %727 = vst [vmem:[%s385 + $0x68] sm:$0xff] %v711
          %728 = vst [vmem:[%s385 + $0x70] sm:$0xff] %v712
          %729 = vst [vmem:[%s385 + $0x78] sm:$0xff] %v713
        $region82: #{forward.29} parent=69 // pred_fallthru
          _
        %s730 = smul.u32 16, %s20
        %p731 = scmp.lt.s32.totalorder %s730, 15
        %s732 = scalar_select %p731, %s730, 15
        %p733 = scmp.lt.s32.totalorder %s21, 0
        %s734 = scalar_select %p733, %s21, 0
        %s735 = sadd.s32 %s734, %s732
        %s736 = smul.addr %s735, 8
        %s737 = scalar_lea.vmem %s4, %s736
        // Predicated region
        $region83: #{forward.29} parent=69 // pred_check
          %p738 = pneg %p162
        $region84: #{forward.29} parent=69 // pred_check_branch
          %740 = sbr.rel (%p738) target = $region86
        $region85: #{forward.29} parent=69 // pred_region
          %s741 = smul.u32 16, %s20
        $region86: #{forward.29} parent=69 // pred_fallthru
          _
        // Predicated region
        $region87: #{forward.29} parent=69 // pred_check
          %p742 = pneg %p162
        $region88: #{forward.29} parent=69 // pred_check_branch
          %744 = sbr.rel (%p742) target = $region90
        $region89: #{forward.29} parent=69 // pred_region
          %s745 = smul.u32 16, %s20
          %p746 = scmp.lt.s32.totalorder %s745, 15
          %s747 = scalar_select %p746, %s745, 15
          %p748 = scmp.lt.s32.totalorder %s21, 0
          %s749 = scalar_select %p748, %s21, 0
          %s750 = sadd.s32 %s749, %s747
          %s751 = smul.addr %s750, 8
          %s752 = scalar_lea.vmem %s4, %s751
        $region90: #{forward.29} parent=69 // pred_fallthru
          _
      $region70: #{forward.29} parent=5 // pred_fallthru
        _
      %p753 = scmp.le.s32.totalorder 2, %s10
      // Predicated region
      $region91: #{forward.29} parent=5 // pred_check
        %p754 = pneg %p753
      $region92: #{forward.29} parent=5 // pred_check_branch
        %756 = sbr.rel (%p754) target = $region94
      $region93: #{forward.29} parent=5 // pred_region
        %s757 = ssub.s32 %s10, 2
      $region94: #{forward.29} parent=5 // pred_fallthru
        _
    $region6: #{forward.29} parent=1 // loop_footer
      %s14 = sadd.s32 1, %s10
    $region7: #{forward.29} parent=1 // loop_footer_branch
      %9 = sbr.rel target = $region3
    $region8: #{forward.29} parent=1 // loop_exit
      _

// kernel: forward.31
$region0: #{forward.31}
  #allocation0 [shape = 'u32[]', space=smem, size = 0x4, offset = 0x4, fixed_abs, tag = 'smem constant byte address 0x4 - core index']
  #allocation1 [shape = 'u32[144,128]{1,0:T(1,128)}', space=vmem, size = 0x12000, scoped, tag = 'internal scratch']
  %s0 = inlined_call_operand.vmem [shape: f32[2,1,64], index: 0, kind: input, shape index: {}]
  %s1 = inlined_call_operand.vmem [shape: f32[64,9], index: 1, kind: input, shape index: {}]
  %s2 = inlined_call_operand.vmem [shape: f32[1,9], index: 2, kind: input, shape index: {}]
  %s3 = inlined_call_operand.vmem [shape: f32[9,5], index: 3, kind: input, shape index: {}]
  %s4 = inlined_call_operand.vmem [shape: f32[1,5], index: 4, kind: input, shape index: {}]
  %s5 = inlined_call_operand.hbm [shape: f32[2,5], index: 5, kind: output, shape index: {}]
  %s6 = sld [smem:[#allocation0]]
  $region30: #{forward.31} parent=0
    _
  %s8 = ssub.s32 1, %s6
  %s9 = scalar_select 0, %s8, %s6
  $region1: #{forward.31} parent=0
    #allocation2 [shape = 'u8[1024]{0}', space=vmem, size = 0x400, scoped, tag = 'output window, operand 0, single buffered']
    #allocation3 [shape = 's32[1]{0}', space=sflag, size = 0x4, scoped, tag = 'scoped memory for forward.31']
    %10 = vsyncpa [#allocation3], 0
    // Predicated region
    $region2: #{forward.31} parent=1 // pred_check
      _
    $region3: #{forward.31} parent=1 // pred_check_branch
      %12 = sbr.rel (0) target = $region5
    $region4: #{forward.31} parent=1 // pred_region
      _
    $region5: #{forward.31} parent=1 // pred_fallthru
      _
    // Predicated region
    $region6: #{forward.31} parent=1 // pred_check
      _
    $region7: #{forward.31} parent=1 // pred_check_branch
      %14 = sbr.rel (0) target = $region9
    $region8: #{forward.31} parent=1 // pred_region
      _
    $region9: #{forward.31} parent=1 // pred_fallthru
      _
    // Predicated region
    $region10: #{forward.31} parent=1 // pred_check
      _
    $region11: #{forward.31} parent=1 // pred_check_branch
      %16 = sbr.rel (0) target = $region13
    $region12: #{forward.31} parent=1 // pred_region
      _
    $region13: #{forward.31} parent=1 // pred_fallthru
      _
    // Predicated region
    $region14: #{forward.31} parent=1 // pred_check
      _
    $region15: #{forward.31} parent=1 // pred_check_branch
      %18 = sbr.rel (0) target = $region17
    $region16: #{forward.31} parent=1 // pred_region
      _
    $region17: #{forward.31} parent=1 // pred_fallthru
      _
    // Predicated region
    $region18: #{forward.31} parent=1 // pred_check
      _
    $region19: #{forward.31} parent=1 // pred_check_branch
      %20 = sbr.rel (0) target = $region21
    $region20: #{forward.31} parent=1 // pred_region
      _
    $region21: #{forward.31} parent=1 // pred_fallthru
      _
    %v21 = vld [vmem:[%s0] sm:$0x1]
    %v22 = vld [vmem:[%s0 + $0x1] sm:$0x1]
    %v23 = vadd.f32 %v21, 0.0
    %v24 = vadd.f32 %v22, 0.0
    %v25 = vld [vmem:[%s1] sm:$0xff]
    %v26 = vld [vmem:[%s1 + $0x8] sm:$0xff]
    %v27 = vld [vmem:[%s1 + $0x10] sm:$0xff]
    %v28 = vld [vmem:[%s1 + $0x18] sm:$0xff]
    %v29 = vld [vmem:[%s1 + $0x20] sm:$0xff]
    %v30 = vld [vmem:[%s1 + $0x28] sm:$0xff]
    %v31 = vld [vmem:[%s1 + $0x30] sm:$0xff]
    %v32 = vld [vmem:[%s1 + $0x38] sm:$0xff]
    %v33 = vld [vmem:[%s2] sm:$0x1]
    %v35 = vlaneseq
    %v36 = vshrl.u32 %v35, 7
    %v37 = vsub.s32 0, %v36
    %v38 = vrot.slane %v33, %v37
    %v42 = vcombine.low %v23, %v24
    %v44 = vunpack.c.l.s4 1966171168
    %v45 = vunpack.c.0.s8 %v44
    %v46 = vlaneseq
    %v47 = vshrl.u32 %v46, 7
    %v48 = vsub.s32 %v45, %v47
    %v49 = vrot.slane %v42, %v48
    %v51 = vunpack.c.l.s4 1966171168
    %v52 = vunpack.c.0.s8 %v51
    %v53 = vlaneseq
    %v54 = vshrl.u32 %v53, 7
    %v55 = vsub.s32 %v52, %v54
    %v56 = vrot.slane %v49, %v55
    %vm57 = vcmask 523264
    %v58 = vsel %vm57, %v56, 0
    %60 = vmatprep.subr.mxu0 0.0
    %61 = vmatpush1.msra.mxu0 %v25
    %62 = vmatprep.subr.mxu0 0.0
    %63 = vmatpush1.msra.mxu0 %v26
    %64 = vmatprep.subr.mxu0 0.0
    %65 = vmatpush1.msra.mxu0 %v27
    %66 = vmatprep.subr.mxu0 0.0
    %67 = vmatpush1.msra.mxu0 %v28
    %68 = vmatprep.subr.mxu0 0.0
    %69 = vmatpush1.msra.mxu0 %v29
    %70 = vmatprep.subr.mxu0 0.0
    %71 = vmatpush1.msra.mxu0 %v30
    %72 = vmatprep.subr.mxu0 0.0
    %73 = vmatpush1.msra.mxu0 %v31
    %74 = vmatprep.subr.mxu0 0.0
    %75 = vmatpush1.msra.mxu0 %v32
    %76 = vmatprep.subr.mxu0 0.0
    %77 = vmatpush1.msra.mxu0 0.0
    %78 = vmatprep.subr.mxu0 0.0
    %79 = vmatpush1.msra.mxu0 0.0
    %80 = vmatprep.subr.mxu0 0.0
    %81 = vmatpush1.msra.mxu0 0.0
    %82 = vmatprep.subr.mxu0 0.0
    %83 = vmatpush1.msra.mxu0 0.0
    %84 = vmatprep.subr.mxu0 0.0
    %85 = vmatpush1.msra.mxu0 0.0
    %86 = vmatprep.subr.mxu0 0.0
    %87 = vmatpush1.msra.mxu0 0.0
    %88 = vmatprep.subr.mxu0 0.0
    %89 = vmatpush1.msra.mxu0 0.0
    %90 = vmatprep.subr.mxu0 0.0
    %91 = vmatpush1.msra.mxu0 0.0
    %92 = vmatprep.subr.mxu0 0.0
    %93 = vmatpush1.msra.mxu0 0.0
    %94 = vmatprep.subr.mxu0 0.0
    %95 = vmatpush1.msra.mxu0 0.0
    %96 = vmatprep.subr.mxu0 0.0
    %97 = vmatpush1.msra.mxu0 0.0
    %98 = vmatprep.subr.mxu0 0.0
    %99 = vmatpush1.msra.mxu0 0.0
    %100 = vmatprep.subr.mxu0 0.0
    %101 = vmatpush1.msra.mxu0 0.0
    %102 = vmatprep.subr.mxu0 0.0
    %103 = vmatpush1.msra.mxu0 0.0
    %104 = vmatprep.subr.mxu0 0.0
    %105 = vmatpush1.msra.mxu0 0.0
    %106 = vmatprep.subr.mxu0 0.0
    %107 = vmatpush1.msra.mxu0 0.0
    %108 = vmatprep.subr.mxu0 0.0
    %109 = vmatpush1.msra.mxu0 0.0
    %110 = vmatprep.subr.mxu0 0.0
    %111 = vmatpush1.msra.mxu0 0.0
    %112 = vmatprep.subr.mxu0 0.0
    %113 = vmatpush1.msra.mxu0 0.0
    %114 = vmatprep.subr.mxu0 0.0
    %115 = vmatpush1.msra.mxu0 0.0
    %116 = vmatprep.subr.mxu0 0.0
    %117 = vmatpush1.msra.mxu0 0.0
    %118 = vmatprep.subr.mxu0 0.0
    %119 = vmatpush1.msra.mxu0 0.0
    %120 = vmatprep.subr.mxu0 0.0
    %121 = vmatpush1.msra.mxu0 0.0
    %122 = vmatprep.subr.mxu0 0.0
    %123 = vmatpush1.msra.mxu0 0.0
    %124 = vmatprep.mubr.f32.mxu0 0.0
    %125 = vmatmul.mubr.f32.gmra.mrb[0].mxu0 %v58
    %v126 = vpop.f32.mrb[0].mxu0
    %v127 = vadd.f32 %v38, %v126
    %v128 = vpop.f32.mrb[0].mxu0
    %129 = vdwg.mxu0
    %v130 = vmax.f32 %v127, 0.0
    %v131 = vld [vmem:[%s3] sm:$0xff]
    %v132 = vld [vmem:[%s3 + $0x8] sm:$0x1]
    %v133 = vld [vmem:[%s4] sm:$0x1]
    %v135 = vlaneseq
    %v136 = vshrl.u32 %v135, 7
    %v137 = vsub.s32 0, %v136
    %v138 = vrot.slane %v133, %v137
    %vm140 = vcmask 72704
    %v142 = vsel %vm140, %v130, 0
    %vm144 = vcmask 1040384
    %v146 = vsel %vm144, %v132, 0
    %148 = vmatprep.subr.mxu0 0.0
    %149 = vmatpush1.msra.mxu0 %v131
    %150 = vmatprep.subr.mxu0 0.0
    %151 = vmatpush1.msra.mxu0 %v146
    %152 = vmatprep.subr.mxu0 0.0
    %153 = vmatpush1.msra.mxu0 0.0
    %154 = vmatprep.subr.mxu0 0.0
    %155 = vmatpush1.msra.mxu0 0.0
    %156 = vmatprep.subr.mxu0 0.0
    %157 = vmatpush1.msra.mxu0 0.0
    %158 = vmatprep.subr.mxu0 0.0
    %159 = vmatpush1.msra.mxu0 0.0
    %160 = vmatprep.subr.mxu0 0.0
    %161 = vmatpush1.msra.mxu0 0.0
    %162 = vmatprep.subr.mxu0 0.0
    %163 = vmatpush1.msra.mxu0 0.0
    %164 = vmatprep.subr.mxu0 0.0
    %165 = vmatpush1.msra.mxu0 0.0
    %166 = vmatprep.subr.mxu0 0.0
    %167 = vmatpush1.msra.mxu0 0.0
    %168 = vmatprep.subr.mxu0 0.0
    %169 = vmatpush1.msra.mxu0 0.0
    %170 = vmatprep.subr.mxu0 0.0
    %171 = vmatpush1.msra.mxu0 0.0
    %172 = vmatprep.subr.mxu0 0.0
    %173 = vmatpush1.msra.mxu0 0.0
    %174 = vmatprep.subr.mxu0 0.0
    %175 = vmatpush1.msra.mxu0 0.0
    %176 = vmatprep.subr.mxu0 0.0
    %177 = vmatpush1.msra.mxu0 0.0
    %178 = vmatprep.subr.mxu0 0.0
    %179 = vmatpush1.msra.mxu0 0.0
    %180 = vmatprep.subr.mxu0 0.0
    %181 = vmatpush1.msra.mxu0 0.0
    %182 = vmatprep.subr.mxu0 0.0
    %183 = vmatpush1.msra.mxu0 0.0
    %184 = vmatprep.subr.mxu0 0.0
    %185 = vmatpush1.msra.mxu0 0.0
    %186 = vmatprep.subr.mxu0 0.0
    %187 = vmatpush1.msra.mxu0 0.0
    %188 = vmatprep.subr.mxu0 0.0
    %189 = vmatpush1.msra.mxu0 0.0
    %190 = vmatprep.subr.mxu0 0.0
    %191 = vmatpush1.msra.mxu0 0.0
    %192 = vmatprep.subr.mxu0 0.0
    %193 = vmatpush1.msra.mxu0 0.0
    %194 = vmatprep.subr.mxu0 0.0
    %195 = vmatpush1.msra.mxu0 0.0
    %196 = vmatprep.subr.mxu0 0.0
    %197 = vmatpush1.msra.mxu0 0.0
    %198 = vmatprep.subr.mxu0 0.0
    %199 = vmatpush1.msra.mxu0 0.0
    %200 = vmatprep.subr.mxu0 0.0
    %201 = vmatpush1.msra.mxu0 0.0
    %202 = vmatprep.subr.mxu0 0.0
    %203 = vmatpush1.msra.mxu0 0.0
    %204 = vmatprep.subr.mxu0 0.0
    %205 = vmatpush1.msra.mxu0 0.0
    %206 = vmatprep.subr.mxu0 0.0
    %207 = vmatpush1.msra.mxu0 0.0
    %208 = vmatprep.subr.mxu0 0.0
    %209 = vmatpush1.msra.mxu0 0.0
    %210 = vmatprep.subr.mxu0 0.0
    %211 = vmatpush1.msra.mxu0 0.0
    %212 = vmatprep.mubr.f32.mxu0 0.0
    %213 = vmatmul.mubr.f32.gmra.mrb[0].mxu0 %v142
    %v214 = vpop.f32.mrb[0].mxu0
    %v215 = vadd.f32 %v138, %v214
    %v216 = vpop.f32.mrb[0].mxu0
    %217 = vdwg.mxu0
    %vm218 = vcmask 33792
    %v219 = vsel %vm218, %v215, -inf
    %220 = vmax.xlane.f32.xlu0 %v219
    %v221 = vpop.xlane.xlu0 %220
    %v222 = vsub.f32 %v215, %v221
    %v223 = vmul.f32 %v222, 1.442695
    %v224 = vpow.pop %v223
    %v225 = vsel %vm218, %v224, 0.0
    %226 = vadd.xlane.f32.xlu0 %v225
    %v227 = vpop.xlane.xlu0 %226
    %v228 = vrcp.pop %v227
    %v229 = vmul.f32 %v224, %v228
    %230 = vst.msk [vmem:[#allocation2] sm:$0x3] %vm218, %v229
    // Predicated region
    $region22: #{forward.31} parent=1 // pred_check
      _
    $region23: #{forward.31} parent=1 // pred_check_branch
      %232 = sbr.rel (0) target = $region25
    $region24: #{forward.31} parent=1 // pred_region
      %s234 = ssub.s32 32, 32
      %235 = vsyncadd [#allocation3], %s234
      %s237 = sshll.u32 [#allocation2], 4
      %s238 = int_to_ptr.vmem [resolvable:$true] %s237
      %240 = dma.vmem_to_hbm [thread:$0]  %s238, 32, %s5, [#allocation3]
    $region25: #{forward.31} parent=1 // pred_fallthru
      _
    // Predicated region
    $region26: #{forward.31} parent=1 // pred_check
      _
    $region27: #{forward.31} parent=1 // pred_check_branch
      %242 = sbr.rel (0) target = $region29
    $region28: #{forward.31} parent=1 // pred_region
      %243 = dma.done [#allocation3], 32
    $region29: #{forward.31} parent=1 // pred_fallthru
      _
    %244 = vsyncpa [#allocation3], 1

// kernel: forward.30
$region0: #{forward.30}
  #allocation0 [shape = 'u32[]', space=smem, size = 0x4, offset = 0x4, fixed_abs, tag = 'smem constant byte address 0x4 - core index']
  #allocation1 [shape = 'u32[144,128]{1,0:T(1,128)}', space=vmem, size = 0x12000, scoped, tag = 'internal scratch']
  #allocation2 [shape = 'f32[128,128]{1,0:T(8,128)}', space=vmem, size = 0x10000, scoped, tag = 'scratch operand']
  %s0 = inlined_call_operand.vmem [shape: f32[128,640], index: 0, kind: input, shape index: {}]
  %s1 = inlined_call_operand.vmem [shape: f32[640,128], index: 1, kind: input, shape index: {}]
  %s2 = inlined_call_operand.vmem [shape: f32[1,128], index: 2, kind: input, shape index: {}]
  %s3 = inlined_call_operand.vmem [shape: f32[1,128], index: 3, kind: input, shape index: {}]
  %s4 = inlined_call_operand.vmem [shape: f32[128,128], index: 4, kind: input, shape index: {}]
  %s5 = inlined_call_operand.vmem [shape: f32[128,128], index: 5, kind: output, shape index: {}]
  %s6 = sld [smem:[#allocation0]]
  $region99: #{forward.30} parent=0
    _
  %s8 = ssub.s32 1, %s6
  %s9 = scalar_select 0, %s8, %s6
  $region1: #{forward.30} parent=0
    #allocation3 [shape = 'u8[131072]{0}', space=vmem, size = 0x20000, scoped, tag = 'input window, operand 0']
    loop: start=0, step=1, limit=7
    $region2: #{forward.30} parent=1 // loop_pre_header
      _
    $region3: #{forward.30} parent=1 // loop_header
      %s11 = sphi 0, %s15
      %p12 = scmp.ge.s32.totalorder %s11, 7
      %s18 = sphi 0, %s37
      %s19 = sphi 0, %s33
      %s20 = sphi 0, %s29
      %s21 = sphi 0, %s18
      %s22 = sphi 0, %s19
      %s23 = sphi 0, %s20
      %s24 = sphi 0, %s21
      %s25 = sphi 0, %s22
      %s26 = sphi 0, %s23
      %s42 = sphi 0, %s44
      %s45 = sphi 0, %s42
      %s46 = sphi 0, %s45
      %s62 = sphi 0, %s46
      %s70 = sphi 0, %s72
      %s73 = sphi 0, %s70
      %s74 = sphi 0, %s73
      %s90 = sphi 0, %s74
      %s96 = sphi 0, %s98
      %s99 = sphi 0, %s96
      %s100 = sphi 0, %s99
      %s116 = sphi 0, %s100
      %s122 = sphi 0, %s124
      %s125 = sphi 0, %s122
      %s126 = sphi 0, %s125
      %s142 = sphi 0, %s126
      %s150 = sphi 0, %s152
      %s153 = sphi 0, %s150
      %s154 = sphi 0, %s153
      %s170 = sphi 0, %s154
      %s178 = sphi 0, %s180
      %s181 = sphi 0, %s178
      %s182 = sphi 0, %s181
      %s198 = sphi 0, %s182
    $region4: #{forward.30} parent=1 // loop_header_branch
      %14 = sbr.rel (%p12) target = $region8
    $region5: #{forward.30} parent=1 // loop_body
      %s16 = ssub.s32 %s11, 1
      %s17 = ssub.s32 %s11, 2
      %s27 = sadd.s32 1, %s20
      %p28 = scmp.ge.s32.totalorder %s27, 5
      %s29 = scalar_select %p28, 0, %s27
      %s30 = sadd.s32 1, %s19
      %s31 = scalar_select %p28, %s30, %s19
      %p32 = scmp.ge.s32.totalorder %s31, 1
      %s33 = scalar_select %p32, 0, %s31
      %s34 = sadd.s32 1, %s18
      %s35 = scalar_select %p32, %s34, %s18
      %p36 = scmp.ge.s32.totalorder %s35, 1
      %s37 = scalar_select %p36, 0, %s35
      %s38 = ssub.s32 %s18, %s37
      %s39 = ssub.s32 %s20, %s29
      %s40 = sor.u32 %s38, %s39
      %p41 = scmp.eq.s32.totalorder %s40, 0
      %s43 = sadd.s32 %s42, 1
      %s44 = scalar_select %p41, %s42, %s43
      %p47 = pneg %p41
      %p48 = scmp.eq.s32.totalorder %s11, 4
      %p49 = por %p47, %p48
      %p50 = scmp.ne.s32.totalorder %s42, %s45
      %p51 = scmp.eq.s32.totalorder %s11, 0
      %p52 = por %p50, %p51
      %p53 = scmp.ne.s32.totalorder %s42, %s45
      %p54 = scmp.eq.s32.totalorder %s16, 4
      %p55 = por %p53, %p54
      %p56 = scmp.ne.s32.totalorder %s45, %s46
      %p57 = scmp.eq.s32.totalorder %s16, 0
      %p58 = por %p56, %p57
      %p59 = scmp.ne.s32.totalorder %s45, %s46
      %p60 = scmp.eq.s32.totalorder %s17, 4
      %p61 = por %p59, %p60
      %p63 = scmp.ne.s32.totalorder %s46, %s62
      %p64 = scmp.eq.s32.totalorder %s17, 0
      %p65 = por %p63, %p64
      %s66 = ssub.s32 %s20, %s29
      %s67 = ssub.s32 %s19, %s33
      %s68 = sor.u32 %s66, %s67
      %p69 = scmp.eq.s32.totalorder %s68, 0
      %s71 = sadd.s32 %s70, 1
      %s72 = scalar_select %p69, %s70, %s71
      %p75 = pneg %p69
      %p76 = scmp.eq.s32.totalorder %s11, 4
      %p77 = por %p75, %p76
      %p78 = scmp.ne.s32.totalorder %s70, %s73
      %p79 = scmp.eq.s32.totalorder %s11, 0
      %p80 = por %p78, %p79
      %p81 = scmp.ne.s32.totalorder %s70, %s73
      %p82 = scmp.eq.s32.totalorder %s16, 4
      %p83 = por %p81, %p82
      %p84 = scmp.ne.s32.totalorder %s73, %s74
      %p85 = scmp.eq.s32.totalorder %s16, 0
      %p86 = por %p84, %p85
      %p87 = scmp.ne.s32.totalorder %s73, %s74
      %p88 = scmp.eq.s32.totalorder %s17, 4
      %p89 = por %p87, %p88
      %p91 = scmp.ne.s32.totalorder %s74, %s90
      %p92 = scmp.eq.s32.totalorder %s17, 0
      %p93 = por %p91, %p92
      %s94 = ssub.s32 %s19, %s33
      %p95 = scmp.eq.s32.totalorder %s94, 0
      %s97 = sadd.s32 %s96, 1
      %s98 = scalar_select %p95, %s96, %s97
      %p101 = pneg %p95
      %p102 = scmp.eq.s32.totalorder %s11, 4
      %p103 = por %p101, %p102
      %p104 = scmp.ne.s32.totalorder %s96, %s99
      %p105 = scmp.eq.s32.totalorder %s11, 0
      %p106 = por %p104, %p105
      %p107 = scmp.ne.s32.totalorder %s96, %s99
      %p108 = scmp.eq.s32.totalorder %s16, 4
      %p109 = por %p107, %p108
      %p110 = scmp.ne.s32.totalorder %s99, %s100
      %p111 = scmp.eq.s32.totalorder %s16, 0
      %p112 = por %p110, %p111
      %p113 = scmp.ne.s32.totalorder %s99, %s100
      %p114 = scmp.eq.s32.totalorder %s17, 4
      %p115 = por %p113, %p114
      %p117 = scmp.ne.s32.totalorder %s100, %s116
      %p118 = scmp.eq.s32.totalorder %s17, 0
      %p119 = por %p117, %p118
      %s120 = ssub.s32 %s19, %s33
      %p121 = scmp.eq.s32.totalorder %s120, 0
      %s123 = sadd.s32 %s122, 1
      %s124 = scalar_select %p121, %s122, %s123
      %p127 = pneg %p121
      %p128 = scmp.eq.s32.totalorder %s11, 4
      %p129 = por %p127, %p128
      %p130 = scmp.ne.s32.totalorder %s122, %s125
      %p131 = scmp.eq.s32.totalorder %s11, 0
      %p132 = por %p130, %p131
      %p133 = scmp.ne.s32.totalorder %s122, %s125
      %p134 = scmp.eq.s32.totalorder %s16, 4
      %p135 = por %p133, %p134
      %p136 = scmp.ne.s32.totalorder %s125, %s126
      %p137 = scmp.eq.s32.totalorder %s16, 0
      %p138 = por %p136, %p137
      %p139 = scmp.ne.s32.totalorder %s125, %s126
      %p140 = scmp.eq.s32.totalorder %s17, 4
      %p141 = por %p139, %p140
      %p143 = scmp.ne.s32.totalorder %s126, %s142
      %p144 = scmp.eq.s32.totalorder %s17, 0
      %p145 = por %p143, %p144
      %s146 = ssub.s32 %s18, %s37
      %s147 = ssub.s32 %s19, %s33
      %s148 = sor.u32 %s146, %s147
      %p149 = scmp.eq.s32.totalorder %s148, 0
      %s151 = sadd.s32 %s150, 1
      %s152 = scalar_select %p149, %s150, %s151
      %p155 = pneg %p149
      %p156 = scmp.eq.s32.totalorder %s11, 4
      %p157 = por %p155, %p156
      %p158 = scmp.ne.s32.totalorder %s150, %s153
      %p159 = scmp.eq.s32.totalorder %s11, 0
      %p160 = por %p158, %p159
      %p161 = scmp.ne.s32.totalorder %s150, %s153
      %p162 = scmp.eq.s32.totalorder %s16, 4
      %p163 = por %p161, %p162
      %p164 = scmp.ne.s32.totalorder %s153, %s154
      %p165 = scmp.eq.s32.totalorder %s16, 0
      %p166 = por %p164, %p165
      %p167 = scmp.ne.s32.totalorder %s153, %s154
      %p168 = scmp.eq.s32.totalorder %s17, 4
      %p169 = por %p167, %p168
      %p171 = scmp.ne.s32.totalorder %s154, %s170
      %p172 = scmp.eq.s32.totalorder %s17, 0
      %p173 = por %p171, %p172
      %s174 = ssub.s32 %s18, %s37
      %s175 = ssub.s32 %s19, %s33
      %s176 = sor.u32 %s174, %s175
      %p177 = scmp.eq.s32.totalorder %s176, 0
      %s179 = sadd.s32 %s178, 1
      %s180 = scalar_select %p177, %s178, %s179
      %p183 = pneg %p177
      %p184 = scmp.eq.s32.totalorder %s11, 4
      %p185 = por %p183, %p184
      %p186 = scmp.ne.s32.totalorder %s178, %s181
      %p187 = scmp.eq.s32.totalorder %s11, 0
      %p188 = por %p186, %p187
      %p189 = scmp.ne.s32.totalorder %s178, %s181
      %p190 = scmp.eq.s32.totalorder %s16, 4
      %p191 = por %p189, %p190
      %p192 = scmp.ne.s32.totalorder %s181, %s182
      %p193 = scmp.eq.s32.totalorder %s16, 0
      %p194 = por %p192, %p193
      %p195 = scmp.ne.s32.totalorder %s181, %s182
      %p196 = scmp.eq.s32.totalorder %s17, 4
      %p197 = por %p195, %p196
      %p199 = scmp.ne.s32.totalorder %s182, %s198
      %p200 = scmp.eq.s32.totalorder %s17, 0
      %p201 = por %p199, %p200
      %p202 = scmp.le.s32.totalorder 1, %s11
      %p203 = scmp.lt.s32.totalorder %s11, 6
      %p204 = pnand %p202, %p203
      %p205 = pneg %p204
      // Predicated region
      $region9: #{forward.30} parent=5 // pred_check
        _
      $region10: #{forward.30} parent=5 // pred_check_branch
        %207 = sbr.rel (%p204) target = $region12
      $region11: #{forward.30} parent=5 // pred_region
        %s208 = ssub.s32 %s11, 1
        // Predicated region
        $region13: #{forward.30} parent=11 // pred_check
          %p209 = pneg %p112
        $region14: #{forward.30} parent=11 // pred_check_branch
          %211 = sbr.rel (%p209) target = $region16
        $region15: #{forward.30} parent=11 // pred_region
          %p212 = scmp.lt.s32.totalorder %s22, 0
          %s213 = scalar_select %p212, %s22, 0
          %s214 = scalar_lea.vmem %s2, %s213
        $region16: #{forward.30} parent=11 // pred_fallthru
          _
        // Predicated region
        $region17: #{forward.30} parent=11 // pred_check
          %p215 = pneg %p138
        $region18: #{forward.30} parent=11 // pred_check_branch
          %217 = sbr.rel (%p215) target = $region20
        $region19: #{forward.30} parent=11 // pred_region
          %p218 = scmp.lt.s32.totalorder %s22, 0
          %s219 = scalar_select %p218, %s22, 0
          %s220 = scalar_lea.vmem %s3, %s219
        $region20: #{forward.30} parent=11 // pred_fallthru
          _
        // Predicated region
        $region21: #{forward.30} parent=11 // pred_check
          %p221 = pneg %p166
        $region22: #{forward.30} parent=11 // pred_check_branch
          %223 = sbr.rel (%p221) target = $region24
        $region23: #{forward.30} parent=11 // pred_region
          %s224 = smul.u32 16, %s21
          %p225 = scmp.lt.s32.totalorder %s224, 15
          %s226 = scalar_select %p225, %s224, 15
          %p227 = scmp.lt.s32.totalorder %s22, 0
          %s228 = scalar_select %p227, %s22, 0
          %s229 = sadd.s32 %s228, %s226
          %s230 = smul.addr %s229, 8
          %s231 = scalar_lea.vmem %s4, %s230
          %s232 = smul.u32 16, %s21
        $region24: #{forward.30} parent=11 // pred_fallthru
          _
      $region12: #{forward.30} parent=5 // pred_fallthru
        _
      %p233 = scmp.lt.s32.totalorder %s11, 5
      // Predicated region
      $region25: #{forward.30} parent=5 // pred_check
        %p234 = pneg %p233
      $region26: #{forward.30} parent=5 // pred_check_branch
        %236 = sbr.rel (%p234) target = $region28
      $region27: #{forward.30} parent=5 // pred_region
        // Predicated region
        $region29: #{forward.30} parent=27 // pred_check
          %p237 = pneg %p52
        $region30: #{forward.30} parent=27 // pred_check_branch
          %239 = sbr.rel (%p237) target = $region32
        $region31: #{forward.30} parent=27 // pred_region
          %s240 = sand.u32 %s42, 1
          %s241 = sand.u32 %s42, 1
          %s242 = smul.addr %s241, 128
          %s243 = scalar_lea.vmem [#allocation3], %s242
          %s244 = smul.u32 16, %s18
          %s245 = smul.addr %s244, 5
          %s246 = sadd.s32 %s20, %s245
          %s247 = smul.addr %s246, 8
          %s248 = scalar_lea.vmem %s0, %s247
          // Predicated region
          $region33: #{forward.30} parent=31 // pred_check
            _
          $region34: #{forward.30} parent=31 // pred_check_branch
            %250 = sbr.rel (0) target = $region36
          $region35: #{forward.30} parent=31 // pred_region
            // Predicated region
            $region37: #{forward.30} parent=35 // pred_check
              _
            $region38: #{forward.30} parent=35 // pred_check_branch
              %252 = sbr.rel (0) target = $region40
            $region39: #{forward.30} parent=35 // pred_region
              // Predicated region
              $region52: #{forward.30} parent=39 // pred_check
                _
              $region53: #{forward.30} parent=39 // pred_check_branch
                %297 = sbr.rel (0) target = $region55
              $region54: #{forward.30} parent=39 // pred_region
                loop: start=0, step=1, limit=1
                $region56: #{forward.30} parent=54 // loop_pre_header
                  _
                $region57: #{forward.30} parent=54 // loop_header
                  %s299 = sphi 0, %s303
                  %p300 = scmp.ge.s32.totalorder %s299, 1
                  %s304 = sphi %s248, %s248
                  %s305 = sphi %s243, %s243
                $region58: #{forward.30} parent=54 // loop_header_branch
                  %302 = sbr.rel (%p300) target = $region62
                $region59: #{forward.30} parent=54 // loop_body
                  %v306 = vld [vmem:[%s304] sm:$0xff]
                  %307 = vst [vmem:[%s305] sm:$0xff] %v306
                  %v308 = vld [vmem:[%s304 + $0x28] sm:$0xff]
                  %309 = vst [vmem:[%s305 + $0x8] sm:$0xff] %v308
                  %v310 = vld [vmem:[%s304 + $0x50] sm:$0xff]
                  %311 = vst [vmem:[%s305 + $0x10] sm:$0xff] %v310
                  %v312 = vld [vmem:[%s304 + $0x78] sm:$0xff]
                  %313 = vst [vmem:[%s305 + $0x18] sm:$0xff] %v312
                  %v314 = vld [vmem:[%s304 + $0xa0] sm:$0xff]
                  %315 = vst [vmem:[%s305 + $0x20] sm:$0xff] %v314
                  %v316 = vld [vmem:[%s304 + $0xc8] sm:$0xff]
                  %317 = vst [vmem:[%s305 + $0x28] sm:$0xff] %v316
                  %v318 = vld [vmem:[%s304 + $0xf0] sm:$0xff]
                  %319 = vst [vmem:[%s305 + $0x30] sm:$0xff] %v318
                  %v320 = vld [vmem:[%s304 + $0x118] sm:$0xff]
                  %321 = vst [vmem:[%s305 + $0x38] sm:$0xff] %v320
                  %v322 = vld [vmem:[%s304 + $0x140] sm:$0xff]
                  %323 = vst [vmem:[%s305 + $0x40] sm:$0xff] %v322
                  %v324 = vld [vmem:[%s304 + $0x168] sm:$0xff]
                  %325 = vst [vmem:[%s305 + $0x48] sm:$0xff] %v324
                  %v326 = vld [vmem:[%s304 + $0x190] sm:$0xff]
                  %327 = vst [vmem:[%s305 + $0x50] sm:$0xff] %v326
                  %v328 = vld [vmem:[%s304 + $0x1b8] sm:$0xff]
                  %329 = vst [vmem:[%s305 + $0x58] sm:$0xff] %v328
                  %v330 = vld [vmem:[%s304 + $0x1e0] sm:$0xff]
                  %331 = vst [vmem:[%s305 + $0x60] sm:$0xff] %v330
                  %v332 = vld [vmem:[%s304 + $0x208] sm:$0xff]
                  %333 = vst [vmem:[%s305 + $0x68] sm:$0xff] %v332
                  %v334 = vld [vmem:[%s304 + $0x230] sm:$0xff]
                  %335 = vst [vmem:[%s305 + $0x70] sm:$0xff] %v334
                  %v336 = vld [vmem:[%s304 + $0x258] sm:$0xff]
                  %337 = vst [vmem:[%s305 + $0x78] sm:$0xff] %v336
                $region60: #{forward.30} parent=54 // loop_footer
                  %s303 = sadd.s32 1, %s299
                $region61: #{forward.30} parent=54 // loop_footer_branch
                  %298 = sbr.rel target = $region57
                $region62: #{forward.30} parent=54 // loop_exit
                  _
              $region55: #{forward.30} parent=39 // pred_fallthru
                _
              // Predicated region
              $region63: #{forward.30} parent=39 // pred_check
                _
              $region64: #{forward.30} parent=39 // pred_check_branch
                %339 = sbr.rel target = $region66
              $region65: #{forward.30} parent=39 // pred_region
                _
              $region66: #{forward.30} parent=39 // pred_fallthru
                _
            $region40: #{forward.30} parent=35 // pred_fallthru
              _
            // Predicated region
            $region41: #{forward.30} parent=35 // pred_check
              _
            $region42: #{forward.30} parent=35 // pred_check_branch
              %254 = sbr.rel target = $region44
            $region43: #{forward.30} parent=35 // pred_region
              loop: start=0, step=1, limit=1
              $region45: #{forward.30} parent=43 // loop_pre_header
                _
              $region46: #{forward.30} parent=43 // loop_header
                %s257 = sphi 0, %s261
                %p258 = scmp.ge.s32.totalorder %s257, 1
                %s262 = sphi %s248, %s248
                %s263 = sphi %s243, %s243
              $region47: #{forward.30} parent=43 // loop_header_branch
                %260 = sbr.rel (%p258) target = $region51
              $region48: #{forward.30} parent=43 // loop_body
                %v264 = vld [vmem:[%s262] sm:$0xff]
                %265 = vst [vmem:[%s263] sm:$0xff] %v264
                %v266 = vld [vmem:[%s262 + $0x28] sm:$0xff]
                %267 = vst [vmem:[%s263 + $0x8] sm:$0xff] %v266
                %v268 = vld [vmem:[%s262 + $0x50] sm:$0xff]
                %269 = vst [vmem:[%s263 + $0x10] sm:$0xff] %v268
                %v270 = vld [vmem:[%s262 + $0x78] sm:$0xff]
                %271 = vst [vmem:[%s263 + $0x18] sm:$0xff] %v270
                %v272 = vld [vmem:[%s262 + $0xa0] sm:$0xff]
                %273 = vst [vmem:[%s263 + $0x20] sm:$0xff] %v272
                %v274 = vld [vmem:[%s262 + $0xc8] sm:$0xff]
                %275 = vst [vmem:[%s263 + $0x28] sm:$0xff] %v274
                %v276 = vld [vmem:[%s262 + $0xf0] sm:$0xff]
                %277 = vst [vmem:[%s263 + $0x30] sm:$0xff] %v276
                %v278 = vld [vmem:[%s262 + $0x118] sm:$0xff]
                %279 = vst [vmem:[%s263 + $0x38] sm:$0xff] %v278
                %v280 = vld [vmem:[%s262 + $0x140] sm:$0xff]
                %281 = vst [vmem:[%s263 + $0x40] sm:$0xff] %v280
                %v282 = vld [vmem:[%s262 + $0x168] sm:$0xff]
                %283 = vst [vmem:[%s263 + $0x48] sm:$0xff] %v282
                %v284 = vld [vmem:[%s262 + $0x190] sm:$0xff]
                %285 = vst [vmem:[%s263 + $0x50] sm:$0xff] %v284
                %v286 = vld [vmem:[%s262 + $0x1b8] sm:$0xff]
                %287 = vst [vmem:[%s263 + $0x58] sm:$0xff] %v286
                %v288 = vld [vmem:[%s262 + $0x1e0] sm:$0xff]
                %289 = vst [vmem:[%s263 + $0x60] sm:$0xff] %v288
                %v290 = vld [vmem:[%s262 + $0x208] sm:$0xff]
                %291 = vst [vmem:[%s263 + $0x68] sm:$0xff] %v290
                %v292 = vld [vmem:[%s262 + $0x230] sm:$0xff]
                %293 = vst [vmem:[%s263 + $0x70] sm:$0xff] %v292
                %v294 = vld [vmem:[%s262 + $0x258] sm:$0xff]
                %295 = vst [vmem:[%s263 + $0x78] sm:$0xff] %v294
              $region49: #{forward.30} parent=43 // loop_footer
                %s261 = sadd.s32 1, %s257
              $region50: #{forward.30} parent=43 // loop_footer_branch
                %256 = sbr.rel target = $region46
              $region51: #{forward.30} parent=43 // loop_exit
                _
            $region44: #{forward.30} parent=35 // pred_fallthru
              _
          $region36: #{forward.30} parent=31 // pred_fallthru
            _
          %340 = vnop
        $region32: #{forward.30} parent=27 // pred_fallthru
          _
        // Predicated region
        $region67: #{forward.30} parent=27 // pred_check
          %p341 = pneg %p80
        $region68: #{forward.30} parent=27 // pred_check_branch
          %343 = sbr.rel (%p341) target = $region70
        $region69: #{forward.30} parent=27 // pred_region
          %s344 = smul.u32 16, %s20
          %p345 = scmp.lt.s32.totalorder %s344, 79
          %s346 = scalar_select %p345, %s344, 79
          %p347 = scmp.lt.s32.totalorder %s19, 0
          %s348 = scalar_select %p347, %s19, 0
          %s349 = sadd.s32 %s348, %s346
          %s350 = smul.addr %s349, 8
          %s351 = scalar_lea.vmem %s1, %s350
          %s352 = smul.u32 16, %s20
        $region70: #{forward.30} parent=27 // pred_fallthru
          _
      $region28: #{forward.30} parent=5 // pred_fallthru
        _
      %p353 = scmp.le.s32.totalorder 1, %s11
      %p354 = scmp.lt.s32.totalorder %s11, 6
      %p355 = pnand %p353, %p354
      %p356 = pneg %p355
      // Predicated region
      $region71: #{forward.30} parent=5 // pred_check
        _
      $region72: #{forward.30} parent=5 // pred_check_branch
        %358 = sbr.rel (%p355) target = $region74
      $region73: #{forward.30} parent=5 // pred_region
        %s359 = ssub.s32 %s11, 1
        %s360 = sand.u32 %s45, 1
        %s361 = sand.u32 %s45, 1
        %s362 = smul.addr %s361, 128
        %s363 = scalar_lea.vmem [#allocation3], %s362
        // Predicated region
        $region75: #{forward.30} parent=73 // pred_check
          %p364 = pneg %p58
        $region76: #{forward.30} parent=73 // pred_check_branch
          %366 = sbr.rel (%p364) target = $region78
        $region77: #{forward.30} parent=73 // pred_region
          _
        $region78: #{forward.30} parent=73 // pred_fallthru
          _
        %s367 = sand.u32 %s45, 1
        %s368 = sand.u32 %s45, 1
        %s369 = smul.addr %s368, 128
        %s370 = scalar_lea.vmem [#allocation3], %s369
        %p371 = pneg %p58
        %p372 = pneg %p55
        %s373 = smul.u32 16, %s23
        %p374 = scmp.lt.s32.totalorder %s373, 79
        %s375 = scalar_select %p374, %s373, 79
        %p376 = scmp.lt.s32.totalorder %s22, 0
        %s377 = scalar_select %p376, %s22, 0
        %s378 = sadd.s32 %s377, %s375
        %s379 = smul.addr %s378, 8
        %s380 = scalar_lea.vmem %s1, %s379
        %p381 = pneg %p86
        %p382 = pneg %p83
        %p383 = scmp.lt.s32.totalorder %s22, 0
        %s384 = scalar_select %p383, %s22, 0
        %s385 = scalar_lea.vmem %s2, %s384
        %p386 = pneg %p112
        %p387 = pneg %p109
        %p388 = scmp.lt.s32.totalorder %s22, 0
        %s389 = scalar_select %p388, %s22, 0
        %s390 = scalar_lea.vmem %s3, %s389
        %p391 = pneg %p138
        %p392 = pneg %p135
        %s393 = smul.u32 16, %s21
        %p394 = scmp.lt.s32.totalorder %s393, 15
        %s395 = scalar_select %p394, %s393, 15
        %p396 = scmp.lt.s32.totalorder %s22, 0
        %s397 = scalar_select %p396, %s22, 0
        %s398 = sadd.s32 %s397, %s395
        %s399 = smul.addr %s398, 8
        %s400 = scalar_lea.vmem %s4, %s399
        %p401 = pneg %p166
        %p402 = pneg %p163
        %p403 = pneg %p194
        %p404 = pneg %p191
        %s405 = smul.u32 16, %s21
        %p406 = scmp.lt.s32.totalorder %s405, 15
        %s407 = scalar_select %p406, %s405, 15
        %p408 = scmp.lt.s32.totalorder %s22, 0
        %s409 = scalar_select %p408, %s22, 0
        %s410 = sadd.s32 %s409, %s407
        %s411 = smul.addr %s410, 8
        %s412 = scalar_lea.vmem %s5, %s411
        %s413 = smul.u32 16, %s21
        %s414 = smul.u32 16, %s23
        %p415 = scmp.lt.s32.totalorder %s414, 79
        %s416 = scalar_select %p415, %s414, 79
        %p417 = scmp.lt.s32.totalorder %s22, 0
        %s418 = scalar_select %p417, %s22, 0
        %s419 = sadd.s32 %s418, %s416
        %s420 = smul.addr %s419, 8
        %s421 = scalar_lea.vmem %s1, %s420
        %s422 = smul.u32 16, %s23
        %p423 = scmp.lt.s32.totalorder %s22, 0
        %s424 = scalar_select %p423, %s22, 0
        %s425 = scalar_lea.vmem %s2, %s424
        %p426 = scmp.lt.s32.totalorder %s22, 0
        %s427 = scalar_select %p426, %s22, 0
        %s428 = scalar_lea.vmem %s3, %s427
        %s429 = smul.u32 16, %s21
        %p430 = scmp.lt.s32.totalorder %s429, 15
        %s431 = scalar_select %p430, %s429, 15
        %p432 = scmp.lt.s32.totalorder %s22, 0
        %s433 = scalar_select %p432, %s22, 0
        %s434 = sadd.s32 %s433, %s431
        %s435 = smul.addr %s434, 8
        %s436 = scalar_lea.vmem %s4, %s435
        %s437 = smul.u32 16, %s21
        %s438 = smul.u32 16, %s21
        %p439 = scmp.lt.s32.totalorder %s438, 15
        %s440 = scalar_select %p439, %s438, 15
        %p441 = scmp.lt.s32.totalorder %s22, 0
        %s442 = scalar_select %p441, %s22, 0
        %s443 = sadd.s32 %s442, %s440
        %s444 = smul.addr %s443, 8
        %s445 = scalar_lea.vmem %s5, %s444
        %s446 = smul.u32 16, %s21
        %p447 = scmp.eq.s32.totalorder %s23, 0
        // Predicated region
        $region79: #{forward.30} parent=73 // pred_check
          %p448 = pneg %p447
        $region80: #{forward.30} parent=73 // pred_check_branch
          %450 = sbr.rel (%p448) target = $region82
        $region81: #{forward.30} parent=73 // pred_region
          %451 = vst [vmem:[#allocation2] sm:$0xff] 0.0
          %452 = vst [vmem:[#allocation2 + $0x8] sm:$0xff] 0.0
          %453 = vst [vmem:[#allocation2 + $0x10] sm:$0xff] 0.0
          %454 = vst [vmem:[#allocation2 + $0x18] sm:$0xff] 0.0
          %455 = vst [vmem:[#allocation2 + $0x20] sm:$0xff] 0.0
          %456 = vst [vmem:[#allocation2 + $0x28] sm:$0xff] 0.0
          %457 = vst [vmem:[#allocation2 + $0x30] sm:$0xff] 0.0
          %458 = vst [vmem:[#allocation2 + $0x38] sm:$0xff] 0.0
          %459 = vst [vmem:[#allocation2 + $0x40] sm:$0xff] 0.0
          %460 = vst [vmem:[#allocation2 + $0x48] sm:$0xff] 0.0
          %461 = vst [vmem:[#allocation2 + $0x50] sm:$0xff] 0.0
          %462 = vst [vmem:[#allocation2 + $0x58] sm:$0xff] 0.0
          %463 = vst [vmem:[#allocation2 + $0x60] sm:$0xff] 0.0
          %464 = vst [vmem:[#allocation2 + $0x68] sm:$0xff] 0.0
          %465 = vst [vmem:[#allocation2 + $0x70] sm:$0xff] 0.0
          %466 = vst [vmem:[#allocation2 + $0x78] sm:$0xff] 0.0
        $region82: #{forward.30} parent=73 // pred_fallthru
          _
        %v467 = vld [vmem:[#allocation2] sm:$0xff]
        %v468 = vld [vmem:[#allocation2 + $0x8] sm:$0xff]
        %v469 = vld [vmem:[#allocation2 + $0x10] sm:$0xff]
        %v470 = vld [vmem:[#allocation2 + $0x18] sm:$0xff]
        %v471 = vld [vmem:[#allocation2 + $0x20] sm:$0xff]
        %v472 = vld [vmem:[#allocation2 + $0x28] sm:$0xff]
        %v473 = vld [vmem:[#allocation2 + $0x30] sm:$0xff]
        %v474 = vld [vmem:[#allocation2 + $0x38] sm:$0xff]
        %v475 = vld [vmem:[#allocation2 + $0x40] sm:$0xff]
        %v476 = vld [vmem:[#allocation2 + $0x48] sm:$0xff]
        %v477 = vld [vmem:[#allocation2 + $0x50] sm:$0xff]
        %v478 = vld [vmem:[#allocation2 + $0x58] sm:$0xff]
        %v479 = vld [vmem:[#allocation2 + $0x60] sm:$0xff]
        %v480 = vld [vmem:[#allocation2 + $0x68] sm:$0xff]
        %v481 = vld [vmem:[#allocation2 + $0x70] sm:$0xff]
        %v482 = vld [vmem:[#allocation2 + $0x78] sm:$0xff]
        %v483 = vld [vmem:[%s363] sm:$0xff]
        %v484 = vld [vmem:[%s363 + $0x8] sm:$0xff]
        %v485 = vld [vmem:[%s363 + $0x10] sm:$0xff]
        %v486 = vld [vmem:[%s363 + $0x18] sm:$0xff]
        %v487 = vld [vmem:[%s363 + $0x20] sm:$0xff]
        %v488 = vld [vmem:[%s363 + $0x28] sm:$0xff]
        %v489 = vld [vmem:[%s363 + $0x30] sm:$0xff]
        %v490 = vld [vmem:[%s363 + $0x38] sm:$0xff]
        %v491 = vld [vmem:[%s363 + $0x40] sm:$0xff]
        %v492 = vld [vmem:[%s363 + $0x48] sm:$0xff]
        %v493 = vld [vmem:[%s363 + $0x50] sm:$0xff]
        %v494 = vld [vmem:[%s363 + $0x58] sm:$0xff]
        %v495 = vld [vmem:[%s363 + $0x60] sm:$0xff]
        %v496 = vld [vmem:[%s363 + $0x68] sm:$0xff]
        %v497 = vld [vmem:[%s363 + $0x70] sm:$0xff]
        %v498 = vld [vmem:[%s363 + $0x78] sm:$0xff]
        %v499 = vld [vmem:[%s421] sm:$0xff]
        %v500 = vld [vmem:[%s421 + $0x8] sm:$0xff]
        %v501 = vld [vmem:[%s421 + $0x10] sm:$0xff]
        %v502 = vld [vmem:[%s421 + $0x18] sm:$0xff]
        %v503 = vld [vmem:[%s421 + $0x20] sm:$0xff]
        %v504 = vld [vmem:[%s421 + $0x28] sm:$0xff]
        %v505 = vld [vmem:[%s421 + $0x30] sm:$0xff]
        %v506 = vld [vmem:[%s421 + $0x38] sm:$0xff]
        %v507 = vld [vmem:[%s421 + $0x40] sm:$0xff]
        %v508 = vld [vmem:[%s421 + $0x48] sm:$0xff]
        %v509 = vld [vmem:[%s421 + $0x50] sm:$0xff]
        %v510 = vld [vmem:[%s421 + $0x58] sm:$0xff]
        %v511 = vld [vmem:[%s421 + $0x60] sm:$0xff]
        %v512 = vld [vmem:[%s421 + $0x68] sm:$0xff]
        %v513 = vld [vmem:[%s421 + $0x70] sm:$0xff]
        %v514 = vld [vmem:[%s421 + $0x78] sm:$0xff]
        %515 = vmatprep.subr.mxu0 0.0
        %516 = vmatpush1.msra.mxu0 %v499
        %517 = vmatprep.subr.mxu0 0.0
        %518 = vmatpush1.msra.mxu0 %v500
        %519 = vmatprep.subr.mxu0 0.0
        %520 = vmatpush1.msra.mxu0 %v501
        %521 = vmatprep.subr.mxu0 0.0
        %522 = vmatpush1.msra.mxu0 %v502
        %523 = vmatprep.subr.mxu0 0.0
        %524 = vmatpush1.msra.mxu0 %v503
        %525 = vmatprep.subr.mxu0 0.0
        %526 = vmatpush1.msra.mxu0 %v504
        %527 = vmatprep.subr.mxu0 0.0
        %528 = vmatpush1.msra.mxu0 %v505
        %529 = vmatprep.subr.mxu0 0.0
        %530 = vmatpush1.msra.mxu0 %v506
        %531 = vmatprep.subr.mxu0 0.0
        %532 = vmatpush1.msra.mxu0 %v507
        %533 = vmatprep.subr.mxu0 0.0
        %534 = vmatpush1.msra.mxu0 %v508
        %535 = vmatprep.subr.mxu0 0.0
        %536 = vmatpush1.msra.mxu0 %v509
        %537 = vmatprep.subr.mxu0 0.0
        %538 = vmatpush1.msra.mxu0 %v510
        %539 = vmatprep.subr.mxu0 0.0
        %540 = vmatpush1.msra.mxu0 %v511
        %541 = vmatprep.subr.mxu0 0.0
        %542 = vmatpush1.msra.mxu0 %v512
        %543 = vmatprep.subr.mxu0 0.0
        %544 = vmatpush1.msra.mxu0 %v513
        %545 = vmatprep.subr.mxu0 0.0
        %546 = vmatpush1.msra.mxu0 %v514
        %547 = vmatprep.subr.mxu0 0.0
        %548 = vmatpush1.msra.mxu0 0.0
        %549 = vmatprep.subr.mxu0 0.0
        %550 = vmatpush1.msra.mxu0 0.0
        %551 = vmatprep.subr.mxu0 0.0
        %552 = vmatpush1.msra.mxu0 0.0
        %553 = vmatprep.subr.mxu0 0.0
        %554 = vmatpush1.msra.mxu0 0.0
        %555 = vmatprep.subr.mxu0 0.0
        %556 = vmatpush1.msra.mxu0 0.0
        %557 = vmatprep.subr.mxu0 0.0
        %558 = vmatpush1.msra.mxu0 0.0
        %559 = vmatprep.subr.mxu0 0.0
        %560 = vmatpush1.msra.mxu0 0.0
        %561 = vmatprep.subr.mxu0 0.0
        %562 = vmatpush1.msra.mxu0 0.0
        %563 = vmatprep.subr.mxu0 0.0
        %564 = vmatpush1.msra.mxu0 0.0
        %565 = vmatprep.subr.mxu0 0.0
        %566 = vmatpush1.msra.mxu0 0.0
        %567 = vmatprep.subr.mxu0 0.0
        %568 = vmatpush1.msra.mxu0 0.0
        %569 = vmatprep.subr.mxu0 0.0
        %570 = vmatpush1.msra.mxu0 0.0
        %571 = vmatprep.subr.mxu0 0.0
        %572 = vmatpush1.msra.mxu0 0.0
        %573 = vmatprep.subr.mxu0 0.0
        %574 = vmatpush1.msra.mxu0 0.0
        %575 = vmatprep.subr.mxu0 0.0
        %576 = vmatpush1.msra.mxu0 0.0
        %577 = vmatprep.subr.mxu0 0.0
        %578 = vmatpush1.msra.mxu0 0.0
        %579 = vmatprep.mubr.f32.mxu0 0.0
        %580 = vmatmul.mubr.f32.gmra.mrb[0].mxu0 %v483
        %v581 = vpop.f32.mrb[0].mxu0
        %v582 = vadd.f32 0.0, %v581
        %v583 = vpop.f32.mrb[0].mxu0
        %584 = vmatprep.mubr.f32.mxu0 0.0
        %585 = vmatmul.mubr.f32.gmra.mrb[0].mxu0 %v484
        %v586 = vpop.f32.mrb[0].mxu0
        %v587 = vadd.f32 0.0, %v586
        %v588 = vpop.f32.mrb[0].mxu0
        %589 = vmatprep.mubr.f32.mxu0 0.0
        %590 = vmatmul.mubr.f32.gmra.mrb[0].mxu0 %v485
        %v591 = vpop.f32.mrb[0].mxu0
        %v592 = vadd.f32 0.0, %v591
        %v593 = vpop.f32.mrb[0].mxu0
        %594 = vmatprep.mubr.f32.mxu0 0.0
        %595 = vmatmul.mubr.f32.gmra.mrb[0].mxu0 %v486
        %v596 = vpop.f32.mrb[0].mxu0
        %v597 = vadd.f32 0.0, %v596
        %v598 = vpop.f32.mrb[0].mxu0
        %599 = vmatprep.mubr.f32.mxu0 0.0
        %600 = vmatmul.mubr.f32.gmra.mrb[0].mxu0 %v487
        %v601 = vpop.f32.mrb[0].mxu0
        %v602 = vadd.f32 0.0, %v601
        %v603 = vpop.f32.mrb[0].mxu0
        %604 = vmatprep.mubr.f32.mxu0 0.0
        %605 = vmatmul.mubr.f32.gmra.mrb[0].mxu0 %v488
        %v606 = vpop.f32.mrb[0].mxu0
        %v607 = vadd.f32 0.0, %v606
        %v608 = vpop.f32.mrb[0].mxu0
        %609 = vmatprep.mubr.f32.mxu0 0.0
        %610 = vmatmul.mubr.f32.gmra.mrb[0].mxu0 %v489
        %v611 = vpop.f32.mrb[0].mxu0
        %v612 = vadd.f32 0.0, %v611
        %v613 = vpop.f32.mrb[0].mxu0
        %614 = vmatprep.mubr.f32.mxu0 0.0
        %615 = vmatmul.mubr.f32.gmra.mrb[0].mxu0 %v490
        %v616 = vpop.f32.mrb[0].mxu0
        %v617 = vadd.f32 0.0, %v616
        %v618 = vpop.f32.mrb[0].mxu0
        %619 = vmatprep.mubr.f32.mxu0 0.0
        %620 = vmatmul.mubr.f32.gmra.mrb[0].mxu0 %v491
        %v621 = vpop.f32.mrb[0].mxu0
        %v622 = vadd.f32 0.0, %v621
        %v623 = vpop.f32.mrb[0].mxu0
        %624 = vmatprep.mubr.f32.mxu0 0.0
        %625 = vmatmul.mubr.f32.gmra.mrb[0].mxu0 %v492
        %v626 = vpop.f32.mrb[0].mxu0
        %v627 = vadd.f32 0.0, %v626
        %v628 = vpop.f32.mrb[0].mxu0
        %629 = vmatprep.mubr.f32.mxu0 0.0
        %630 = vmatmul.mubr.f32.gmra.mrb[0].mxu0 %v493
        %v631 = vpop.f32.mrb[0].mxu0
        %v632 = vadd.f32 0.0, %v631
        %v633 = vpop.f32.mrb[0].mxu0
        %634 = vmatprep.mubr.f32.mxu0 0.0
        %635 = vmatmul.mubr.f32.gmra.mrb[0].mxu0 %v494
        %v636 = vpop.f32.mrb[0].mxu0
        %v637 = vadd.f32 0.0, %v636
        %v638 = vpop.f32.mrb[0].mxu0
        %639 = vmatprep.mubr.f32.mxu0 0.0
        %640 = vmatmul.mubr.f32.gmra.mrb[0].mxu0 %v495
        %v641 = vpop.f32.mrb[0].mxu0
        %v642 = vadd.f32 0.0, %v641
        %v643 = vpop.f32.mrb[0].mxu0
        %644 = vmatprep.mubr.f32.mxu0 0.0
        %645 = vmatmul.mubr.f32.gmra.mrb[0].mxu0 %v496
        %v646 = vpop.f32.mrb[0].mxu0
        %v647 = vadd.f32 0.0, %v646
        %v648 = vpop.f32.mrb[0].mxu0
        %649 = vmatprep.mubr.f32.mxu0 0.0
        %650 = vmatmul.mubr.f32.gmra.mrb[0].mxu0 %v497
        %v651 = vpop.f32.mrb[0].mxu0
        %v652 = vadd.f32 0.0, %v651
        %v653 = vpop.f32.mrb[0].mxu0
        %654 = vmatprep.mubr.f32.mxu0 0.0
        %655 = vmatmul.mubr.f32.gmra.mrb[0].mxu0 %v498
        %v656 = vpop.f32.mrb[0].mxu0
        %v657 = vadd.f32 0.0, %v656
        %v658 = vpop.f32.mrb[0].mxu0
        %659 = vdwg.mxu0
        %v660 = vadd.f32 %v467, %v582
        %v661 = vadd.f32 %v468, %v587
        %v662 = vadd.f32 %v469, %v592
        %v663 = vadd.f32 %v470, %v597
        %v664 = vadd.f32 %v471, %v602
        %v665 = vadd.f32 %v472, %v607
        %v666 = vadd.f32 %v473, %v612
        %v667 = vadd.f32 %v474, %v617
        %v668 = vadd.f32 %v475, %v622
        %v669 = vadd.f32 %v476, %v627
        %v670 = vadd.f32 %v477, %v632
        %v671 = vadd.f32 %v478, %v637
        %v672 = vadd.f32 %v479, %v642
        %v673 = vadd.f32 %v480, %v647
        %v674 = vadd.f32 %v481, %v652
        %v675 = vadd.f32 %v482, %v657
        %676 = vst [vmem:[#allocation2] sm:$0xff] %v660
        %677 = vst [vmem:[#allocation2 + $0x8] sm:$0xff] %v661
        %678 = vst [vmem:[#allocation2 + $0x10] sm:$0xff] %v662
        %679 = vst [vmem:[#allocation2 + $0x18] sm:$0xff] %v663
        %680 = vst [vmem:[#allocation2 + $0x20] sm:$0xff] %v664
        %681 = vst [vmem:[#allocation2 + $0x28] sm:$0xff] %v665
        %682 = vst [vmem:[#allocation2 + $0x30] sm:$0xff] %v666
        %683 = vst [vmem:[#allocation2 + $0x38] sm:$0xff] %v667
        %684 = vst [vmem:[#allocation2 + $0x40] sm:$0xff] %v668
        %685 = vst [vmem:[#allocation2 + $0x48] sm:$0xff] %v669
        %686 = vst [vmem:[#allocation2 + $0x50] sm:$0xff] %v670
        %687 = vst [vmem:[#allocation2 + $0x58] sm:$0xff] %v671
        %688 = vst [vmem:[#allocation2 + $0x60] sm:$0xff] %v672
        %689 = vst [vmem:[#allocation2 + $0x68] sm:$0xff] %v673
        %690 = vst [vmem:[#allocation2 + $0x70] sm:$0xff] %v674
        %691 = vst [vmem:[#allocation2 + $0x78] sm:$0xff] %v675
        %p692 = scmp.eq.s32.totalorder %s23, 4
        // Predicated region
        $region83: #{forward.30} parent=73 // pred_check
          %p693 = pneg %p692
        $region84: #{forward.30} parent=73 // pred_check_branch
          %695 = sbr.rel (%p693) target = $region86
        $region85: #{forward.30} parent=73 // pred_region
          %v696 = vld [vmem:[#allocation2] sm:$0xff]
          %v697 = vld [vmem:[#allocation2 + $0x8] sm:$0xff]
          %v698 = vld [vmem:[#allocation2 + $0x10] sm:$0xff]
          %v699 = vld [vmem:[#allocation2 + $0x18] sm:$0xff]
          %v700 = vld [vmem:[#allocation2 + $0x20] sm:$0xff]
          %v701 = vld [vmem:[#allocation2 + $0x28] sm:$0xff]
          %v702 = vld [vmem:[#allocation2 + $0x30] sm:$0xff]
          %v703 = vld [vmem:[#allocation2 + $0x38] sm:$0xff]
          %v704 = vld [vmem:[#allocation2 + $0x40] sm:$0xff]
          %v705 = vld [vmem:[#allocation2 + $0x48] sm:$0xff]
          %v706 = vld [vmem:[#allocation2 + $0x50] sm:$0xff]
          %v707 = vld [vmem:[#allocation2 + $0x58] sm:$0xff]
          %v708 = vld [vmem:[#allocation2 + $0x60] sm:$0xff]
          %v709 = vld [vmem:[#allocation2 + $0x68] sm:$0xff]
          %v710 = vld [vmem:[#allocation2 + $0x70] sm:$0xff]
          %v711 = vld [vmem:[#allocation2 + $0x78] sm:$0xff]
          %v712 = vld [vmem:[%s425] sm:$0x1]
          %v713 = vld [vmem:[%s428] sm:$0x1]
          %v714 = vld [vmem:[%s436] sm:$0xff]
          %v715 = vld [vmem:[%s436 + $0x8] sm:$0xff]
          %v716 = vld [vmem:[%s436 + $0x10] sm:$0xff]
          %v717 = vld [vmem:[%s436 + $0x18] sm:$0xff]
          %v718 = vld [vmem:[%s436 + $0x20] sm:$0xff]
          %v719 = vld [vmem:[%s436 + $0x28] sm:$0xff]
          %v720 = vld [vmem:[%s436 + $0x30] sm:$0xff]
          %v721 = vld [vmem:[%s436 + $0x38] sm:$0xff]
          %v722 = vld [vmem:[%s436 + $0x40] sm:$0xff]
          %v723 = vld [vmem:[%s436 + $0x48] sm:$0xff]
          %v724 = vld [vmem:[%s436 + $0x50] sm:$0xff]
          %v725 = vld [vmem:[%s436 + $0x58] sm:$0xff]
          %v726 = vld [vmem:[%s436 + $0x60] sm:$0xff]
          %v727 = vld [vmem:[%s436 + $0x68] sm:$0xff]
          %v728 = vld [vmem:[%s436 + $0x70] sm:$0xff]
          %v729 = vld [vmem:[%s436 + $0x78] sm:$0xff]
          %v731 = vlaneseq
          %v732 = vshrl.u32 %v731, 7
          %v733 = vsub.s32 0, %v732
          %v734 = vrot.slane %v712, %v733
          %v736 = vmul.f32 %v696, %v734
          %v737 = vmul.f32 %v697, %v734
          %v738 = vmul.f32 %v698, %v734
          %v739 = vmul.f32 %v699, %v734
          %v740 = vmul.f32 %v700, %v734
          %v741 = vmul.f32 %v701, %v734
          %v742 = vmul.f32 %v702, %v734
          %v743 = vmul.f32 %v703, %v734
          %v744 = vmul.f32 %v704, %v734
          %v745 = vmul.f32 %v705, %v734
          %v746 = vmul.f32 %v706, %v734
          %v747 = vmul.f32 %v707, %v734
          %v748 = vmul.f32 %v708, %v734
          %v749 = vmul.f32 %v709, %v734
          %v750 = vmul.f32 %v710, %v734
          %v751 = vmul.f32 %v711, %v734
          %v753 = vlaneseq
          %v754 = vshrl.u32 %v753, 7
          %v755 = vsub.s32 0, %v754
          %v756 = vrot.slane %v713, %v755
          %v758 = vadd.f32 %v736, %v756
          %v759 = vadd.f32 %v737, %v756
          %v760 = vadd.f32 %v738, %v756
          %v761 = vadd.f32 %v739, %v756
          %v762 = vadd.f32 %v740, %v756
          %v763 = vadd.f32 %v741, %v756
          %v764 = vadd.f32 %v742, %v756
          %v765 = vadd.f32 %v743, %v756
          %v766 = vadd.f32 %v744, %v756
          %v767 = vadd.f32 %v745, %v756
          %v768 = vadd.f32 %v746, %v756
          %v769 = vadd.f32 %v747, %v756
          %v770 = vadd.f32 %v748, %v756
          %v771 = vadd.f32 %v749, %v756
          %v772 = vadd.f32 %v750, %v756
          %v773 = vadd.f32 %v751, %v756
          %v774 = vadd.f32 %v758, %v714
          %v775 = vadd.f32 %v759, %v715
          %v776 = vadd.f32 %v760, %v716
          %v777 = vadd.f32 %v761, %v717
          %v778 = vadd.f32 %v762, %v718
          %v779 = vadd.f32 %v763, %v719
          %v780 = vadd.f32 %v764, %v720
          %v781 = vadd.f32 %v765, %v721
          %v782 = vadd.f32 %v766, %v722
          %v783 = vadd.f32 %v767, %v723
          %v784 = vadd.f32 %v768, %v724
          %v785 = vadd.f32 %v769, %v725
          %v786 = vadd.f32 %v770, %v726
          %v787 = vadd.f32 %v771, %v727
          %v788 = vadd.f32 %v772, %v728
          %v789 = vadd.f32 %v773, %v729
          %790 = vst [vmem:[%s445] sm:$0xff] %v774
          %791 = vst [vmem:[%s445 + $0x8] sm:$0xff] %v775
          %792 = vst [vmem:[%s445 + $0x10] sm:$0xff] %v776
          %793 = vst [vmem:[%s445 + $0x18] sm:$0xff] %v777
          %794 = vst [vmem:[%s445 + $0x20] sm:$0xff] %v778
          %795 = vst [vmem:[%s445 + $0x28] sm:$0xff] %v779
          %796 = vst [vmem:[%s445 + $0x30] sm:$0xff] %v780
          %797 = vst [vmem:[%s445 + $0x38] sm:$0xff] %v781
          %798 = vst [vmem:[%s445 + $0x40] sm:$0xff] %v782
          %799 = vst [vmem:[%s445 + $0x48] sm:$0xff] %v783
          %800 = vst [vmem:[%s445 + $0x50] sm:$0xff] %v784
          %801 = vst [vmem:[%s445 + $0x58] sm:$0xff] %v785
          %802 = vst [vmem:[%s445 + $0x60] sm:$0xff] %v786
          %803 = vst [vmem:[%s445 + $0x68] sm:$0xff] %v787
          %804 = vst [vmem:[%s445 + $0x70] sm:$0xff] %v788
          %805 = vst [vmem:[%s445 + $0x78] sm:$0xff] %v789
        $region86: #{forward.30} parent=73 // pred_fallthru
          _
        %s806 = smul.u32 16, %s21
        %p807 = scmp.lt.s32.totalorder %s806, 15
        %s808 = scalar_select %p807, %s806, 15
        %p809 = scmp.lt.s32.totalorder %s22, 0
        %s810 = scalar_select %p809, %s22, 0
        %s811 = sadd.s32 %s810, %s808
        %s812 = smul.addr %s811, 8
        %s813 = scalar_lea.vmem %s5, %s812
        // Predicated region
        $region87: #{forward.30} parent=73 // pred_check
          %p814 = pneg %p191
        $region88: #{forward.30} parent=73 // pred_check_branch
          %816 = sbr.rel (%p814) target = $region90
        $region89: #{forward.30} parent=73 // pred_region
          %s817 = smul.u32 16, %s21
        $region90: #{forward.30} parent=73 // pred_fallthru
          _
        // Predicated region
        $region91: #{forward.30} parent=73 // pred_check
          %p818 = pneg %p191
        $region92: #{forward.30} parent=73 // pred_check_branch
          %820 = sbr.rel (%p818) target = $region94
        $region93: #{forward.30} parent=73 // pred_region
          %s821 = smul.u32 16, %s21
          %p822 = scmp.lt.s32.totalorder %s821, 15
          %s823 = scalar_select %p822, %s821, 15
          %p824 = scmp.lt.s32.totalorder %s22, 0
          %s825 = scalar_select %p824, %s22, 0
          %s826 = sadd.s32 %s825, %s823
          %s827 = smul.addr %s826, 8
          %s828 = scalar_lea.vmem %s5, %s827
        $region94: #{forward.30} parent=73 // pred_fallthru
          _
      $region74: #{forward.30} parent=5 // pred_fallthru
        _
      %p829 = scmp.le.s32.totalorder 2, %s11
      // Predicated region
      $region95: #{forward.30} parent=5 // pred_check
        %p830 = pneg %p829
      $region96: #{forward.30} parent=5 // pred_check_branch
        %832 = sbr.rel (%p830) target = $region98
      $region97: #{forward.30} parent=5 // pred_region
        %s833 = ssub.s32 %s11, 2
      $region98: #{forward.30} parent=5 // pred_fallthru
        _
    $region6: #{forward.30} parent=1 // loop_footer
      %s15 = sadd.s32 1, %s11
    $region7: #{forward.30} parent=1 // loop_footer_branch
      %10 = sbr.rel target = $region3
    $region8: #{forward.30} parent=1 // loop_exit
      _

</llo_original>
